<compile_context>
chip_gen: v7x
topology: tpu7x:2x2x1
jax: 0.10.0
libtpu: 0.0.40
codegen_flags: <defaults>
</compile_context>

<pallas_src>
import functools

import numpy as np

import jax
import jax.numpy as jnp
from jax.experimental import pallas as pl
from jax.experimental.pallas import tpu as pltpu

_K = 3              # conv kernel size
_C1, _C2 = 6, 16    # conv channel counts
_FC1, _FC2, _FC3 = 120, 84, 10


def _round_up(v, m):
    return -(-v // m) * m


# ---------------------------------------------------------------------------
# Fused forward-pass kernel
# ---------------------------------------------------------------------------
def _lenet_kernel(x_ref, w1_ref, b1_ref, w2_ref, b2_ref, pmap_ref,
                  fc1w_ref, fc1b_ref, fc2w_ref, fc2b_ref, fc3w_ref, fc3b_ref,
                  out_ref, p2_ref, x1_ref, *, n, h, w):
    f32 = jnp.float32
    k = _K
    L = h * w                      # per-image stride in the flattened layout
    LX = n * L                     # conv1 output width (full layout)
    M1W = LX - (w + 1)             # width after pool-1 shifted max
    OFF2MAX = 2 * w * (k - 1) + 2 * (k - 1)
    L2 = M1W - OFF2MAX             # conv2 output width (full layout)
    M2W = L2 - (2 * w + 2)         # width after pool-2 shifted max
    H3 = ((h - (k - 1)) // 2 - (k - 1)) // 2   # spatial after 2nd pool (=5)
    S3 = H3 * H3

    x = x_ref[...]                                           # (1, XW), zero padded

    # ---- conv1 + bias + ReLU (Cin = 1 -> broadcast MAC per kernel offset) ----
    acc1 = jnp.zeros((_C1, LX), f32)
    for i in range(k):
        for j in range(k):
            off = i * w + j
            acc1 = acc1 + w1_ref[:, i * k + j:i * k + j + 1] * x[:, off:off + LX]
    r1 = jnp.maximum(acc1 + b1_ref[...], 0.0)                # (6, LX)

    # ---- 2x2 max-pool, step 1: max over the 4 window offsets --------------
    # pooled value for (n, ho, wo) now lives at column n*L + 2*w*ho + 2*wo;
    # the stride-2 "holes" are never read by valid conv2 outputs.
    m1 = jnp.maximum(jnp.maximum(r1[:, 0:M1W], r1[:, 1:1 + M1W]),
                     jnp.maximum(r1[:, w:w + M1W], r1[:, w + 1:w + 1 + M1W]))

    # ---- conv2 + bias + ReLU: 9 shifted (C2, C1) @ (C1, L2) MXU matmuls ----
    acc2 = jnp.zeros((_C2, L2), f32)
    for i in range(k):
        for j in range(k):
            off = 2 * w * i + 2 * j
            acc2 = acc2 + jnp.dot(w2_ref[i * k + j], m1[:, off:off + L2],
                                  preferred_element_type=f32)
    r2 = jnp.maximum(acc2 + b2_ref[...], 0.0)                # (16, L2)

    # ---- second 2x2 max-pool, step 1 (window offsets doubled in this layout)
    m2 = jnp.maximum(jnp.maximum(r2[:, 0:M2W], r2[:, 2:2 + M2W]),
                     jnp.maximum(r2[:, 2 * w:2 * w + M2W],
                                 r2[:, 2 * w + 2:2 * w + 2 + M2W]))

    # ---- pool step 2: gather the N*5*5 valid positions into dense columns --
    # column q = n*25 + ho*5 + wo, via a 0/1 selection matmul built from iota.
    qw = pmap_ref.shape[-1]
    eq = jax.lax.broadcasted_iota(jnp.int32, (M2W, qw), 0) == pmap_ref[...]
    sel = jnp.where(eq, 1.0, 0.0)                            # (M2W, qw) f32
    p2_ref[...] = jnp.dot(m2, sel, preferred_element_type=f32)   # (16, qw)

    # ---- flatten to PyTorch order: X1[n, c*25 + s] = P2[c, n*25 + s] --------
    for c in range(_C2):
        for b in range(n):
            x1_ref[b:b + 1, c * S3:(c + 1) * S3] = \
                p2_ref[c:c + 1, b * S3:(b + 1) * S3]

    # ---- fully-connected head (batch-major, weights already (K, O)) --------
    y = jnp.dot(x1_ref[...], fc1w_ref[...], preferred_element_type=f32)
    y = jnp.maximum(y + fc1b_ref[...], 0.0)
    y = jnp.dot(y, fc2w_ref[...], preferred_element_type=f32)
    y = jnp.maximum(y + fc2b_ref[...], 0.0)
    out_ref[...] = jnp.dot(y, fc3w_ref[...], preferred_element_type=f32) + fc3b_ref[...]


# ---------------------------------------------------------------------------
# Wrapper
# ---------------------------------------------------------------------------
def prepare_params(params):
    """One-time re-layout of the PyTorch-style parameters (no per-call transposes)."""
    return {
        # conv1: (6,1,3,3) -> (6, 9): [cout, i*3+j]
        "w1": params["conv1_w"].reshape(_C1, _K * _K),
        "b1": params["conv1_b"].reshape(_C1, 1),
        # conv2: (16,6,3,3) -> (9, 16, 6): [i*3+j, cout, cin]
        "w2": jnp.transpose(params["conv2_w"], (2, 3, 0, 1)).reshape(_K * _K, _C2, _C1),
        "b2": params["conv2_b"].reshape(_C2, 1),
        # fc weights pre-transposed to (K, O)
        "fc1_wt": params["fc1_w"].T, "fc1_b": params["fc1_b"].reshape(1, -1),
        "fc2_wt": params["fc2_w"].T, "fc2_b": params["fc2_b"].reshape(1, -1),
        "fc3_wt": params["fc3_w"].T, "fc3_b": params["fc3_b"].reshape(1, -1),
    }


def lenet_forward(prepped, x):
    # x: (N, 1, 28, 28) float32 NCHW, same as the PyTorch module.
    N, Cin, H, W = x.shape
    assert Cin == 1
    L = H * W
    LX = N * L
    H1 = H - (_K - 1)                  # 26
    P1 = H1 // 2                       # 13
    H2 = P1 - (_K - 1)                 # 11
    H3 = H2 // 2                       # 5
    assert _C2 * H3 * H3 == prepped["fc1_wt"].shape[0]

    XW = _round_up(LX + (_K - 1) * W + (_K - 1), 128)
    M1W = LX - (W + 1)
    L2 = M1W - (2 * W * (_K - 1) + 2 * (_K - 1))
    M2W = L2 - (2 * W + 2)
    # conv2 "full layout" width must cover the last valid output column.
    assert L2 >= (N - 1) * L + 2 * W * (H2 - 1) + 2 * (H2 - 1) + 1

    # Selection map for the final pool-2 gather: column q = n*25 + h3*5 + w3
    # picks flattened position n*L + 4*W*h3 + 4*w3 (rest are -1 -> zero columns).
    QW = _round_up(N * H3 * H3, 64)
    pmap = np.full((1, QW), -1, np.int32)
    for b in range(N):
        for h3 in range(H3):
            for w3 in range(H3):
                pmap[0, b * H3 * H3 + h3 * H3 + w3] = b * L + 4 * W * h3 + 4 * w3
    assert int(pmap.max()) < M2W

    x_flat = jnp.pad(x.reshape(1, LX), ((0, 0), (0, XW - LX)))

    vmem = pl.BlockSpec(memory_space=pltpu.MemorySpace.VMEM)
    out = pl.pallas_call(
        functools.partial(_lenet_kernel, n=N, h=H, w=W),
        out_shape=jax.ShapeDtypeStruct((N, _FC3), jnp.float32),
        in_specs=[vmem] * 12,
        out_specs=vmem,
        scratch_shapes=[
            pltpu.VMEM((_C2, QW), jnp.float32),            # pooled-2 features
            pltpu.VMEM((N, _C2 * H3 * H3), jnp.float32),   # flattened fc1 input
        ],
    )(x_flat,
      prepped["w1"], prepped["b1"], prepped["w2"], prepped["b2"],
      jnp.asarray(pmap),
      prepped["fc1_wt"], prepped["fc1_b"],
      prepped["fc2_wt"], prepped["fc2_b"],
      prepped["fc3_wt"], prepped["fc3_b"])
    return out


# ---------------------------------------------------------------------------
# Pure-JAX reference (for a loose numerical sanity check)
# ---------------------------------------------------------------------------
def _lenet_reference(params, x):
    hi = jax.lax.Precision.HIGHEST

    def conv_relu(x, w, b):
        y = jax.lax.conv_general_dilated(
            x, w, (1, 1), "VALID",
            dimension_numbers=("NCHW", "OIHW", "NCHW"), precision=hi)
        return jax.nn.relu(y + b.reshape(1, -1, 1, 1))

    def pool(x):
        N, C, H, W = x.shape
        Ho, Wo = H // 2, W // 2
        x = x[:, :, :2 * Ho, :2 * Wo].reshape(N, C, Ho, 2, Wo, 2)
        return x.max(axis=(3, 5))

    x = pool(conv_relu(x, params["conv1_w"], params["conv1_b"]))
    x = pool(conv_relu(x, params["conv2_w"], params["conv2_b"]))
    x = x.reshape(x.shape[0], -1)
    x = jax.nn.relu(jnp.dot(x, params["fc1_w"].T, precision=hi) + params["fc1_b"])
    x = jax.nn.relu(jnp.dot(x, params["fc2_w"].T, precision=hi) + params["fc2_b"])
    return jnp.dot(x, params["fc3_w"].T, precision=hi) + params["fc3_b"]


# ---------------------------------------------------------------------------
# Deterministic parameter init (same shapes / fan-in scaling as nn.Conv2d/Linear)
# ---------------------------------------------------------------------------
def init_params(key):
    ks = jax.random.split(key, 10)

    def u(k, shape, fan_in):
        bound = 1.0 / jnp.sqrt(jnp.float32(fan_in))
        return jax.random.uniform(k, shape, jnp.float32, -bound, bound)

    return {
        "conv1_w": u(ks[0], (6, 1, 3, 3), 1 * 3 * 3),
        "conv1_b": u(ks[1], (6,), 1 * 3 * 3),
        "conv2_w": u(ks[2], (16, 6, 3, 3), 6 * 3 * 3),
        "conv2_b": u(ks[3], (16,), 6 * 3 * 3),
        "fc1_w": u(ks[4], (120, 400), 400),
        "fc1_b": u(ks[5], (120,), 400),
        "fc2_w": u(ks[6], (84, 120), 120),
        "fc2_b": u(ks[7], (84,), 120),
        "fc3_w": u(ks[8], (10, 84), 84),
        "fc3_b": u(ks[9], (10,), 84),
    }


if __name__ == "__main__":
    key = jax.random.PRNGKey(0)
    pkey, xkey = jax.random.split(key)
    params = init_params(pkey)
    prepped = prepare_params(params)        # one-time weight re-layout (not per call)

    # 28x28 single-channel input is implied by fc1 expecting 16*5*5 = 400 features.
    x = jax.random.normal(xkey, (2, 1, 28, 28), jnp.float32)

    out = jax.jit(lenet_forward)(prepped, x)
    out = jax.block_until_ready(out)
    assert out.shape == (2, 10) and out.dtype == jnp.float32

    ref = _lenet_reference(params, x)
    assert jnp.allclose(out, ref, rtol=1e-2, atol=1e-2), (out, ref)

    print("KERNEL_OK")
</pallas_src>

<mosaic_0001>
module attributes {stable_mosaic.version = 11 : i64} {
  func.func @_lenet_kernel(%arg0: memref<1x1664xf32, #tpu.memory_space<vmem>>, %arg1: memref<6x9xf32, #tpu.memory_space<vmem>>, %arg2: memref<6x1xf32, #tpu.memory_space<vmem>>, %arg3: memref<9x16x6xf32, #tpu.memory_space<vmem>>, %arg4: memref<16x1xf32, #tpu.memory_space<vmem>>, %arg5: memref<1x64xi32, #tpu.memory_space<vmem>>, %arg6: memref<400x120xf32, #tpu.memory_space<vmem>>, %arg7: memref<1x120xf32, #tpu.memory_space<vmem>>, %arg8: memref<120x84xf32, #tpu.memory_space<vmem>>, %arg9: memref<1x84xf32, #tpu.memory_space<vmem>>, %arg10: memref<84x10xf32, #tpu.memory_space<vmem>>, %arg11: memref<1x10xf32, #tpu.memory_space<vmem>>, %arg12: memref<2x10xf32, #tpu.memory_space<vmem>>, %arg13: memref<16x64xf32, #tpu.memory_space<vmem>>, %arg14: memref<2x400xf32, #tpu.memory_space<vmem>>) attributes {dimension_semantics = [], scalar_prefetch = 0 : i64, scratch_operands = 2 : i64, tpu.core_type = #tpu.core_type<tc>} {
    %c0 = arith.constant 0 : index
    %c0_0 = arith.constant 0 : index
    %0 = vector.load %arg0[%c0, %c0_0] : memref<1x1664xf32, #tpu.memory_space<vmem>>, vector<1x1664xf32>
    %cst = arith.constant 0.000000e+00 : f32
    %1 = vector.broadcast %cst : f32 to vector<6x1568xf32>
    %c0_1 = arith.constant 0 : index
    %c0_2 = arith.constant 0 : index
    %2 = vector.load %arg1[%c0_1, %c0_2] : memref<6x9xf32, #tpu.memory_space<vmem>>, vector<6x1xf32>
    %3 = vector.extract_strided_slice %0 {offsets = [0, 0], sizes = [1, 1568], strides = [1, 1]} : vector<1x1664xf32> to vector<1x1568xf32>
    %4 = vector.broadcast %2 : vector<6x1xf32> to vector<6x1568xf32>
    %5 = vector.broadcast %3 : vector<1x1568xf32> to vector<6x1568xf32>
    %6 = arith.mulf %4, %5 : vector<6x1568xf32>
    %7 = arith.addf %1, %6 : vector<6x1568xf32>
    %c0_3 = arith.constant 0 : index
    %c1 = arith.constant 1 : index
    %8 = vector.load %arg1[%c0_3, %c1] : memref<6x9xf32, #tpu.memory_space<vmem>>, vector<6x1xf32>
    %9 = vector.extract_strided_slice %0 {offsets = [0, 1], sizes = [1, 1568], strides = [1, 1]} : vector<1x1664xf32> to vector<1x1568xf32>
    %10 = vector.broadcast %8 : vector<6x1xf32> to vector<6x1568xf32>
    %11 = vector.broadcast %9 : vector<1x1568xf32> to vector<6x1568xf32>
    %12 = arith.mulf %10, %11 : vector<6x1568xf32>
    %13 = arith.addf %7, %12 : vector<6x1568xf32>
    %c0_4 = arith.constant 0 : index
    %c2 = arith.constant 2 : index
    %14 = vector.load %arg1[%c0_4, %c2] : memref<6x9xf32, #tpu.memory_space<vmem>>, vector<6x1xf32>
    %15 = vector.extract_strided_slice %0 {offsets = [0, 2], sizes = [1, 1568], strides = [1, 1]} : vector<1x1664xf32> to vector<1x1568xf32>
    %16 = vector.broadcast %14 : vector<6x1xf32> to vector<6x1568xf32>
    %17 = vector.broadcast %15 : vector<1x1568xf32> to vector<6x1568xf32>
    %18 = arith.mulf %16, %17 : vector<6x1568xf32>
    %19 = arith.addf %13, %18 : vector<6x1568xf32>
    %c0_5 = arith.constant 0 : index
    %c3 = arith.constant 3 : index
    %20 = vector.load %arg1[%c0_5, %c3] : memref<6x9xf32, #tpu.memory_space<vmem>>, vector<6x1xf32>
    %21 = vector.extract_strided_slice %0 {offsets = [0, 28], sizes = [1, 1568], strides = [1, 1]} : vector<1x1664xf32> to vector<1x1568xf32>
    %22 = vector.broadcast %20 : vector<6x1xf32> to vector<6x1568xf32>
    %23 = vector.broadcast %21 : vector<1x1568xf32> to vector<6x1568xf32>
    %24 = arith.mulf %22, %23 : vector<6x1568xf32>
    %25 = arith.addf %19, %24 : vector<6x1568xf32>
    %c0_6 = arith.constant 0 : index
    %c4 = arith.constant 4 : index
    %26 = vector.load %arg1[%c0_6, %c4] : memref<6x9xf32, #tpu.memory_space<vmem>>, vector<6x1xf32>
    %27 = vector.extract_strided_slice %0 {offsets = [0, 29], sizes = [1, 1568], strides = [1, 1]} : vector<1x1664xf32> to vector<1x1568xf32>
    %28 = vector.broadcast %26 : vector<6x1xf32> to vector<6x1568xf32>
    %29 = vector.broadcast %27 : vector<1x1568xf32> to vector<6x1568xf32>
    %30 = arith.mulf %28, %29 : vector<6x1568xf32>
    %31 = arith.addf %25, %30 : vector<6x1568xf32>
    %c0_7 = arith.constant 0 : index
    %c5 = arith.constant 5 : index
    %32 = vector.load %arg1[%c0_7, %c5] : memref<6x9xf32, #tpu.memory_space<vmem>>, vector<6x1xf32>
    %33 = vector.extract_strided_slice %0 {offsets = [0, 30], sizes = [1, 1568], strides = [1, 1]} : vector<1x1664xf32> to vector<1x1568xf32>
    %34 = vector.broadcast %32 : vector<6x1xf32> to vector<6x1568xf32>
    %35 = vector.broadcast %33 : vector<1x1568xf32> to vector<6x1568xf32>
    %36 = arith.mulf %34, %35 : vector<6x1568xf32>
    %37 = arith.addf %31, %36 : vector<6x1568xf32>
    %c0_8 = arith.constant 0 : index
    %c6 = arith.constant 6 : index
    %38 = vector.load %arg1[%c0_8, %c6] : memref<6x9xf32, #tpu.memory_space<vmem>>, vector<6x1xf32>
    %39 = vector.extract_strided_slice %0 {offsets = [0, 56], sizes = [1, 1568], strides = [1, 1]} : vector<1x1664xf32> to vector<1x1568xf32>
    %40 = vector.broadcast %38 : vector<6x1xf32> to vector<6x1568xf32>
    %41 = vector.broadcast %39 : vector<1x1568xf32> to vector<6x1568xf32>
    %42 = arith.mulf %40, %41 : vector<6x1568xf32>
    %43 = arith.addf %37, %42 : vector<6x1568xf32>
    %c0_9 = arith.constant 0 : index
    %c7 = arith.constant 7 : index
    %44 = vector.load %arg1[%c0_9, %c7] : memref<6x9xf32, #tpu.memory_space<vmem>>, vector<6x1xf32>
    %45 = vector.extract_strided_slice %0 {offsets = [0, 57], sizes = [1, 1568], strides = [1, 1]} : vector<1x1664xf32> to vector<1x1568xf32>
    %46 = vector.broadcast %44 : vector<6x1xf32> to vector<6x1568xf32>
    %47 = vector.broadcast %45 : vector<1x1568xf32> to vector<6x1568xf32>
    %48 = arith.mulf %46, %47 : vector<6x1568xf32>
    %49 = arith.addf %43, %48 : vector<6x1568xf32>
    %c0_10 = arith.constant 0 : index
    %c8 = arith.constant 8 : index
    %50 = vector.load %arg1[%c0_10, %c8] : memref<6x9xf32, #tpu.memory_space<vmem>>, vector<6x1xf32>
    %51 = vector.extract_strided_slice %0 {offsets = [0, 58], sizes = [1, 1568], strides = [1, 1]} : vector<1x1664xf32> to vector<1x1568xf32>
    %52 = vector.broadcast %50 : vector<6x1xf32> to vector<6x1568xf32>
    %53 = vector.broadcast %51 : vector<1x1568xf32> to vector<6x1568xf32>
    %54 = arith.mulf %52, %53 : vector<6x1568xf32>
    %55 = arith.addf %49, %54 : vector<6x1568xf32>
    %c0_11 = arith.constant 0 : index
    %c0_12 = arith.constant 0 : index
    %56 = vector.load %arg2[%c0_11, %c0_12] : memref<6x1xf32, #tpu.memory_space<vmem>>, vector<6x1xf32>
    %57 = vector.broadcast %56 : vector<6x1xf32> to vector<6x1568xf32>
    %58 = arith.addf %55, %57 : vector<6x1568xf32>
    %cst_13 = arith.constant 0.000000e+00 : f32
    %59 = vector.broadcast %cst_13 : f32 to vector<6x1568xf32>
    %60 = arith.maximumf %58, %59 : vector<6x1568xf32>
    %61 = vector.extract_strided_slice %60 {offsets = [0, 0], sizes = [6, 1539], strides = [1, 1]} : vector<6x1568xf32> to vector<6x1539xf32>
    %62 = vector.extract_strided_slice %60 {offsets = [0, 1], sizes = [6, 1539], strides = [1, 1]} : vector<6x1568xf32> to vector<6x1539xf32>
    %63 = arith.maximumf %61, %62 : vector<6x1539xf32>
    %64 = vector.extract_strided_slice %60 {offsets = [0, 28], sizes = [6, 1539], strides = [1, 1]} : vector<6x1568xf32> to vector<6x1539xf32>
    %65 = vector.extract_strided_slice %60 {offsets = [0, 29], sizes = [6, 1539], strides = [1, 1]} : vector<6x1568xf32> to vector<6x1539xf32>
    %66 = arith.maximumf %64, %65 : vector<6x1539xf32>
    %67 = arith.maximumf %63, %66 : vector<6x1539xf32>
    %cst_14 = arith.constant 0.000000e+00 : f32
    %68 = vector.broadcast %cst_14 : f32 to vector<16x1423xf32>
    %c0_15 = arith.constant 0 : index
    %c0_16 = arith.constant 0 : index
    %c0_17 = arith.constant 0 : index
    %69 = vector.load %arg3[%c0_15, %c0_16, %c0_17] : memref<9x16x6xf32, #tpu.memory_space<vmem>>, vector<1x16x6xf32>
    %70 = vector.shape_cast %69 : vector<1x16x6xf32> to vector<16x6xf32>
    %71 = vector.extract_strided_slice %67 {offsets = [0, 0], sizes = [6, 1423], strides = [1, 1]} : vector<6x1539xf32> to vector<6x1423xf32>
    %cst_18 = arith.constant dense<0.000000e+00> : vector<16x1423xf32>
    %72 = tpu.matmul %70, %71, %cst_18 {dimension_numbers = #tpu.dot_dimension_numbers<[1], [0], [0], [1], [0, 0, 1, 1], [], []>} : vector<16x6xf32>, vector<6x1423xf32>, vector<16x1423xf32> -> vector<16x1423xf32>
    %73 = arith.addf %68, %72 : vector<16x1423xf32>
    %c1_19 = arith.constant 1 : index
    %c0_20 = arith.constant 0 : index
    %c0_21 = arith.constant 0 : index
    %74 = vector.load %arg3[%c1_19, %c0_20, %c0_21] : memref<9x16x6xf32, #tpu.memory_space<vmem>>, vector<1x16x6xf32>
    %75 = vector.shape_cast %74 : vector<1x16x6xf32> to vector<16x6xf32>
    %76 = vector.extract_strided_slice %67 {offsets = [0, 2], sizes = [6, 1423], strides = [1, 1]} : vector<6x1539xf32> to vector<6x1423xf32>
    %cst_22 = arith.constant dense<0.000000e+00> : vector<16x1423xf32>
    %77 = tpu.matmul %75, %76, %cst_22 {dimension_numbers = #tpu.dot_dimension_numbers<[1], [0], [0], [1], [0, 0, 1, 1], [], []>} : vector<16x6xf32>, vector<6x1423xf32>, vector<16x1423xf32> -> vector<16x1423xf32>
    %78 = arith.addf %73, %77 : vector<16x1423xf32>
    %c2_23 = arith.constant 2 : index
    %c0_24 = arith.constant 0 : index
    %c0_25 = arith.constant 0 : index
    %79 = vector.load %arg3[%c2_23, %c0_24, %c0_25] : memref<9x16x6xf32, #tpu.memory_space<vmem>>, vector<1x16x6xf32>
    %80 = vector.shape_cast %79 : vector<1x16x6xf32> to vector<16x6xf32>
    %81 = vector.extract_strided_slice %67 {offsets = [0, 4], sizes = [6, 1423], strides = [1, 1]} : vector<6x1539xf32> to vector<6x1423xf32>
    %cst_26 = arith.constant dense<0.000000e+00> : vector<16x1423xf32>
    %82 = tpu.matmul %80, %81, %cst_26 {dimension_numbers = #tpu.dot_dimension_numbers<[1], [0], [0], [1], [0, 0, 1, 1], [], []>} : vector<16x6xf32>, vector<6x1423xf32>, vector<16x1423xf32> -> vector<16x1423xf32>
    %83 = arith.addf %78, %82 : vector<16x1423xf32>
    %c3_27 = arith.constant 3 : index
    %c0_28 = arith.constant 0 : index
    %c0_29 = arith.constant 0 : index
    %84 = vector.load %arg3[%c3_27, %c0_28, %c0_29] : memref<9x16x6xf32, #tpu.memory_space<vmem>>, vector<1x16x6xf32>
    %85 = vector.shape_cast %84 : vector<1x16x6xf32> to vector<16x6xf32>
    %86 = vector.extract_strided_slice %67 {offsets = [0, 56], sizes = [6, 1423], strides = [1, 1]} : vector<6x1539xf32> to vector<6x1423xf32>
    %cst_30 = arith.constant dense<0.000000e+00> : vector<16x1423xf32>
    %87 = tpu.matmul %85, %86, %cst_30 {dimension_numbers = #tpu.dot_dimension_numbers<[1], [0], [0], [1], [0, 0, 1, 1], [], []>} : vector<16x6xf32>, vector<6x1423xf32>, vector<16x1423xf32> -> vector<16x1423xf32>
    %88 = arith.addf %83, %87 : vector<16x1423xf32>
    %c4_31 = arith.constant 4 : index
    %c0_32 = arith.constant 0 : index
    %c0_33 = arith.constant 0 : index
    %89 = vector.load %arg3[%c4_31, %c0_32, %c0_33] : memref<9x16x6xf32, #tpu.memory_space<vmem>>, vector<1x16x6xf32>
    %90 = vector.shape_cast %89 : vector<1x16x6xf32> to vector<16x6xf32>
    %91 = vector.extract_strided_slice %67 {offsets = [0, 58], sizes = [6, 1423], strides = [1, 1]} : vector<6x1539xf32> to vector<6x1423xf32>
    %cst_34 = arith.constant dense<0.000000e+00> : vector<16x1423xf32>
    %92 = tpu.matmul %90, %91, %cst_34 {dimension_numbers = #tpu.dot_dimension_numbers<[1], [0], [0], [1], [0, 0, 1, 1], [], []>} : vector<16x6xf32>, vector<6x1423xf32>, vector<16x1423xf32> -> vector<16x1423xf32>
    %93 = arith.addf %88, %92 : vector<16x1423xf32>
    %c5_35 = arith.constant 5 : index
    %c0_36 = arith.constant 0 : index
    %c0_37 = arith.constant 0 : index
    %94 = vector.load %arg3[%c5_35, %c0_36, %c0_37] : memref<9x16x6xf32, #tpu.memory_space<vmem>>, vector<1x16x6xf32>
    %95 = vector.shape_cast %94 : vector<1x16x6xf32> to vector<16x6xf32>
    %96 = vector.extract_strided_slice %67 {offsets = [0, 60], sizes = [6, 1423], strides = [1, 1]} : vector<6x1539xf32> to vector<6x1423xf32>
    %cst_38 = arith.constant dense<0.000000e+00> : vector<16x1423xf32>
    %97 = tpu.matmul %95, %96, %cst_38 {dimension_numbers = #tpu.dot_dimension_numbers<[1], [0], [0], [1], [0, 0, 1, 1], [], []>} : vector<16x6xf32>, vector<6x1423xf32>, vector<16x1423xf32> -> vector<16x1423xf32>
    %98 = arith.addf %93, %97 : vector<16x1423xf32>
    %c6_39 = arith.constant 6 : index
    %c0_40 = arith.constant 0 : index
    %c0_41 = arith.constant 0 : index
    %99 = vector.load %arg3[%c6_39, %c0_40, %c0_41] : memref<9x16x6xf32, #tpu.memory_space<vmem>>, vector<1x16x6xf32>
    %100 = vector.shape_cast %99 : vector<1x16x6xf32> to vector<16x6xf32>
    %101 = vector.extract_strided_slice %67 {offsets = [0, 112], sizes = [6, 1423], strides = [1, 1]} : vector<6x1539xf32> to vector<6x1423xf32>
    %cst_42 = arith.constant dense<0.000000e+00> : vector<16x1423xf32>
    %102 = tpu.matmul %100, %101, %cst_42 {dimension_numbers = #tpu.dot_dimension_numbers<[1], [0], [0], [1], [0, 0, 1, 1], [], []>} : vector<16x6xf32>, vector<6x1423xf32>, vector<16x1423xf32> -> vector<16x1423xf32>
    %103 = arith.addf %98, %102 : vector<16x1423xf32>
    %c7_43 = arith.constant 7 : index
    %c0_44 = arith.constant 0 : index
    %c0_45 = arith.constant 0 : index
    %104 = vector.load %arg3[%c7_43, %c0_44, %c0_45] : memref<9x16x6xf32, #tpu.memory_space<vmem>>, vector<1x16x6xf32>
    %105 = vector.shape_cast %104 : vector<1x16x6xf32> to vector<16x6xf32>
    %106 = vector.extract_strided_slice %67 {offsets = [0, 114], sizes = [6, 1423], strides = [1, 1]} : vector<6x1539xf32> to vector<6x1423xf32>
    %cst_46 = arith.constant dense<0.000000e+00> : vector<16x1423xf32>
    %107 = tpu.matmul %105, %106, %cst_46 {dimension_numbers = #tpu.dot_dimension_numbers<[1], [0], [0], [1], [0, 0, 1, 1], [], []>} : vector<16x6xf32>, vector<6x1423xf32>, vector<16x1423xf32> -> vector<16x1423xf32>
    %108 = arith.addf %103, %107 : vector<16x1423xf32>
    %c8_47 = arith.constant 8 : index
    %c0_48 = arith.constant 0 : index
    %c0_49 = arith.constant 0 : index
    %109 = vector.load %arg3[%c8_47, %c0_48, %c0_49] : memref<9x16x6xf32, #tpu.memory_space<vmem>>, vector<1x16x6xf32>
    %110 = vector.shape_cast %109 : vector<1x16x6xf32> to vector<16x6xf32>
    %111 = vector.extract_strided_slice %67 {offsets = [0, 116], sizes = [6, 1423], strides = [1, 1]} : vector<6x1539xf32> to vector<6x1423xf32>
    %cst_50 = arith.constant dense<0.000000e+00> : vector<16x1423xf32>
    %112 = tpu.matmul %110, %111, %cst_50 {dimension_numbers = #tpu.dot_dimension_numbers<[1], [0], [0], [1], [0, 0, 1, 1], [], []>} : vector<16x6xf32>, vector<6x1423xf32>, vector<16x1423xf32> -> vector<16x1423xf32>
    %113 = arith.addf %108, %112 : vector<16x1423xf32>
    %c0_51 = arith.constant 0 : index
    %c0_52 = arith.constant 0 : index
    %114 = vector.load %arg4[%c0_51, %c0_52] : memref<16x1xf32, #tpu.memory_space<vmem>>, vector<16x1xf32>
    %115 = vector.broadcast %114 : vector<16x1xf32> to vector<16x1423xf32>
    %116 = arith.addf %113, %115 : vector<16x1423xf32>
    %cst_53 = arith.constant 0.000000e+00 : f32
    %117 = vector.broadcast %cst_53 : f32 to vector<16x1423xf32>
    %118 = arith.maximumf %116, %117 : vector<16x1423xf32>
    %119 = vector.extract_strided_slice %118 {offsets = [0, 0], sizes = [16, 1365], strides = [1, 1]} : vector<16x1423xf32> to vector<16x1365xf32>
    %120 = vector.extract_strided_slice %118 {offsets = [0, 2], sizes = [16, 1365], strides = [1, 1]} : vector<16x1423xf32> to vector<16x1365xf32>
    %121 = arith.maximumf %119, %120 : vector<16x1365xf32>
    %122 = vector.extract_strided_slice %118 {offsets = [0, 56], sizes = [16, 1365], strides = [1, 1]} : vector<16x1423xf32> to vector<16x1365xf32>
    %123 = vector.extract_strided_slice %118 {offsets = [0, 58], sizes = [16, 1365], strides = [1, 1]} : vector<16x1423xf32> to vector<16x1365xf32>
    %124 = arith.maximumf %122, %123 : vector<16x1365xf32>
    %125 = arith.maximumf %121, %124 : vector<16x1365xf32>
    %126 = tpu.iota {dimensions = array<i32: 0>} : vector<1365x64xi32>
    %c0_54 = arith.constant 0 : index
    %c0_55 = arith.constant 0 : index
    %127 = vector.load %arg5[%c0_54, %c0_55] : memref<1x64xi32, #tpu.memory_space<vmem>>, vector<1x64xi32>
    %128 = vector.broadcast %127 : vector<1x64xi32> to vector<1365x64xi32>
    %129 = arith.cmpi eq, %126, %128 : vector<1365x64xi32>
    %cst_56 = arith.constant 1.000000e+00 : f32
    %cst_57 = arith.constant 0.000000e+00 : f32
    %130 = vector.broadcast %cst_56 : f32 to vector<1365x64xf32>
    %131 = vector.broadcast %cst_57 : f32 to vector<1365x64xf32>
    %132 = arith.select %129, %130, %131 : vector<1365x64xi1>, vector<1365x64xf32>
    %cst_58 = arith.constant dense<0.000000e+00> : vector<16x64xf32>
    %133 = tpu.matmul %125, %132, %cst_58 {dimension_numbers = #tpu.dot_dimension_numbers<[1], [0], [0], [1], [0, 0, 1, 1], [], []>} : vector<16x1365xf32>, vector<1365x64xf32>, vector<16x64xf32> -> vector<16x64xf32>
    %c0_59 = arith.constant 0 : index
    %c0_60 = arith.constant 0 : index
    %134 = vector.load %arg13[%c0_59, %c0_60] : memref<16x64xf32, #tpu.memory_space<vmem>>, vector<16x64xf32>
    tpu.vector_store %arg13[%c0_59, %c0_60], %133 {strides = array<i32>} : memref<16x64xf32, #tpu.memory_space<vmem>>, vector<16x64xf32>,
    %c0_61 = arith.constant 0 : index
    %c0_62 = arith.constant 0 : index
    %135 = vector.load %arg13[%c0_61, %c0_62] : memref<16x64xf32, #tpu.memory_space<vmem>>, vector<1x25xf32>
    %c0_63 = arith.constant 0 : index
    %c0_64 = arith.constant 0 : index
    %136 = vector.load %arg14[%c0_63, %c0_64] : memref<2x400xf32, #tpu.memory_space<vmem>>, vector<1x25xf32>
    tpu.vector_store %arg14[%c0_63, %c0_64], %135 {strides = array<i32>} : memref<2x400xf32, #tpu.memory_space<vmem>>, vector<1x25xf32>,
    %c0_65 = arith.constant 0 : index
    %c25 = arith.constant 25 : index
    %137 = vector.load %arg13[%c0_65, %c25] : memref<16x64xf32, #tpu.memory_space<vmem>>, vector<1x25xf32>
    %c1_66 = arith.constant 1 : index
    %c0_67 = arith.constant 0 : index
    %138 = vector.load %arg14[%c1_66, %c0_67] : memref<2x400xf32, #tpu.memory_space<vmem>>, vector<1x25xf32>
    tpu.vector_store %arg14[%c1_66, %c0_67], %137 {strides = array<i32>} : memref<2x400xf32, #tpu.memory_space<vmem>>, vector<1x25xf32>,
    %c1_68 = arith.constant 1 : index
    %c0_69 = arith.constant 0 : index
    %139 = vector.load %arg13[%c1_68, %c0_69] : memref<16x64xf32, #tpu.memory_space<vmem>>, vector<1x25xf32>
    %c0_70 = arith.constant 0 : index
    %c25_71 = arith.constant 25 : index
    %140 = vector.load %arg14[%c0_70, %c25_71] : memref<2x400xf32, #tpu.memory_space<vmem>>, vector<1x25xf32>
    tpu.vector_store %arg14[%c0_70, %c25_71], %139 {strides = array<i32>} : memref<2x400xf32, #tpu.memory_space<vmem>>, vector<1x25xf32>,
    %c1_72 = arith.constant 1 : index
    %c25_73 = arith.constant 25 : index
    %141 = vector.load %arg13[%c1_72, %c25_73] : memref<16x64xf32, #tpu.memory_space<vmem>>, vector<1x25xf32>
    %c1_74 = arith.constant 1 : index
    %c25_75 = arith.constant 25 : index
    %142 = vector.load %arg14[%c1_74, %c25_75] : memref<2x400xf32, #tpu.memory_space<vmem>>, vector<1x25xf32>
    tpu.vector_store %arg14[%c1_74, %c25_75], %141 {strides = array<i32>} : memref<2x400xf32, #tpu.memory_space<vmem>>, vector<1x25xf32>,
    %c2_76 = arith.constant 2 : index
    %c0_77 = arith.constant 0 : index
    %143 = vector.load %arg13[%c2_76, %c0_77] : memref<16x64xf32, #tpu.memory_space<vmem>>, vector<1x25xf32>
    %c0_78 = arith.constant 0 : index
    %c50 = arith.constant 50 : index
    %144 = vector.load %arg14[%c0_78, %c50] : memref<2x400xf32, #tpu.memory_space<vmem>>, vector<1x25xf32>
    tpu.vector_store %arg14[%c0_78, %c50], %143 {strides = array<i32>} : memref<2x400xf32, #tpu.memory_space<vmem>>, vector<1x25xf32>,
    %c2_79 = arith.constant 2 : index
    %c25_80 = arith.constant 25 : index
    %145 = vector.load %arg13[%c2_79, %c25_80] : memref<16x64xf32, #tpu.memory_space<vmem>>, vector<1x25xf32>
    %c1_81 = arith.constant 1 : index
    %c50_82 = arith.constant 50 : index
    %146 = vector.load %arg14[%c1_81, %c50_82] : memref<2x400xf32, #tpu.memory_space<vmem>>, vector<1x25xf32>
    tpu.vector_store %arg14[%c1_81, %c50_82], %145 {strides = array<i32>} : memref<2x400xf32, #tpu.memory_space<vmem>>, vector<1x25xf32>,
    %c3_83 = arith.constant 3 : index
    %c0_84 = arith.constant 0 : index
    %147 = vector.load %arg13[%c3_83, %c0_84] : memref<16x64xf32, #tpu.memory_space<vmem>>, vector<1x25xf32>
    %c0_85 = arith.constant 0 : index
    %c75 = arith.constant 75 : index
    %148 = vector.load %arg14[%c0_85, %c75] : memref<2x400xf32, #tpu.memory_space<vmem>>, vector<1x25xf32>
    tpu.vector_store %arg14[%c0_85, %c75], %147 {strides = array<i32>} : memref<2x400xf32, #tpu.memory_space<vmem>>, vector<1x25xf32>,
    %c3_86 = arith.constant 3 : index
    %c25_87 = arith.constant 25 : index
    %149 = vector.load %arg13[%c3_86, %c25_87] : memref<16x64xf32, #tpu.memory_space<vmem>>, vector<1x25xf32>
    %c1_88 = arith.constant 1 : index
    %c75_89 = arith.constant 75 : index
    %150 = vector.load %arg14[%c1_88, %c75_89] : memref<2x400xf32, #tpu.memory_space<vmem>>, vector<1x25xf32>
    tpu.vector_store %arg14[%c1_88, %c75_89], %149 {strides = array<i32>} : memref<2x400xf32, #tpu.memory_space<vmem>>, vector<1x25xf32>,
    %c4_90 = arith.constant 4 : index
    %c0_91 = arith.constant 0 : index
    %151 = vector.load %arg13[%c4_90, %c0_91] : memref<16x64xf32, #tpu.memory_space<vmem>>, vector<1x25xf32>
    %c0_92 = arith.constant 0 : index
    %c100 = arith.constant 100 : index
    %152 = vector.load %arg14[%c0_92, %c100] : memref<2x400xf32, #tpu.memory_space<vmem>>, vector<1x25xf32>
    tpu.vector_store %arg14[%c0_92, %c100], %151 {strides = array<i32>} : memref<2x400xf32, #tpu.memory_space<vmem>>, vector<1x25xf32>,
    %c4_93 = arith.constant 4 : index
    %c25_94 = arith.constant 25 : index
    %153 = vector.load %arg13[%c4_93, %c25_94] : memref<16x64xf32, #tpu.memory_space<vmem>>, vector<1x25xf32>
    %c1_95 = arith.constant 1 : index
    %c100_96 = arith.constant 100 : index
    %154 = vector.load %arg14[%c1_95, %c100_96] : memref<2x400xf32, #tpu.memory_space<vmem>>, vector<1x25xf32>
    tpu.vector_store %arg14[%c1_95, %c100_96], %153 {strides = array<i32>} : memref<2x400xf32, #tpu.memory_space<vmem>>, vector<1x25xf32>,
    %c5_97 = arith.constant 5 : index
    %c0_98 = arith.constant 0 : index
    %155 = vector.load %arg13[%c5_97, %c0_98] : memref<16x64xf32, #tpu.memory_space<vmem>>, vector<1x25xf32>
    %c0_99 = arith.constant 0 : index
    %c125 = arith.constant 125 : index
    %156 = vector.load %arg14[%c0_99, %c125] : memref<2x400xf32, #tpu.memory_space<vmem>>, vector<1x25xf32>
    tpu.vector_store %arg14[%c0_99, %c125], %155 {strides = array<i32>} : memref<2x400xf32, #tpu.memory_space<vmem>>, vector<1x25xf32>,
    %c5_100 = arith.constant 5 : index
    %c25_101 = arith.constant 25 : index
    %157 = vector.load %arg13[%c5_100, %c25_101] : memref<16x64xf32, #tpu.memory_space<vmem>>, vector<1x25xf32>
    %c1_102 = arith.constant 1 : index
    %c125_103 = arith.constant 125 : index
    %158 = vector.load %arg14[%c1_102, %c125_103] : memref<2x400xf32, #tpu.memory_space<vmem>>, vector<1x25xf32>
    tpu.vector_store %arg14[%c1_102, %c125_103], %157 {strides = array<i32>} : memref<2x400xf32, #tpu.memory_space<vmem>>, vector<1x25xf32>,
    %c6_104 = arith.constant 6 : index
    %c0_105 = arith.constant 0 : index
    %159 = vector.load %arg13[%c6_104, %c0_105] : memref<16x64xf32, #tpu.memory_space<vmem>>, vector<1x25xf32>
    %c0_106 = arith.constant 0 : index
    %c150 = arith.constant 150 : index
    %160 = vector.load %arg14[%c0_106, %c150] : memref<2x400xf32, #tpu.memory_space<vmem>>, vector<1x25xf32>
    tpu.vector_store %arg14[%c0_106, %c150], %159 {strides = array<i32>} : memref<2x400xf32, #tpu.memory_space<vmem>>, vector<1x25xf32>,
    %c6_107 = arith.constant 6 : index
    %c25_108 = arith.constant 25 : index
    %161 = vector.load %arg13[%c6_107, %c25_108] : memref<16x64xf32, #tpu.memory_space<vmem>>, vector<1x25xf32>
    %c1_109 = arith.constant 1 : index
    %c150_110 = arith.constant 150 : index
    %162 = vector.load %arg14[%c1_109, %c150_110] : memref<2x400xf32, #tpu.memory_space<vmem>>, vector<1x25xf32>
    tpu.vector_store %arg14[%c1_109, %c150_110], %161 {strides = array<i32>} : memref<2x400xf32, #tpu.memory_space<vmem>>, vector<1x25xf32>,
    %c7_111 = arith.constant 7 : index
    %c0_112 = arith.constant 0 : index
    %163 = vector.load %arg13[%c7_111, %c0_112] : memref<16x64xf32, #tpu.memory_space<vmem>>, vector<1x25xf32>
    %c0_113 = arith.constant 0 : index
    %c175 = arith.constant 175 : index
    %164 = vector.load %arg14[%c0_113, %c175] : memref<2x400xf32, #tpu.memory_space<vmem>>, vector<1x25xf32>
    tpu.vector_store %arg14[%c0_113, %c175], %163 {strides = array<i32>} : memref<2x400xf32, #tpu.memory_space<vmem>>, vector<1x25xf32>,
    %c7_114 = arith.constant 7 : index
    %c25_115 = arith.constant 25 : index
    %165 = vector.load %arg13[%c7_114, %c25_115] : memref<16x64xf32, #tpu.memory_space<vmem>>, vector<1x25xf32>
    %c1_116 = arith.constant 1 : index
    %c175_117 = arith.constant 175 : index
    %166 = vector.load %arg14[%c1_116, %c175_117] : memref<2x400xf32, #tpu.memory_space<vmem>>, vector<1x25xf32>
    tpu.vector_store %arg14[%c1_116, %c175_117], %165 {strides = array<i32>} : memref<2x400xf32, #tpu.memory_space<vmem>>, vector<1x25xf32>,
    %c8_118 = arith.constant 8 : index
    %c0_119 = arith.constant 0 : index
    %167 = vector.load %arg13[%c8_118, %c0_119] : memref<16x64xf32, #tpu.memory_space<vmem>>, vector<1x25xf32>
    %c0_120 = arith.constant 0 : index
    %c200 = arith.constant 200 : index
    %168 = vector.load %arg14[%c0_120, %c200] : memref<2x400xf32, #tpu.memory_space<vmem>>, vector<1x25xf32>
    tpu.vector_store %arg14[%c0_120, %c200], %167 {strides = array<i32>} : memref<2x400xf32, #tpu.memory_space<vmem>>, vector<1x25xf32>,
    %c8_121 = arith.constant 8 : index
    %c25_122 = arith.constant 25 : index
    %169 = vector.load %arg13[%c8_121, %c25_122] : memref<16x64xf32, #tpu.memory_space<vmem>>, vector<1x25xf32>
    %c1_123 = arith.constant 1 : index
    %c200_124 = arith.constant 200 : index
    %170 = vector.load %arg14[%c1_123, %c200_124] : memref<2x400xf32, #tpu.memory_space<vmem>>, vector<1x25xf32>
    tpu.vector_store %arg14[%c1_123, %c200_124], %169 {strides = array<i32>} : memref<2x400xf32, #tpu.memory_space<vmem>>, vector<1x25xf32>,
    %c9 = arith.constant 9 : index
    %c0_125 = arith.constant 0 : index
    %171 = vector.load %arg13[%c9, %c0_125] : memref<16x64xf32, #tpu.memory_space<vmem>>, vector<1x25xf32>
    %c0_126 = arith.constant 0 : index
    %c225 = arith.constant 225 : index
    %172 = vector.load %arg14[%c0_126, %c225] : memref<2x400xf32, #tpu.memory_space<vmem>>, vector<1x25xf32>
    tpu.vector_store %arg14[%c0_126, %c225], %171 {strides = array<i32>} : memref<2x400xf32, #tpu.memory_space<vmem>>, vector<1x25xf32>,
    %c9_127 = arith.constant 9 : index
    %c25_128 = arith.constant 25 : index
    %173 = vector.load %arg13[%c9_127, %c25_128] : memref<16x64xf32, #tpu.memory_space<vmem>>, vector<1x25xf32>
    %c1_129 = arith.constant 1 : index
    %c225_130 = arith.constant 225 : index
    %174 = vector.load %arg14[%c1_129, %c225_130] : memref<2x400xf32, #tpu.memory_space<vmem>>, vector<1x25xf32>
    tpu.vector_store %arg14[%c1_129, %c225_130], %173 {strides = array<i32>} : memref<2x400xf32, #tpu.memory_space<vmem>>, vector<1x25xf32>,
    %c10 = arith.constant 10 : index
    %c0_131 = arith.constant 0 : index
    %175 = vector.load %arg13[%c10, %c0_131] : memref<16x64xf32, #tpu.memory_space<vmem>>, vector<1x25xf32>
    %c0_132 = arith.constant 0 : index
    %c250 = arith.constant 250 : index
    %176 = vector.load %arg14[%c0_132, %c250] : memref<2x400xf32, #tpu.memory_space<vmem>>, vector<1x25xf32>
    tpu.vector_store %arg14[%c0_132, %c250], %175 {strides = array<i32>} : memref<2x400xf32, #tpu.memory_space<vmem>>, vector<1x25xf32>,
    %c10_133 = arith.constant 10 : index
    %c25_134 = arith.constant 25 : index
    %177 = vector.load %arg13[%c10_133, %c25_134] : memref<16x64xf32, #tpu.memory_space<vmem>>, vector<1x25xf32>
    %c1_135 = arith.constant 1 : index
    %c250_136 = arith.constant 250 : index
    %178 = vector.load %arg14[%c1_135, %c250_136] : memref<2x400xf32, #tpu.memory_space<vmem>>, vector<1x25xf32>
    tpu.vector_store %arg14[%c1_135, %c250_136], %177 {strides = array<i32>} : memref<2x400xf32, #tpu.memory_space<vmem>>, vector<1x25xf32>,
    %c11 = arith.constant 11 : index
    %c0_137 = arith.constant 0 : index
    %179 = vector.load %arg13[%c11, %c0_137] : memref<16x64xf32, #tpu.memory_space<vmem>>, vector<1x25xf32>
    %c0_138 = arith.constant 0 : index
    %c275 = arith.constant 275 : index
    %180 = vector.load %arg14[%c0_138, %c275] : memref<2x400xf32, #tpu.memory_space<vmem>>, vector<1x25xf32>
    tpu.vector_store %arg14[%c0_138, %c275], %179 {strides = array<i32>} : memref<2x400xf32, #tpu.memory_space<vmem>>, vector<1x25xf32>,
    %c11_139 = arith.constant 11 : index
    %c25_140 = arith.constant 25 : index
    %181 = vector.load %arg13[%c11_139, %c25_140] : memref<16x64xf32, #tpu.memory_space<vmem>>, vector<1x25xf32>
    %c1_141 = arith.constant 1 : index
    %c275_142 = arith.constant 275 : index
    %182 = vector.load %arg14[%c1_141, %c275_142] : memref<2x400xf32, #tpu.memory_space<vmem>>, vector<1x25xf32>
    tpu.vector_store %arg14[%c1_141, %c275_142], %181 {strides = array<i32>} : memref<2x400xf32, #tpu.memory_space<vmem>>, vector<1x25xf32>,
    %c12 = arith.constant 12 : index
    %c0_143 = arith.constant 0 : index
    %183 = vector.load %arg13[%c12, %c0_143] : memref<16x64xf32, #tpu.memory_space<vmem>>, vector<1x25xf32>
    %c0_144 = arith.constant 0 : index
    %c300 = arith.constant 300 : index
    %184 = vector.load %arg14[%c0_144, %c300] : memref<2x400xf32, #tpu.memory_space<vmem>>, vector<1x25xf32>
    tpu.vector_store %arg14[%c0_144, %c300], %183 {strides = array<i32>} : memref<2x400xf32, #tpu.memory_space<vmem>>, vector<1x25xf32>,
    %c12_145 = arith.constant 12 : index
    %c25_146 = arith.constant 25 : index
    %185 = vector.load %arg13[%c12_145, %c25_146] : memref<16x64xf32, #tpu.memory_space<vmem>>, vector<1x25xf32>
    %c1_147 = arith.constant 1 : index
    %c300_148 = arith.constant 300 : index
    %186 = vector.load %arg14[%c1_147, %c300_148] : memref<2x400xf32, #tpu.memory_space<vmem>>, vector<1x25xf32>
    tpu.vector_store %arg14[%c1_147, %c300_148], %185 {strides = array<i32>} : memref<2x400xf32, #tpu.memory_space<vmem>>, vector<1x25xf32>,
    %c13 = arith.constant 13 : index
    %c0_149 = arith.constant 0 : index
    %187 = vector.load %arg13[%c13, %c0_149] : memref<16x64xf32, #tpu.memory_space<vmem>>, vector<1x25xf32>
    %c0_150 = arith.constant 0 : index
    %c325 = arith.constant 325 : index
    %188 = vector.load %arg14[%c0_150, %c325] : memref<2x400xf32, #tpu.memory_space<vmem>>, vector<1x25xf32>
    tpu.vector_store %arg14[%c0_150, %c325], %187 {strides = array<i32>} : memref<2x400xf32, #tpu.memory_space<vmem>>, vector<1x25xf32>,
    %c13_151 = arith.constant 13 : index
    %c25_152 = arith.constant 25 : index
    %189 = vector.load %arg13[%c13_151, %c25_152] : memref<16x64xf32, #tpu.memory_space<vmem>>, vector<1x25xf32>
    %c1_153 = arith.constant 1 : index
    %c325_154 = arith.constant 325 : index
    %190 = vector.load %arg14[%c1_153, %c325_154] : memref<2x400xf32, #tpu.memory_space<vmem>>, vector<1x25xf32>
    tpu.vector_store %arg14[%c1_153, %c325_154], %189 {strides = array<i32>} : memref<2x400xf32, #tpu.memory_space<vmem>>, vector<1x25xf32>,
    %c14 = arith.constant 14 : index
    %c0_155 = arith.constant 0 : index
    %191 = vector.load %arg13[%c14, %c0_155] : memref<16x64xf32, #tpu.memory_space<vmem>>, vector<1x25xf32>
    %c0_156 = arith.constant 0 : index
    %c350 = arith.constant 350 : index
    %192 = vector.load %arg14[%c0_156, %c350] : memref<2x400xf32, #tpu.memory_space<vmem>>, vector<1x25xf32>
    tpu.vector_store %arg14[%c0_156, %c350], %191 {strides = array<i32>} : memref<2x400xf32, #tpu.memory_space<vmem>>, vector<1x25xf32>,
    %c14_157 = arith.constant 14 : index
    %c25_158 = arith.constant 25 : index
    %193 = vector.load %arg13[%c14_157, %c25_158] : memref<16x64xf32, #tpu.memory_space<vmem>>, vector<1x25xf32>
    %c1_159 = arith.constant 1 : index
    %c350_160 = arith.constant 350 : index
    %194 = vector.load %arg14[%c1_159, %c350_160] : memref<2x400xf32, #tpu.memory_space<vmem>>, vector<1x25xf32>
    tpu.vector_store %arg14[%c1_159, %c350_160], %193 {strides = array<i32>} : memref<2x400xf32, #tpu.memory_space<vmem>>, vector<1x25xf32>,
    %c15 = arith.constant 15 : index
    %c0_161 = arith.constant 0 : index
    %195 = vector.load %arg13[%c15, %c0_161] : memref<16x64xf32, #tpu.memory_space<vmem>>, vector<1x25xf32>
    %c0_162 = arith.constant 0 : index
    %c375 = arith.constant 375 : index
    %196 = vector.load %arg14[%c0_162, %c375] : memref<2x400xf32, #tpu.memory_space<vmem>>, vector<1x25xf32>
    tpu.vector_store %arg14[%c0_162, %c375], %195 {strides = array<i32>} : memref<2x400xf32, #tpu.memory_space<vmem>>, vector<1x25xf32>,
    %c15_163 = arith.constant 15 : index
    %c25_164 = arith.constant 25 : index
    %197 = vector.load %arg13[%c15_163, %c25_164] : memref<16x64xf32, #tpu.memory_space<vmem>>, vector<1x25xf32>
    %c1_165 = arith.constant 1 : index
    %c375_166 = arith.constant 375 : index
    %198 = vector.load %arg14[%c1_165, %c375_166] : memref<2x400xf32, #tpu.memory_space<vmem>>, vector<1x25xf32>
    tpu.vector_store %arg14[%c1_165, %c375_166], %197 {strides = array<i32>} : memref<2x400xf32, #tpu.memory_space<vmem>>, vector<1x25xf32>,
    %c0_167 = arith.constant 0 : index
    %c0_168 = arith.constant 0 : index
    %199 = vector.load %arg14[%c0_167, %c0_168] : memref<2x400xf32, #tpu.memory_space<vmem>>, vector<2x400xf32>
    %c0_169 = arith.constant 0 : index
    %c0_170 = arith.constant 0 : index
    %200 = vector.load %arg6[%c0_169, %c0_170] : memref<400x120xf32, #tpu.memory_space<vmem>>, vector<400x120xf32>
    %cst_171 = arith.constant dense<0.000000e+00> : vector<2x120xf32>
    %201 = tpu.matmul %199, %200, %cst_171 {dimension_numbers = #tpu.dot_dimension_numbers<[1], [0], [0], [1], [0, 0, 1, 1], [], []>} : vector<2x400xf32>, vector<400x120xf32>, vector<2x120xf32> -> vector<2x120xf32>
    %c0_172 = arith.constant 0 : index
    %c0_173 = arith.constant 0 : index
    %202 = vector.load %arg7[%c0_172, %c0_173] : memref<1x120xf32, #tpu.memory_space<vmem>>, vector<1x120xf32>
    %203 = vector.broadcast %202 : vector<1x120xf32> to vector<2x120xf32>
    %204 = arith.addf %201, %203 : vector<2x120xf32>
    %cst_174 = arith.constant 0.000000e+00 : f32
    %205 = vector.broadcast %cst_174 : f32 to vector<2x120xf32>
    %206 = arith.maximumf %204, %205 : vector<2x120xf32>
    %c0_175 = arith.constant 0 : index
    %c0_176 = arith.constant 0 : index
    %207 = vector.load %arg8[%c0_175, %c0_176] : memref<120x84xf32, #tpu.memory_space<vmem>>, vector<120x84xf32>
    %cst_177 = arith.constant dense<0.000000e+00> : vector<2x84xf32>
    %208 = tpu.matmul %206, %207, %cst_177 {dimension_numbers = #tpu.dot_dimension_numbers<[1], [0], [0], [1], [0, 0, 1, 1], [], []>} : vector<2x120xf32>, vector<120x84xf32>, vector<2x84xf32> -> vector<2x84xf32>
    %c0_178 = arith.constant 0 : index
    %c0_179 = arith.constant 0 : index
    %209 = vector.load %arg9[%c0_178, %c0_179] : memref<1x84xf32, #tpu.memory_space<vmem>>, vector<1x84xf32>
    %210 = vector.broadcast %209 : vector<1x84xf32> to vector<2x84xf32>
    %211 = arith.addf %208, %210 : vector<2x84xf32>
    %cst_180 = arith.constant 0.000000e+00 : f32
    %212 = vector.broadcast %cst_180 : f32 to vector<2x84xf32>
    %213 = arith.maximumf %211, %212 : vector<2x84xf32>
    %c0_181 = arith.constant 0 : index
    %c0_182 = arith.constant 0 : index
    %214 = vector.load %arg10[%c0_181, %c0_182] : memref<84x10xf32, #tpu.memory_space<vmem>>, vector<84x10xf32>
    %cst_183 = arith.constant dense<0.000000e+00> : vector<2x10xf32>
    %215 = tpu.matmul %213, %214, %cst_183 {dimension_numbers = #tpu.dot_dimension_numbers<[1], [0], [0], [1], [0, 0, 1, 1], [], []>} : vector<2x84xf32>, vector<84x10xf32>, vector<2x10xf32> -> vector<2x10xf32>
    %c0_184 = arith.constant 0 : index
    %c0_185 = arith.constant 0 : index
    %216 = vector.load %arg11[%c0_184, %c0_185] : memref<1x10xf32, #tpu.memory_space<vmem>>, vector<1x10xf32>
    %217 = vector.broadcast %216 : vector<1x10xf32> to vector<2x10xf32>
    %218 = arith.addf %215, %217 : vector<2x10xf32>
    %c0_186 = arith.constant 0 : index
    %c0_187 = arith.constant 0 : index
    %219 = vector.load %arg12[%c0_186, %c0_187] : memref<2x10xf32, #tpu.memory_space<vmem>>, vector<2x10xf32>
    tpu.vector_store %arg12[%c0_186, %c0_187], %218 {strides = array<i32>} : memref<2x10xf32, #tpu.memory_space<vmem>>, vector<2x10xf32>,
    return
  }
}

</mosaic_0001>

<llo_original>
// kernel: lenet_forward.1
$region0: #{lenet_forward.1}
  #allocation0 [shape = 'u32[]', space=smem, size = 0x4, offset = 0x4, fixed_abs, tag = 'smem constant byte address 0x4 - core index']
  #allocation1 [shape = 'u32[144,128]{1,0:T(1,128)}', space=vmem, size = 0x12000, scoped, tag = 'internal scratch']
  #allocation2 [shape = 'f32[16,64]{1,0:T(8,128)}', space=vmem, size = 0x2000, scoped, tag = 'scratch operand']
  #allocation3 [shape = 'f32[2,400]{1,0:T(2,128)}', space=vmem, size = 0x1000, scoped, tag = 'scratch operand']
  %s0 = inlined_call_operand.vmem [shape: f32[1,1664], index: 0, kind: input, shape index: {}]
  %s1 = inlined_call_operand.vmem [shape: f32[6,9], index: 1, kind: input, shape index: {}]
  %s2 = inlined_call_operand.vmem [shape: f32[6,1], index: 2, kind: input, shape index: {}]
  %s3 = inlined_call_operand.vmem [shape: f32[9,16,6], index: 3, kind: input, shape index: {}]
  %s4 = inlined_call_operand.vmem [shape: f32[16,1], index: 4, kind: input, shape index: {}]
  %s5 = inlined_call_operand.vmem [shape: s32[1,64], index: 5, kind: input, shape index: {}]
  %s6 = inlined_call_operand.vmem [shape: f32[400,120], index: 6, kind: input, shape index: {}]
  %s7 = inlined_call_operand.vmem [shape: f32[1,120], index: 7, kind: input, shape index: {}]
  %s8 = inlined_call_operand.vmem [shape: f32[120,84], index: 8, kind: input, shape index: {}]
  %s9 = inlined_call_operand.vmem [shape: f32[1,84], index: 9, kind: input, shape index: {}]
  %s10 = inlined_call_operand.vmem [shape: f32[84,10], index: 10, kind: input, shape index: {}]
  %s11 = inlined_call_operand.vmem [shape: f32[1,10], index: 11, kind: input, shape index: {}]
  %s12 = inlined_call_operand.hbm [shape: f32[2,10], index: 12, kind: output, shape index: {}]
  %s13 = sld [smem:[#allocation0]]
  $region58: #{lenet_forward.1} parent=0
    _
  %s15 = ssub.s32 1, %s13
  %s16 = scalar_select 0, %s15, %s13
  $region1: #{lenet_forward.1} parent=0
    #allocation4 [shape = 'u8[1024]{0}', space=vmem, size = 0x400, scoped, tag = 'output window, operand 0, single buffered']
    #allocation5 [shape = 's32[1]{0}', space=sflag, size = 0x4, scoped, tag = 'scoped memory for lenet_forward.1']
    %17 = vsyncpa [#allocation5], 0
    // Predicated region
    $region2: #{lenet_forward.1} parent=1 // pred_check
      _
    $region3: #{lenet_forward.1} parent=1 // pred_check_branch
      %19 = sbr.rel (0) target = $region5
    $region4: #{lenet_forward.1} parent=1 // pred_region
      _
    $region5: #{lenet_forward.1} parent=1 // pred_fallthru
      _
    // Predicated region
    $region6: #{lenet_forward.1} parent=1 // pred_check
      _
    $region7: #{lenet_forward.1} parent=1 // pred_check_branch
      %21 = sbr.rel (0) target = $region9
    $region8: #{lenet_forward.1} parent=1 // pred_region
      _
    $region9: #{lenet_forward.1} parent=1 // pred_fallthru
      _
    // Predicated region
    $region10: #{lenet_forward.1} parent=1 // pred_check
      _
    $region11: #{lenet_forward.1} parent=1 // pred_check_branch
      %23 = sbr.rel (0) target = $region13
    $region12: #{lenet_forward.1} parent=1 // pred_region
      _
    $region13: #{lenet_forward.1} parent=1 // pred_fallthru
      _
    // Predicated region
    $region14: #{lenet_forward.1} parent=1 // pred_check
      _
    $region15: #{lenet_forward.1} parent=1 // pred_check_branch
      %25 = sbr.rel (0) target = $region17
    $region16: #{lenet_forward.1} parent=1 // pred_region
      _
    $region17: #{lenet_forward.1} parent=1 // pred_fallthru
      _
    // Predicated region
    $region18: #{lenet_forward.1} parent=1 // pred_check
      _
    $region19: #{lenet_forward.1} parent=1 // pred_check_branch
      %27 = sbr.rel (0) target = $region21
    $region20: #{lenet_forward.1} parent=1 // pred_region
      _
    $region21: #{lenet_forward.1} parent=1 // pred_fallthru
      _
    // Predicated region
    $region22: #{lenet_forward.1} parent=1 // pred_check
      _
    $region23: #{lenet_forward.1} parent=1 // pred_check_branch
      %29 = sbr.rel (0) target = $region25
    $region24: #{lenet_forward.1} parent=1 // pred_region
      _
    $region25: #{lenet_forward.1} parent=1 // pred_fallthru
      _
    // Predicated region
    $region26: #{lenet_forward.1} parent=1 // pred_check
      _
    $region27: #{lenet_forward.1} parent=1 // pred_check_branch
      %31 = sbr.rel (0) target = $region29
    $region28: #{lenet_forward.1} parent=1 // pred_region
      _
    $region29: #{lenet_forward.1} parent=1 // pred_fallthru
      _
    // Predicated region
    $region30: #{lenet_forward.1} parent=1 // pred_check
      _
    $region31: #{lenet_forward.1} parent=1 // pred_check_branch
      %33 = sbr.rel (0) target = $region33
    $region32: #{lenet_forward.1} parent=1 // pred_region
      _
    $region33: #{lenet_forward.1} parent=1 // pred_fallthru
      _
    // Predicated region
    $region34: #{lenet_forward.1} parent=1 // pred_check
      _
    $region35: #{lenet_forward.1} parent=1 // pred_check_branch
      %35 = sbr.rel (0) target = $region37
    $region36: #{lenet_forward.1} parent=1 // pred_region
      _
    $region37: #{lenet_forward.1} parent=1 // pred_fallthru
      _
    // Predicated region
    $region38: #{lenet_forward.1} parent=1 // pred_check
      _
    $region39: #{lenet_forward.1} parent=1 // pred_check_branch
      %37 = sbr.rel (0) target = $region41
    $region40: #{lenet_forward.1} parent=1 // pred_region
      _
    $region41: #{lenet_forward.1} parent=1 // pred_fallthru
      _
    // Predicated region
    $region42: #{lenet_forward.1} parent=1 // pred_check
      _
    $region43: #{lenet_forward.1} parent=1 // pred_check_branch
      %39 = sbr.rel (0) target = $region45
    $region44: #{lenet_forward.1} parent=1 // pred_region
      _
    $region45: #{lenet_forward.1} parent=1 // pred_fallthru
      _
    // Predicated region
    $region46: #{lenet_forward.1} parent=1 // pred_check
      _
    $region47: #{lenet_forward.1} parent=1 // pred_check_branch
      %41 = sbr.rel (0) target = $region49
    $region48: #{lenet_forward.1} parent=1 // pred_region
      _
    $region49: #{lenet_forward.1} parent=1 // pred_fallthru
      _
    %v42 = vld [vmem:[%s0] sm:$0xff]
    %v43 = vld [vmem:[%s0 + $0x8] sm:$0x1f]
    %v44 = vld [vmem:[%s1] sm:$0x3f]
    %46 = vset.pattern.permute.xlu0 0
    %47 = vperm.xlu0 %46, %v44
    %v48 = vpop.permute.xlu0 %47
    %v52 = vlaneseq
    %v53 = vshrl.u32 %v52, 7
    %v54 = vsub.s32 0, %v53
    %v55 = vrot.slane %v42, %v54
    %v56 = vlaneseq
    %v57 = vshrl.u32 %v56, 7
    %v58 = vsub.s32 1, %v57
    %v59 = vrot.slane %v42, %v58
    %v60 = vlaneseq
    %v61 = vshrl.u32 %v60, 7
    %v62 = vsub.s32 2, %v61
    %v63 = vrot.slane %v42, %v62
    %v64 = vlaneseq
    %v65 = vshrl.u32 %v64, 7
    %v66 = vsub.s32 3, %v65
    %v67 = vrot.slane %v42, %v66
    %v68 = vlaneseq
    %v69 = vshrl.u32 %v68, 7
    %v70 = vsub.s32 4, %v69
    %v71 = vrot.slane %v42, %v70
    %v72 = vlaneseq
    %v73 = vshrl.u32 %v72, 7
    %v74 = vsub.s32 5, %v73
    %v75 = vrot.slane %v42, %v74
    %v76 = vlaneseq
    %v77 = vshrl.u32 %v76, 7
    %v78 = vsub.s32 6, %v77
    %v79 = vrot.slane %v42, %v78
    %v80 = vlaneseq
    %v81 = vshrl.u32 %v80, 7
    %v82 = vsub.s32 7, %v81
    %v83 = vrot.slane %v42, %v82
    %v84 = vlaneseq
    %v85 = vshrl.u32 %v84, 7
    %v86 = vsub.s32 0, %v85
    %v87 = vrot.slane %v43, %v86
    %v88 = vlaneseq
    %v89 = vshrl.u32 %v88, 7
    %v90 = vsub.s32 1, %v89
    %v91 = vrot.slane %v43, %v90
    %v92 = vlaneseq
    %v93 = vshrl.u32 %v92, 7
    %v94 = vsub.s32 2, %v93
    %v95 = vrot.slane %v43, %v94
    %v96 = vlaneseq
    %v97 = vshrl.u32 %v96, 7
    %v98 = vsub.s32 3, %v97
    %v99 = vrot.slane %v43, %v98
    %v100 = vlaneseq
    %v101 = vshrl.u32 %v100, 7
    %v102 = vsub.s32 4, %v101
    %v103 = vrot.slane %v43, %v102
    %v117 = vmul.f32 %v48, %v55
    %v118 = vmul.f32 %v48, %v59
    %v119 = vmul.f32 %v48, %v63
    %v120 = vmul.f32 %v48, %v67
    %v121 = vmul.f32 %v48, %v71
    %v122 = vmul.f32 %v48, %v75
    %v123 = vmul.f32 %v48, %v79
    %v124 = vmul.f32 %v48, %v83
    %v125 = vmul.f32 %v48, %v87
    %v126 = vmul.f32 %v48, %v91
    %v127 = vmul.f32 %v48, %v95
    %v128 = vmul.f32 %v48, %v99
    %v129 = vmul.f32 %v48, %v103
    %v130 = vadd.f32 %v117, 0.0
    %v131 = vadd.f32 %v118, 0.0
    %v132 = vadd.f32 %v119, 0.0
    %v133 = vadd.f32 %v120, 0.0
    %v134 = vadd.f32 %v121, 0.0
    %v135 = vadd.f32 %v122, 0.0
    %v136 = vadd.f32 %v123, 0.0
    %v137 = vadd.f32 %v124, 0.0
    %v138 = vadd.f32 %v125, 0.0
    %v139 = vadd.f32 %v126, 0.0
    %v140 = vadd.f32 %v127, 0.0
    %v141 = vadd.f32 %v128, 0.0
    %v142 = vadd.f32 %v129, 0.0
    %143 = vset.pattern.permute.xlu0 1
    %144 = vperm.xlu0 %143, %v44
    %v145 = vpop.permute.xlu0 %144
    %v147 = vmul.f32 %v145, %v55
    %v148 = vmul.f32 %v145, %v59
    %v149 = vmul.f32 %v145, %v63
    %v150 = vmul.f32 %v145, %v67
    %v151 = vmul.f32 %v145, %v71
    %v152 = vmul.f32 %v145, %v75
    %v153 = vmul.f32 %v145, %v79
    %v154 = vmul.f32 %v145, %v83
    %v155 = vmul.f32 %v145, %v87
    %v156 = vmul.f32 %v145, %v91
    %v157 = vmul.f32 %v145, %v95
    %v158 = vmul.f32 %v145, %v99
    %v159 = vmul.f32 %v145, %v103
    %173 = vrot.lane.b32.xlu0 %v147, 127
    %v174 = vpop.permute.xlu0 %173
    %175 = vrot.lane.b32.xlu0 %v148, 127
    %v176 = vpop.permute.xlu0 %175
    %177 = vrot.lane.b32.xlu0 %v149, 127
    %v178 = vpop.permute.xlu0 %177
    %179 = vrot.lane.b32.xlu0 %v150, 127
    %v180 = vpop.permute.xlu0 %179
    %181 = vrot.lane.b32.xlu0 %v151, 127
    %v182 = vpop.permute.xlu0 %181
    %183 = vrot.lane.b32.xlu0 %v152, 127
    %v184 = vpop.permute.xlu0 %183
    %185 = vrot.lane.b32.xlu0 %v153, 127
    %v186 = vpop.permute.xlu0 %185
    %187 = vrot.lane.b32.xlu0 %v154, 127
    %v188 = vpop.permute.xlu0 %187
    %189 = vrot.lane.b32.xlu0 %v155, 127
    %v190 = vpop.permute.xlu0 %189
    %191 = vrot.lane.b32.xlu0 %v156, 127
    %v192 = vpop.permute.xlu0 %191
    %193 = vrot.lane.b32.xlu0 %v157, 127
    %v194 = vpop.permute.xlu0 %193
    %195 = vrot.lane.b32.xlu0 %v158, 127
    %v196 = vpop.permute.xlu0 %195
    %197 = vrot.lane.b32.xlu0 %v159, 127
    %v198 = vpop.permute.xlu0 %197
    %vm199 = vcmask 1039360
    %v200 = vsel %vm199, %v174, %v176
    %v201 = vsel %vm199, %v176, %v178
    %v202 = vsel %vm199, %v178, %v180
    %v203 = vsel %vm199, %v180, %v182
    %v204 = vsel %vm199, %v182, %v184
    %v205 = vsel %vm199, %v184, %v186
    %v206 = vsel %vm199, %v186, %v188
    %v207 = vsel %vm199, %v188, %v190
    %v208 = vsel %vm199, %v190, %v192
    %v209 = vsel %vm199, %v192, %v194
    %v210 = vsel %vm199, %v194, %v196
    %v211 = vsel %vm199, %v196, %v198
    %v225 = vadd.f32 %v130, %v200
    %v226 = vadd.f32 %v131, %v201
    %v227 = vadd.f32 %v132, %v202
    %v228 = vadd.f32 %v133, %v203
    %v229 = vadd.f32 %v134, %v204
    %v230 = vadd.f32 %v135, %v205
    %v231 = vadd.f32 %v136, %v206
    %v232 = vadd.f32 %v137, %v207
    %v233 = vadd.f32 %v138, %v208
    %v234 = vadd.f32 %v139, %v209
    %v235 = vadd.f32 %v140, %v210
    %v236 = vadd.f32 %v141, %v211
    %v237 = vadd.f32 %v142, %v198
    %238 = vset.pattern.permute.xlu0 2
    %239 = vperm.xlu0 %238, %v44
    %v240 = vpop.permute.xlu0 %239
    %v242 = vmul.f32 %v240, %v55
    %v243 = vmul.f32 %v240, %v59
    %v244 = vmul.f32 %v240, %v63
    %v245 = vmul.f32 %v240, %v67
    %v246 = vmul.f32 %v240, %v71
    %v247 = vmul.f32 %v240, %v75
    %v248 = vmul.f32 %v240, %v79
    %v249 = vmul.f32 %v240, %v83
    %v250 = vmul.f32 %v240, %v87
    %v251 = vmul.f32 %v240, %v91
    %v252 = vmul.f32 %v240, %v95
    %v253 = vmul.f32 %v240, %v99
    %v254 = vmul.f32 %v240, %v103
    %268 = vrot.lane.b32.xlu0 %v242, 126
    %v269 = vpop.permute.xlu0 %268
    %270 = vrot.lane.b32.xlu0 %v243, 126
    %v271 = vpop.permute.xlu0 %270
    %272 = vrot.lane.b32.xlu0 %v244, 126
    %v273 = vpop.permute.xlu0 %272
    %274 = vrot.lane.b32.xlu0 %v245, 126
    %v275 = vpop.permute.xlu0 %274
    %276 = vrot.lane.b32.xlu0 %v246, 126
    %v277 = vpop.permute.xlu0 %276
    %278 = vrot.lane.b32.xlu0 %v247, 126
    %v279 = vpop.permute.xlu0 %278
    %280 = vrot.lane.b32.xlu0 %v248, 126
    %v281 = vpop.permute.xlu0 %280
    %282 = vrot.lane.b32.xlu0 %v249, 126
    %v283 = vpop.permute.xlu0 %282
    %284 = vrot.lane.b32.xlu0 %v250, 126
    %v285 = vpop.permute.xlu0 %284
    %286 = vrot.lane.b32.xlu0 %v251, 126
    %v287 = vpop.permute.xlu0 %286
    %288 = vrot.lane.b32.xlu0 %v252, 126
    %v289 = vpop.permute.xlu0 %288
    %290 = vrot.lane.b32.xlu0 %v253, 126
    %v291 = vpop.permute.xlu0 %290
    %292 = vrot.lane.b32.xlu0 %v254, 126
    %v293 = vpop.permute.xlu0 %292
    %vm294 = vcmask 1031168
    %v295 = vsel %vm294, %v269, %v271
    %v296 = vsel %vm294, %v271, %v273
    %v297 = vsel %vm294, %v273, %v275
    %v298 = vsel %vm294, %v275, %v277
    %v299 = vsel %vm294, %v277, %v279
    %v300 = vsel %vm294, %v279, %v281
    %v301 = vsel %vm294, %v281, %v283
    %v302 = vsel %vm294, %v283, %v285
    %v303 = vsel %vm294, %v285, %v287
    %v304 = vsel %vm294, %v287, %v289
    %v305 = vsel %vm294, %v289, %v291
    %v306 = vsel %vm294, %v291, %v293
    %v320 = vadd.f32 %v225, %v295
    %v321 = vadd.f32 %v226, %v296
    %v322 = vadd.f32 %v227, %v297
    %v323 = vadd.f32 %v228, %v298
    %v324 = vadd.f32 %v229, %v299
    %v325 = vadd.f32 %v230, %v300
    %v326 = vadd.f32 %v231, %v301
    %v327 = vadd.f32 %v232, %v302
    %v328 = vadd.f32 %v233, %v303
    %v329 = vadd.f32 %v234, %v304
    %v330 = vadd.f32 %v235, %v305
    %v331 = vadd.f32 %v236, %v306
    %v332 = vadd.f32 %v237, %v293
    %333 = vset.pattern.permute.xlu0 3
    %334 = vperm.xlu0 %333, %v44
    %v335 = vpop.permute.xlu0 %334
    %v337 = vmul.f32 %v335, %v55
    %v338 = vmul.f32 %v335, %v59
    %v339 = vmul.f32 %v335, %v63
    %v340 = vmul.f32 %v335, %v67
    %v341 = vmul.f32 %v335, %v71
    %v342 = vmul.f32 %v335, %v75
    %v343 = vmul.f32 %v335, %v79
    %v344 = vmul.f32 %v335, %v83
    %v345 = vmul.f32 %v335, %v87
    %v346 = vmul.f32 %v335, %v91
    %v347 = vmul.f32 %v335, %v95
    %v348 = vmul.f32 %v335, %v99
    %v349 = vmul.f32 %v335, %v103
    %363 = vrot.lane.b32.xlu0 %v337, 100
    %v364 = vpop.permute.xlu0 %363
    %365 = vrot.lane.b32.xlu0 %v338, 100
    %v366 = vpop.permute.xlu0 %365
    %367 = vrot.lane.b32.xlu0 %v339, 100
    %v368 = vpop.permute.xlu0 %367
    %369 = vrot.lane.b32.xlu0 %v340, 100
    %v370 = vpop.permute.xlu0 %369
    %371 = vrot.lane.b32.xlu0 %v341, 100
    %v372 = vpop.permute.xlu0 %371
    %373 = vrot.lane.b32.xlu0 %v342, 100
    %v374 = vpop.permute.xlu0 %373
    %375 = vrot.lane.b32.xlu0 %v343, 100
    %v376 = vpop.permute.xlu0 %375
    %377 = vrot.lane.b32.xlu0 %v344, 100
    %v378 = vpop.permute.xlu0 %377
    %379 = vrot.lane.b32.xlu0 %v345, 100
    %v380 = vpop.permute.xlu0 %379
    %381 = vrot.lane.b32.xlu0 %v346, 100
    %v382 = vpop.permute.xlu0 %381
    %383 = vrot.lane.b32.xlu0 %v347, 100
    %v384 = vpop.permute.xlu0 %383
    %385 = vrot.lane.b32.xlu0 %v348, 100
    %v386 = vpop.permute.xlu0 %385
    %387 = vrot.lane.b32.xlu0 %v349, 100
    %v388 = vpop.permute.xlu0 %387
    %vm389 = vcmask 818176
    %v390 = vsel %vm389, %v364, %v366
    %v391 = vsel %vm389, %v366, %v368
    %v392 = vsel %vm389, %v368, %v370
    %v393 = vsel %vm389, %v370, %v372
    %v394 = vsel %vm389, %v372, %v374
    %v395 = vsel %vm389, %v374, %v376
    %v396 = vsel %vm389, %v376, %v378
    %v397 = vsel %vm389, %v378, %v380
    %v398 = vsel %vm389, %v380, %v382
    %v399 = vsel %vm389, %v382, %v384
    %v400 = vsel %vm389, %v384, %v386
    %v401 = vsel %vm389, %v386, %v388
    %v415 = vadd.f32 %v320, %v390
    %v416 = vadd.f32 %v321, %v391
    %v417 = vadd.f32 %v322, %v392
    %v418 = vadd.f32 %v323, %v393
    %v419 = vadd.f32 %v324, %v394
    %v420 = vadd.f32 %v325, %v395
    %v421 = vadd.f32 %v326, %v396
    %v422 = vadd.f32 %v327, %v397
    %v423 = vadd.f32 %v328, %v398
    %v424 = vadd.f32 %v329, %v399
    %v425 = vadd.f32 %v330, %v400
    %v426 = vadd.f32 %v331, %v401
    %v427 = vadd.f32 %v332, %v388
    %428 = vset.pattern.permute.xlu0 4
    %429 = vperm.xlu0 %428, %v44
    %v430 = vpop.permute.xlu0 %429
    %v432 = vmul.f32 %v430, %v55
    %v433 = vmul.f32 %v430, %v59
    %v434 = vmul.f32 %v430, %v63
    %v435 = vmul.f32 %v430, %v67
    %v436 = vmul.f32 %v430, %v71
    %v437 = vmul.f32 %v430, %v75
    %v438 = vmul.f32 %v430, %v79
    %v439 = vmul.f32 %v430, %v83
    %v440 = vmul.f32 %v430, %v87
    %v441 = vmul.f32 %v430, %v91
    %v442 = vmul.f32 %v430, %v95
    %v443 = vmul.f32 %v430, %v99
    %v444 = vmul.f32 %v430, %v103
    %458 = vrot.lane.b32.xlu0 %v432, 99
    %v459 = vpop.permute.xlu0 %458
    %460 = vrot.lane.b32.xlu0 %v433, 99
    %v461 = vpop.permute.xlu0 %460
    %462 = vrot.lane.b32.xlu0 %v434, 99
    %v463 = vpop.permute.xlu0 %462
    %464 = vrot.lane.b32.xlu0 %v435, 99
    %v465 = vpop.permute.xlu0 %464
    %466 = vrot.lane.b32.xlu0 %v436, 99
    %v467 = vpop.permute.xlu0 %466
    %468 = vrot.lane.b32.xlu0 %v437, 99
    %v469 = vpop.permute.xlu0 %468
    %470 = vrot.lane.b32.xlu0 %v438, 99
    %v471 = vpop.permute.xlu0 %470
    %472 = vrot.lane.b32.xlu0 %v439, 99
    %v473 = vpop.permute.xlu0 %472
    %474 = vrot.lane.b32.xlu0 %v440, 99
    %v475 = vpop.permute.xlu0 %474
    %476 = vrot.lane.b32.xlu0 %v441, 99
    %v477 = vpop.permute.xlu0 %476
    %478 = vrot.lane.b32.xlu0 %v442, 99
    %v479 = vpop.permute.xlu0 %478
    %480 = vrot.lane.b32.xlu0 %v443, 99
    %v481 = vpop.permute.xlu0 %480
    %482 = vrot.lane.b32.xlu0 %v444, 99
    %v483 = vpop.permute.xlu0 %482
    %vm484 = vcmask 809984
    %v485 = vsel %vm484, %v459, %v461
    %v486 = vsel %vm484, %v461, %v463
    %v487 = vsel %vm484, %v463, %v465
    %v488 = vsel %vm484, %v465, %v467
    %v489 = vsel %vm484, %v467, %v469
    %v490 = vsel %vm484, %v469, %v471
    %v491 = vsel %vm484, %v471, %v473
    %v492 = vsel %vm484, %v473, %v475
    %v493 = vsel %vm484, %v475, %v477
    %v494 = vsel %vm484, %v477, %v479
    %v495 = vsel %vm484, %v479, %v481
    %v496 = vsel %vm484, %v481, %v483
    %v510 = vadd.f32 %v415, %v485
    %v511 = vadd.f32 %v416, %v486
    %v512 = vadd.f32 %v417, %v487
    %v513 = vadd.f32 %v418, %v488
    %v514 = vadd.f32 %v419, %v489
    %v515 = vadd.f32 %v420, %v490
    %v516 = vadd.f32 %v421, %v491
    %v517 = vadd.f32 %v422, %v492
    %v518 = vadd.f32 %v423, %v493
    %v519 = vadd.f32 %v424, %v494
    %v520 = vadd.f32 %v425, %v495
    %v521 = vadd.f32 %v426, %v496
    %v522 = vadd.f32 %v427, %v483
    %523 = vset.pattern.permute.xlu0 5
    %524 = vperm.xlu0 %523, %v44
    %v525 = vpop.permute.xlu0 %524
    %v527 = vmul.f32 %v525, %v55
    %v528 = vmul.f32 %v525, %v59
    %v529 = vmul.f32 %v525, %v63
    %v530 = vmul.f32 %v525, %v67
    %v531 = vmul.f32 %v525, %v71
    %v532 = vmul.f32 %v525, %v75
    %v533 = vmul.f32 %v525, %v79
    %v534 = vmul.f32 %v525, %v83
    %v535 = vmul.f32 %v525, %v87
    %v536 = vmul.f32 %v525, %v91
    %v537 = vmul.f32 %v525, %v95
    %v538 = vmul.f32 %v525, %v99
    %v539 = vmul.f32 %v525, %v103
    %553 = vrot.lane.b32.xlu0 %v527, 98
    %v554 = vpop.permute.xlu0 %553
    %555 = vrot.lane.b32.xlu0 %v528, 98
    %v556 = vpop.permute.xlu0 %555
    %557 = vrot.lane.b32.xlu0 %v529, 98
    %v558 = vpop.permute.xlu0 %557
    %559 = vrot.lane.b32.xlu0 %v530, 98
    %v560 = vpop.permute.xlu0 %559
    %561 = vrot.lane.b32.xlu0 %v531, 98
    %v562 = vpop.permute.xlu0 %561
    %563 = vrot.lane.b32.xlu0 %v532, 98
    %v564 = vpop.permute.xlu0 %563
    %565 = vrot.lane.b32.xlu0 %v533, 98
    %v566 = vpop.permute.xlu0 %565
    %567 = vrot.lane.b32.xlu0 %v534, 98
    %v568 = vpop.permute.xlu0 %567
    %569 = vrot.lane.b32.xlu0 %v535, 98
    %v570 = vpop.permute.xlu0 %569
    %571 = vrot.lane.b32.xlu0 %v536, 98
    %v572 = vpop.permute.xlu0 %571
    %573 = vrot.lane.b32.xlu0 %v537, 98
    %v574 = vpop.permute.xlu0 %573
    %575 = vrot.lane.b32.xlu0 %v538, 98
    %v576 = vpop.permute.xlu0 %575
    %577 = vrot.lane.b32.xlu0 %v539, 98
    %v578 = vpop.permute.xlu0 %577
    %vm579 = vcmask 801792
    %v580 = vsel %vm579, %v554, %v556
    %v581 = vsel %vm579, %v556, %v558
    %v582 = vsel %vm579, %v558, %v560
    %v583 = vsel %vm579, %v560, %v562
    %v584 = vsel %vm579, %v562, %v564
    %v585 = vsel %vm579, %v564, %v566
    %v586 = vsel %vm579, %v566, %v568
    %v587 = vsel %vm579, %v568, %v570
    %v588 = vsel %vm579, %v570, %v572
    %v589 = vsel %vm579, %v572, %v574
    %v590 = vsel %vm579, %v574, %v576
    %v591 = vsel %vm579, %v576, %v578
    %v605 = vadd.f32 %v510, %v580
    %v606 = vadd.f32 %v511, %v581
    %v607 = vadd.f32 %v512, %v582
    %v608 = vadd.f32 %v513, %v583
    %v609 = vadd.f32 %v514, %v584
    %v610 = vadd.f32 %v515, %v585
    %v611 = vadd.f32 %v516, %v586
    %v612 = vadd.f32 %v517, %v587
    %v613 = vadd.f32 %v518, %v588
    %v614 = vadd.f32 %v519, %v589
    %v615 = vadd.f32 %v520, %v590
    %v616 = vadd.f32 %v521, %v591
    %v617 = vadd.f32 %v522, %v578
    %618 = vset.pattern.permute.xlu0 6
    %619 = vperm.xlu0 %618, %v44
    %v620 = vpop.permute.xlu0 %619
    %v622 = vmul.f32 %v620, %v55
    %v623 = vmul.f32 %v620, %v59
    %v624 = vmul.f32 %v620, %v63
    %v625 = vmul.f32 %v620, %v67
    %v626 = vmul.f32 %v620, %v71
    %v627 = vmul.f32 %v620, %v75
    %v628 = vmul.f32 %v620, %v79
    %v629 = vmul.f32 %v620, %v83
    %v630 = vmul.f32 %v620, %v87
    %v631 = vmul.f32 %v620, %v91
    %v632 = vmul.f32 %v620, %v95
    %v633 = vmul.f32 %v620, %v99
    %v634 = vmul.f32 %v620, %v103
    %648 = vrot.lane.b32.xlu0 %v622, 72
    %v649 = vpop.permute.xlu0 %648
    %650 = vrot.lane.b32.xlu0 %v623, 72
    %v651 = vpop.permute.xlu0 %650
    %652 = vrot.lane.b32.xlu0 %v624, 72
    %v653 = vpop.permute.xlu0 %652
    %654 = vrot.lane.b32.xlu0 %v625, 72
    %v655 = vpop.permute.xlu0 %654
    %656 = vrot.lane.b32.xlu0 %v626, 72
    %v657 = vpop.permute.xlu0 %656
    %658 = vrot.lane.b32.xlu0 %v627, 72
    %v659 = vpop.permute.xlu0 %658
    %660 = vrot.lane.b32.xlu0 %v628, 72
    %v661 = vpop.permute.xlu0 %660
    %662 = vrot.lane.b32.xlu0 %v629, 72
    %v663 = vpop.permute.xlu0 %662
    %664 = vrot.lane.b32.xlu0 %v630, 72
    %v665 = vpop.permute.xlu0 %664
    %666 = vrot.lane.b32.xlu0 %v631, 72
    %v667 = vpop.permute.xlu0 %666
    %668 = vrot.lane.b32.xlu0 %v632, 72
    %v669 = vpop.permute.xlu0 %668
    %670 = vrot.lane.b32.xlu0 %v633, 72
    %v671 = vpop.permute.xlu0 %670
    %672 = vrot.lane.b32.xlu0 %v634, 72
    %v673 = vpop.permute.xlu0 %672
    %vm674 = vcmask 588800
    %v675 = vsel %vm674, %v649, %v651
    %v676 = vsel %vm674, %v651, %v653
    %v677 = vsel %vm674, %v653, %v655
    %v678 = vsel %vm674, %v655, %v657
    %v679 = vsel %vm674, %v657, %v659
    %v680 = vsel %vm674, %v659, %v661
    %v681 = vsel %vm674, %v661, %v663
    %v682 = vsel %vm674, %v663, %v665
    %v683 = vsel %vm674, %v665, %v667
    %v684 = vsel %vm674, %v667, %v669
    %v685 = vsel %vm674, %v669, %v671
    %v686 = vsel %vm674, %v671, %v673
    %v700 = vadd.f32 %v605, %v675
    %v701 = vadd.f32 %v606, %v676
    %v702 = vadd.f32 %v607, %v677
    %v703 = vadd.f32 %v608, %v678
    %v704 = vadd.f32 %v609, %v679
    %v705 = vadd.f32 %v610, %v680
    %v706 = vadd.f32 %v611, %v681
    %v707 = vadd.f32 %v612, %v682
    %v708 = vadd.f32 %v613, %v683
    %v709 = vadd.f32 %v614, %v684
    %v710 = vadd.f32 %v615, %v685
    %v711 = vadd.f32 %v616, %v686
    %v712 = vadd.f32 %v617, %v673
    %713 = vset.pattern.permute.xlu0 7
    %714 = vperm.xlu0 %713, %v44
    %v715 = vpop.permute.xlu0 %714
    %v717 = vmul.f32 %v715, %v55
    %v718 = vmul.f32 %v715, %v59
    %v719 = vmul.f32 %v715, %v63
    %v720 = vmul.f32 %v715, %v67
    %v721 = vmul.f32 %v715, %v71
    %v722 = vmul.f32 %v715, %v75
    %v723 = vmul.f32 %v715, %v79
    %v724 = vmul.f32 %v715, %v83
    %v725 = vmul.f32 %v715, %v87
    %v726 = vmul.f32 %v715, %v91
    %v727 = vmul.f32 %v715, %v95
    %v728 = vmul.f32 %v715, %v99
    %v729 = vmul.f32 %v715, %v103
    %743 = vrot.lane.b32.xlu0 %v717, 71
    %v744 = vpop.permute.xlu0 %743
    %745 = vrot.lane.b32.xlu0 %v718, 71
    %v746 = vpop.permute.xlu0 %745
    %747 = vrot.lane.b32.xlu0 %v719, 71
    %v748 = vpop.permute.xlu0 %747
    %749 = vrot.lane.b32.xlu0 %v720, 71
    %v750 = vpop.permute.xlu0 %749
    %751 = vrot.lane.b32.xlu0 %v721, 71
    %v752 = vpop.permute.xlu0 %751
    %753 = vrot.lane.b32.xlu0 %v722, 71
    %v754 = vpop.permute.xlu0 %753
    %755 = vrot.lane.b32.xlu0 %v723, 71
    %v756 = vpop.permute.xlu0 %755
    %757 = vrot.lane.b32.xlu0 %v724, 71
    %v758 = vpop.permute.xlu0 %757
    %759 = vrot.lane.b32.xlu0 %v725, 71
    %v760 = vpop.permute.xlu0 %759
    %761 = vrot.lane.b32.xlu0 %v726, 71
    %v762 = vpop.permute.xlu0 %761
    %763 = vrot.lane.b32.xlu0 %v727, 71
    %v764 = vpop.permute.xlu0 %763
    %765 = vrot.lane.b32.xlu0 %v728, 71
    %v766 = vpop.permute.xlu0 %765
    %767 = vrot.lane.b32.xlu0 %v729, 71
    %v768 = vpop.permute.xlu0 %767
    %vm769 = vcmask 580608
    %v770 = vsel %vm769, %v744, %v746
    %v771 = vsel %vm769, %v746, %v748
    %v772 = vsel %vm769, %v748, %v750
    %v773 = vsel %vm769, %v750, %v752
    %v774 = vsel %vm769, %v752, %v754
    %v775 = vsel %vm769, %v754, %v756
    %v776 = vsel %vm769, %v756, %v758
    %v777 = vsel %vm769, %v758, %v760
    %v778 = vsel %vm769, %v760, %v762
    %v779 = vsel %vm769, %v762, %v764
    %v780 = vsel %vm769, %v764, %v766
    %v781 = vsel %vm769, %v766, %v768
    %v795 = vadd.f32 %v700, %v770
    %v796 = vadd.f32 %v701, %v771
    %v797 = vadd.f32 %v702, %v772
    %v798 = vadd.f32 %v703, %v773
    %v799 = vadd.f32 %v704, %v774
    %v800 = vadd.f32 %v705, %v775
    %v801 = vadd.f32 %v706, %v776
    %v802 = vadd.f32 %v707, %v777
    %v803 = vadd.f32 %v708, %v778
    %v804 = vadd.f32 %v709, %v779
    %v805 = vadd.f32 %v710, %v780
    %v806 = vadd.f32 %v711, %v781
    %v807 = vadd.f32 %v712, %v768
    %808 = vset.pattern.permute.xlu0 8
    %809 = vperm.xlu0 %808, %v44
    %v810 = vpop.permute.xlu0 %809
    %v812 = vmul.f32 %v810, %v55
    %v813 = vmul.f32 %v810, %v59
    %v814 = vmul.f32 %v810, %v63
    %v815 = vmul.f32 %v810, %v67
    %v816 = vmul.f32 %v810, %v71
    %v817 = vmul.f32 %v810, %v75
    %v818 = vmul.f32 %v810, %v79
    %v819 = vmul.f32 %v810, %v83
    %v820 = vmul.f32 %v810, %v87
    %v821 = vmul.f32 %v810, %v91
    %v822 = vmul.f32 %v810, %v95
    %v823 = vmul.f32 %v810, %v99
    %v824 = vmul.f32 %v810, %v103
    %838 = vrot.lane.b32.xlu0 %v812, 70
    %v839 = vpop.permute.xlu0 %838
    %840 = vrot.lane.b32.xlu0 %v813, 70
    %v841 = vpop.permute.xlu0 %840
    %842 = vrot.lane.b32.xlu0 %v814, 70
    %v843 = vpop.permute.xlu0 %842
    %844 = vrot.lane.b32.xlu0 %v815, 70
    %v845 = vpop.permute.xlu0 %844
    %846 = vrot.lane.b32.xlu0 %v816, 70
    %v847 = vpop.permute.xlu0 %846
    %848 = vrot.lane.b32.xlu0 %v817, 70
    %v849 = vpop.permute.xlu0 %848
    %850 = vrot.lane.b32.xlu0 %v818, 70
    %v851 = vpop.permute.xlu0 %850
    %852 = vrot.lane.b32.xlu0 %v819, 70
    %v853 = vpop.permute.xlu0 %852
    %854 = vrot.lane.b32.xlu0 %v820, 70
    %v855 = vpop.permute.xlu0 %854
    %856 = vrot.lane.b32.xlu0 %v821, 70
    %v857 = vpop.permute.xlu0 %856
    %858 = vrot.lane.b32.xlu0 %v822, 70
    %v859 = vpop.permute.xlu0 %858
    %860 = vrot.lane.b32.xlu0 %v823, 70
    %v861 = vpop.permute.xlu0 %860
    %862 = vrot.lane.b32.xlu0 %v824, 70
    %v863 = vpop.permute.xlu0 %862
    %vm864 = vcmask 572416
    %v865 = vsel %vm864, %v839, %v841
    %v866 = vsel %vm864, %v841, %v843
    %v867 = vsel %vm864, %v843, %v845
    %v868 = vsel %vm864, %v845, %v847
    %v869 = vsel %vm864, %v847, %v849
    %v870 = vsel %vm864, %v849, %v851
    %v871 = vsel %vm864, %v851, %v853
    %v872 = vsel %vm864, %v853, %v855
    %v873 = vsel %vm864, %v855, %v857
    %v874 = vsel %vm864, %v857, %v859
    %v875 = vsel %vm864, %v859, %v861
    %v876 = vsel %vm864, %v861, %v863
    %v890 = vadd.f32 %v795, %v865
    %v891 = vadd.f32 %v796, %v866
    %v892 = vadd.f32 %v797, %v867
    %v893 = vadd.f32 %v798, %v868
    %v894 = vadd.f32 %v799, %v869
    %v895 = vadd.f32 %v800, %v870
    %v896 = vadd.f32 %v801, %v871
    %v897 = vadd.f32 %v802, %v872
    %v898 = vadd.f32 %v803, %v873
    %v899 = vadd.f32 %v804, %v874
    %v900 = vadd.f32 %v805, %v875
    %v901 = vadd.f32 %v806, %v876
    %v902 = vadd.f32 %v807, %v863
    %v903 = vld [vmem:[%s2] sm:$0x3f]
    %905 = vset.pattern.permute.xlu0 0
    %906 = vperm.xlu0 %905, %v903
    %v907 = vpop.permute.xlu0 %906
    %v909 = vadd.f32 %v890, %v907
    %v910 = vadd.f32 %v891, %v907
    %v911 = vadd.f32 %v892, %v907
    %v912 = vadd.f32 %v893, %v907
    %v913 = vadd.f32 %v894, %v907
    %v914 = vadd.f32 %v895, %v907
    %v915 = vadd.f32 %v896, %v907
    %v916 = vadd.f32 %v897, %v907
    %v917 = vadd.f32 %v898, %v907
    %v918 = vadd.f32 %v899, %v907
    %v919 = vadd.f32 %v900, %v907
    %v920 = vadd.f32 %v901, %v907
    %v921 = vadd.f32 %v902, %v907
    %v922 = vmax.f32 %v909, 0.0
    %v923 = vmax.f32 %v910, 0.0
    %v924 = vmax.f32 %v911, 0.0
    %v925 = vmax.f32 %v912, 0.0
    %v926 = vmax.f32 %v913, 0.0
    %v927 = vmax.f32 %v914, 0.0
    %v928 = vmax.f32 %v915, 0.0
    %v929 = vmax.f32 %v916, 0.0
    %v930 = vmax.f32 %v917, 0.0
    %v931 = vmax.f32 %v918, 0.0
    %v932 = vmax.f32 %v919, 0.0
    %v933 = vmax.f32 %v920, 0.0
    %v934 = vmax.f32 %v921, 0.0
    %948 = vrot.lane.b32.xlu0 %v922, 127
    %v949 = vpop.permute.xlu0 %948
    %950 = vrot.lane.b32.xlu0 %v923, 127
    %v951 = vpop.permute.xlu0 %950
    %952 = vrot.lane.b32.xlu0 %v924, 127
    %v953 = vpop.permute.xlu0 %952
    %954 = vrot.lane.b32.xlu0 %v925, 127
    %v955 = vpop.permute.xlu0 %954
    %956 = vrot.lane.b32.xlu0 %v926, 127
    %v957 = vpop.permute.xlu0 %956
    %958 = vrot.lane.b32.xlu0 %v927, 127
    %v959 = vpop.permute.xlu0 %958
    %960 = vrot.lane.b32.xlu0 %v928, 127
    %v961 = vpop.permute.xlu0 %960
    %962 = vrot.lane.b32.xlu0 %v929, 127
    %v963 = vpop.permute.xlu0 %962
    %964 = vrot.lane.b32.xlu0 %v930, 127
    %v965 = vpop.permute.xlu0 %964
    %966 = vrot.lane.b32.xlu0 %v931, 127
    %v967 = vpop.permute.xlu0 %966
    %968 = vrot.lane.b32.xlu0 %v932, 127
    %v969 = vpop.permute.xlu0 %968
    %970 = vrot.lane.b32.xlu0 %v933, 127
    %v971 = vpop.permute.xlu0 %970
    %972 = vrot.lane.b32.xlu0 %v934, 127
    %v973 = vpop.permute.xlu0 %972
    %v974 = vsel %vm199, %v949, %v951
    %v975 = vsel %vm199, %v951, %v953
    %v976 = vsel %vm199, %v953, %v955
    %v977 = vsel %vm199, %v955, %v957
    %v978 = vsel %vm199, %v957, %v959
    %v979 = vsel %vm199, %v959, %v961
    %v980 = vsel %vm199, %v961, %v963
    %v981 = vsel %vm199, %v963, %v965
    %v982 = vsel %vm199, %v965, %v967
    %v983 = vsel %vm199, %v967, %v969
    %v984 = vsel %vm199, %v969, %v971
    %v985 = vsel %vm199, %v971, %v973
    %v999 = vmax.f32 %v922, %v974
    %v1000 = vmax.f32 %v923, %v975
    %v1001 = vmax.f32 %v924, %v976
    %v1002 = vmax.f32 %v925, %v977
    %v1003 = vmax.f32 %v926, %v978
    %v1004 = vmax.f32 %v927, %v979
    %v1005 = vmax.f32 %v928, %v980
    %v1006 = vmax.f32 %v929, %v981
    %v1007 = vmax.f32 %v930, %v982
    %v1008 = vmax.f32 %v931, %v983
    %v1009 = vmax.f32 %v932, %v984
    %v1010 = vmax.f32 %v933, %v985
    %v1011 = vmax.f32 %v934, %v973
    %1025 = vrot.lane.b32.xlu0 %v999, 100
    %v1026 = vpop.permute.xlu0 %1025
    %1027 = vrot.lane.b32.xlu0 %v1000, 100
    %v1028 = vpop.permute.xlu0 %1027
    %1029 = vrot.lane.b32.xlu0 %v1001, 100
    %v1030 = vpop.permute.xlu0 %1029
    %1031 = vrot.lane.b32.xlu0 %v1002, 100
    %v1032 = vpop.permute.xlu0 %1031
    %1033 = vrot.lane.b32.xlu0 %v1003, 100
    %v1034 = vpop.permute.xlu0 %1033
    %1035 = vrot.lane.b32.xlu0 %v1004, 100
    %v1036 = vpop.permute.xlu0 %1035
    %1037 = vrot.lane.b32.xlu0 %v1005, 100
    %v1038 = vpop.permute.xlu0 %1037
    %1039 = vrot.lane.b32.xlu0 %v1006, 100
    %v1040 = vpop.permute.xlu0 %1039
    %1041 = vrot.lane.b32.xlu0 %v1007, 100
    %v1042 = vpop.permute.xlu0 %1041
    %1043 = vrot.lane.b32.xlu0 %v1008, 100
    %v1044 = vpop.permute.xlu0 %1043
    %1045 = vrot.lane.b32.xlu0 %v1009, 100
    %v1046 = vpop.permute.xlu0 %1045
    %1047 = vrot.lane.b32.xlu0 %v1010, 100
    %v1048 = vpop.permute.xlu0 %1047
    %1049 = vrot.lane.b32.xlu0 %v1011, 100
    %v1050 = vpop.permute.xlu0 %1049
    %v1051 = vsel %vm389, %v1026, %v1028
    %v1052 = vsel %vm389, %v1028, %v1030
    %v1053 = vsel %vm389, %v1030, %v1032
    %v1054 = vsel %vm389, %v1032, %v1034
    %v1055 = vsel %vm389, %v1034, %v1036
    %v1056 = vsel %vm389, %v1036, %v1038
    %v1057 = vsel %vm389, %v1038, %v1040
    %v1058 = vsel %vm389, %v1040, %v1042
    %v1059 = vsel %vm389, %v1042, %v1044
    %v1060 = vsel %vm389, %v1044, %v1046
    %v1061 = vsel %vm389, %v1046, %v1048
    %v1062 = vsel %vm389, %v1048, %v1050
    %v1076 = vmax.f32 %v999, %v1051
    %v1077 = vmax.f32 %v1000, %v1052
    %v1078 = vmax.f32 %v1001, %v1053
    %v1079 = vmax.f32 %v1002, %v1054
    %v1080 = vmax.f32 %v1003, %v1055
    %v1081 = vmax.f32 %v1004, %v1056
    %v1082 = vmax.f32 %v1005, %v1057
    %v1083 = vmax.f32 %v1006, %v1058
    %v1084 = vmax.f32 %v1007, %v1059
    %v1085 = vmax.f32 %v1008, %v1060
    %v1086 = vmax.f32 %v1009, %v1061
    %v1087 = vmax.f32 %v1010, %v1062
    %v1088 = vmax.f32 %v1011, %v1050
    %v1089 = vld [vmem:[%s3] sm:$0xff]
    %v1090 = vld [vmem:[%s3 + $0x8] sm:$0xff]
    %s1091 = scalar_lea.vmem %s3, 16
    %v1092 = vld [vmem:[%s1091] sm:$0xff]
    %v1093 = vld [vmem:[%s1091 + $0x8] sm:$0xff]
    %1106 = vrot.lane.b32.xlu0 %v1076, 126
    %v1107 = vpop.permute.xlu0 %1106
    %1108 = vrot.lane.b32.xlu0 %v1077, 126
    %v1109 = vpop.permute.xlu0 %1108
    %1110 = vrot.lane.b32.xlu0 %v1078, 126
    %v1111 = vpop.permute.xlu0 %1110
    %1112 = vrot.lane.b32.xlu0 %v1079, 126
    %v1113 = vpop.permute.xlu0 %1112
    %1114 = vrot.lane.b32.xlu0 %v1080, 126
    %v1115 = vpop.permute.xlu0 %1114
    %1116 = vrot.lane.b32.xlu0 %v1081, 126
    %v1117 = vpop.permute.xlu0 %1116
    %1118 = vrot.lane.b32.xlu0 %v1082, 126
    %v1119 = vpop.permute.xlu0 %1118
    %1120 = vrot.lane.b32.xlu0 %v1083, 126
    %v1121 = vpop.permute.xlu0 %1120
    %1122 = vrot.lane.b32.xlu0 %v1084, 126
    %v1123 = vpop.permute.xlu0 %1122
    %1124 = vrot.lane.b32.xlu0 %v1085, 126
    %v1125 = vpop.permute.xlu0 %1124
    %1126 = vrot.lane.b32.xlu0 %v1086, 126
    %v1127 = vpop.permute.xlu0 %1126
    %1128 = vrot.lane.b32.xlu0 %v1087, 126
    %v1129 = vpop.permute.xlu0 %1128
    %v1130 = vsel %vm294, %v1107, %v1109
    %v1131 = vsel %vm294, %v1109, %v1111
    %v1132 = vsel %vm294, %v1111, %v1113
    %v1133 = vsel %vm294, %v1113, %v1115
    %v1134 = vsel %vm294, %v1115, %v1117
    %v1135 = vsel %vm294, %v1117, %v1119
    %v1136 = vsel %vm294, %v1119, %v1121
    %v1137 = vsel %vm294, %v1121, %v1123
    %v1138 = vsel %vm294, %v1123, %v1125
    %v1139 = vsel %vm294, %v1125, %v1127
    %v1140 = vsel %vm294, %v1127, %v1129
    %vm1141 = vcmask 48128
    %v1143 = vsel %vm1141, %v1092, 0
    %v1146 = vsel %vm1141, %v1093, 0
    %vm1148 = vcmask 1045504
    %v1149 = vsel %vm1148, %v1130, 0
    %v1151 = vsel %vm1148, %v1131, 0
    %v1153 = vsel %vm1148, %v1132, 0
    %v1155 = vsel %vm1148, %v1133, 0
    %v1157 = vsel %vm1148, %v1134, 0
    %v1159 = vsel %vm1148, %v1135, 0
    %v1161 = vsel %vm1148, %v1136, 0
    %v1163 = vsel %vm1148, %v1137, 0
    %v1165 = vsel %vm1148, %v1138, 0
    %v1167 = vsel %vm1148, %v1139, 0
    %v1169 = vsel %vm1148, %v1140, 0
    %v1171 = vsel %vm1148, %v1129, 0
    %1173 = vmatprep.subr.mxu0 %v1151
    %1174 = vmatpush1.msra.mxu0 %v1149
    %1175 = vmatprep.subr.mxu0 0.0
    %1176 = vmatpush1.msra.mxu0 0.0
    %1177 = vmatprep.subr.mxu0 0.0
    %1178 = vmatpush1.msra.mxu0 0.0
    %1179 = vmatprep.subr.mxu0 0.0
    %1180 = vmatpush1.msra.mxu0 0.0
    %1181 = vmatprep.subr.mxu0 0.0
    %1182 = vmatpush1.msra.mxu0 0.0
    %1183 = vmatprep.subr.mxu0 0.0
    %1184 = vmatpush1.msra.mxu0 0.0
    %1185 = vmatprep.subr.mxu0 0.0
    %1186 = vmatpush1.msra.mxu0 0.0
    %1187 = vmatprep.subr.mxu0 0.0
    %1188 = vmatpush1.msra.mxu0 0.0
    %1189 = vmatprep.subr.mxu0 0.0
    %1190 = vmatpush1.msra.mxu0 0.0
    %1191 = vmatprep.subr.mxu0 0.0
    %1192 = vmatpush1.msra.mxu0 0.0
    %1193 = vmatprep.subr.mxu0 0.0
    %1194 = vmatpush1.msra.mxu0 0.0
    %1195 = vmatprep.subr.mxu0 0.0
    %1196 = vmatpush1.msra.mxu0 0.0
    %1197 = vmatprep.subr.mxu0 0.0
    %1198 = vmatpush1.msra.mxu0 0.0
    %1199 = vmatprep.subr.mxu0 0.0
    %1200 = vmatpush1.msra.mxu0 0.0
    %1201 = vmatprep.subr.mxu0 0.0
    %1202 = vmatpush1.msra.mxu0 0.0
    %1203 = vmatprep.subr.mxu0 0.0
    %1204 = vmatpush1.msra.mxu0 0.0
    %1205 = vmatprep.subr.mxu0 0.0
    %1206 = vmatpush1.msra.mxu0 0.0
    %1207 = vmatprep.subr.mxu0 0.0
    %1208 = vmatpush1.msra.mxu0 0.0
    %1209 = vmatprep.subr.mxu0 0.0
    %1210 = vmatpush1.msra.mxu0 0.0
    %1211 = vmatprep.subr.mxu0 0.0
    %1212 = vmatpush1.msra.mxu0 0.0
    %1213 = vmatprep.subr.mxu0 0.0
    %1214 = vmatpush1.msra.mxu0 0.0
    %1215 = vmatprep.subr.mxu0 0.0
    %1216 = vmatpush1.msra.mxu0 0.0
    %1217 = vmatprep.subr.mxu0 0.0
    %1218 = vmatpush1.msra.mxu0 0.0
    %1219 = vmatprep.subr.mxu0 0.0
    %1220 = vmatpush1.msra.mxu0 0.0
    %1221 = vmatprep.subr.mxu0 0.0
    %1222 = vmatpush1.msra.mxu0 0.0
    %1223 = vmatprep.subr.mxu0 0.0
    %1224 = vmatpush1.msra.mxu0 0.0
    %1225 = vmatprep.subr.mxu0 0.0
    %1226 = vmatpush1.msra.mxu0 0.0
    %1227 = vmatprep.subr.mxu0 0.0
    %1228 = vmatpush1.msra.mxu0 0.0
    %1229 = vmatprep.subr.mxu0 0.0
    %1230 = vmatpush1.msra.mxu0 0.0
    %1231 = vmatprep.subr.mxu0 0.0
    %1232 = vmatpush1.msra.mxu0 0.0
    %1233 = vmatprep.subr.mxu0 0.0
    %1234 = vmatpush1.msra.mxu0 0.0
    %1235 = vmatprep.subr.mxu0 0.0
    %1236 = vmatpush1.msra.mxu0 0.0
    %1237 = vmatprep.mubr.f32.mxu0 0.0
    %1238 = vmatmul.mubr.f32.gmra.mrb[0].mxu0 %v1143
    %v1239 = vpop.f32.mrb[0].mxu0
    %v1240 = vadd.f32 0.0, %v1239
    %v1241 = vpop.f32.mrb[0].mxu0
    %v1242 = vadd.f32 0.0, %v1241
    %1243 = vmatprep.mubr.f32.mxu0 0.0
    %1244 = vmatmul.mubr.f32.gmra.mrb[0].mxu0 %v1146
    %v1245 = vpop.f32.mrb[0].mxu0
    %v1246 = vadd.f32 0.0, %v1245
    %v1247 = vpop.f32.mrb[0].mxu0
    %v1248 = vadd.f32 0.0, %v1247
    %1249 = vdwg.mxu0
    %1250 = vmatprep.subr.mxu0 %v1155
    %1251 = vmatpush1.msra.mxu0 %v1153
    %1252 = vmatprep.subr.mxu0 0.0
    %1253 = vmatpush1.msra.mxu0 0.0
    %1254 = vmatprep.subr.mxu0 0.0
    %1255 = vmatpush1.msra.mxu0 0.0
    %1256 = vmatprep.subr.mxu0 0.0
    %1257 = vmatpush1.msra.mxu0 0.0
    %1258 = vmatprep.subr.mxu0 0.0
    %1259 = vmatpush1.msra.mxu0 0.0
    %1260 = vmatprep.subr.mxu0 0.0
    %1261 = vmatpush1.msra.mxu0 0.0
    %1262 = vmatprep.subr.mxu0 0.0
    %1263 = vmatpush1.msra.mxu0 0.0
    %1264 = vmatprep.subr.mxu0 0.0
    %1265 = vmatpush1.msra.mxu0 0.0
    %1266 = vmatprep.subr.mxu0 0.0
    %1267 = vmatpush1.msra.mxu0 0.0
    %1268 = vmatprep.subr.mxu0 0.0
    %1269 = vmatpush1.msra.mxu0 0.0
    %1270 = vmatprep.subr.mxu0 0.0
    %1271 = vmatpush1.msra.mxu0 0.0
    %1272 = vmatprep.subr.mxu0 0.0
    %1273 = vmatpush1.msra.mxu0 0.0
    %1274 = vmatprep.subr.mxu0 0.0
    %1275 = vmatpush1.msra.mxu0 0.0
    %1276 = vmatprep.subr.mxu0 0.0
    %1277 = vmatpush1.msra.mxu0 0.0
    %1278 = vmatprep.subr.mxu0 0.0
    %1279 = vmatpush1.msra.mxu0 0.0
    %1280 = vmatprep.subr.mxu0 0.0
    %1281 = vmatpush1.msra.mxu0 0.0
    %1282 = vmatprep.subr.mxu0 0.0
    %1283 = vmatpush1.msra.mxu0 0.0
    %1284 = vmatprep.subr.mxu0 0.0
    %1285 = vmatpush1.msra.mxu0 0.0
    %1286 = vmatprep.subr.mxu0 0.0
    %1287 = vmatpush1.msra.mxu0 0.0
    %1288 = vmatprep.subr.mxu0 0.0
    %1289 = vmatpush1.msra.mxu0 0.0
    %1290 = vmatprep.subr.mxu0 0.0
    %1291 = vmatpush1.msra.mxu0 0.0
    %1292 = vmatprep.subr.mxu0 0.0
    %1293 = vmatpush1.msra.mxu0 0.0
    %1294 = vmatprep.subr.mxu0 0.0
    %1295 = vmatpush1.msra.mxu0 0.0
    %1296 = vmatprep.subr.mxu0 0.0
    %1297 = vmatpush1.msra.mxu0 0.0
    %1298 = vmatprep.subr.mxu0 0.0
    %1299 = vmatpush1.msra.mxu0 0.0
    %1300 = vmatprep.subr.mxu0 0.0
    %1301 = vmatpush1.msra.mxu0 0.0
    %1302 = vmatprep.subr.mxu0 0.0
    %1303 = vmatpush1.msra.mxu0 0.0
    %1304 = vmatprep.subr.mxu0 0.0
    %1305 = vmatpush1.msra.mxu0 0.0
    %1306 = vmatprep.subr.mxu0 0.0
    %1307 = vmatpush1.msra.mxu0 0.0
    %1308 = vmatprep.subr.mxu0 0.0
    %1309 = vmatpush1.msra.mxu0 0.0
    %1310 = vmatprep.subr.mxu0 0.0
    %1311 = vmatpush1.msra.mxu0 0.0
    %1312 = vmatprep.subr.mxu0 0.0
    %1313 = vmatpush1.msra.mxu0 0.0
    %1314 = vmatprep.mubr.f32.mxu0 0.0
    %1315 = vmatmul.mubr.f32.gmra.mrb[0].mxu0 %v1143
    %v1316 = vpop.f32.mrb[0].mxu0
    %v1317 = vadd.f32 0.0, %v1316
    %v1318 = vpop.f32.mrb[0].mxu0
    %v1319 = vadd.f32 0.0, %v1318
    %1320 = vmatprep.mubr.f32.mxu0 0.0
    %1321 = vmatmul.mubr.f32.gmra.mrb[0].mxu0 %v1146
    %v1322 = vpop.f32.mrb[0].mxu0
    %v1323 = vadd.f32 0.0, %v1322
    %v1324 = vpop.f32.mrb[0].mxu0
    %v1325 = vadd.f32 0.0, %v1324
    %1326 = vdwg.mxu0
    %1327 = vmatprep.subr.mxu0 %v1159
    %1328 = vmatpush1.msra.mxu0 %v1157
    %1329 = vmatprep.subr.mxu0 0.0
    %1330 = vmatpush1.msra.mxu0 0.0
    %1331 = vmatprep.subr.mxu0 0.0
    %1332 = vmatpush1.msra.mxu0 0.0
    %1333 = vmatprep.subr.mxu0 0.0
    %1334 = vmatpush1.msra.mxu0 0.0
    %1335 = vmatprep.subr.mxu0 0.0
    %1336 = vmatpush1.msra.mxu0 0.0
    %1337 = vmatprep.subr.mxu0 0.0
    %1338 = vmatpush1.msra.mxu0 0.0
    %1339 = vmatprep.subr.mxu0 0.0
    %1340 = vmatpush1.msra.mxu0 0.0
    %1341 = vmatprep.subr.mxu0 0.0
    %1342 = vmatpush1.msra.mxu0 0.0
    %1343 = vmatprep.subr.mxu0 0.0
    %1344 = vmatpush1.msra.mxu0 0.0
    %1345 = vmatprep.subr.mxu0 0.0
    %1346 = vmatpush1.msra.mxu0 0.0
    %1347 = vmatprep.subr.mxu0 0.0
    %1348 = vmatpush1.msra.mxu0 0.0
    %1349 = vmatprep.subr.mxu0 0.0
    %1350 = vmatpush1.msra.mxu0 0.0
    %1351 = vmatprep.subr.mxu0 0.0
    %1352 = vmatpush1.msra.mxu0 0.0
    %1353 = vmatprep.subr.mxu0 0.0
    %1354 = vmatpush1.msra.mxu0 0.0
    %1355 = vmatprep.subr.mxu0 0.0
    %1356 = vmatpush1.msra.mxu0 0.0
    %1357 = vmatprep.subr.mxu0 0.0
    %1358 = vmatpush1.msra.mxu0 0.0
    %1359 = vmatprep.subr.mxu0 0.0
    %1360 = vmatpush1.msra.mxu0 0.0
    %1361 = vmatprep.subr.mxu0 0.0
    %1362 = vmatpush1.msra.mxu0 0.0
    %1363 = vmatprep.subr.mxu0 0.0
    %1364 = vmatpush1.msra.mxu0 0.0
    %1365 = vmatprep.subr.mxu0 0.0
    %1366 = vmatpush1.msra.mxu0 0.0
    %1367 = vmatprep.subr.mxu0 0.0
    %1368 = vmatpush1.msra.mxu0 0.0
    %1369 = vmatprep.subr.mxu0 0.0
    %1370 = vmatpush1.msra.mxu0 0.0
    %1371 = vmatprep.subr.mxu0 0.0
    %1372 = vmatpush1.msra.mxu0 0.0
    %1373 = vmatprep.subr.mxu0 0.0
    %1374 = vmatpush1.msra.mxu0 0.0
    %1375 = vmatprep.subr.mxu0 0.0
    %1376 = vmatpush1.msra.mxu0 0.0
    %1377 = vmatprep.subr.mxu0 0.0
    %1378 = vmatpush1.msra.mxu0 0.0
    %1379 = vmatprep.subr.mxu0 0.0
    %1380 = vmatpush1.msra.mxu0 0.0
    %1381 = vmatprep.subr.mxu0 0.0
    %1382 = vmatpush1.msra.mxu0 0.0
    %1383 = vmatprep.subr.mxu0 0.0
    %1384 = vmatpush1.msra.mxu0 0.0
    %1385 = vmatprep.subr.mxu0 0.0
    %1386 = vmatpush1.msra.mxu0 0.0
    %1387 = vmatprep.subr.mxu0 0.0
    %1388 = vmatpush1.msra.mxu0 0.0
    %1389 = vmatprep.subr.mxu0 0.0
    %1390 = vmatpush1.msra.mxu0 0.0
    %1391 = vmatprep.mubr.f32.mxu0 0.0
    %1392 = vmatmul.mubr.f32.gmra.mrb[0].mxu0 %v1143
    %v1393 = vpop.f32.mrb[0].mxu0
    %v1394 = vadd.f32 0.0, %v1393
    %v1395 = vpop.f32.mrb[0].mxu0
    %v1396 = vadd.f32 0.0, %v1395
    %1397 = vmatprep.mubr.f32.mxu0 0.0
    %1398 = vmatmul.mubr.f32.gmra.mrb[0].mxu0 %v1146
    %v1399 = vpop.f32.mrb[0].mxu0
    %v1400 = vadd.f32 0.0, %v1399
    %v1401 = vpop.f32.mrb[0].mxu0
    %v1402 = vadd.f32 0.0, %v1401
    %1403 = vdwg.mxu0
    %1404 = vmatprep.subr.mxu0 %v1163
    %1405 = vmatpush1.msra.mxu0 %v1161
    %1406 = vmatprep.subr.mxu0 0.0
    %1407 = vmatpush1.msra.mxu0 0.0
    %1408 = vmatprep.subr.mxu0 0.0
    %1409 = vmatpush1.msra.mxu0 0.0
    %1410 = vmatprep.subr.mxu0 0.0
    %1411 = vmatpush1.msra.mxu0 0.0
    %1412 = vmatprep.subr.mxu0 0.0
    %1413 = vmatpush1.msra.mxu0 0.0
    %1414 = vmatprep.subr.mxu0 0.0
    %1415 = vmatpush1.msra.mxu0 0.0
    %1416 = vmatprep.subr.mxu0 0.0
    %1417 = vmatpush1.msra.mxu0 0.0
    %1418 = vmatprep.subr.mxu0 0.0
    %1419 = vmatpush1.msra.mxu0 0.0
    %1420 = vmatprep.subr.mxu0 0.0
    %1421 = vmatpush1.msra.mxu0 0.0
    %1422 = vmatprep.subr.mxu0 0.0
    %1423 = vmatpush1.msra.mxu0 0.0
    %1424 = vmatprep.subr.mxu0 0.0
    %1425 = vmatpush1.msra.mxu0 0.0
    %1426 = vmatprep.subr.mxu0 0.0
    %1427 = vmatpush1.msra.mxu0 0.0
    %1428 = vmatprep.subr.mxu0 0.0
    %1429 = vmatpush1.msra.mxu0 0.0
    %1430 = vmatprep.subr.mxu0 0.0
    %1431 = vmatpush1.msra.mxu0 0.0
    %1432 = vmatprep.subr.mxu0 0.0
    %1433 = vmatpush1.msra.mxu0 0.0
    %1434 = vmatprep.subr.mxu0 0.0
    %1435 = vmatpush1.msra.mxu0 0.0
    %1436 = vmatprep.subr.mxu0 0.0
    %1437 = vmatpush1.msra.mxu0 0.0
    %1438 = vmatprep.subr.mxu0 0.0
    %1439 = vmatpush1.msra.mxu0 0.0
    %1440 = vmatprep.subr.mxu0 0.0
    %1441 = vmatpush1.msra.mxu0 0.0
    %1442 = vmatprep.subr.mxu0 0.0
    %1443 = vmatpush1.msra.mxu0 0.0
    %1444 = vmatprep.subr.mxu0 0.0
    %1445 = vmatpush1.msra.mxu0 0.0
    %1446 = vmatprep.subr.mxu0 0.0
    %1447 = vmatpush1.msra.mxu0 0.0
    %1448 = vmatprep.subr.mxu0 0.0
    %1449 = vmatpush1.msra.mxu0 0.0
    %1450 = vmatprep.subr.mxu0 0.0
    %1451 = vmatpush1.msra.mxu0 0.0
    %1452 = vmatprep.subr.mxu0 0.0
    %1453 = vmatpush1.msra.mxu0 0.0
    %1454 = vmatprep.subr.mxu0 0.0
    %1455 = vmatpush1.msra.mxu0 0.0
    %1456 = vmatprep.subr.mxu0 0.0
    %1457 = vmatpush1.msra.mxu0 0.0
    %1458 = vmatprep.subr.mxu0 0.0
    %1459 = vmatpush1.msra.mxu0 0.0
    %1460 = vmatprep.subr.mxu0 0.0
    %1461 = vmatpush1.msra.mxu0 0.0
    %1462 = vmatprep.subr.mxu0 0.0
    %1463 = vmatpush1.msra.mxu0 0.0
    %1464 = vmatprep.subr.mxu0 0.0
    %1465 = vmatpush1.msra.mxu0 0.0
    %1466 = vmatprep.subr.mxu0 0.0
    %1467 = vmatpush1.msra.mxu0 0.0
    %1468 = vmatprep.mubr.f32.mxu0 0.0
    %1469 = vmatmul.mubr.f32.gmra.mrb[0].mxu0 %v1143
    %v1470 = vpop.f32.mrb[0].mxu0
    %v1471 = vadd.f32 0.0, %v1470
    %v1472 = vpop.f32.mrb[0].mxu0
    %v1473 = vadd.f32 0.0, %v1472
    %1474 = vmatprep.mubr.f32.mxu0 0.0
    %1475 = vmatmul.mubr.f32.gmra.mrb[0].mxu0 %v1146
    %v1476 = vpop.f32.mrb[0].mxu0
    %v1477 = vadd.f32 0.0, %v1476
    %v1478 = vpop.f32.mrb[0].mxu0
    %v1479 = vadd.f32 0.0, %v1478
    %1480 = vdwg.mxu0
    %1481 = vmatprep.subr.mxu0 %v1167
    %1482 = vmatpush1.msra.mxu0 %v1165
    %1483 = vmatprep.subr.mxu0 0.0
    %1484 = vmatpush1.msra.mxu0 0.0
    %1485 = vmatprep.subr.mxu0 0.0
    %1486 = vmatpush1.msra.mxu0 0.0
    %1487 = vmatprep.subr.mxu0 0.0
    %1488 = vmatpush1.msra.mxu0 0.0
    %1489 = vmatprep.subr.mxu0 0.0
    %1490 = vmatpush1.msra.mxu0 0.0
    %1491 = vmatprep.subr.mxu0 0.0
    %1492 = vmatpush1.msra.mxu0 0.0
    %1493 = vmatprep.subr.mxu0 0.0
    %1494 = vmatpush1.msra.mxu0 0.0
    %1495 = vmatprep.subr.mxu0 0.0
    %1496 = vmatpush1.msra.mxu0 0.0
    %1497 = vmatprep.subr.mxu0 0.0
    %1498 = vmatpush1.msra.mxu0 0.0
    %1499 = vmatprep.subr.mxu0 0.0
    %1500 = vmatpush1.msra.mxu0 0.0
    %1501 = vmatprep.subr.mxu0 0.0
    %1502 = vmatpush1.msra.mxu0 0.0
    %1503 = vmatprep.subr.mxu0 0.0
    %1504 = vmatpush1.msra.mxu0 0.0
    %1505 = vmatprep.subr.mxu0 0.0
    %1506 = vmatpush1.msra.mxu0 0.0
    %1507 = vmatprep.subr.mxu0 0.0
    %1508 = vmatpush1.msra.mxu0 0.0
    %1509 = vmatprep.subr.mxu0 0.0
    %1510 = vmatpush1.msra.mxu0 0.0
    %1511 = vmatprep.subr.mxu0 0.0
    %1512 = vmatpush1.msra.mxu0 0.0
    %1513 = vmatprep.subr.mxu0 0.0
    %1514 = vmatpush1.msra.mxu0 0.0
    %1515 = vmatprep.subr.mxu0 0.0
    %1516 = vmatpush1.msra.mxu0 0.0
    %1517 = vmatprep.subr.mxu0 0.0
    %1518 = vmatpush1.msra.mxu0 0.0
    %1519 = vmatprep.subr.mxu0 0.0
    %1520 = vmatpush1.msra.mxu0 0.0
    %1521 = vmatprep.subr.mxu0 0.0
    %1522 = vmatpush1.msra.mxu0 0.0
    %1523 = vmatprep.subr.mxu0 0.0
    %1524 = vmatpush1.msra.mxu0 0.0
    %1525 = vmatprep.subr.mxu0 0.0
    %1526 = vmatpush1.msra.mxu0 0.0
    %1527 = vmatprep.subr.mxu0 0.0
    %1528 = vmatpush1.msra.mxu0 0.0
    %1529 = vmatprep.subr.mxu0 0.0
    %1530 = vmatpush1.msra.mxu0 0.0
    %1531 = vmatprep.subr.mxu0 0.0
    %1532 = vmatpush1.msra.mxu0 0.0
    %1533 = vmatprep.subr.mxu0 0.0
    %1534 = vmatpush1.msra.mxu0 0.0
    %1535 = vmatprep.subr.mxu0 0.0
    %1536 = vmatpush1.msra.mxu0 0.0
    %1537 = vmatprep.subr.mxu0 0.0
    %1538 = vmatpush1.msra.mxu0 0.0
    %1539 = vmatprep.subr.mxu0 0.0
    %1540 = vmatpush1.msra.mxu0 0.0
    %1541 = vmatprep.subr.mxu0 0.0
    %1542 = vmatpush1.msra.mxu0 0.0
    %1543 = vmatprep.subr.mxu0 0.0
    %1544 = vmatpush1.msra.mxu0 0.0
    %1545 = vmatprep.mubr.f32.mxu0 0.0
    %1546 = vmatmul.mubr.f32.gmra.mrb[0].mxu0 %v1143
    %v1547 = vpop.f32.mrb[0].mxu0
    %v1548 = vadd.f32 0.0, %v1547
    %v1549 = vpop.f32.mrb[0].mxu0
    %v1550 = vadd.f32 0.0, %v1549
    %1551 = vmatprep.mubr.f32.mxu0 0.0
    %1552 = vmatmul.mubr.f32.gmra.mrb[0].mxu0 %v1146
    %v1553 = vpop.f32.mrb[0].mxu0
    %v1554 = vadd.f32 0.0, %v1553
    %v1555 = vpop.f32.mrb[0].mxu0
    %v1556 = vadd.f32 0.0, %v1555
    %1557 = vdwg.mxu0
    %1558 = vmatprep.subr.mxu0 %v1171
    %1559 = vmatpush1.msra.mxu0 %v1169
    %1560 = vmatprep.subr.mxu0 0.0
    %1561 = vmatpush1.msra.mxu0 0.0
    %1562 = vmatprep.subr.mxu0 0.0
    %1563 = vmatpush1.msra.mxu0 0.0
    %1564 = vmatprep.subr.mxu0 0.0
    %1565 = vmatpush1.msra.mxu0 0.0
    %1566 = vmatprep.subr.mxu0 0.0
    %1567 = vmatpush1.msra.mxu0 0.0
    %1568 = vmatprep.subr.mxu0 0.0
    %1569 = vmatpush1.msra.mxu0 0.0
    %1570 = vmatprep.subr.mxu0 0.0
    %1571 = vmatpush1.msra.mxu0 0.0
    %1572 = vmatprep.subr.mxu0 0.0
    %1573 = vmatpush1.msra.mxu0 0.0
    %1574 = vmatprep.subr.mxu0 0.0
    %1575 = vmatpush1.msra.mxu0 0.0
    %1576 = vmatprep.subr.mxu0 0.0
    %1577 = vmatpush1.msra.mxu0 0.0
    %1578 = vmatprep.subr.mxu0 0.0
    %1579 = vmatpush1.msra.mxu0 0.0
    %1580 = vmatprep.subr.mxu0 0.0
    %1581 = vmatpush1.msra.mxu0 0.0
    %1582 = vmatprep.subr.mxu0 0.0
    %1583 = vmatpush1.msra.mxu0 0.0
    %1584 = vmatprep.subr.mxu0 0.0
    %1585 = vmatpush1.msra.mxu0 0.0
    %1586 = vmatprep.subr.mxu0 0.0
    %1587 = vmatpush1.msra.mxu0 0.0
    %1588 = vmatprep.subr.mxu0 0.0
    %1589 = vmatpush1.msra.mxu0 0.0
    %1590 = vmatprep.subr.mxu0 0.0
    %1591 = vmatpush1.msra.mxu0 0.0
    %1592 = vmatprep.subr.mxu0 0.0
    %1593 = vmatpush1.msra.mxu0 0.0
    %1594 = vmatprep.subr.mxu0 0.0
    %1595 = vmatpush1.msra.mxu0 0.0
    %1596 = vmatprep.subr.mxu0 0.0
    %1597 = vmatpush1.msra.mxu0 0.0
    %1598 = vmatprep.subr.mxu0 0.0
    %1599 = vmatpush1.msra.mxu0 0.0
    %1600 = vmatprep.subr.mxu0 0.0
    %1601 = vmatpush1.msra.mxu0 0.0
    %1602 = vmatprep.subr.mxu0 0.0
    %1603 = vmatpush1.msra.mxu0 0.0
    %1604 = vmatprep.subr.mxu0 0.0
    %1605 = vmatpush1.msra.mxu0 0.0
    %1606 = vmatprep.subr.mxu0 0.0
    %1607 = vmatpush1.msra.mxu0 0.0
    %1608 = vmatprep.subr.mxu0 0.0
    %1609 = vmatpush1.msra.mxu0 0.0
    %1610 = vmatprep.subr.mxu0 0.0
    %1611 = vmatpush1.msra.mxu0 0.0
    %1612 = vmatprep.subr.mxu0 0.0
    %1613 = vmatpush1.msra.mxu0 0.0
    %1614 = vmatprep.subr.mxu0 0.0
    %1615 = vmatpush1.msra.mxu0 0.0
    %1616 = vmatprep.subr.mxu0 0.0
    %1617 = vmatpush1.msra.mxu0 0.0
    %1618 = vmatprep.subr.mxu0 0.0
    %1619 = vmatpush1.msra.mxu0 0.0
    %1620 = vmatprep.subr.mxu0 0.0
    %1621 = vmatpush1.msra.mxu0 0.0
    %1622 = vmatprep.mubr.f32.mxu0 0.0
    %1623 = vmatmul.mubr.f32.gmra.mrb[0].mxu0 %v1143
    %v1624 = vpop.f32.mrb[0].mxu0
    %v1625 = vadd.f32 0.0, %v1624
    %v1626 = vpop.f32.mrb[0].mxu0
    %v1627 = vadd.f32 0.0, %v1626
    %1628 = vmatprep.mubr.f32.mxu0 0.0
    %1629 = vmatmul.mubr.f32.gmra.mrb[0].mxu0 %v1146
    %v1630 = vpop.f32.mrb[0].mxu0
    %v1631 = vadd.f32 0.0, %v1630
    %v1632 = vpop.f32.mrb[0].mxu0
    %v1633 = vadd.f32 0.0, %v1632
    %1634 = vdwg.mxu0
    %v1636 = vsel %vm1141, %v1089, 0
    %v1639 = vsel %vm1141, %v1090, 0
    %v1641 = vsel %vm1148, %v1076, 0
    %v1643 = vsel %vm1148, %v1077, 0
    %v1645 = vsel %vm1148, %v1078, 0
    %v1647 = vsel %vm1148, %v1079, 0
    %v1649 = vsel %vm1148, %v1080, 0
    %v1651 = vsel %vm1148, %v1081, 0
    %v1653 = vsel %vm1148, %v1082, 0
    %v1655 = vsel %vm1148, %v1083, 0
    %v1657 = vsel %vm1148, %v1084, 0
    %v1659 = vsel %vm1148, %v1085, 0
    %v1661 = vsel %vm1148, %v1086, 0
    %v1663 = vsel %vm1148, %v1087, 0
    %1665 = vmatprep.subr.mxu0 %v1643
    %1666 = vmatpush1.msra.mxu0 %v1641
    %1667 = vmatprep.subr.mxu0 0.0
    %1668 = vmatpush1.msra.mxu0 0.0
    %1669 = vmatprep.subr.mxu0 0.0
    %1670 = vmatpush1.msra.mxu0 0.0
    %1671 = vmatprep.subr.mxu0 0.0
    %1672 = vmatpush1.msra.mxu0 0.0
    %1673 = vmatprep.subr.mxu0 0.0
    %1674 = vmatpush1.msra.mxu0 0.0
    %1675 = vmatprep.subr.mxu0 0.0
    %1676 = vmatpush1.msra.mxu0 0.0
    %1677 = vmatprep.subr.mxu0 0.0
    %1678 = vmatpush1.msra.mxu0 0.0
    %1679 = vmatprep.subr.mxu0 0.0
    %1680 = vmatpush1.msra.mxu0 0.0
    %1681 = vmatprep.subr.mxu0 0.0
    %1682 = vmatpush1.msra.mxu0 0.0
    %1683 = vmatprep.subr.mxu0 0.0
    %1684 = vmatpush1.msra.mxu0 0.0
    %1685 = vmatprep.subr.mxu0 0.0
    %1686 = vmatpush1.msra.mxu0 0.0
    %1687 = vmatprep.subr.mxu0 0.0
    %1688 = vmatpush1.msra.mxu0 0.0
    %1689 = vmatprep.subr.mxu0 0.0
    %1690 = vmatpush1.msra.mxu0 0.0
    %1691 = vmatprep.subr.mxu0 0.0
    %1692 = vmatpush1.msra.mxu0 0.0
    %1693 = vmatprep.subr.mxu0 0.0
    %1694 = vmatpush1.msra.mxu0 0.0
    %1695 = vmatprep.subr.mxu0 0.0
    %1696 = vmatpush1.msra.mxu0 0.0
    %1697 = vmatprep.subr.mxu0 0.0
    %1698 = vmatpush1.msra.mxu0 0.0
    %1699 = vmatprep.subr.mxu0 0.0
    %1700 = vmatpush1.msra.mxu0 0.0
    %1701 = vmatprep.subr.mxu0 0.0
    %1702 = vmatpush1.msra.mxu0 0.0
    %1703 = vmatprep.subr.mxu0 0.0
    %1704 = vmatpush1.msra.mxu0 0.0
    %1705 = vmatprep.subr.mxu0 0.0
    %1706 = vmatpush1.msra.mxu0 0.0
    %1707 = vmatprep.subr.mxu0 0.0
    %1708 = vmatpush1.msra.mxu0 0.0
    %1709 = vmatprep.subr.mxu0 0.0
    %1710 = vmatpush1.msra.mxu0 0.0
    %1711 = vmatprep.subr.mxu0 0.0
    %1712 = vmatpush1.msra.mxu0 0.0
    %1713 = vmatprep.subr.mxu0 0.0
    %1714 = vmatpush1.msra.mxu0 0.0
    %1715 = vmatprep.subr.mxu0 0.0
    %1716 = vmatpush1.msra.mxu0 0.0
    %1717 = vmatprep.subr.mxu0 0.0
    %1718 = vmatpush1.msra.mxu0 0.0
    %1719 = vmatprep.subr.mxu0 0.0
    %1720 = vmatpush1.msra.mxu0 0.0
    %1721 = vmatprep.subr.mxu0 0.0
    %1722 = vmatpush1.msra.mxu0 0.0
    %1723 = vmatprep.subr.mxu0 0.0
    %1724 = vmatpush1.msra.mxu0 0.0
    %1725 = vmatprep.subr.mxu0 0.0
    %1726 = vmatpush1.msra.mxu0 0.0
    %1727 = vmatprep.subr.mxu0 0.0
    %1728 = vmatpush1.msra.mxu0 0.0
    %1729 = vmatprep.mubr.f32.mxu0 0.0
    %1730 = vmatmul.mubr.f32.gmra.mrb[0].mxu0 %v1636
    %v1731 = vpop.f32.mrb[0].mxu0
    %v1732 = vadd.f32 %v1240, %v1731
    %v1733 = vpop.f32.mrb[0].mxu0
    %v1734 = vadd.f32 %v1242, %v1733
    %1735 = vmatprep.mubr.f32.mxu0 0.0
    %1736 = vmatmul.mubr.f32.gmra.mrb[0].mxu0 %v1639
    %v1737 = vpop.f32.mrb[0].mxu0
    %v1738 = vadd.f32 %v1246, %v1737
    %v1739 = vpop.f32.mrb[0].mxu0
    %v1740 = vadd.f32 %v1248, %v1739
    %1741 = vdwg.mxu0
    %1742 = vmatprep.subr.mxu0 %v1647
    %1743 = vmatpush1.msra.mxu0 %v1645
    %1744 = vmatprep.subr.mxu0 0.0
    %1745 = vmatpush1.msra.mxu0 0.0
    %1746 = vmatprep.subr.mxu0 0.0
    %1747 = vmatpush1.msra.mxu0 0.0
    %1748 = vmatprep.subr.mxu0 0.0
    %1749 = vmatpush1.msra.mxu0 0.0
    %1750 = vmatprep.subr.mxu0 0.0
    %1751 = vmatpush1.msra.mxu0 0.0
    %1752 = vmatprep.subr.mxu0 0.0
    %1753 = vmatpush1.msra.mxu0 0.0
    %1754 = vmatprep.subr.mxu0 0.0
    %1755 = vmatpush1.msra.mxu0 0.0
    %1756 = vmatprep.subr.mxu0 0.0
    %1757 = vmatpush1.msra.mxu0 0.0
    %1758 = vmatprep.subr.mxu0 0.0
    %1759 = vmatpush1.msra.mxu0 0.0
    %1760 = vmatprep.subr.mxu0 0.0
    %1761 = vmatpush1.msra.mxu0 0.0
    %1762 = vmatprep.subr.mxu0 0.0
    %1763 = vmatpush1.msra.mxu0 0.0
    %1764 = vmatprep.subr.mxu0 0.0
    %1765 = vmatpush1.msra.mxu0 0.0
    %1766 = vmatprep.subr.mxu0 0.0
    %1767 = vmatpush1.msra.mxu0 0.0
    %1768 = vmatprep.subr.mxu0 0.0
    %1769 = vmatpush1.msra.mxu0 0.0
    %1770 = vmatprep.subr.mxu0 0.0
    %1771 = vmatpush1.msra.mxu0 0.0
    %1772 = vmatprep.subr.mxu0 0.0
    %1773 = vmatpush1.msra.mxu0 0.0
    %1774 = vmatprep.subr.mxu0 0.0
    %1775 = vmatpush1.msra.mxu0 0.0
    %1776 = vmatprep.subr.mxu0 0.0
    %1777 = vmatpush1.msra.mxu0 0.0
    %1778 = vmatprep.subr.mxu0 0.0
    %1779 = vmatpush1.msra.mxu0 0.0
    %1780 = vmatprep.subr.mxu0 0.0
    %1781 = vmatpush1.msra.mxu0 0.0
    %1782 = vmatprep.subr.mxu0 0.0
    %1783 = vmatpush1.msra.mxu0 0.0
    %1784 = vmatprep.subr.mxu0 0.0
    %1785 = vmatpush1.msra.mxu0 0.0
    %1786 = vmatprep.subr.mxu0 0.0
    %1787 = vmatpush1.msra.mxu0 0.0
    %1788 = vmatprep.subr.mxu0 0.0
    %1789 = vmatpush1.msra.mxu0 0.0
    %1790 = vmatprep.subr.mxu0 0.0
    %1791 = vmatpush1.msra.mxu0 0.0
    %1792 = vmatprep.subr.mxu0 0.0
    %1793 = vmatpush1.msra.mxu0 0.0
    %1794 = vmatprep.subr.mxu0 0.0
    %1795 = vmatpush1.msra.mxu0 0.0
    %1796 = vmatprep.subr.mxu0 0.0
    %1797 = vmatpush1.msra.mxu0 0.0
    %1798 = vmatprep.subr.mxu0 0.0
    %1799 = vmatpush1.msra.mxu0 0.0
    %1800 = vmatprep.subr.mxu0 0.0
    %1801 = vmatpush1.msra.mxu0 0.0
    %1802 = vmatprep.subr.mxu0 0.0
    %1803 = vmatpush1.msra.mxu0 0.0
    %1804 = vmatprep.subr.mxu0 0.0
    %1805 = vmatpush1.msra.mxu0 0.0
    %1806 = vmatprep.mubr.f32.mxu0 0.0
    %1807 = vmatmul.mubr.f32.gmra.mrb[0].mxu0 %v1636
    %v1808 = vpop.f32.mrb[0].mxu0
    %v1809 = vadd.f32 %v1317, %v1808
    %v1810 = vpop.f32.mrb[0].mxu0
    %v1811 = vadd.f32 %v1319, %v1810
    %1812 = vmatprep.mubr.f32.mxu0 0.0
    %1813 = vmatmul.mubr.f32.gmra.mrb[0].mxu0 %v1639
    %v1814 = vpop.f32.mrb[0].mxu0
    %v1815 = vadd.f32 %v1323, %v1814
    %v1816 = vpop.f32.mrb[0].mxu0
    %v1817 = vadd.f32 %v1325, %v1816
    %1818 = vdwg.mxu0
    %1819 = vmatprep.subr.mxu0 %v1651
    %1820 = vmatpush1.msra.mxu0 %v1649
    %1821 = vmatprep.subr.mxu0 0.0
    %1822 = vmatpush1.msra.mxu0 0.0
    %1823 = vmatprep.subr.mxu0 0.0
    %1824 = vmatpush1.msra.mxu0 0.0
    %1825 = vmatprep.subr.mxu0 0.0
    %1826 = vmatpush1.msra.mxu0 0.0
    %1827 = vmatprep.subr.mxu0 0.0
    %1828 = vmatpush1.msra.mxu0 0.0
    %1829 = vmatprep.subr.mxu0 0.0
    %1830 = vmatpush1.msra.mxu0 0.0
    %1831 = vmatprep.subr.mxu0 0.0
    %1832 = vmatpush1.msra.mxu0 0.0
    %1833 = vmatprep.subr.mxu0 0.0
    %1834 = vmatpush1.msra.mxu0 0.0
    %1835 = vmatprep.subr.mxu0 0.0
    %1836 = vmatpush1.msra.mxu0 0.0
    %1837 = vmatprep.subr.mxu0 0.0
    %1838 = vmatpush1.msra.mxu0 0.0
    %1839 = vmatprep.subr.mxu0 0.0
    %1840 = vmatpush1.msra.mxu0 0.0
    %1841 = vmatprep.subr.mxu0 0.0
    %1842 = vmatpush1.msra.mxu0 0.0
    %1843 = vmatprep.subr.mxu0 0.0
    %1844 = vmatpush1.msra.mxu0 0.0
    %1845 = vmatprep.subr.mxu0 0.0
    %1846 = vmatpush1.msra.mxu0 0.0
    %1847 = vmatprep.subr.mxu0 0.0
    %1848 = vmatpush1.msra.mxu0 0.0
    %1849 = vmatprep.subr.mxu0 0.0
    %1850 = vmatpush1.msra.mxu0 0.0
    %1851 = vmatprep.subr.mxu0 0.0
    %1852 = vmatpush1.msra.mxu0 0.0
    %1853 = vmatprep.subr.mxu0 0.0
    %1854 = vmatpush1.msra.mxu0 0.0
    %1855 = vmatprep.subr.mxu0 0.0
    %1856 = vmatpush1.msra.mxu0 0.0
    %1857 = vmatprep.subr.mxu0 0.0
    %1858 = vmatpush1.msra.mxu0 0.0
    %1859 = vmatprep.subr.mxu0 0.0
    %1860 = vmatpush1.msra.mxu0 0.0
    %1861 = vmatprep.subr.mxu0 0.0
    %1862 = vmatpush1.msra.mxu0 0.0
    %1863 = vmatprep.subr.mxu0 0.0
    %1864 = vmatpush1.msra.mxu0 0.0
    %1865 = vmatprep.subr.mxu0 0.0
    %1866 = vmatpush1.msra.mxu0 0.0
    %1867 = vmatprep.subr.mxu0 0.0
    %1868 = vmatpush1.msra.mxu0 0.0
    %1869 = vmatprep.subr.mxu0 0.0
    %1870 = vmatpush1.msra.mxu0 0.0
    %1871 = vmatprep.subr.mxu0 0.0
    %1872 = vmatpush1.msra.mxu0 0.0
    %1873 = vmatprep.subr.mxu0 0.0
    %1874 = vmatpush1.msra.mxu0 0.0
    %1875 = vmatprep.subr.mxu0 0.0
    %1876 = vmatpush1.msra.mxu0 0.0
    %1877 = vmatprep.subr.mxu0 0.0
    %1878 = vmatpush1.msra.mxu0 0.0
    %1879 = vmatprep.subr.mxu0 0.0
    %1880 = vmatpush1.msra.mxu0 0.0
    %1881 = vmatprep.subr.mxu0 0.0
    %1882 = vmatpush1.msra.mxu0 0.0
    %1883 = vmatprep.mubr.f32.mxu0 0.0
    %1884 = vmatmul.mubr.f32.gmra.mrb[0].mxu0 %v1636
    %v1885 = vpop.f32.mrb[0].mxu0
    %v1886 = vadd.f32 %v1394, %v1885
    %v1887 = vpop.f32.mrb[0].mxu0
    %v1888 = vadd.f32 %v1396, %v1887
    %1889 = vmatprep.mubr.f32.mxu0 0.0
    %1890 = vmatmul.mubr.f32.gmra.mrb[0].mxu0 %v1639
    %v1891 = vpop.f32.mrb[0].mxu0
    %v1892 = vadd.f32 %v1400, %v1891
    %v1893 = vpop.f32.mrb[0].mxu0
    %v1894 = vadd.f32 %v1402, %v1893
    %1895 = vdwg.mxu0
    %1896 = vmatprep.subr.mxu0 %v1655
    %1897 = vmatpush1.msra.mxu0 %v1653
    %1898 = vmatprep.subr.mxu0 0.0
    %1899 = vmatpush1.msra.mxu0 0.0
    %1900 = vmatprep.subr.mxu0 0.0
    %1901 = vmatpush1.msra.mxu0 0.0
    %1902 = vmatprep.subr.mxu0 0.0
    %1903 = vmatpush1.msra.mxu0 0.0
    %1904 = vmatprep.subr.mxu0 0.0
    %1905 = vmatpush1.msra.mxu0 0.0
    %1906 = vmatprep.subr.mxu0 0.0
    %1907 = vmatpush1.msra.mxu0 0.0
    %1908 = vmatprep.subr.mxu0 0.0
    %1909 = vmatpush1.msra.mxu0 0.0
    %1910 = vmatprep.subr.mxu0 0.0
    %1911 = vmatpush1.msra.mxu0 0.0
    %1912 = vmatprep.subr.mxu0 0.0
    %1913 = vmatpush1.msra.mxu0 0.0
    %1914 = vmatprep.subr.mxu0 0.0
    %1915 = vmatpush1.msra.mxu0 0.0
    %1916 = vmatprep.subr.mxu0 0.0
    %1917 = vmatpush1.msra.mxu0 0.0
    %1918 = vmatprep.subr.mxu0 0.0
    %1919 = vmatpush1.msra.mxu0 0.0
    %1920 = vmatprep.subr.mxu0 0.0
    %1921 = vmatpush1.msra.mxu0 0.0
    %1922 = vmatprep.subr.mxu0 0.0
    %1923 = vmatpush1.msra.mxu0 0.0
    %1924 = vmatprep.subr.mxu0 0.0
    %1925 = vmatpush1.msra.mxu0 0.0
    %1926 = vmatprep.subr.mxu0 0.0
    %1927 = vmatpush1.msra.mxu0 0.0
    %1928 = vmatprep.subr.mxu0 0.0
    %1929 = vmatpush1.msra.mxu0 0.0
    %1930 = vmatprep.subr.mxu0 0.0
    %1931 = vmatpush1.msra.mxu0 0.0
    %1932 = vmatprep.subr.mxu0 0.0
    %1933 = vmatpush1.msra.mxu0 0.0
    %1934 = vmatprep.subr.mxu0 0.0
    %1935 = vmatpush1.msra.mxu0 0.0
    %1936 = vmatprep.subr.mxu0 0.0
    %1937 = vmatpush1.msra.mxu0 0.0
    %1938 = vmatprep.subr.mxu0 0.0
    %1939 = vmatpush1.msra.mxu0 0.0
    %1940 = vmatprep.subr.mxu0 0.0
    %1941 = vmatpush1.msra.mxu0 0.0
    %1942 = vmatprep.subr.mxu0 0.0
    %1943 = vmatpush1.msra.mxu0 0.0
    %1944 = vmatprep.subr.mxu0 0.0
    %1945 = vmatpush1.msra.mxu0 0.0
    %1946 = vmatprep.subr.mxu0 0.0
    %1947 = vmatpush1.msra.mxu0 0.0
    %1948 = vmatprep.subr.mxu0 0.0
    %1949 = vmatpush1.msra.mxu0 0.0
    %1950 = vmatprep.subr.mxu0 0.0
    %1951 = vmatpush1.msra.mxu0 0.0
    %1952 = vmatprep.subr.mxu0 0.0
    %1953 = vmatpush1.msra.mxu0 0.0
    %1954 = vmatprep.subr.mxu0 0.0
    %1955 = vmatpush1.msra.mxu0 0.0
    %1956 = vmatprep.subr.mxu0 0.0
    %1957 = vmatpush1.msra.mxu0 0.0
    %1958 = vmatprep.subr.mxu0 0.0
    %1959 = vmatpush1.msra.mxu0 0.0
    %1960 = vmatprep.mubr.f32.mxu0 0.0
    %1961 = vmatmul.mubr.f32.gmra.mrb[0].mxu0 %v1636
    %v1962 = vpop.f32.mrb[0].mxu0
    %v1963 = vadd.f32 %v1471, %v1962
    %v1964 = vpop.f32.mrb[0].mxu0
    %v1965 = vadd.f32 %v1473, %v1964
    %1966 = vmatprep.mubr.f32.mxu0 0.0
    %1967 = vmatmul.mubr.f32.gmra.mrb[0].mxu0 %v1639
    %v1968 = vpop.f32.mrb[0].mxu0
    %v1969 = vadd.f32 %v1477, %v1968
    %v1970 = vpop.f32.mrb[0].mxu0
    %v1971 = vadd.f32 %v1479, %v1970
    %1972 = vdwg.mxu0
    %1973 = vmatprep.subr.mxu0 %v1659
    %1974 = vmatpush1.msra.mxu0 %v1657
    %1975 = vmatprep.subr.mxu0 0.0
    %1976 = vmatpush1.msra.mxu0 0.0
    %1977 = vmatprep.subr.mxu0 0.0
    %1978 = vmatpush1.msra.mxu0 0.0
    %1979 = vmatprep.subr.mxu0 0.0
    %1980 = vmatpush1.msra.mxu0 0.0
    %1981 = vmatprep.subr.mxu0 0.0
    %1982 = vmatpush1.msra.mxu0 0.0
    %1983 = vmatprep.subr.mxu0 0.0
    %1984 = vmatpush1.msra.mxu0 0.0
    %1985 = vmatprep.subr.mxu0 0.0
    %1986 = vmatpush1.msra.mxu0 0.0
    %1987 = vmatprep.subr.mxu0 0.0
    %1988 = vmatpush1.msra.mxu0 0.0
    %1989 = vmatprep.subr.mxu0 0.0
    %1990 = vmatpush1.msra.mxu0 0.0
    %1991 = vmatprep.subr.mxu0 0.0
    %1992 = vmatpush1.msra.mxu0 0.0
    %1993 = vmatprep.subr.mxu0 0.0
    %1994 = vmatpush1.msra.mxu0 0.0
    %1995 = vmatprep.subr.mxu0 0.0
    %1996 = vmatpush1.msra.mxu0 0.0
    %1997 = vmatprep.subr.mxu0 0.0
    %1998 = vmatpush1.msra.mxu0 0.0
    %1999 = vmatprep.subr.mxu0 0.0
    %2000 = vmatpush1.msra.mxu0 0.0
    %2001 = vmatprep.subr.mxu0 0.0
    %2002 = vmatpush1.msra.mxu0 0.0
    %2003 = vmatprep.subr.mxu0 0.0
    %2004 = vmatpush1.msra.mxu0 0.0
    %2005 = vmatprep.subr.mxu0 0.0
    %2006 = vmatpush1.msra.mxu0 0.0
    %2007 = vmatprep.subr.mxu0 0.0
    %2008 = vmatpush1.msra.mxu0 0.0
    %2009 = vmatprep.subr.mxu0 0.0
    %2010 = vmatpush1.msra.mxu0 0.0
    %2011 = vmatprep.subr.mxu0 0.0
    %2012 = vmatpush1.msra.mxu0 0.0
    %2013 = vmatprep.subr.mxu0 0.0
    %2014 = vmatpush1.msra.mxu0 0.0
    %2015 = vmatprep.subr.mxu0 0.0
    %2016 = vmatpush1.msra.mxu0 0.0
    %2017 = vmatprep.subr.mxu0 0.0
    %2018 = vmatpush1.msra.mxu0 0.0
    %2019 = vmatprep.subr.mxu0 0.0
    %2020 = vmatpush1.msra.mxu0 0.0
    %2021 = vmatprep.subr.mxu0 0.0
    %2022 = vmatpush1.msra.mxu0 0.0
    %2023 = vmatprep.subr.mxu0 0.0
    %2024 = vmatpush1.msra.mxu0 0.0
    %2025 = vmatprep.subr.mxu0 0.0
    %2026 = vmatpush1.msra.mxu0 0.0
    %2027 = vmatprep.subr.mxu0 0.0
    %2028 = vmatpush1.msra.mxu0 0.0
    %2029 = vmatprep.subr.mxu0 0.0
    %2030 = vmatpush1.msra.mxu0 0.0
    %2031 = vmatprep.subr.mxu0 0.0
    %2032 = vmatpush1.msra.mxu0 0.0
    %2033 = vmatprep.subr.mxu0 0.0
    %2034 = vmatpush1.msra.mxu0 0.0
    %2035 = vmatprep.subr.mxu0 0.0
    %2036 = vmatpush1.msra.mxu0 0.0
    %2037 = vmatprep.mubr.f32.mxu0 0.0
    %2038 = vmatmul.mubr.f32.gmra.mrb[0].mxu0 %v1636
    %v2039 = vpop.f32.mrb[0].mxu0
    %v2040 = vadd.f32 %v1548, %v2039
    %v2041 = vpop.f32.mrb[0].mxu0
    %v2042 = vadd.f32 %v1550, %v2041
    %2043 = vmatprep.mubr.f32.mxu0 0.0
    %2044 = vmatmul.mubr.f32.gmra.mrb[0].mxu0 %v1639
    %v2045 = vpop.f32.mrb[0].mxu0
    %v2046 = vadd.f32 %v1554, %v2045
    %v2047 = vpop.f32.mrb[0].mxu0
    %v2048 = vadd.f32 %v1556, %v2047
    %2049 = vdwg.mxu0
    %2050 = vmatprep.subr.mxu0 %v1663
    %2051 = vmatpush1.msra.mxu0 %v1661
    %2052 = vmatprep.subr.mxu0 0.0
    %2053 = vmatpush1.msra.mxu0 0.0
    %2054 = vmatprep.subr.mxu0 0.0
    %2055 = vmatpush1.msra.mxu0 0.0
    %2056 = vmatprep.subr.mxu0 0.0
    %2057 = vmatpush1.msra.mxu0 0.0
    %2058 = vmatprep.subr.mxu0 0.0
    %2059 = vmatpush1.msra.mxu0 0.0
    %2060 = vmatprep.subr.mxu0 0.0
    %2061 = vmatpush1.msra.mxu0 0.0
    %2062 = vmatprep.subr.mxu0 0.0
    %2063 = vmatpush1.msra.mxu0 0.0
    %2064 = vmatprep.subr.mxu0 0.0
    %2065 = vmatpush1.msra.mxu0 0.0
    %2066 = vmatprep.subr.mxu0 0.0
    %2067 = vmatpush1.msra.mxu0 0.0
    %2068 = vmatprep.subr.mxu0 0.0
    %2069 = vmatpush1.msra.mxu0 0.0
    %2070 = vmatprep.subr.mxu0 0.0
    %2071 = vmatpush1.msra.mxu0 0.0
    %2072 = vmatprep.subr.mxu0 0.0
    %2073 = vmatpush1.msra.mxu0 0.0
    %2074 = vmatprep.subr.mxu0 0.0
    %2075 = vmatpush1.msra.mxu0 0.0
    %2076 = vmatprep.subr.mxu0 0.0
    %2077 = vmatpush1.msra.mxu0 0.0
    %2078 = vmatprep.subr.mxu0 0.0
    %2079 = vmatpush1.msra.mxu0 0.0
    %2080 = vmatprep.subr.mxu0 0.0
    %2081 = vmatpush1.msra.mxu0 0.0
    %2082 = vmatprep.subr.mxu0 0.0
    %2083 = vmatpush1.msra.mxu0 0.0
    %2084 = vmatprep.subr.mxu0 0.0
    %2085 = vmatpush1.msra.mxu0 0.0
    %2086 = vmatprep.subr.mxu0 0.0
    %2087 = vmatpush1.msra.mxu0 0.0
    %2088 = vmatprep.subr.mxu0 0.0
    %2089 = vmatpush1.msra.mxu0 0.0
    %2090 = vmatprep.subr.mxu0 0.0
    %2091 = vmatpush1.msra.mxu0 0.0
    %2092 = vmatprep.subr.mxu0 0.0
    %2093 = vmatpush1.msra.mxu0 0.0
    %2094 = vmatprep.subr.mxu0 0.0
    %2095 = vmatpush1.msra.mxu0 0.0
    %2096 = vmatprep.subr.mxu0 0.0
    %2097 = vmatpush1.msra.mxu0 0.0
    %2098 = vmatprep.subr.mxu0 0.0
    %2099 = vmatpush1.msra.mxu0 0.0
    %2100 = vmatprep.subr.mxu0 0.0
    %2101 = vmatpush1.msra.mxu0 0.0
    %2102 = vmatprep.subr.mxu0 0.0
    %2103 = vmatpush1.msra.mxu0 0.0
    %2104 = vmatprep.subr.mxu0 0.0
    %2105 = vmatpush1.msra.mxu0 0.0
    %2106 = vmatprep.subr.mxu0 0.0
    %2107 = vmatpush1.msra.mxu0 0.0
    %2108 = vmatprep.subr.mxu0 0.0
    %2109 = vmatpush1.msra.mxu0 0.0
    %2110 = vmatprep.subr.mxu0 0.0
    %2111 = vmatpush1.msra.mxu0 0.0
    %2112 = vmatprep.subr.mxu0 0.0
    %2113 = vmatpush1.msra.mxu0 0.0
    %2114 = vmatprep.mubr.f32.mxu0 0.0
    %2115 = vmatmul.mubr.f32.gmra.mrb[0].mxu0 %v1636
    %v2116 = vpop.f32.mrb[0].mxu0
    %v2117 = vadd.f32 %v1625, %v2116
    %v2118 = vpop.f32.mrb[0].mxu0
    %v2119 = vadd.f32 %v1627, %v2118
    %2120 = vmatprep.mubr.f32.mxu0 0.0
    %2121 = vmatmul.mubr.f32.gmra.mrb[0].mxu0 %v1639
    %v2122 = vpop.f32.mrb[0].mxu0
    %v2123 = vadd.f32 %v1631, %v2122
    %v2124 = vpop.f32.mrb[0].mxu0
    %v2125 = vadd.f32 %v1633, %v2124
    %2126 = vdwg.mxu0
    %s2127 = scalar_lea.vmem %s3, 32
    %v2128 = vld [vmem:[%s2127] sm:$0xff]
    %v2129 = vld [vmem:[%s2127 + $0x8] sm:$0xff]
    %2130 = vrot.lane.b32.xlu0 %v1076, 124
    %v2131 = vpop.permute.xlu0 %2130
    %2132 = vrot.lane.b32.xlu0 %v1077, 124
    %v2133 = vpop.permute.xlu0 %2132
    %2134 = vrot.lane.b32.xlu0 %v1078, 124
    %v2135 = vpop.permute.xlu0 %2134
    %2136 = vrot.lane.b32.xlu0 %v1079, 124
    %v2137 = vpop.permute.xlu0 %2136
    %2138 = vrot.lane.b32.xlu0 %v1080, 124
    %v2139 = vpop.permute.xlu0 %2138
    %2140 = vrot.lane.b32.xlu0 %v1081, 124
    %v2141 = vpop.permute.xlu0 %2140
    %2142 = vrot.lane.b32.xlu0 %v1082, 124
    %v2143 = vpop.permute.xlu0 %2142
    %2144 = vrot.lane.b32.xlu0 %v1083, 124
    %v2145 = vpop.permute.xlu0 %2144
    %2146 = vrot.lane.b32.xlu0 %v1084, 124
    %v2147 = vpop.permute.xlu0 %2146
    %2148 = vrot.lane.b32.xlu0 %v1085, 124
    %v2149 = vpop.permute.xlu0 %2148
    %2150 = vrot.lane.b32.xlu0 %v1086, 124
    %v2151 = vpop.permute.xlu0 %2150
    %2152 = vrot.lane.b32.xlu0 %v1087, 124
    %v2153 = vpop.permute.xlu0 %2152
    %vm2154 = vcmask 1014784
    %v2155 = vsel %vm2154, %v2131, %v2133
    %v2156 = vsel %vm2154, %v2133, %v2135
    %v2157 = vsel %vm2154, %v2135, %v2137
    %v2158 = vsel %vm2154, %v2137, %v2139
    %v2159 = vsel %vm2154, %v2139, %v2141
    %v2160 = vsel %vm2154, %v2141, %v2143
    %v2161 = vsel %vm2154, %v2143, %v2145
    %v2162 = vsel %vm2154, %v2145, %v2147
    %v2163 = vsel %vm2154, %v2147, %v2149
    %v2164 = vsel %vm2154, %v2149, %v2151
    %v2165 = vsel %vm2154, %v2151, %v2153
    %v2167 = vsel %vm1141, %v2128, 0
    %v2170 = vsel %vm1141, %v2129, 0
    %v2172 = vsel %vm1148, %v2155, 0
    %v2174 = vsel %vm1148, %v2156, 0
    %v2176 = vsel %vm1148, %v2157, 0
    %v2178 = vsel %vm1148, %v2158, 0
    %v2180 = vsel %vm1148, %v2159, 0
    %v2182 = vsel %vm1148, %v2160, 0
    %v2184 = vsel %vm1148, %v2161, 0
    %v2186 = vsel %vm1148, %v2162, 0
    %v2188 = vsel %vm1148, %v2163, 0
    %v2190 = vsel %vm1148, %v2164, 0
    %v2192 = vsel %vm1148, %v2165, 0
    %v2194 = vsel %vm1148, %v2153, 0
    %2196 = vmatprep.subr.mxu0 %v2174
    %2197 = vmatpush1.msra.mxu0 %v2172
    %2198 = vmatprep.subr.mxu0 0.0
    %2199 = vmatpush1.msra.mxu0 0.0
    %2200 = vmatprep.subr.mxu0 0.0
    %2201 = vmatpush1.msra.mxu0 0.0
    %2202 = vmatprep.subr.mxu0 0.0
    %2203 = vmatpush1.msra.mxu0 0.0
    %2204 = vmatprep.subr.mxu0 0.0
    %2205 = vmatpush1.msra.mxu0 0.0
    %2206 = vmatprep.subr.mxu0 0.0
    %2207 = vmatpush1.msra.mxu0 0.0
    %2208 = vmatprep.subr.mxu0 0.0
    %2209 = vmatpush1.msra.mxu0 0.0
    %2210 = vmatprep.subr.mxu0 0.0
    %2211 = vmatpush1.msra.mxu0 0.0
    %2212 = vmatprep.subr.mxu0 0.0
    %2213 = vmatpush1.msra.mxu0 0.0
    %2214 = vmatprep.subr.mxu0 0.0
    %2215 = vmatpush1.msra.mxu0 0.0
    %2216 = vmatprep.subr.mxu0 0.0
    %2217 = vmatpush1.msra.mxu0 0.0
    %2218 = vmatprep.subr.mxu0 0.0
    %2219 = vmatpush1.msra.mxu0 0.0
    %2220 = vmatprep.subr.mxu0 0.0
    %2221 = vmatpush1.msra.mxu0 0.0
    %2222 = vmatprep.subr.mxu0 0.0
    %2223 = vmatpush1.msra.mxu0 0.0
    %2224 = vmatprep.subr.mxu0 0.0
    %2225 = vmatpush1.msra.mxu0 0.0
    %2226 = vmatprep.subr.mxu0 0.0
    %2227 = vmatpush1.msra.mxu0 0.0
    %2228 = vmatprep.subr.mxu0 0.0
    %2229 = vmatpush1.msra.mxu0 0.0
    %2230 = vmatprep.subr.mxu0 0.0
    %2231 = vmatpush1.msra.mxu0 0.0
    %2232 = vmatprep.subr.mxu0 0.0
    %2233 = vmatpush1.msra.mxu0 0.0
    %2234 = vmatprep.subr.mxu0 0.0
    %2235 = vmatpush1.msra.mxu0 0.0
    %2236 = vmatprep.subr.mxu0 0.0
    %2237 = vmatpush1.msra.mxu0 0.0
    %2238 = vmatprep.subr.mxu0 0.0
    %2239 = vmatpush1.msra.mxu0 0.0
    %2240 = vmatprep.subr.mxu0 0.0
    %2241 = vmatpush1.msra.mxu0 0.0
    %2242 = vmatprep.subr.mxu0 0.0
    %2243 = vmatpush1.msra.mxu0 0.0
    %2244 = vmatprep.subr.mxu0 0.0
    %2245 = vmatpush1.msra.mxu0 0.0
    %2246 = vmatprep.subr.mxu0 0.0
    %2247 = vmatpush1.msra.mxu0 0.0
    %2248 = vmatprep.subr.mxu0 0.0
    %2249 = vmatpush1.msra.mxu0 0.0
    %2250 = vmatprep.subr.mxu0 0.0
    %2251 = vmatpush1.msra.mxu0 0.0
    %2252 = vmatprep.subr.mxu0 0.0
    %2253 = vmatpush1.msra.mxu0 0.0
    %2254 = vmatprep.subr.mxu0 0.0
    %2255 = vmatpush1.msra.mxu0 0.0
    %2256 = vmatprep.subr.mxu0 0.0
    %2257 = vmatpush1.msra.mxu0 0.0
    %2258 = vmatprep.subr.mxu0 0.0
    %2259 = vmatpush1.msra.mxu0 0.0
    %2260 = vmatprep.mubr.f32.mxu0 0.0
    %2261 = vmatmul.mubr.f32.gmra.mrb[0].mxu0 %v2167
    %v2262 = vpop.f32.mrb[0].mxu0
    %v2263 = vadd.f32 0.0, %v2262
    %v2264 = vpop.f32.mrb[0].mxu0
    %v2265 = vadd.f32 0.0, %v2264
    %2266 = vmatprep.mubr.f32.mxu0 0.0
    %2267 = vmatmul.mubr.f32.gmra.mrb[0].mxu0 %v2170
    %v2268 = vpop.f32.mrb[0].mxu0
    %v2269 = vadd.f32 0.0, %v2268
    %v2270 = vpop.f32.mrb[0].mxu0
    %v2271 = vadd.f32 0.0, %v2270
    %2272 = vdwg.mxu0
    %2273 = vmatprep.subr.mxu0 %v2178
    %2274 = vmatpush1.msra.mxu0 %v2176
    %2275 = vmatprep.subr.mxu0 0.0
    %2276 = vmatpush1.msra.mxu0 0.0
    %2277 = vmatprep.subr.mxu0 0.0
    %2278 = vmatpush1.msra.mxu0 0.0
    %2279 = vmatprep.subr.mxu0 0.0
    %2280 = vmatpush1.msra.mxu0 0.0
    %2281 = vmatprep.subr.mxu0 0.0
    %2282 = vmatpush1.msra.mxu0 0.0
    %2283 = vmatprep.subr.mxu0 0.0
    %2284 = vmatpush1.msra.mxu0 0.0
    %2285 = vmatprep.subr.mxu0 0.0
    %2286 = vmatpush1.msra.mxu0 0.0
    %2287 = vmatprep.subr.mxu0 0.0
    %2288 = vmatpush1.msra.mxu0 0.0
    %2289 = vmatprep.subr.mxu0 0.0
    %2290 = vmatpush1.msra.mxu0 0.0
    %2291 = vmatprep.subr.mxu0 0.0
    %2292 = vmatpush1.msra.mxu0 0.0
    %2293 = vmatprep.subr.mxu0 0.0
    %2294 = vmatpush1.msra.mxu0 0.0
    %2295 = vmatprep.subr.mxu0 0.0
    %2296 = vmatpush1.msra.mxu0 0.0
    %2297 = vmatprep.subr.mxu0 0.0
    %2298 = vmatpush1.msra.mxu0 0.0
    %2299 = vmatprep.subr.mxu0 0.0
    %2300 = vmatpush1.msra.mxu0 0.0
    %2301 = vmatprep.subr.mxu0 0.0
    %2302 = vmatpush1.msra.mxu0 0.0
    %2303 = vmatprep.subr.mxu0 0.0
    %2304 = vmatpush1.msra.mxu0 0.0
    %2305 = vmatprep.subr.mxu0 0.0
    %2306 = vmatpush1.msra.mxu0 0.0
    %2307 = vmatprep.subr.mxu0 0.0
    %2308 = vmatpush1.msra.mxu0 0.0
    %2309 = vmatprep.subr.mxu0 0.0
    %2310 = vmatpush1.msra.mxu0 0.0
    %2311 = vmatprep.subr.mxu0 0.0
    %2312 = vmatpush1.msra.mxu0 0.0
    %2313 = vmatprep.subr.mxu0 0.0
    %2314 = vmatpush1.msra.mxu0 0.0
    %2315 = vmatprep.subr.mxu0 0.0
    %2316 = vmatpush1.msra.mxu0 0.0
    %2317 = vmatprep.subr.mxu0 0.0
    %2318 = vmatpush1.msra.mxu0 0.0
    %2319 = vmatprep.subr.mxu0 0.0
    %2320 = vmatpush1.msra.mxu0 0.0
    %2321 = vmatprep.subr.mxu0 0.0
    %2322 = vmatpush1.msra.mxu0 0.0
    %2323 = vmatprep.subr.mxu0 0.0
    %2324 = vmatpush1.msra.mxu0 0.0
    %2325 = vmatprep.subr.mxu0 0.0
    %2326 = vmatpush1.msra.mxu0 0.0
    %2327 = vmatprep.subr.mxu0 0.0
    %2328 = vmatpush1.msra.mxu0 0.0
    %2329 = vmatprep.subr.mxu0 0.0
    %2330 = vmatpush1.msra.mxu0 0.0
    %2331 = vmatprep.subr.mxu0 0.0
    %2332 = vmatpush1.msra.mxu0 0.0
    %2333 = vmatprep.subr.mxu0 0.0
    %2334 = vmatpush1.msra.mxu0 0.0
    %2335 = vmatprep.subr.mxu0 0.0
    %2336 = vmatpush1.msra.mxu0 0.0
    %2337 = vmatprep.mubr.f32.mxu0 0.0
    %2338 = vmatmul.mubr.f32.gmra.mrb[0].mxu0 %v2167
    %v2339 = vpop.f32.mrb[0].mxu0
    %v2340 = vadd.f32 0.0, %v2339
    %v2341 = vpop.f32.mrb[0].mxu0
    %v2342 = vadd.f32 0.0, %v2341
    %2343 = vmatprep.mubr.f32.mxu0 0.0
    %2344 = vmatmul.mubr.f32.gmra.mrb[0].mxu0 %v2170
    %v2345 = vpop.f32.mrb[0].mxu0
    %v2346 = vadd.f32 0.0, %v2345
    %v2347 = vpop.f32.mrb[0].mxu0
    %v2348 = vadd.f32 0.0, %v2347
    %2349 = vdwg.mxu0
    %2350 = vmatprep.subr.mxu0 %v2182
    %2351 = vmatpush1.msra.mxu0 %v2180
    %2352 = vmatprep.subr.mxu0 0.0
    %2353 = vmatpush1.msra.mxu0 0.0
    %2354 = vmatprep.subr.mxu0 0.0
    %2355 = vmatpush1.msra.mxu0 0.0
    %2356 = vmatprep.subr.mxu0 0.0
    %2357 = vmatpush1.msra.mxu0 0.0
    %2358 = vmatprep.subr.mxu0 0.0
    %2359 = vmatpush1.msra.mxu0 0.0
    %2360 = vmatprep.subr.mxu0 0.0
    %2361 = vmatpush1.msra.mxu0 0.0
    %2362 = vmatprep.subr.mxu0 0.0
    %2363 = vmatpush1.msra.mxu0 0.0
    %2364 = vmatprep.subr.mxu0 0.0
    %2365 = vmatpush1.msra.mxu0 0.0
    %2366 = vmatprep.subr.mxu0 0.0
    %2367 = vmatpush1.msra.mxu0 0.0
    %2368 = vmatprep.subr.mxu0 0.0
    %2369 = vmatpush1.msra.mxu0 0.0
    %2370 = vmatprep.subr.mxu0 0.0
    %2371 = vmatpush1.msra.mxu0 0.0
    %2372 = vmatprep.subr.mxu0 0.0
    %2373 = vmatpush1.msra.mxu0 0.0
    %2374 = vmatprep.subr.mxu0 0.0
    %2375 = vmatpush1.msra.mxu0 0.0
    %2376 = vmatprep.subr.mxu0 0.0
    %2377 = vmatpush1.msra.mxu0 0.0
    %2378 = vmatprep.subr.mxu0 0.0
    %2379 = vmatpush1.msra.mxu0 0.0
    %2380 = vmatprep.subr.mxu0 0.0
    %2381 = vmatpush1.msra.mxu0 0.0
    %2382 = vmatprep.subr.mxu0 0.0
    %2383 = vmatpush1.msra.mxu0 0.0
    %2384 = vmatprep.subr.mxu0 0.0
    %2385 = vmatpush1.msra.mxu0 0.0
    %2386 = vmatprep.subr.mxu0 0.0
    %2387 = vmatpush1.msra.mxu0 0.0
    %2388 = vmatprep.subr.mxu0 0.0
    %2389 = vmatpush1.msra.mxu0 0.0
    %2390 = vmatprep.subr.mxu0 0.0
    %2391 = vmatpush1.msra.mxu0 0.0
    %2392 = vmatprep.subr.mxu0 0.0
    %2393 = vmatpush1.msra.mxu0 0.0
    %2394 = vmatprep.subr.mxu0 0.0
    %2395 = vmatpush1.msra.mxu0 0.0
    %2396 = vmatprep.subr.mxu0 0.0
    %2397 = vmatpush1.msra.mxu0 0.0
    %2398 = vmatprep.subr.mxu0 0.0
    %2399 = vmatpush1.msra.mxu0 0.0
    %2400 = vmatprep.subr.mxu0 0.0
    %2401 = vmatpush1.msra.mxu0 0.0
    %2402 = vmatprep.subr.mxu0 0.0
    %2403 = vmatpush1.msra.mxu0 0.0
    %2404 = vmatprep.subr.mxu0 0.0
    %2405 = vmatpush1.msra.mxu0 0.0
    %2406 = vmatprep.subr.mxu0 0.0
    %2407 = vmatpush1.msra.mxu0 0.0
    %2408 = vmatprep.subr.mxu0 0.0
    %2409 = vmatpush1.msra.mxu0 0.0
    %2410 = vmatprep.subr.mxu0 0.0
    %2411 = vmatpush1.msra.mxu0 0.0
    %2412 = vmatprep.subr.mxu0 0.0
    %2413 = vmatpush1.msra.mxu0 0.0
    %2414 = vmatprep.mubr.f32.mxu0 0.0
    %2415 = vmatmul.mubr.f32.gmra.mrb[0].mxu0 %v2167
    %v2416 = vpop.f32.mrb[0].mxu0
    %v2417 = vadd.f32 0.0, %v2416
    %v2418 = vpop.f32.mrb[0].mxu0
    %v2419 = vadd.f32 0.0, %v2418
    %2420 = vmatprep.mubr.f32.mxu0 0.0
    %2421 = vmatmul.mubr.f32.gmra.mrb[0].mxu0 %v2170
    %v2422 = vpop.f32.mrb[0].mxu0
    %v2423 = vadd.f32 0.0, %v2422
    %v2424 = vpop.f32.mrb[0].mxu0
    %v2425 = vadd.f32 0.0, %v2424
    %2426 = vdwg.mxu0
    %2427 = vmatprep.subr.mxu0 %v2186
    %2428 = vmatpush1.msra.mxu0 %v2184
    %2429 = vmatprep.subr.mxu0 0.0
    %2430 = vmatpush1.msra.mxu0 0.0
    %2431 = vmatprep.subr.mxu0 0.0
    %2432 = vmatpush1.msra.mxu0 0.0
    %2433 = vmatprep.subr.mxu0 0.0
    %2434 = vmatpush1.msra.mxu0 0.0
    %2435 = vmatprep.subr.mxu0 0.0
    %2436 = vmatpush1.msra.mxu0 0.0
    %2437 = vmatprep.subr.mxu0 0.0
    %2438 = vmatpush1.msra.mxu0 0.0
    %2439 = vmatprep.subr.mxu0 0.0
    %2440 = vmatpush1.msra.mxu0 0.0
    %2441 = vmatprep.subr.mxu0 0.0
    %2442 = vmatpush1.msra.mxu0 0.0
    %2443 = vmatprep.subr.mxu0 0.0
    %2444 = vmatpush1.msra.mxu0 0.0
    %2445 = vmatprep.subr.mxu0 0.0
    %2446 = vmatpush1.msra.mxu0 0.0
    %2447 = vmatprep.subr.mxu0 0.0
    %2448 = vmatpush1.msra.mxu0 0.0
    %2449 = vmatprep.subr.mxu0 0.0
    %2450 = vmatpush1.msra.mxu0 0.0
    %2451 = vmatprep.subr.mxu0 0.0
    %2452 = vmatpush1.msra.mxu0 0.0
    %2453 = vmatprep.subr.mxu0 0.0
    %2454 = vmatpush1.msra.mxu0 0.0
    %2455 = vmatprep.subr.mxu0 0.0
    %2456 = vmatpush1.msra.mxu0 0.0
    %2457 = vmatprep.subr.mxu0 0.0
    %2458 = vmatpush1.msra.mxu0 0.0
    %2459 = vmatprep.subr.mxu0 0.0
    %2460 = vmatpush1.msra.mxu0 0.0
    %2461 = vmatprep.subr.mxu0 0.0
    %2462 = vmatpush1.msra.mxu0 0.0
    %2463 = vmatprep.subr.mxu0 0.0
    %2464 = vmatpush1.msra.mxu0 0.0
    %2465 = vmatprep.subr.mxu0 0.0
    %2466 = vmatpush1.msra.mxu0 0.0
    %2467 = vmatprep.subr.mxu0 0.0
    %2468 = vmatpush1.msra.mxu0 0.0
    %2469 = vmatprep.subr.mxu0 0.0
    %2470 = vmatpush1.msra.mxu0 0.0
    %2471 = vmatprep.subr.mxu0 0.0
    %2472 = vmatpush1.msra.mxu0 0.0
    %2473 = vmatprep.subr.mxu0 0.0
    %2474 = vmatpush1.msra.mxu0 0.0
    %2475 = vmatprep.subr.mxu0 0.0
    %2476 = vmatpush1.msra.mxu0 0.0
    %2477 = vmatprep.subr.mxu0 0.0
    %2478 = vmatpush1.msra.mxu0 0.0
    %2479 = vmatprep.subr.mxu0 0.0
    %2480 = vmatpush1.msra.mxu0 0.0
    %2481 = vmatprep.subr.mxu0 0.0
    %2482 = vmatpush1.msra.mxu0 0.0
    %2483 = vmatprep.subr.mxu0 0.0
    %2484 = vmatpush1.msra.mxu0 0.0
    %2485 = vmatprep.subr.mxu0 0.0
    %2486 = vmatpush1.msra.mxu0 0.0
    %2487 = vmatprep.subr.mxu0 0.0
    %2488 = vmatpush1.msra.mxu0 0.0
    %2489 = vmatprep.subr.mxu0 0.0
    %2490 = vmatpush1.msra.mxu0 0.0
    %2491 = vmatprep.mubr.f32.mxu0 0.0
    %2492 = vmatmul.mubr.f32.gmra.mrb[0].mxu0 %v2167
    %v2493 = vpop.f32.mrb[0].mxu0
    %v2494 = vadd.f32 0.0, %v2493
    %v2495 = vpop.f32.mrb[0].mxu0
    %v2496 = vadd.f32 0.0, %v2495
    %2497 = vmatprep.mubr.f32.mxu0 0.0
    %2498 = vmatmul.mubr.f32.gmra.mrb[0].mxu0 %v2170
    %v2499 = vpop.f32.mrb[0].mxu0
    %v2500 = vadd.f32 0.0, %v2499
    %v2501 = vpop.f32.mrb[0].mxu0
    %v2502 = vadd.f32 0.0, %v2501
    %2503 = vdwg.mxu0
    %2504 = vmatprep.subr.mxu0 %v2190
    %2505 = vmatpush1.msra.mxu0 %v2188
    %2506 = vmatprep.subr.mxu0 0.0
    %2507 = vmatpush1.msra.mxu0 0.0
    %2508 = vmatprep.subr.mxu0 0.0
    %2509 = vmatpush1.msra.mxu0 0.0
    %2510 = vmatprep.subr.mxu0 0.0
    %2511 = vmatpush1.msra.mxu0 0.0
    %2512 = vmatprep.subr.mxu0 0.0
    %2513 = vmatpush1.msra.mxu0 0.0
    %2514 = vmatprep.subr.mxu0 0.0
    %2515 = vmatpush1.msra.mxu0 0.0
    %2516 = vmatprep.subr.mxu0 0.0
    %2517 = vmatpush1.msra.mxu0 0.0
    %2518 = vmatprep.subr.mxu0 0.0
    %2519 = vmatpush1.msra.mxu0 0.0
    %2520 = vmatprep.subr.mxu0 0.0
    %2521 = vmatpush1.msra.mxu0 0.0
    %2522 = vmatprep.subr.mxu0 0.0
    %2523 = vmatpush1.msra.mxu0 0.0
    %2524 = vmatprep.subr.mxu0 0.0
    %2525 = vmatpush1.msra.mxu0 0.0
    %2526 = vmatprep.subr.mxu0 0.0
    %2527 = vmatpush1.msra.mxu0 0.0
    %2528 = vmatprep.subr.mxu0 0.0
    %2529 = vmatpush1.msra.mxu0 0.0
    %2530 = vmatprep.subr.mxu0 0.0
    %2531 = vmatpush1.msra.mxu0 0.0
    %2532 = vmatprep.subr.mxu0 0.0
    %2533 = vmatpush1.msra.mxu0 0.0
    %2534 = vmatprep.subr.mxu0 0.0
    %2535 = vmatpush1.msra.mxu0 0.0
    %2536 = vmatprep.subr.mxu0 0.0
    %2537 = vmatpush1.msra.mxu0 0.0
    %2538 = vmatprep.subr.mxu0 0.0
    %2539 = vmatpush1.msra.mxu0 0.0
    %2540 = vmatprep.subr.mxu0 0.0
    %2541 = vmatpush1.msra.mxu0 0.0
    %2542 = vmatprep.subr.mxu0 0.0
    %2543 = vmatpush1.msra.mxu0 0.0
    %2544 = vmatprep.subr.mxu0 0.0
    %2545 = vmatpush1.msra.mxu0 0.0
    %2546 = vmatprep.subr.mxu0 0.0
    %2547 = vmatpush1.msra.mxu0 0.0
    %2548 = vmatprep.subr.mxu0 0.0
    %2549 = vmatpush1.msra.mxu0 0.0
    %2550 = vmatprep.subr.mxu0 0.0
    %2551 = vmatpush1.msra.mxu0 0.0
    %2552 = vmatprep.subr.mxu0 0.0
    %2553 = vmatpush1.msra.mxu0 0.0
    %2554 = vmatprep.subr.mxu0 0.0
    %2555 = vmatpush1.msra.mxu0 0.0
    %2556 = vmatprep.subr.mxu0 0.0
    %2557 = vmatpush1.msra.mxu0 0.0
    %2558 = vmatprep.subr.mxu0 0.0
    %2559 = vmatpush1.msra.mxu0 0.0
    %2560 = vmatprep.subr.mxu0 0.0
    %2561 = vmatpush1.msra.mxu0 0.0
    %2562 = vmatprep.subr.mxu0 0.0
    %2563 = vmatpush1.msra.mxu0 0.0
    %2564 = vmatprep.subr.mxu0 0.0
    %2565 = vmatpush1.msra.mxu0 0.0
    %2566 = vmatprep.subr.mxu0 0.0
    %2567 = vmatpush1.msra.mxu0 0.0
    %2568 = vmatprep.mubr.f32.mxu0 0.0
    %2569 = vmatmul.mubr.f32.gmra.mrb[0].mxu0 %v2167
    %v2570 = vpop.f32.mrb[0].mxu0
    %v2571 = vadd.f32 0.0, %v2570
    %v2572 = vpop.f32.mrb[0].mxu0
    %v2573 = vadd.f32 0.0, %v2572
    %2574 = vmatprep.mubr.f32.mxu0 0.0
    %2575 = vmatmul.mubr.f32.gmra.mrb[0].mxu0 %v2170
    %v2576 = vpop.f32.mrb[0].mxu0
    %v2577 = vadd.f32 0.0, %v2576
    %v2578 = vpop.f32.mrb[0].mxu0
    %v2579 = vadd.f32 0.0, %v2578
    %2580 = vdwg.mxu0
    %2581 = vmatprep.subr.mxu0 %v2194
    %2582 = vmatpush1.msra.mxu0 %v2192
    %2583 = vmatprep.subr.mxu0 0.0
    %2584 = vmatpush1.msra.mxu0 0.0
    %2585 = vmatprep.subr.mxu0 0.0
    %2586 = vmatpush1.msra.mxu0 0.0
    %2587 = vmatprep.subr.mxu0 0.0
    %2588 = vmatpush1.msra.mxu0 0.0
    %2589 = vmatprep.subr.mxu0 0.0
    %2590 = vmatpush1.msra.mxu0 0.0
    %2591 = vmatprep.subr.mxu0 0.0
    %2592 = vmatpush1.msra.mxu0 0.0
    %2593 = vmatprep.subr.mxu0 0.0
    %2594 = vmatpush1.msra.mxu0 0.0
    %2595 = vmatprep.subr.mxu0 0.0
    %2596 = vmatpush1.msra.mxu0 0.0
    %2597 = vmatprep.subr.mxu0 0.0
    %2598 = vmatpush1.msra.mxu0 0.0
    %2599 = vmatprep.subr.mxu0 0.0
    %2600 = vmatpush1.msra.mxu0 0.0
    %2601 = vmatprep.subr.mxu0 0.0
    %2602 = vmatpush1.msra.mxu0 0.0
    %2603 = vmatprep.subr.mxu0 0.0
    %2604 = vmatpush1.msra.mxu0 0.0
    %2605 = vmatprep.subr.mxu0 0.0
    %2606 = vmatpush1.msra.mxu0 0.0
    %2607 = vmatprep.subr.mxu0 0.0
    %2608 = vmatpush1.msra.mxu0 0.0
    %2609 = vmatprep.subr.mxu0 0.0
    %2610 = vmatpush1.msra.mxu0 0.0
    %2611 = vmatprep.subr.mxu0 0.0
    %2612 = vmatpush1.msra.mxu0 0.0
    %2613 = vmatprep.subr.mxu0 0.0
    %2614 = vmatpush1.msra.mxu0 0.0
    %2615 = vmatprep.subr.mxu0 0.0
    %2616 = vmatpush1.msra.mxu0 0.0
    %2617 = vmatprep.subr.mxu0 0.0
    %2618 = vmatpush1.msra.mxu0 0.0
    %2619 = vmatprep.subr.mxu0 0.0
    %2620 = vmatpush1.msra.mxu0 0.0
    %2621 = vmatprep.subr.mxu0 0.0
    %2622 = vmatpush1.msra.mxu0 0.0
    %2623 = vmatprep.subr.mxu0 0.0
    %2624 = vmatpush1.msra.mxu0 0.0
    %2625 = vmatprep.subr.mxu0 0.0
    %2626 = vmatpush1.msra.mxu0 0.0
    %2627 = vmatprep.subr.mxu0 0.0
    %2628 = vmatpush1.msra.mxu0 0.0
    %2629 = vmatprep.subr.mxu0 0.0
    %2630 = vmatpush1.msra.mxu0 0.0
    %2631 = vmatprep.subr.mxu0 0.0
    %2632 = vmatpush1.msra.mxu0 0.0
    %2633 = vmatprep.subr.mxu0 0.0
    %2634 = vmatpush1.msra.mxu0 0.0
    %2635 = vmatprep.subr.mxu0 0.0
    %2636 = vmatpush1.msra.mxu0 0.0
    %2637 = vmatprep.subr.mxu0 0.0
    %2638 = vmatpush1.msra.mxu0 0.0
    %2639 = vmatprep.subr.mxu0 0.0
    %2640 = vmatpush1.msra.mxu0 0.0
    %2641 = vmatprep.subr.mxu0 0.0
    %2642 = vmatpush1.msra.mxu0 0.0
    %2643 = vmatprep.subr.mxu0 0.0
    %2644 = vmatpush1.msra.mxu0 0.0
    %2645 = vmatprep.mubr.f32.mxu0 0.0
    %2646 = vmatmul.mubr.f32.gmra.mrb[0].mxu0 %v2167
    %v2647 = vpop.f32.mrb[0].mxu0
    %v2648 = vadd.f32 0.0, %v2647
    %v2649 = vpop.f32.mrb[0].mxu0
    %v2650 = vadd.f32 0.0, %v2649
    %2651 = vmatprep.mubr.f32.mxu0 0.0
    %2652 = vmatmul.mubr.f32.gmra.mrb[0].mxu0 %v2170
    %v2653 = vpop.f32.mrb[0].mxu0
    %v2654 = vadd.f32 0.0, %v2653
    %v2655 = vpop.f32.mrb[0].mxu0
    %v2656 = vadd.f32 0.0, %v2655
    %2657 = vdwg.mxu0
    %v2658 = vadd.f32 %v1732, %v2263
    %v2659 = vadd.f32 %v1734, %v2265
    %v2660 = vadd.f32 %v1809, %v2340
    %v2661 = vadd.f32 %v1811, %v2342
    %v2662 = vadd.f32 %v1886, %v2417
    %v2663 = vadd.f32 %v1888, %v2419
    %v2664 = vadd.f32 %v1963, %v2494
    %v2665 = vadd.f32 %v1965, %v2496
    %v2666 = vadd.f32 %v2040, %v2571
    %v2667 = vadd.f32 %v2042, %v2573
    %v2668 = vadd.f32 %v2117, %v2648
    %v2669 = vadd.f32 %v2119, %v2650
    %v2670 = vadd.f32 %v1738, %v2269
    %v2671 = vadd.f32 %v1740, %v2271
    %v2672 = vadd.f32 %v1815, %v2346
    %v2673 = vadd.f32 %v1817, %v2348
    %v2674 = vadd.f32 %v1892, %v2423
    %v2675 = vadd.f32 %v1894, %v2425
    %v2676 = vadd.f32 %v1969, %v2500
    %v2677 = vadd.f32 %v1971, %v2502
    %v2678 = vadd.f32 %v2046, %v2577
    %v2679 = vadd.f32 %v2048, %v2579
    %v2680 = vadd.f32 %v2123, %v2654
    %v2681 = vadd.f32 %v2125, %v2656
    %s2682 = scalar_lea.vmem %s3, 48
    %v2683 = vld [vmem:[%s2682] sm:$0xff]
    %v2684 = vld [vmem:[%s2682 + $0x8] sm:$0xff]
    %2685 = vrot.lane.b32.xlu0 %v1076, 72
    %v2686 = vpop.permute.xlu0 %2685
    %2687 = vrot.lane.b32.xlu0 %v1077, 72
    %v2688 = vpop.permute.xlu0 %2687
    %2689 = vrot.lane.b32.xlu0 %v1078, 72
    %v2690 = vpop.permute.xlu0 %2689
    %2691 = vrot.lane.b32.xlu0 %v1079, 72
    %v2692 = vpop.permute.xlu0 %2691
    %2693 = vrot.lane.b32.xlu0 %v1080, 72
    %v2694 = vpop.permute.xlu0 %2693
    %2695 = vrot.lane.b32.xlu0 %v1081, 72
    %v2696 = vpop.permute.xlu0 %2695
    %2697 = vrot.lane.b32.xlu0 %v1082, 72
    %v2698 = vpop.permute.xlu0 %2697
    %2699 = vrot.lane.b32.xlu0 %v1083, 72
    %v2700 = vpop.permute.xlu0 %2699
    %2701 = vrot.lane.b32.xlu0 %v1084, 72
    %v2702 = vpop.permute.xlu0 %2701
    %2703 = vrot.lane.b32.xlu0 %v1085, 72
    %v2704 = vpop.permute.xlu0 %2703
    %2705 = vrot.lane.b32.xlu0 %v1086, 72
    %v2706 = vpop.permute.xlu0 %2705
    %2707 = vrot.lane.b32.xlu0 %v1087, 72
    %v2708 = vpop.permute.xlu0 %2707
    %v2709 = vsel %vm674, %v2686, %v2688
    %v2710 = vsel %vm674, %v2688, %v2690
    %v2711 = vsel %vm674, %v2690, %v2692
    %v2712 = vsel %vm674, %v2692, %v2694
    %v2713 = vsel %vm674, %v2694, %v2696
    %v2714 = vsel %vm674, %v2696, %v2698
    %v2715 = vsel %vm674, %v2698, %v2700
    %v2716 = vsel %vm674, %v2700, %v2702
    %v2717 = vsel %vm674, %v2702, %v2704
    %v2718 = vsel %vm674, %v2704, %v2706
    %v2719 = vsel %vm674, %v2706, %v2708
    %v2721 = vsel %vm1141, %v2683, 0
    %v2724 = vsel %vm1141, %v2684, 0
    %v2726 = vsel %vm1148, %v2709, 0
    %v2728 = vsel %vm1148, %v2710, 0
    %v2730 = vsel %vm1148, %v2711, 0
    %v2732 = vsel %vm1148, %v2712, 0
    %v2734 = vsel %vm1148, %v2713, 0
    %v2736 = vsel %vm1148, %v2714, 0
    %v2738 = vsel %vm1148, %v2715, 0
    %v2740 = vsel %vm1148, %v2716, 0
    %v2742 = vsel %vm1148, %v2717, 0
    %v2744 = vsel %vm1148, %v2718, 0
    %v2746 = vsel %vm1148, %v2719, 0
    %v2748 = vsel %vm1148, %v2708, 0
    %2750 = vmatprep.subr.mxu0 %v2728
    %2751 = vmatpush1.msra.mxu0 %v2726
    %2752 = vmatprep.subr.mxu0 0.0
    %2753 = vmatpush1.msra.mxu0 0.0
    %2754 = vmatprep.subr.mxu0 0.0
    %2755 = vmatpush1.msra.mxu0 0.0
    %2756 = vmatprep.subr.mxu0 0.0
    %2757 = vmatpush1.msra.mxu0 0.0
    %2758 = vmatprep.subr.mxu0 0.0
    %2759 = vmatpush1.msra.mxu0 0.0
    %2760 = vmatprep.subr.mxu0 0.0
    %2761 = vmatpush1.msra.mxu0 0.0
    %2762 = vmatprep.subr.mxu0 0.0
    %2763 = vmatpush1.msra.mxu0 0.0
    %2764 = vmatprep.subr.mxu0 0.0
    %2765 = vmatpush1.msra.mxu0 0.0
    %2766 = vmatprep.subr.mxu0 0.0
    %2767 = vmatpush1.msra.mxu0 0.0
    %2768 = vmatprep.subr.mxu0 0.0
    %2769 = vmatpush1.msra.mxu0 0.0
    %2770 = vmatprep.subr.mxu0 0.0
    %2771 = vmatpush1.msra.mxu0 0.0
    %2772 = vmatprep.subr.mxu0 0.0
    %2773 = vmatpush1.msra.mxu0 0.0
    %2774 = vmatprep.subr.mxu0 0.0
    %2775 = vmatpush1.msra.mxu0 0.0
    %2776 = vmatprep.subr.mxu0 0.0
    %2777 = vmatpush1.msra.mxu0 0.0
    %2778 = vmatprep.subr.mxu0 0.0
    %2779 = vmatpush1.msra.mxu0 0.0
    %2780 = vmatprep.subr.mxu0 0.0
    %2781 = vmatpush1.msra.mxu0 0.0
    %2782 = vmatprep.subr.mxu0 0.0
    %2783 = vmatpush1.msra.mxu0 0.0
    %2784 = vmatprep.subr.mxu0 0.0
    %2785 = vmatpush1.msra.mxu0 0.0
    %2786 = vmatprep.subr.mxu0 0.0
    %2787 = vmatpush1.msra.mxu0 0.0
    %2788 = vmatprep.subr.mxu0 0.0
    %2789 = vmatpush1.msra.mxu0 0.0
    %2790 = vmatprep.subr.mxu0 0.0
    %2791 = vmatpush1.msra.mxu0 0.0
    %2792 = vmatprep.subr.mxu0 0.0
    %2793 = vmatpush1.msra.mxu0 0.0
    %2794 = vmatprep.subr.mxu0 0.0
    %2795 = vmatpush1.msra.mxu0 0.0
    %2796 = vmatprep.subr.mxu0 0.0
    %2797 = vmatpush1.msra.mxu0 0.0
    %2798 = vmatprep.subr.mxu0 0.0
    %2799 = vmatpush1.msra.mxu0 0.0
    %2800 = vmatprep.subr.mxu0 0.0
    %2801 = vmatpush1.msra.mxu0 0.0
    %2802 = vmatprep.subr.mxu0 0.0
    %2803 = vmatpush1.msra.mxu0 0.0
    %2804 = vmatprep.subr.mxu0 0.0
    %2805 = vmatpush1.msra.mxu0 0.0
    %2806 = vmatprep.subr.mxu0 0.0
    %2807 = vmatpush1.msra.mxu0 0.0
    %2808 = vmatprep.subr.mxu0 0.0
    %2809 = vmatpush1.msra.mxu0 0.0
    %2810 = vmatprep.subr.mxu0 0.0
    %2811 = vmatpush1.msra.mxu0 0.0
    %2812 = vmatprep.subr.mxu0 0.0
    %2813 = vmatpush1.msra.mxu0 0.0
    %2814 = vmatprep.mubr.f32.mxu0 0.0
    %2815 = vmatmul.mubr.f32.gmra.mrb[0].mxu0 %v2721
    %v2816 = vpop.f32.mrb[0].mxu0
    %v2817 = vadd.f32 0.0, %v2816
    %v2818 = vpop.f32.mrb[0].mxu0
    %v2819 = vadd.f32 0.0, %v2818
    %2820 = vmatprep.mubr.f32.mxu0 0.0
    %2821 = vmatmul.mubr.f32.gmra.mrb[0].mxu0 %v2724
    %v2822 = vpop.f32.mrb[0].mxu0
    %v2823 = vadd.f32 0.0, %v2822
    %v2824 = vpop.f32.mrb[0].mxu0
    %v2825 = vadd.f32 0.0, %v2824
    %2826 = vdwg.mxu0
    %2827 = vmatprep.subr.mxu0 %v2732
    %2828 = vmatpush1.msra.mxu0 %v2730
    %2829 = vmatprep.subr.mxu0 0.0
    %2830 = vmatpush1.msra.mxu0 0.0
    %2831 = vmatprep.subr.mxu0 0.0
    %2832 = vmatpush1.msra.mxu0 0.0
    %2833 = vmatprep.subr.mxu0 0.0
    %2834 = vmatpush1.msra.mxu0 0.0
    %2835 = vmatprep.subr.mxu0 0.0
    %2836 = vmatpush1.msra.mxu0 0.0
    %2837 = vmatprep.subr.mxu0 0.0
    %2838 = vmatpush1.msra.mxu0 0.0
    %2839 = vmatprep.subr.mxu0 0.0
    %2840 = vmatpush1.msra.mxu0 0.0
    %2841 = vmatprep.subr.mxu0 0.0
    %2842 = vmatpush1.msra.mxu0 0.0
    %2843 = vmatprep.subr.mxu0 0.0
    %2844 = vmatpush1.msra.mxu0 0.0
    %2845 = vmatprep.subr.mxu0 0.0
    %2846 = vmatpush1.msra.mxu0 0.0
    %2847 = vmatprep.subr.mxu0 0.0
    %2848 = vmatpush1.msra.mxu0 0.0
    %2849 = vmatprep.subr.mxu0 0.0
    %2850 = vmatpush1.msra.mxu0 0.0
    %2851 = vmatprep.subr.mxu0 0.0
    %2852 = vmatpush1.msra.mxu0 0.0
    %2853 = vmatprep.subr.mxu0 0.0
    %2854 = vmatpush1.msra.mxu0 0.0
    %2855 = vmatprep.subr.mxu0 0.0
    %2856 = vmatpush1.msra.mxu0 0.0
    %2857 = vmatprep.subr.mxu0 0.0
    %2858 = vmatpush1.msra.mxu0 0.0
    %2859 = vmatprep.subr.mxu0 0.0
    %2860 = vmatpush1.msra.mxu0 0.0
    %2861 = vmatprep.subr.mxu0 0.0
    %2862 = vmatpush1.msra.mxu0 0.0
    %2863 = vmatprep.subr.mxu0 0.0
    %2864 = vmatpush1.msra.mxu0 0.0
    %2865 = vmatprep.subr.mxu0 0.0
    %2866 = vmatpush1.msra.mxu0 0.0
    %2867 = vmatprep.subr.mxu0 0.0
    %2868 = vmatpush1.msra.mxu0 0.0
    %2869 = vmatprep.subr.mxu0 0.0
    %2870 = vmatpush1.msra.mxu0 0.0
    %2871 = vmatprep.subr.mxu0 0.0
    %2872 = vmatpush1.msra.mxu0 0.0
    %2873 = vmatprep.subr.mxu0 0.0
    %2874 = vmatpush1.msra.mxu0 0.0
    %2875 = vmatprep.subr.mxu0 0.0
    %2876 = vmatpush1.msra.mxu0 0.0
    %2877 = vmatprep.subr.mxu0 0.0
    %2878 = vmatpush1.msra.mxu0 0.0
    %2879 = vmatprep.subr.mxu0 0.0
    %2880 = vmatpush1.msra.mxu0 0.0
    %2881 = vmatprep.subr.mxu0 0.0
    %2882 = vmatpush1.msra.mxu0 0.0
    %2883 = vmatprep.subr.mxu0 0.0
    %2884 = vmatpush1.msra.mxu0 0.0
    %2885 = vmatprep.subr.mxu0 0.0
    %2886 = vmatpush1.msra.mxu0 0.0
    %2887 = vmatprep.subr.mxu0 0.0
    %2888 = vmatpush1.msra.mxu0 0.0
    %2889 = vmatprep.subr.mxu0 0.0
    %2890 = vmatpush1.msra.mxu0 0.0
    %2891 = vmatprep.mubr.f32.mxu0 0.0
    %2892 = vmatmul.mubr.f32.gmra.mrb[0].mxu0 %v2721
    %v2893 = vpop.f32.mrb[0].mxu0
    %v2894 = vadd.f32 0.0, %v2893
    %v2895 = vpop.f32.mrb[0].mxu0
    %v2896 = vadd.f32 0.0, %v2895
    %2897 = vmatprep.mubr.f32.mxu0 0.0
    %2898 = vmatmul.mubr.f32.gmra.mrb[0].mxu0 %v2724
    %v2899 = vpop.f32.mrb[0].mxu0
    %v2900 = vadd.f32 0.0, %v2899
    %v2901 = vpop.f32.mrb[0].mxu0
    %v2902 = vadd.f32 0.0, %v2901
    %2903 = vdwg.mxu0
    %2904 = vmatprep.subr.mxu0 %v2736
    %2905 = vmatpush1.msra.mxu0 %v2734
    %2906 = vmatprep.subr.mxu0 0.0
    %2907 = vmatpush1.msra.mxu0 0.0
    %2908 = vmatprep.subr.mxu0 0.0
    %2909 = vmatpush1.msra.mxu0 0.0
    %2910 = vmatprep.subr.mxu0 0.0
    %2911 = vmatpush1.msra.mxu0 0.0
    %2912 = vmatprep.subr.mxu0 0.0
    %2913 = vmatpush1.msra.mxu0 0.0
    %2914 = vmatprep.subr.mxu0 0.0
    %2915 = vmatpush1.msra.mxu0 0.0
    %2916 = vmatprep.subr.mxu0 0.0
    %2917 = vmatpush1.msra.mxu0 0.0
    %2918 = vmatprep.subr.mxu0 0.0
    %2919 = vmatpush1.msra.mxu0 0.0
    %2920 = vmatprep.subr.mxu0 0.0
    %2921 = vmatpush1.msra.mxu0 0.0
    %2922 = vmatprep.subr.mxu0 0.0
    %2923 = vmatpush1.msra.mxu0 0.0
    %2924 = vmatprep.subr.mxu0 0.0
    %2925 = vmatpush1.msra.mxu0 0.0
    %2926 = vmatprep.subr.mxu0 0.0
    %2927 = vmatpush1.msra.mxu0 0.0
    %2928 = vmatprep.subr.mxu0 0.0
    %2929 = vmatpush1.msra.mxu0 0.0
    %2930 = vmatprep.subr.mxu0 0.0
    %2931 = vmatpush1.msra.mxu0 0.0
    %2932 = vmatprep.subr.mxu0 0.0
    %2933 = vmatpush1.msra.mxu0 0.0
    %2934 = vmatprep.subr.mxu0 0.0
    %2935 = vmatpush1.msra.mxu0 0.0
    %2936 = vmatprep.subr.mxu0 0.0
    %2937 = vmatpush1.msra.mxu0 0.0
    %2938 = vmatprep.subr.mxu0 0.0
    %2939 = vmatpush1.msra.mxu0 0.0
    %2940 = vmatprep.subr.mxu0 0.0
    %2941 = vmatpush1.msra.mxu0 0.0
    %2942 = vmatprep.subr.mxu0 0.0
    %2943 = vmatpush1.msra.mxu0 0.0
    %2944 = vmatprep.subr.mxu0 0.0
    %2945 = vmatpush1.msra.mxu0 0.0
    %2946 = vmatprep.subr.mxu0 0.0
    %2947 = vmatpush1.msra.mxu0 0.0
    %2948 = vmatprep.subr.mxu0 0.0
    %2949 = vmatpush1.msra.mxu0 0.0
    %2950 = vmatprep.subr.mxu0 0.0
    %2951 = vmatpush1.msra.mxu0 0.0
    %2952 = vmatprep.subr.mxu0 0.0
    %2953 = vmatpush1.msra.mxu0 0.0
    %2954 = vmatprep.subr.mxu0 0.0
    %2955 = vmatpush1.msra.mxu0 0.0
    %2956 = vmatprep.subr.mxu0 0.0
    %2957 = vmatpush1.msra.mxu0 0.0
    %2958 = vmatprep.subr.mxu0 0.0
    %2959 = vmatpush1.msra.mxu0 0.0
    %2960 = vmatprep.subr.mxu0 0.0
    %2961 = vmatpush1.msra.mxu0 0.0
    %2962 = vmatprep.subr.mxu0 0.0
    %2963 = vmatpush1.msra.mxu0 0.0
    %2964 = vmatprep.subr.mxu0 0.0
    %2965 = vmatpush1.msra.mxu0 0.0
    %2966 = vmatprep.subr.mxu0 0.0
    %2967 = vmatpush1.msra.mxu0 0.0
    %2968 = vmatprep.mubr.f32.mxu0 0.0
    %2969 = vmatmul.mubr.f32.gmra.mrb[0].mxu0 %v2721
    %v2970 = vpop.f32.mrb[0].mxu0
    %v2971 = vadd.f32 0.0, %v2970
    %v2972 = vpop.f32.mrb[0].mxu0
    %v2973 = vadd.f32 0.0, %v2972
    %2974 = vmatprep.mubr.f32.mxu0 0.0
    %2975 = vmatmul.mubr.f32.gmra.mrb[0].mxu0 %v2724
    %v2976 = vpop.f32.mrb[0].mxu0
    %v2977 = vadd.f32 0.0, %v2976
    %v2978 = vpop.f32.mrb[0].mxu0
    %v2979 = vadd.f32 0.0, %v2978
    %2980 = vdwg.mxu0
    %2981 = vmatprep.subr.mxu0 %v2740
    %2982 = vmatpush1.msra.mxu0 %v2738
    %2983 = vmatprep.subr.mxu0 0.0
    %2984 = vmatpush1.msra.mxu0 0.0
    %2985 = vmatprep.subr.mxu0 0.0
    %2986 = vmatpush1.msra.mxu0 0.0
    %2987 = vmatprep.subr.mxu0 0.0
    %2988 = vmatpush1.msra.mxu0 0.0
    %2989 = vmatprep.subr.mxu0 0.0
    %2990 = vmatpush1.msra.mxu0 0.0
    %2991 = vmatprep.subr.mxu0 0.0
    %2992 = vmatpush1.msra.mxu0 0.0
    %2993 = vmatprep.subr.mxu0 0.0
    %2994 = vmatpush1.msra.mxu0 0.0
    %2995 = vmatprep.subr.mxu0 0.0
    %2996 = vmatpush1.msra.mxu0 0.0
    %2997 = vmatprep.subr.mxu0 0.0
    %2998 = vmatpush1.msra.mxu0 0.0
    %2999 = vmatprep.subr.mxu0 0.0
    %3000 = vmatpush1.msra.mxu0 0.0
    %3001 = vmatprep.subr.mxu0 0.0
    %3002 = vmatpush1.msra.mxu0 0.0
    %3003 = vmatprep.subr.mxu0 0.0
    %3004 = vmatpush1.msra.mxu0 0.0
    %3005 = vmatprep.subr.mxu0 0.0
    %3006 = vmatpush1.msra.mxu0 0.0
    %3007 = vmatprep.subr.mxu0 0.0
    %3008 = vmatpush1.msra.mxu0 0.0
    %3009 = vmatprep.subr.mxu0 0.0
    %3010 = vmatpush1.msra.mxu0 0.0
    %3011 = vmatprep.subr.mxu0 0.0
    %3012 = vmatpush1.msra.mxu0 0.0
    %3013 = vmatprep.subr.mxu0 0.0
    %3014 = vmatpush1.msra.mxu0 0.0
    %3015 = vmatprep.subr.mxu0 0.0
    %3016 = vmatpush1.msra.mxu0 0.0
    %3017 = vmatprep.subr.mxu0 0.0
    %3018 = vmatpush1.msra.mxu0 0.0
    %3019 = vmatprep.subr.mxu0 0.0
    %3020 = vmatpush1.msra.mxu0 0.0
    %3021 = vmatprep.subr.mxu0 0.0
    %3022 = vmatpush1.msra.mxu0 0.0
    %3023 = vmatprep.subr.mxu0 0.0
    %3024 = vmatpush1.msra.mxu0 0.0
    %3025 = vmatprep.subr.mxu0 0.0
    %3026 = vmatpush1.msra.mxu0 0.0
    %3027 = vmatprep.subr.mxu0 0.0
    %3028 = vmatpush1.msra.mxu0 0.0
    %3029 = vmatprep.subr.mxu0 0.0
    %3030 = vmatpush1.msra.mxu0 0.0
    %3031 = vmatprep.subr.mxu0 0.0
    %3032 = vmatpush1.msra.mxu0 0.0
    %3033 = vmatprep.subr.mxu0 0.0
    %3034 = vmatpush1.msra.mxu0 0.0
    %3035 = vmatprep.subr.mxu0 0.0
    %3036 = vmatpush1.msra.mxu0 0.0
    %3037 = vmatprep.subr.mxu0 0.0
    %3038 = vmatpush1.msra.mxu0 0.0
    %3039 = vmatprep.subr.mxu0 0.0
    %3040 = vmatpush1.msra.mxu0 0.0
    %3041 = vmatprep.subr.mxu0 0.0
    %3042 = vmatpush1.msra.mxu0 0.0
    %3043 = vmatprep.subr.mxu0 0.0
    %3044 = vmatpush1.msra.mxu0 0.0
    %3045 = vmatprep.mubr.f32.mxu0 0.0
    %3046 = vmatmul.mubr.f32.gmra.mrb[0].mxu0 %v2721
    %v3047 = vpop.f32.mrb[0].mxu0
    %v3048 = vadd.f32 0.0, %v3047
    %v3049 = vpop.f32.mrb[0].mxu0
    %v3050 = vadd.f32 0.0, %v3049
    %3051 = vmatprep.mubr.f32.mxu0 0.0
    %3052 = vmatmul.mubr.f32.gmra.mrb[0].mxu0 %v2724
    %v3053 = vpop.f32.mrb[0].mxu0
    %v3054 = vadd.f32 0.0, %v3053
    %v3055 = vpop.f32.mrb[0].mxu0
    %v3056 = vadd.f32 0.0, %v3055
    %3057 = vdwg.mxu0
    %3058 = vmatprep.subr.mxu0 %v2744
    %3059 = vmatpush1.msra.mxu0 %v2742
    %3060 = vmatprep.subr.mxu0 0.0
    %3061 = vmatpush1.msra.mxu0 0.0
    %3062 = vmatprep.subr.mxu0 0.0
    %3063 = vmatpush1.msra.mxu0 0.0
    %3064 = vmatprep.subr.mxu0 0.0
    %3065 = vmatpush1.msra.mxu0 0.0
    %3066 = vmatprep.subr.mxu0 0.0
    %3067 = vmatpush1.msra.mxu0 0.0
    %3068 = vmatprep.subr.mxu0 0.0
    %3069 = vmatpush1.msra.mxu0 0.0
    %3070 = vmatprep.subr.mxu0 0.0
    %3071 = vmatpush1.msra.mxu0 0.0
    %3072 = vmatprep.subr.mxu0 0.0
    %3073 = vmatpush1.msra.mxu0 0.0
    %3074 = vmatprep.subr.mxu0 0.0
    %3075 = vmatpush1.msra.mxu0 0.0
    %3076 = vmatprep.subr.mxu0 0.0
    %3077 = vmatpush1.msra.mxu0 0.0
    %3078 = vmatprep.subr.mxu0 0.0
    %3079 = vmatpush1.msra.mxu0 0.0
    %3080 = vmatprep.subr.mxu0 0.0
    %3081 = vmatpush1.msra.mxu0 0.0
    %3082 = vmatprep.subr.mxu0 0.0
    %3083 = vmatpush1.msra.mxu0 0.0
    %3084 = vmatprep.subr.mxu0 0.0
    %3085 = vmatpush1.msra.mxu0 0.0
    %3086 = vmatprep.subr.mxu0 0.0
    %3087 = vmatpush1.msra.mxu0 0.0
    %3088 = vmatprep.subr.mxu0 0.0
    %3089 = vmatpush1.msra.mxu0 0.0
    %3090 = vmatprep.subr.mxu0 0.0
    %3091 = vmatpush1.msra.mxu0 0.0
    %3092 = vmatprep.subr.mxu0 0.0
    %3093 = vmatpush1.msra.mxu0 0.0
    %3094 = vmatprep.subr.mxu0 0.0
    %3095 = vmatpush1.msra.mxu0 0.0
    %3096 = vmatprep.subr.mxu0 0.0
    %3097 = vmatpush1.msra.mxu0 0.0
    %3098 = vmatprep.subr.mxu0 0.0
    %3099 = vmatpush1.msra.mxu0 0.0
    %3100 = vmatprep.subr.mxu0 0.0
    %3101 = vmatpush1.msra.mxu0 0.0
    %3102 = vmatprep.subr.mxu0 0.0
    %3103 = vmatpush1.msra.mxu0 0.0
    %3104 = vmatprep.subr.mxu0 0.0
    %3105 = vmatpush1.msra.mxu0 0.0
    %3106 = vmatprep.subr.mxu0 0.0
    %3107 = vmatpush1.msra.mxu0 0.0
    %3108 = vmatprep.subr.mxu0 0.0
    %3109 = vmatpush1.msra.mxu0 0.0
    %3110 = vmatprep.subr.mxu0 0.0
    %3111 = vmatpush1.msra.mxu0 0.0
    %3112 = vmatprep.subr.mxu0 0.0
    %3113 = vmatpush1.msra.mxu0 0.0
    %3114 = vmatprep.subr.mxu0 0.0
    %3115 = vmatpush1.msra.mxu0 0.0
    %3116 = vmatprep.subr.mxu0 0.0
    %3117 = vmatpush1.msra.mxu0 0.0
    %3118 = vmatprep.subr.mxu0 0.0
    %3119 = vmatpush1.msra.mxu0 0.0
    %3120 = vmatprep.subr.mxu0 0.0
    %3121 = vmatpush1.msra.mxu0 0.0
    %3122 = vmatprep.mubr.f32.mxu0 0.0
    %3123 = vmatmul.mubr.f32.gmra.mrb[0].mxu0 %v2721
    %v3124 = vpop.f32.mrb[0].mxu0
    %v3125 = vadd.f32 0.0, %v3124
    %v3126 = vpop.f32.mrb[0].mxu0
    %v3127 = vadd.f32 0.0, %v3126
    %3128 = vmatprep.mubr.f32.mxu0 0.0
    %3129 = vmatmul.mubr.f32.gmra.mrb[0].mxu0 %v2724
    %v3130 = vpop.f32.mrb[0].mxu0
    %v3131 = vadd.f32 0.0, %v3130
    %v3132 = vpop.f32.mrb[0].mxu0
    %v3133 = vadd.f32 0.0, %v3132
    %3134 = vdwg.mxu0
    %3135 = vmatprep.subr.mxu0 %v2748
    %3136 = vmatpush1.msra.mxu0 %v2746
    %3137 = vmatprep.subr.mxu0 0.0
    %3138 = vmatpush1.msra.mxu0 0.0
    %3139 = vmatprep.subr.mxu0 0.0
    %3140 = vmatpush1.msra.mxu0 0.0
    %3141 = vmatprep.subr.mxu0 0.0
    %3142 = vmatpush1.msra.mxu0 0.0
    %3143 = vmatprep.subr.mxu0 0.0
    %3144 = vmatpush1.msra.mxu0 0.0
    %3145 = vmatprep.subr.mxu0 0.0
    %3146 = vmatpush1.msra.mxu0 0.0
    %3147 = vmatprep.subr.mxu0 0.0
    %3148 = vmatpush1.msra.mxu0 0.0
    %3149 = vmatprep.subr.mxu0 0.0
    %3150 = vmatpush1.msra.mxu0 0.0
    %3151 = vmatprep.subr.mxu0 0.0
    %3152 = vmatpush1.msra.mxu0 0.0
    %3153 = vmatprep.subr.mxu0 0.0
    %3154 = vmatpush1.msra.mxu0 0.0
    %3155 = vmatprep.subr.mxu0 0.0
    %3156 = vmatpush1.msra.mxu0 0.0
    %3157 = vmatprep.subr.mxu0 0.0
    %3158 = vmatpush1.msra.mxu0 0.0
    %3159 = vmatprep.subr.mxu0 0.0
    %3160 = vmatpush1.msra.mxu0 0.0
    %3161 = vmatprep.subr.mxu0 0.0
    %3162 = vmatpush1.msra.mxu0 0.0
    %3163 = vmatprep.subr.mxu0 0.0
    %3164 = vmatpush1.msra.mxu0 0.0
    %3165 = vmatprep.subr.mxu0 0.0
    %3166 = vmatpush1.msra.mxu0 0.0
    %3167 = vmatprep.subr.mxu0 0.0
    %3168 = vmatpush1.msra.mxu0 0.0
    %3169 = vmatprep.subr.mxu0 0.0
    %3170 = vmatpush1.msra.mxu0 0.0
    %3171 = vmatprep.subr.mxu0 0.0
    %3172 = vmatpush1.msra.mxu0 0.0
    %3173 = vmatprep.subr.mxu0 0.0
    %3174 = vmatpush1.msra.mxu0 0.0
    %3175 = vmatprep.subr.mxu0 0.0
    %3176 = vmatpush1.msra.mxu0 0.0
    %3177 = vmatprep.subr.mxu0 0.0
    %3178 = vmatpush1.msra.mxu0 0.0
    %3179 = vmatprep.subr.mxu0 0.0
    %3180 = vmatpush1.msra.mxu0 0.0
    %3181 = vmatprep.subr.mxu0 0.0
    %3182 = vmatpush1.msra.mxu0 0.0
    %3183 = vmatprep.subr.mxu0 0.0
    %3184 = vmatpush1.msra.mxu0 0.0
    %3185 = vmatprep.subr.mxu0 0.0
    %3186 = vmatpush1.msra.mxu0 0.0
    %3187 = vmatprep.subr.mxu0 0.0
    %3188 = vmatpush1.msra.mxu0 0.0
    %3189 = vmatprep.subr.mxu0 0.0
    %3190 = vmatpush1.msra.mxu0 0.0
    %3191 = vmatprep.subr.mxu0 0.0
    %3192 = vmatpush1.msra.mxu0 0.0
    %3193 = vmatprep.subr.mxu0 0.0
    %3194 = vmatpush1.msra.mxu0 0.0
    %3195 = vmatprep.subr.mxu0 0.0
    %3196 = vmatpush1.msra.mxu0 0.0
    %3197 = vmatprep.subr.mxu0 0.0
    %3198 = vmatpush1.msra.mxu0 0.0
    %3199 = vmatprep.mubr.f32.mxu0 0.0
    %3200 = vmatmul.mubr.f32.gmra.mrb[0].mxu0 %v2721
    %v3201 = vpop.f32.mrb[0].mxu0
    %v3202 = vadd.f32 0.0, %v3201
    %v3203 = vpop.f32.mrb[0].mxu0
    %v3204 = vadd.f32 0.0, %v3203
    %3205 = vmatprep.mubr.f32.mxu0 0.0
    %3206 = vmatmul.mubr.f32.gmra.mrb[0].mxu0 %v2724
    %v3207 = vpop.f32.mrb[0].mxu0
    %v3208 = vadd.f32 0.0, %v3207
    %v3209 = vpop.f32.mrb[0].mxu0
    %v3210 = vadd.f32 0.0, %v3209
    %3211 = vdwg.mxu0
    %v3212 = vadd.f32 %v2658, %v2817
    %v3213 = vadd.f32 %v2659, %v2819
    %v3214 = vadd.f32 %v2660, %v2894
    %v3215 = vadd.f32 %v2661, %v2896
    %v3216 = vadd.f32 %v2662, %v2971
    %v3217 = vadd.f32 %v2663, %v2973
    %v3218 = vadd.f32 %v2664, %v3048
    %v3219 = vadd.f32 %v2665, %v3050
    %v3220 = vadd.f32 %v2666, %v3125
    %v3221 = vadd.f32 %v2667, %v3127
    %v3222 = vadd.f32 %v2668, %v3202
    %v3223 = vadd.f32 %v2669, %v3204
    %v3224 = vadd.f32 %v2670, %v2823
    %v3225 = vadd.f32 %v2671, %v2825
    %v3226 = vadd.f32 %v2672, %v2900
    %v3227 = vadd.f32 %v2673, %v2902
    %v3228 = vadd.f32 %v2674, %v2977
    %v3229 = vadd.f32 %v2675, %v2979
    %v3230 = vadd.f32 %v2676, %v3054
    %v3231 = vadd.f32 %v2677, %v3056
    %v3232 = vadd.f32 %v2678, %v3131
    %v3233 = vadd.f32 %v2679, %v3133
    %v3234 = vadd.f32 %v2680, %v3208
    %v3235 = vadd.f32 %v2681, %v3210
    %s3236 = scalar_lea.vmem %s3, 64
    %v3237 = vld [vmem:[%s3236] sm:$0xff]
    %v3238 = vld [vmem:[%s3236 + $0x8] sm:$0xff]
    %3239 = vrot.lane.b32.xlu0 %v1076, 70
    %v3240 = vpop.permute.xlu0 %3239
    %3241 = vrot.lane.b32.xlu0 %v1077, 70
    %v3242 = vpop.permute.xlu0 %3241
    %3243 = vrot.lane.b32.xlu0 %v1078, 70
    %v3244 = vpop.permute.xlu0 %3243
    %3245 = vrot.lane.b32.xlu0 %v1079, 70
    %v3246 = vpop.permute.xlu0 %3245
    %3247 = vrot.lane.b32.xlu0 %v1080, 70
    %v3248 = vpop.permute.xlu0 %3247
    %3249 = vrot.lane.b32.xlu0 %v1081, 70
    %v3250 = vpop.permute.xlu0 %3249
    %3251 = vrot.lane.b32.xlu0 %v1082, 70
    %v3252 = vpop.permute.xlu0 %3251
    %3253 = vrot.lane.b32.xlu0 %v1083, 70
    %v3254 = vpop.permute.xlu0 %3253
    %3255 = vrot.lane.b32.xlu0 %v1084, 70
    %v3256 = vpop.permute.xlu0 %3255
    %3257 = vrot.lane.b32.xlu0 %v1085, 70
    %v3258 = vpop.permute.xlu0 %3257
    %3259 = vrot.lane.b32.xlu0 %v1086, 70
    %v3260 = vpop.permute.xlu0 %3259
    %3261 = vrot.lane.b32.xlu0 %v1087, 70
    %v3262 = vpop.permute.xlu0 %3261
    %v3263 = vsel %vm864, %v3240, %v3242
    %v3264 = vsel %vm864, %v3242, %v3244
    %v3265 = vsel %vm864, %v3244, %v3246
    %v3266 = vsel %vm864, %v3246, %v3248
    %v3267 = vsel %vm864, %v3248, %v3250
    %v3268 = vsel %vm864, %v3250, %v3252
    %v3269 = vsel %vm864, %v3252, %v3254
    %v3270 = vsel %vm864, %v3254, %v3256
    %v3271 = vsel %vm864, %v3256, %v3258
    %v3272 = vsel %vm864, %v3258, %v3260
    %v3273 = vsel %vm864, %v3260, %v3262
    %v3275 = vsel %vm1141, %v3237, 0
    %v3278 = vsel %vm1141, %v3238, 0
    %v3280 = vsel %vm1148, %v3263, 0
    %v3282 = vsel %vm1148, %v3264, 0
    %v3284 = vsel %vm1148, %v3265, 0
    %v3286 = vsel %vm1148, %v3266, 0
    %v3288 = vsel %vm1148, %v3267, 0
    %v3290 = vsel %vm1148, %v3268, 0
    %v3292 = vsel %vm1148, %v3269, 0
    %v3294 = vsel %vm1148, %v3270, 0
    %v3296 = vsel %vm1148, %v3271, 0
    %v3298 = vsel %vm1148, %v3272, 0
    %v3300 = vsel %vm1148, %v3273, 0
    %v3302 = vsel %vm1148, %v3262, 0
    %3304 = vmatprep.subr.mxu0 %v3282
    %3305 = vmatpush1.msra.mxu0 %v3280
    %3306 = vmatprep.subr.mxu0 0.0
    %3307 = vmatpush1.msra.mxu0 0.0
    %3308 = vmatprep.subr.mxu0 0.0
    %3309 = vmatpush1.msra.mxu0 0.0
    %3310 = vmatprep.subr.mxu0 0.0
    %3311 = vmatpush1.msra.mxu0 0.0
    %3312 = vmatprep.subr.mxu0 0.0
    %3313 = vmatpush1.msra.mxu0 0.0
    %3314 = vmatprep.subr.mxu0 0.0
    %3315 = vmatpush1.msra.mxu0 0.0
    %3316 = vmatprep.subr.mxu0 0.0
    %3317 = vmatpush1.msra.mxu0 0.0
    %3318 = vmatprep.subr.mxu0 0.0
    %3319 = vmatpush1.msra.mxu0 0.0
    %3320 = vmatprep.subr.mxu0 0.0
    %3321 = vmatpush1.msra.mxu0 0.0
    %3322 = vmatprep.subr.mxu0 0.0
    %3323 = vmatpush1.msra.mxu0 0.0
    %3324 = vmatprep.subr.mxu0 0.0
    %3325 = vmatpush1.msra.mxu0 0.0
    %3326 = vmatprep.subr.mxu0 0.0
    %3327 = vmatpush1.msra.mxu0 0.0
    %3328 = vmatprep.subr.mxu0 0.0
    %3329 = vmatpush1.msra.mxu0 0.0
    %3330 = vmatprep.subr.mxu0 0.0
    %3331 = vmatpush1.msra.mxu0 0.0
    %3332 = vmatprep.subr.mxu0 0.0
    %3333 = vmatpush1.msra.mxu0 0.0
    %3334 = vmatprep.subr.mxu0 0.0
    %3335 = vmatpush1.msra.mxu0 0.0
    %3336 = vmatprep.subr.mxu0 0.0
    %3337 = vmatpush1.msra.mxu0 0.0
    %3338 = vmatprep.subr.mxu0 0.0
    %3339 = vmatpush1.msra.mxu0 0.0
    %3340 = vmatprep.subr.mxu0 0.0
    %3341 = vmatpush1.msra.mxu0 0.0
    %3342 = vmatprep.subr.mxu0 0.0
    %3343 = vmatpush1.msra.mxu0 0.0
    %3344 = vmatprep.subr.mxu0 0.0
    %3345 = vmatpush1.msra.mxu0 0.0
    %3346 = vmatprep.subr.mxu0 0.0
    %3347 = vmatpush1.msra.mxu0 0.0
    %3348 = vmatprep.subr.mxu0 0.0
    %3349 = vmatpush1.msra.mxu0 0.0
    %3350 = vmatprep.subr.mxu0 0.0
    %3351 = vmatpush1.msra.mxu0 0.0
    %3352 = vmatprep.subr.mxu0 0.0
    %3353 = vmatpush1.msra.mxu0 0.0
    %3354 = vmatprep.subr.mxu0 0.0
    %3355 = vmatpush1.msra.mxu0 0.0
    %3356 = vmatprep.subr.mxu0 0.0
    %3357 = vmatpush1.msra.mxu0 0.0
    %3358 = vmatprep.subr.mxu0 0.0
    %3359 = vmatpush1.msra.mxu0 0.0
    %3360 = vmatprep.subr.mxu0 0.0
    %3361 = vmatpush1.msra.mxu0 0.0
    %3362 = vmatprep.subr.mxu0 0.0
    %3363 = vmatpush1.msra.mxu0 0.0
    %3364 = vmatprep.subr.mxu0 0.0
    %3365 = vmatpush1.msra.mxu0 0.0
    %3366 = vmatprep.subr.mxu0 0.0
    %3367 = vmatpush1.msra.mxu0 0.0
    %3368 = vmatprep.mubr.f32.mxu0 0.0
    %3369 = vmatmul.mubr.f32.gmra.mrb[0].mxu0 %v3275
    %v3370 = vpop.f32.mrb[0].mxu0
    %v3371 = vadd.f32 0.0, %v3370
    %v3372 = vpop.f32.mrb[0].mxu0
    %v3373 = vadd.f32 0.0, %v3372
    %3374 = vmatprep.mubr.f32.mxu0 0.0
    %3375 = vmatmul.mubr.f32.gmra.mrb[0].mxu0 %v3278
    %v3376 = vpop.f32.mrb[0].mxu0
    %v3377 = vadd.f32 0.0, %v3376
    %v3378 = vpop.f32.mrb[0].mxu0
    %v3379 = vadd.f32 0.0, %v3378
    %3380 = vdwg.mxu0
    %3381 = vmatprep.subr.mxu0 %v3286
    %3382 = vmatpush1.msra.mxu0 %v3284
    %3383 = vmatprep.subr.mxu0 0.0
    %3384 = vmatpush1.msra.mxu0 0.0
    %3385 = vmatprep.subr.mxu0 0.0
    %3386 = vmatpush1.msra.mxu0 0.0
    %3387 = vmatprep.subr.mxu0 0.0
    %3388 = vmatpush1.msra.mxu0 0.0
    %3389 = vmatprep.subr.mxu0 0.0
    %3390 = vmatpush1.msra.mxu0 0.0
    %3391 = vmatprep.subr.mxu0 0.0
    %3392 = vmatpush1.msra.mxu0 0.0
    %3393 = vmatprep.subr.mxu0 0.0
    %3394 = vmatpush1.msra.mxu0 0.0
    %3395 = vmatprep.subr.mxu0 0.0
    %3396 = vmatpush1.msra.mxu0 0.0
    %3397 = vmatprep.subr.mxu0 0.0
    %3398 = vmatpush1.msra.mxu0 0.0
    %3399 = vmatprep.subr.mxu0 0.0
    %3400 = vmatpush1.msra.mxu0 0.0
    %3401 = vmatprep.subr.mxu0 0.0
    %3402 = vmatpush1.msra.mxu0 0.0
    %3403 = vmatprep.subr.mxu0 0.0
    %3404 = vmatpush1.msra.mxu0 0.0
    %3405 = vmatprep.subr.mxu0 0.0
    %3406 = vmatpush1.msra.mxu0 0.0
    %3407 = vmatprep.subr.mxu0 0.0
    %3408 = vmatpush1.msra.mxu0 0.0
    %3409 = vmatprep.subr.mxu0 0.0
    %3410 = vmatpush1.msra.mxu0 0.0
    %3411 = vmatprep.subr.mxu0 0.0
    %3412 = vmatpush1.msra.mxu0 0.0
    %3413 = vmatprep.subr.mxu0 0.0
    %3414 = vmatpush1.msra.mxu0 0.0
    %3415 = vmatprep.subr.mxu0 0.0
    %3416 = vmatpush1.msra.mxu0 0.0
    %3417 = vmatprep.subr.mxu0 0.0
    %3418 = vmatpush1.msra.mxu0 0.0
    %3419 = vmatprep.subr.mxu0 0.0
    %3420 = vmatpush1.msra.mxu0 0.0
    %3421 = vmatprep.subr.mxu0 0.0
    %3422 = vmatpush1.msra.mxu0 0.0
    %3423 = vmatprep.subr.mxu0 0.0
    %3424 = vmatpush1.msra.mxu0 0.0
    %3425 = vmatprep.subr.mxu0 0.0
    %3426 = vmatpush1.msra.mxu0 0.0
    %3427 = vmatprep.subr.mxu0 0.0
    %3428 = vmatpush1.msra.mxu0 0.0
    %3429 = vmatprep.subr.mxu0 0.0
    %3430 = vmatpush1.msra.mxu0 0.0
    %3431 = vmatprep.subr.mxu0 0.0
    %3432 = vmatpush1.msra.mxu0 0.0
    %3433 = vmatprep.subr.mxu0 0.0
    %3434 = vmatpush1.msra.mxu0 0.0
    %3435 = vmatprep.subr.mxu0 0.0
    %3436 = vmatpush1.msra.mxu0 0.0
    %3437 = vmatprep.subr.mxu0 0.0
    %3438 = vmatpush1.msra.mxu0 0.0
    %3439 = vmatprep.subr.mxu0 0.0
    %3440 = vmatpush1.msra.mxu0 0.0
    %3441 = vmatprep.subr.mxu0 0.0
    %3442 = vmatpush1.msra.mxu0 0.0
    %3443 = vmatprep.subr.mxu0 0.0
    %3444 = vmatpush1.msra.mxu0 0.0
    %3445 = vmatprep.mubr.f32.mxu0 0.0
    %3446 = vmatmul.mubr.f32.gmra.mrb[0].mxu0 %v3275
    %v3447 = vpop.f32.mrb[0].mxu0
    %v3448 = vadd.f32 0.0, %v3447
    %v3449 = vpop.f32.mrb[0].mxu0
    %v3450 = vadd.f32 0.0, %v3449
    %3451 = vmatprep.mubr.f32.mxu0 0.0
    %3452 = vmatmul.mubr.f32.gmra.mrb[0].mxu0 %v3278
    %v3453 = vpop.f32.mrb[0].mxu0
    %v3454 = vadd.f32 0.0, %v3453
    %v3455 = vpop.f32.mrb[0].mxu0
    %v3456 = vadd.f32 0.0, %v3455
    %3457 = vdwg.mxu0
    %3458 = vmatprep.subr.mxu0 %v3290
    %3459 = vmatpush1.msra.mxu0 %v3288
    %3460 = vmatprep.subr.mxu0 0.0
    %3461 = vmatpush1.msra.mxu0 0.0
    %3462 = vmatprep.subr.mxu0 0.0
    %3463 = vmatpush1.msra.mxu0 0.0
    %3464 = vmatprep.subr.mxu0 0.0
    %3465 = vmatpush1.msra.mxu0 0.0
    %3466 = vmatprep.subr.mxu0 0.0
    %3467 = vmatpush1.msra.mxu0 0.0
    %3468 = vmatprep.subr.mxu0 0.0
    %3469 = vmatpush1.msra.mxu0 0.0
    %3470 = vmatprep.subr.mxu0 0.0
    %3471 = vmatpush1.msra.mxu0 0.0
    %3472 = vmatprep.subr.mxu0 0.0
    %3473 = vmatpush1.msra.mxu0 0.0
    %3474 = vmatprep.subr.mxu0 0.0
    %3475 = vmatpush1.msra.mxu0 0.0
    %3476 = vmatprep.subr.mxu0 0.0
    %3477 = vmatpush1.msra.mxu0 0.0
    %3478 = vmatprep.subr.mxu0 0.0
    %3479 = vmatpush1.msra.mxu0 0.0
    %3480 = vmatprep.subr.mxu0 0.0
    %3481 = vmatpush1.msra.mxu0 0.0
    %3482 = vmatprep.subr.mxu0 0.0
    %3483 = vmatpush1.msra.mxu0 0.0
    %3484 = vmatprep.subr.mxu0 0.0
    %3485 = vmatpush1.msra.mxu0 0.0
    %3486 = vmatprep.subr.mxu0 0.0
    %3487 = vmatpush1.msra.mxu0 0.0
    %3488 = vmatprep.subr.mxu0 0.0
    %3489 = vmatpush1.msra.mxu0 0.0
    %3490 = vmatprep.subr.mxu0 0.0
    %3491 = vmatpush1.msra.mxu0 0.0
    %3492 = vmatprep.subr.mxu0 0.0
    %3493 = vmatpush1.msra.mxu0 0.0
    %3494 = vmatprep.subr.mxu0 0.0
    %3495 = vmatpush1.msra.mxu0 0.0
    %3496 = vmatprep.subr.mxu0 0.0
    %3497 = vmatpush1.msra.mxu0 0.0
    %3498 = vmatprep.subr.mxu0 0.0
    %3499 = vmatpush1.msra.mxu0 0.0
    %3500 = vmatprep.subr.mxu0 0.0
    %3501 = vmatpush1.msra.mxu0 0.0
    %3502 = vmatprep.subr.mxu0 0.0
    %3503 = vmatpush1.msra.mxu0 0.0
    %3504 = vmatprep.subr.mxu0 0.0
    %3505 = vmatpush1.msra.mxu0 0.0
    %3506 = vmatprep.subr.mxu0 0.0
    %3507 = vmatpush1.msra.mxu0 0.0
    %3508 = vmatprep.subr.mxu0 0.0
    %3509 = vmatpush1.msra.mxu0 0.0
    %3510 = vmatprep.subr.mxu0 0.0
    %3511 = vmatpush1.msra.mxu0 0.0
    %3512 = vmatprep.subr.mxu0 0.0
    %3513 = vmatpush1.msra.mxu0 0.0
    %3514 = vmatprep.subr.mxu0 0.0
    %3515 = vmatpush1.msra.mxu0 0.0
    %3516 = vmatprep.subr.mxu0 0.0
    %3517 = vmatpush1.msra.mxu0 0.0
    %3518 = vmatprep.subr.mxu0 0.0
    %3519 = vmatpush1.msra.mxu0 0.0
    %3520 = vmatprep.subr.mxu0 0.0
    %3521 = vmatpush1.msra.mxu0 0.0
    %3522 = vmatprep.mubr.f32.mxu0 0.0
    %3523 = vmatmul.mubr.f32.gmra.mrb[0].mxu0 %v3275
    %v3524 = vpop.f32.mrb[0].mxu0
    %v3525 = vadd.f32 0.0, %v3524
    %v3526 = vpop.f32.mrb[0].mxu0
    %v3527 = vadd.f32 0.0, %v3526
    %3528 = vmatprep.mubr.f32.mxu0 0.0
    %3529 = vmatmul.mubr.f32.gmra.mrb[0].mxu0 %v3278
    %v3530 = vpop.f32.mrb[0].mxu0
    %v3531 = vadd.f32 0.0, %v3530
    %v3532 = vpop.f32.mrb[0].mxu0
    %v3533 = vadd.f32 0.0, %v3532
    %3534 = vdwg.mxu0
    %3535 = vmatprep.subr.mxu0 %v3294
    %3536 = vmatpush1.msra.mxu0 %v3292
    %3537 = vmatprep.subr.mxu0 0.0
    %3538 = vmatpush1.msra.mxu0 0.0
    %3539 = vmatprep.subr.mxu0 0.0
    %3540 = vmatpush1.msra.mxu0 0.0
    %3541 = vmatprep.subr.mxu0 0.0
    %3542 = vmatpush1.msra.mxu0 0.0
    %3543 = vmatprep.subr.mxu0 0.0
    %3544 = vmatpush1.msra.mxu0 0.0
    %3545 = vmatprep.subr.mxu0 0.0
    %3546 = vmatpush1.msra.mxu0 0.0
    %3547 = vmatprep.subr.mxu0 0.0
    %3548 = vmatpush1.msra.mxu0 0.0
    %3549 = vmatprep.subr.mxu0 0.0
    %3550 = vmatpush1.msra.mxu0 0.0
    %3551 = vmatprep.subr.mxu0 0.0
    %3552 = vmatpush1.msra.mxu0 0.0
    %3553 = vmatprep.subr.mxu0 0.0
    %3554 = vmatpush1.msra.mxu0 0.0
    %3555 = vmatprep.subr.mxu0 0.0
    %3556 = vmatpush1.msra.mxu0 0.0
    %3557 = vmatprep.subr.mxu0 0.0
    %3558 = vmatpush1.msra.mxu0 0.0
    %3559 = vmatprep.subr.mxu0 0.0
    %3560 = vmatpush1.msra.mxu0 0.0
    %3561 = vmatprep.subr.mxu0 0.0
    %3562 = vmatpush1.msra.mxu0 0.0
    %3563 = vmatprep.subr.mxu0 0.0
    %3564 = vmatpush1.msra.mxu0 0.0
    %3565 = vmatprep.subr.mxu0 0.0
    %3566 = vmatpush1.msra.mxu0 0.0
    %3567 = vmatprep.subr.mxu0 0.0
    %3568 = vmatpush1.msra.mxu0 0.0
    %3569 = vmatprep.subr.mxu0 0.0
    %3570 = vmatpush1.msra.mxu0 0.0
    %3571 = vmatprep.subr.mxu0 0.0
    %3572 = vmatpush1.msra.mxu0 0.0
    %3573 = vmatprep.subr.mxu0 0.0
    %3574 = vmatpush1.msra.mxu0 0.0
    %3575 = vmatprep.subr.mxu0 0.0
    %3576 = vmatpush1.msra.mxu0 0.0
    %3577 = vmatprep.subr.mxu0 0.0
    %3578 = vmatpush1.msra.mxu0 0.0
    %3579 = vmatprep.subr.mxu0 0.0
    %3580 = vmatpush1.msra.mxu0 0.0
    %3581 = vmatprep.subr.mxu0 0.0
    %3582 = vmatpush1.msra.mxu0 0.0
    %3583 = vmatprep.subr.mxu0 0.0
    %3584 = vmatpush1.msra.mxu0 0.0
    %3585 = vmatprep.subr.mxu0 0.0
    %3586 = vmatpush1.msra.mxu0 0.0
    %3587 = vmatprep.subr.mxu0 0.0
    %3588 = vmatpush1.msra.mxu0 0.0
    %3589 = vmatprep.subr.mxu0 0.0
    %3590 = vmatpush1.msra.mxu0 0.0
    %3591 = vmatprep.subr.mxu0 0.0
    %3592 = vmatpush1.msra.mxu0 0.0
    %3593 = vmatprep.subr.mxu0 0.0
    %3594 = vmatpush1.msra.mxu0 0.0
    %3595 = vmatprep.subr.mxu0 0.0
    %3596 = vmatpush1.msra.mxu0 0.0
    %3597 = vmatprep.subr.mxu0 0.0
    %3598 = vmatpush1.msra.mxu0 0.0
    %3599 = vmatprep.mubr.f32.mxu0 0.0
    %3600 = vmatmul.mubr.f32.gmra.mrb[0].mxu0 %v3275
    %v3601 = vpop.f32.mrb[0].mxu0
    %v3602 = vadd.f32 0.0, %v3601
    %v3603 = vpop.f32.mrb[0].mxu0
    %v3604 = vadd.f32 0.0, %v3603
    %3605 = vmatprep.mubr.f32.mxu0 0.0
    %3606 = vmatmul.mubr.f32.gmra.mrb[0].mxu0 %v3278
    %v3607 = vpop.f32.mrb[0].mxu0
    %v3608 = vadd.f32 0.0, %v3607
    %v3609 = vpop.f32.mrb[0].mxu0
    %v3610 = vadd.f32 0.0, %v3609
    %3611 = vdwg.mxu0
    %3612 = vmatprep.subr.mxu0 %v3298
    %3613 = vmatpush1.msra.mxu0 %v3296
    %3614 = vmatprep.subr.mxu0 0.0
    %3615 = vmatpush1.msra.mxu0 0.0
    %3616 = vmatprep.subr.mxu0 0.0
    %3617 = vmatpush1.msra.mxu0 0.0
    %3618 = vmatprep.subr.mxu0 0.0
    %3619 = vmatpush1.msra.mxu0 0.0
    %3620 = vmatprep.subr.mxu0 0.0
    %3621 = vmatpush1.msra.mxu0 0.0
    %3622 = vmatprep.subr.mxu0 0.0
    %3623 = vmatpush1.msra.mxu0 0.0
    %3624 = vmatprep.subr.mxu0 0.0
    %3625 = vmatpush1.msra.mxu0 0.0
    %3626 = vmatprep.subr.mxu0 0.0
    %3627 = vmatpush1.msra.mxu0 0.0
    %3628 = vmatprep.subr.mxu0 0.0
    %3629 = vmatpush1.msra.mxu0 0.0
    %3630 = vmatprep.subr.mxu0 0.0
    %3631 = vmatpush1.msra.mxu0 0.0
    %3632 = vmatprep.subr.mxu0 0.0
    %3633 = vmatpush1.msra.mxu0 0.0
    %3634 = vmatprep.subr.mxu0 0.0
    %3635 = vmatpush1.msra.mxu0 0.0
    %3636 = vmatprep.subr.mxu0 0.0
    %3637 = vmatpush1.msra.mxu0 0.0
    %3638 = vmatprep.subr.mxu0 0.0
    %3639 = vmatpush1.msra.mxu0 0.0
    %3640 = vmatprep.subr.mxu0 0.0
    %3641 = vmatpush1.msra.mxu0 0.0
    %3642 = vmatprep.subr.mxu0 0.0
    %3643 = vmatpush1.msra.mxu0 0.0
    %3644 = vmatprep.subr.mxu0 0.0
    %3645 = vmatpush1.msra.mxu0 0.0
    %3646 = vmatprep.subr.mxu0 0.0
    %3647 = vmatpush1.msra.mxu0 0.0
    %3648 = vmatprep.subr.mxu0 0.0
    %3649 = vmatpush1.msra.mxu0 0.0
    %3650 = vmatprep.subr.mxu0 0.0
    %3651 = vmatpush1.msra.mxu0 0.0
    %3652 = vmatprep.subr.mxu0 0.0
    %3653 = vmatpush1.msra.mxu0 0.0
    %3654 = vmatprep.subr.mxu0 0.0
    %3655 = vmatpush1.msra.mxu0 0.0
    %3656 = vmatprep.subr.mxu0 0.0
    %3657 = vmatpush1.msra.mxu0 0.0
    %3658 = vmatprep.subr.mxu0 0.0
    %3659 = vmatpush1.msra.mxu0 0.0
    %3660 = vmatprep.subr.mxu0 0.0
    %3661 = vmatpush1.msra.mxu0 0.0
    %3662 = vmatprep.subr.mxu0 0.0
    %3663 = vmatpush1.msra.mxu0 0.0
    %3664 = vmatprep.subr.mxu0 0.0
    %3665 = vmatpush1.msra.mxu0 0.0
    %3666 = vmatprep.subr.mxu0 0.0
    %3667 = vmatpush1.msra.mxu0 0.0
    %3668 = vmatprep.subr.mxu0 0.0
    %3669 = vmatpush1.msra.mxu0 0.0
    %3670 = vmatprep.subr.mxu0 0.0
    %3671 = vmatpush1.msra.mxu0 0.0
    %3672 = vmatprep.subr.mxu0 0.0
    %3673 = vmatpush1.msra.mxu0 0.0
    %3674 = vmatprep.subr.mxu0 0.0
    %3675 = vmatpush1.msra.mxu0 0.0
    %3676 = vmatprep.mubr.f32.mxu0 0.0
    %3677 = vmatmul.mubr.f32.gmra.mrb[0].mxu0 %v3275
    %v3678 = vpop.f32.mrb[0].mxu0
    %v3679 = vadd.f32 0.0, %v3678
    %v3680 = vpop.f32.mrb[0].mxu0
    %v3681 = vadd.f32 0.0, %v3680
    %3682 = vmatprep.mubr.f32.mxu0 0.0
    %3683 = vmatmul.mubr.f32.gmra.mrb[0].mxu0 %v3278
    %v3684 = vpop.f32.mrb[0].mxu0
    %v3685 = vadd.f32 0.0, %v3684
    %v3686 = vpop.f32.mrb[0].mxu0
    %v3687 = vadd.f32 0.0, %v3686
    %3688 = vdwg.mxu0
    %3689 = vmatprep.subr.mxu0 %v3302
    %3690 = vmatpush1.msra.mxu0 %v3300
    %3691 = vmatprep.subr.mxu0 0.0
    %3692 = vmatpush1.msra.mxu0 0.0
    %3693 = vmatprep.subr.mxu0 0.0
    %3694 = vmatpush1.msra.mxu0 0.0
    %3695 = vmatprep.subr.mxu0 0.0
    %3696 = vmatpush1.msra.mxu0 0.0
    %3697 = vmatprep.subr.mxu0 0.0
    %3698 = vmatpush1.msra.mxu0 0.0
    %3699 = vmatprep.subr.mxu0 0.0
    %3700 = vmatpush1.msra.mxu0 0.0
    %3701 = vmatprep.subr.mxu0 0.0
    %3702 = vmatpush1.msra.mxu0 0.0
    %3703 = vmatprep.subr.mxu0 0.0
    %3704 = vmatpush1.msra.mxu0 0.0
    %3705 = vmatprep.subr.mxu0 0.0
    %3706 = vmatpush1.msra.mxu0 0.0
    %3707 = vmatprep.subr.mxu0 0.0
    %3708 = vmatpush1.msra.mxu0 0.0
    %3709 = vmatprep.subr.mxu0 0.0
    %3710 = vmatpush1.msra.mxu0 0.0
    %3711 = vmatprep.subr.mxu0 0.0
    %3712 = vmatpush1.msra.mxu0 0.0
    %3713 = vmatprep.subr.mxu0 0.0
    %3714 = vmatpush1.msra.mxu0 0.0
    %3715 = vmatprep.subr.mxu0 0.0
    %3716 = vmatpush1.msra.mxu0 0.0
    %3717 = vmatprep.subr.mxu0 0.0
    %3718 = vmatpush1.msra.mxu0 0.0
    %3719 = vmatprep.subr.mxu0 0.0
    %3720 = vmatpush1.msra.mxu0 0.0
    %3721 = vmatprep.subr.mxu0 0.0
    %3722 = vmatpush1.msra.mxu0 0.0
    %3723 = vmatprep.subr.mxu0 0.0
    %3724 = vmatpush1.msra.mxu0 0.0
    %3725 = vmatprep.subr.mxu0 0.0
    %3726 = vmatpush1.msra.mxu0 0.0
    %3727 = vmatprep.subr.mxu0 0.0
    %3728 = vmatpush1.msra.mxu0 0.0
    %3729 = vmatprep.subr.mxu0 0.0
    %3730 = vmatpush1.msra.mxu0 0.0
    %3731 = vmatprep.subr.mxu0 0.0
    %3732 = vmatpush1.msra.mxu0 0.0
    %3733 = vmatprep.subr.mxu0 0.0
    %3734 = vmatpush1.msra.mxu0 0.0
    %3735 = vmatprep.subr.mxu0 0.0
    %3736 = vmatpush1.msra.mxu0 0.0
    %3737 = vmatprep.subr.mxu0 0.0
    %3738 = vmatpush1.msra.mxu0 0.0
    %3739 = vmatprep.subr.mxu0 0.0
    %3740 = vmatpush1.msra.mxu0 0.0
    %3741 = vmatprep.subr.mxu0 0.0
    %3742 = vmatpush1.msra.mxu0 0.0
    %3743 = vmatprep.subr.mxu0 0.0
    %3744 = vmatpush1.msra.mxu0 0.0
    %3745 = vmatprep.subr.mxu0 0.0
    %3746 = vmatpush1.msra.mxu0 0.0
    %3747 = vmatprep.subr.mxu0 0.0
    %3748 = vmatpush1.msra.mxu0 0.0
    %3749 = vmatprep.subr.mxu0 0.0
    %3750 = vmatpush1.msra.mxu0 0.0
    %3751 = vmatprep.subr.mxu0 0.0
    %3752 = vmatpush1.msra.mxu0 0.0
    %3753 = vmatprep.mubr.f32.mxu0 0.0
    %3754 = vmatmul.mubr.f32.gmra.mrb[0].mxu0 %v3275
    %v3755 = vpop.f32.mrb[0].mxu0
    %v3756 = vadd.f32 0.0, %v3755
    %v3757 = vpop.f32.mrb[0].mxu0
    %v3758 = vadd.f32 0.0, %v3757
    %3759 = vmatprep.mubr.f32.mxu0 0.0
    %3760 = vmatmul.mubr.f32.gmra.mrb[0].mxu0 %v3278
    %v3761 = vpop.f32.mrb[0].mxu0
    %v3762 = vadd.f32 0.0, %v3761
    %v3763 = vpop.f32.mrb[0].mxu0
    %v3764 = vadd.f32 0.0, %v3763
    %3765 = vdwg.mxu0
    %v3766 = vadd.f32 %v3212, %v3371
    %v3767 = vadd.f32 %v3213, %v3373
    %v3768 = vadd.f32 %v3214, %v3448
    %v3769 = vadd.f32 %v3215, %v3450
    %v3770 = vadd.f32 %v3216, %v3525
    %v3771 = vadd.f32 %v3217, %v3527
    %v3772 = vadd.f32 %v3218, %v3602
    %v3773 = vadd.f32 %v3219, %v3604
    %v3774 = vadd.f32 %v3220, %v3679
    %v3775 = vadd.f32 %v3221, %v3681
    %v3776 = vadd.f32 %v3222, %v3756
    %v3777 = vadd.f32 %v3223, %v3758
    %v3778 = vadd.f32 %v3224, %v3377
    %v3779 = vadd.f32 %v3225, %v3379
    %v3780 = vadd.f32 %v3226, %v3454
    %v3781 = vadd.f32 %v3227, %v3456
    %v3782 = vadd.f32 %v3228, %v3531
    %v3783 = vadd.f32 %v3229, %v3533
    %v3784 = vadd.f32 %v3230, %v3608
    %v3785 = vadd.f32 %v3231, %v3610
    %v3786 = vadd.f32 %v3232, %v3685
    %v3787 = vadd.f32 %v3233, %v3687
    %v3788 = vadd.f32 %v3234, %v3762
    %v3789 = vadd.f32 %v3235, %v3764
    %s3790 = scalar_lea.vmem %s3, 80
    %v3791 = vld [vmem:[%s3790] sm:$0xff]
    %v3792 = vld [vmem:[%s3790 + $0x8] sm:$0xff]
    %3793 = vrot.lane.b32.xlu0 %v1076, 68
    %v3794 = vpop.permute.xlu0 %3793
    %3795 = vrot.lane.b32.xlu0 %v1077, 68
    %v3796 = vpop.permute.xlu0 %3795
    %3797 = vrot.lane.b32.xlu0 %v1078, 68
    %v3798 = vpop.permute.xlu0 %3797
    %3799 = vrot.lane.b32.xlu0 %v1079, 68
    %v3800 = vpop.permute.xlu0 %3799
    %3801 = vrot.lane.b32.xlu0 %v1080, 68
    %v3802 = vpop.permute.xlu0 %3801
    %3803 = vrot.lane.b32.xlu0 %v1081, 68
    %v3804 = vpop.permute.xlu0 %3803
    %3805 = vrot.lane.b32.xlu0 %v1082, 68
    %v3806 = vpop.permute.xlu0 %3805
    %3807 = vrot.lane.b32.xlu0 %v1083, 68
    %v3808 = vpop.permute.xlu0 %3807
    %3809 = vrot.lane.b32.xlu0 %v1084, 68
    %v3810 = vpop.permute.xlu0 %3809
    %3811 = vrot.lane.b32.xlu0 %v1085, 68
    %v3812 = vpop.permute.xlu0 %3811
    %3813 = vrot.lane.b32.xlu0 %v1086, 68
    %v3814 = vpop.permute.xlu0 %3813
    %3815 = vrot.lane.b32.xlu0 %v1087, 68
    %v3816 = vpop.permute.xlu0 %3815
    %vm3817 = vcmask 556032
    %v3818 = vsel %vm3817, %v3794, %v3796
    %v3819 = vsel %vm3817, %v3796, %v3798
    %v3820 = vsel %vm3817, %v3798, %v3800
    %v3821 = vsel %vm3817, %v3800, %v3802
    %v3822 = vsel %vm3817, %v3802, %v3804
    %v3823 = vsel %vm3817, %v3804, %v3806
    %v3824 = vsel %vm3817, %v3806, %v3808
    %v3825 = vsel %vm3817, %v3808, %v3810
    %v3826 = vsel %vm3817, %v3810, %v3812
    %v3827 = vsel %vm3817, %v3812, %v3814
    %v3828 = vsel %vm3817, %v3814, %v3816
    %v3830 = vsel %vm1141, %v3791, 0
    %v3833 = vsel %vm1141, %v3792, 0
    %v3835 = vsel %vm1148, %v3818, 0
    %v3837 = vsel %vm1148, %v3819, 0
    %v3839 = vsel %vm1148, %v3820, 0
    %v3841 = vsel %vm1148, %v3821, 0
    %v3843 = vsel %vm1148, %v3822, 0
    %v3845 = vsel %vm1148, %v3823, 0
    %v3847 = vsel %vm1148, %v3824, 0
    %v3849 = vsel %vm1148, %v3825, 0
    %v3851 = vsel %vm1148, %v3826, 0
    %v3853 = vsel %vm1148, %v3827, 0
    %v3855 = vsel %vm1148, %v3828, 0
    %v3857 = vsel %vm1148, %v3816, 0
    %3859 = vmatprep.subr.mxu0 %v3837
    %3860 = vmatpush1.msra.mxu0 %v3835
    %3861 = vmatprep.subr.mxu0 0.0
    %3862 = vmatpush1.msra.mxu0 0.0
    %3863 = vmatprep.subr.mxu0 0.0
    %3864 = vmatpush1.msra.mxu0 0.0
    %3865 = vmatprep.subr.mxu0 0.0
    %3866 = vmatpush1.msra.mxu0 0.0
    %3867 = vmatprep.subr.mxu0 0.0
    %3868 = vmatpush1.msra.mxu0 0.0
    %3869 = vmatprep.subr.mxu0 0.0
    %3870 = vmatpush1.msra.mxu0 0.0
    %3871 = vmatprep.subr.mxu0 0.0
    %3872 = vmatpush1.msra.mxu0 0.0
    %3873 = vmatprep.subr.mxu0 0.0
    %3874 = vmatpush1.msra.mxu0 0.0
    %3875 = vmatprep.subr.mxu0 0.0
    %3876 = vmatpush1.msra.mxu0 0.0
    %3877 = vmatprep.subr.mxu0 0.0
    %3878 = vmatpush1.msra.mxu0 0.0
    %3879 = vmatprep.subr.mxu0 0.0
    %3880 = vmatpush1.msra.mxu0 0.0
    %3881 = vmatprep.subr.mxu0 0.0
    %3882 = vmatpush1.msra.mxu0 0.0
    %3883 = vmatprep.subr.mxu0 0.0
    %3884 = vmatpush1.msra.mxu0 0.0
    %3885 = vmatprep.subr.mxu0 0.0
    %3886 = vmatpush1.msra.mxu0 0.0
    %3887 = vmatprep.subr.mxu0 0.0
    %3888 = vmatpush1.msra.mxu0 0.0
    %3889 = vmatprep.subr.mxu0 0.0
    %3890 = vmatpush1.msra.mxu0 0.0
    %3891 = vmatprep.subr.mxu0 0.0
    %3892 = vmatpush1.msra.mxu0 0.0
    %3893 = vmatprep.subr.mxu0 0.0
    %3894 = vmatpush1.msra.mxu0 0.0
    %3895 = vmatprep.subr.mxu0 0.0
    %3896 = vmatpush1.msra.mxu0 0.0
    %3897 = vmatprep.subr.mxu0 0.0
    %3898 = vmatpush1.msra.mxu0 0.0
    %3899 = vmatprep.subr.mxu0 0.0
    %3900 = vmatpush1.msra.mxu0 0.0
    %3901 = vmatprep.subr.mxu0 0.0
    %3902 = vmatpush1.msra.mxu0 0.0
    %3903 = vmatprep.subr.mxu0 0.0
    %3904 = vmatpush1.msra.mxu0 0.0
    %3905 = vmatprep.subr.mxu0 0.0
    %3906 = vmatpush1.msra.mxu0 0.0
    %3907 = vmatprep.subr.mxu0 0.0
    %3908 = vmatpush1.msra.mxu0 0.0
    %3909 = vmatprep.subr.mxu0 0.0
    %3910 = vmatpush1.msra.mxu0 0.0
    %3911 = vmatprep.subr.mxu0 0.0
    %3912 = vmatpush1.msra.mxu0 0.0
    %3913 = vmatprep.subr.mxu0 0.0
    %3914 = vmatpush1.msra.mxu0 0.0
    %3915 = vmatprep.subr.mxu0 0.0
    %3916 = vmatpush1.msra.mxu0 0.0
    %3917 = vmatprep.subr.mxu0 0.0
    %3918 = vmatpush1.msra.mxu0 0.0
    %3919 = vmatprep.subr.mxu0 0.0
    %3920 = vmatpush1.msra.mxu0 0.0
    %3921 = vmatprep.subr.mxu0 0.0
    %3922 = vmatpush1.msra.mxu0 0.0
    %3923 = vmatprep.mubr.f32.mxu0 0.0
    %3924 = vmatmul.mubr.f32.gmra.mrb[0].mxu0 %v3830
    %v3925 = vpop.f32.mrb[0].mxu0
    %v3926 = vadd.f32 0.0, %v3925
    %v3927 = vpop.f32.mrb[0].mxu0
    %v3928 = vadd.f32 0.0, %v3927
    %3929 = vmatprep.mubr.f32.mxu0 0.0
    %3930 = vmatmul.mubr.f32.gmra.mrb[0].mxu0 %v3833
    %v3931 = vpop.f32.mrb[0].mxu0
    %v3932 = vadd.f32 0.0, %v3931
    %v3933 = vpop.f32.mrb[0].mxu0
    %v3934 = vadd.f32 0.0, %v3933
    %3935 = vdwg.mxu0
    %3936 = vmatprep.subr.mxu0 %v3841
    %3937 = vmatpush1.msra.mxu0 %v3839
    %3938 = vmatprep.subr.mxu0 0.0
    %3939 = vmatpush1.msra.mxu0 0.0
    %3940 = vmatprep.subr.mxu0 0.0
    %3941 = vmatpush1.msra.mxu0 0.0
    %3942 = vmatprep.subr.mxu0 0.0
    %3943 = vmatpush1.msra.mxu0 0.0
    %3944 = vmatprep.subr.mxu0 0.0
    %3945 = vmatpush1.msra.mxu0 0.0
    %3946 = vmatprep.subr.mxu0 0.0
    %3947 = vmatpush1.msra.mxu0 0.0
    %3948 = vmatprep.subr.mxu0 0.0
    %3949 = vmatpush1.msra.mxu0 0.0
    %3950 = vmatprep.subr.mxu0 0.0
    %3951 = vmatpush1.msra.mxu0 0.0
    %3952 = vmatprep.subr.mxu0 0.0
    %3953 = vmatpush1.msra.mxu0 0.0
    %3954 = vmatprep.subr.mxu0 0.0
    %3955 = vmatpush1.msra.mxu0 0.0
    %3956 = vmatprep.subr.mxu0 0.0
    %3957 = vmatpush1.msra.mxu0 0.0
    %3958 = vmatprep.subr.mxu0 0.0
    %3959 = vmatpush1.msra.mxu0 0.0
    %3960 = vmatprep.subr.mxu0 0.0
    %3961 = vmatpush1.msra.mxu0 0.0
    %3962 = vmatprep.subr.mxu0 0.0
    %3963 = vmatpush1.msra.mxu0 0.0
    %3964 = vmatprep.subr.mxu0 0.0
    %3965 = vmatpush1.msra.mxu0 0.0
    %3966 = vmatprep.subr.mxu0 0.0
    %3967 = vmatpush1.msra.mxu0 0.0
    %3968 = vmatprep.subr.mxu0 0.0
    %3969 = vmatpush1.msra.mxu0 0.0
    %3970 = vmatprep.subr.mxu0 0.0
    %3971 = vmatpush1.msra.mxu0 0.0
    %3972 = vmatprep.subr.mxu0 0.0
    %3973 = vmatpush1.msra.mxu0 0.0
    %3974 = vmatprep.subr.mxu0 0.0
    %3975 = vmatpush1.msra.mxu0 0.0
    %3976 = vmatprep.subr.mxu0 0.0
    %3977 = vmatpush1.msra.mxu0 0.0
    %3978 = vmatprep.subr.mxu0 0.0
    %3979 = vmatpush1.msra.mxu0 0.0
    %3980 = vmatprep.subr.mxu0 0.0
    %3981 = vmatpush1.msra.mxu0 0.0
    %3982 = vmatprep.subr.mxu0 0.0
    %3983 = vmatpush1.msra.mxu0 0.0
    %3984 = vmatprep.subr.mxu0 0.0
    %3985 = vmatpush1.msra.mxu0 0.0
    %3986 = vmatprep.subr.mxu0 0.0
    %3987 = vmatpush1.msra.mxu0 0.0
    %3988 = vmatprep.subr.mxu0 0.0
    %3989 = vmatpush1.msra.mxu0 0.0
    %3990 = vmatprep.subr.mxu0 0.0
    %3991 = vmatpush1.msra.mxu0 0.0
    %3992 = vmatprep.subr.mxu0 0.0
    %3993 = vmatpush1.msra.mxu0 0.0
    %3994 = vmatprep.subr.mxu0 0.0
    %3995 = vmatpush1.msra.mxu0 0.0
    %3996 = vmatprep.subr.mxu0 0.0
    %3997 = vmatpush1.msra.mxu0 0.0
    %3998 = vmatprep.subr.mxu0 0.0
    %3999 = vmatpush1.msra.mxu0 0.0
    %4000 = vmatprep.mubr.f32.mxu0 0.0
    %4001 = vmatmul.mubr.f32.gmra.mrb[0].mxu0 %v3830
    %v4002 = vpop.f32.mrb[0].mxu0
    %v4003 = vadd.f32 0.0, %v4002
    %v4004 = vpop.f32.mrb[0].mxu0
    %v4005 = vadd.f32 0.0, %v4004
    %4006 = vmatprep.mubr.f32.mxu0 0.0
    %4007 = vmatmul.mubr.f32.gmra.mrb[0].mxu0 %v3833
    %v4008 = vpop.f32.mrb[0].mxu0
    %v4009 = vadd.f32 0.0, %v4008
    %v4010 = vpop.f32.mrb[0].mxu0
    %v4011 = vadd.f32 0.0, %v4010
    %4012 = vdwg.mxu0
    %4013 = vmatprep.subr.mxu0 %v3845
    %4014 = vmatpush1.msra.mxu0 %v3843
    %4015 = vmatprep.subr.mxu0 0.0
    %4016 = vmatpush1.msra.mxu0 0.0
    %4017 = vmatprep.subr.mxu0 0.0
    %4018 = vmatpush1.msra.mxu0 0.0
    %4019 = vmatprep.subr.mxu0 0.0
    %4020 = vmatpush1.msra.mxu0 0.0
    %4021 = vmatprep.subr.mxu0 0.0
    %4022 = vmatpush1.msra.mxu0 0.0
    %4023 = vmatprep.subr.mxu0 0.0
    %4024 = vmatpush1.msra.mxu0 0.0
    %4025 = vmatprep.subr.mxu0 0.0
    %4026 = vmatpush1.msra.mxu0 0.0
    %4027 = vmatprep.subr.mxu0 0.0
    %4028 = vmatpush1.msra.mxu0 0.0
    %4029 = vmatprep.subr.mxu0 0.0
    %4030 = vmatpush1.msra.mxu0 0.0
    %4031 = vmatprep.subr.mxu0 0.0
    %4032 = vmatpush1.msra.mxu0 0.0
    %4033 = vmatprep.subr.mxu0 0.0
    %4034 = vmatpush1.msra.mxu0 0.0
    %4035 = vmatprep.subr.mxu0 0.0
    %4036 = vmatpush1.msra.mxu0 0.0
    %4037 = vmatprep.subr.mxu0 0.0
    %4038 = vmatpush1.msra.mxu0 0.0
    %4039 = vmatprep.subr.mxu0 0.0
    %4040 = vmatpush1.msra.mxu0 0.0
    %4041 = vmatprep.subr.mxu0 0.0
    %4042 = vmatpush1.msra.mxu0 0.0
    %4043 = vmatprep.subr.mxu0 0.0
    %4044 = vmatpush1.msra.mxu0 0.0
    %4045 = vmatprep.subr.mxu0 0.0
    %4046 = vmatpush1.msra.mxu0 0.0
    %4047 = vmatprep.subr.mxu0 0.0
    %4048 = vmatpush1.msra.mxu0 0.0
    %4049 = vmatprep.subr.mxu0 0.0
    %4050 = vmatpush1.msra.mxu0 0.0
    %4051 = vmatprep.subr.mxu0 0.0
    %4052 = vmatpush1.msra.mxu0 0.0
    %4053 = vmatprep.subr.mxu0 0.0
    %4054 = vmatpush1.msra.mxu0 0.0
    %4055 = vmatprep.subr.mxu0 0.0
    %4056 = vmatpush1.msra.mxu0 0.0
    %4057 = vmatprep.subr.mxu0 0.0
    %4058 = vmatpush1.msra.mxu0 0.0
    %4059 = vmatprep.subr.mxu0 0.0
    %4060 = vmatpush1.msra.mxu0 0.0
    %4061 = vmatprep.subr.mxu0 0.0
    %4062 = vmatpush1.msra.mxu0 0.0
    %4063 = vmatprep.subr.mxu0 0.0
    %4064 = vmatpush1.msra.mxu0 0.0
    %4065 = vmatprep.subr.mxu0 0.0
    %4066 = vmatpush1.msra.mxu0 0.0
    %4067 = vmatprep.subr.mxu0 0.0
    %4068 = vmatpush1.msra.mxu0 0.0
    %4069 = vmatprep.subr.mxu0 0.0
    %4070 = vmatpush1.msra.mxu0 0.0
    %4071 = vmatprep.subr.mxu0 0.0
    %4072 = vmatpush1.msra.mxu0 0.0
    %4073 = vmatprep.subr.mxu0 0.0
    %4074 = vmatpush1.msra.mxu0 0.0
    %4075 = vmatprep.subr.mxu0 0.0
    %4076 = vmatpush1.msra.mxu0 0.0
    %4077 = vmatprep.mubr.f32.mxu0 0.0
    %4078 = vmatmul.mubr.f32.gmra.mrb[0].mxu0 %v3830
    %v4079 = vpop.f32.mrb[0].mxu0
    %v4080 = vadd.f32 0.0, %v4079
    %v4081 = vpop.f32.mrb[0].mxu0
    %v4082 = vadd.f32 0.0, %v4081
    %4083 = vmatprep.mubr.f32.mxu0 0.0
    %4084 = vmatmul.mubr.f32.gmra.mrb[0].mxu0 %v3833
    %v4085 = vpop.f32.mrb[0].mxu0
    %v4086 = vadd.f32 0.0, %v4085
    %v4087 = vpop.f32.mrb[0].mxu0
    %v4088 = vadd.f32 0.0, %v4087
    %4089 = vdwg.mxu0
    %4090 = vmatprep.subr.mxu0 %v3849
    %4091 = vmatpush1.msra.mxu0 %v3847
    %4092 = vmatprep.subr.mxu0 0.0
    %4093 = vmatpush1.msra.mxu0 0.0
    %4094 = vmatprep.subr.mxu0 0.0
    %4095 = vmatpush1.msra.mxu0 0.0
    %4096 = vmatprep.subr.mxu0 0.0
    %4097 = vmatpush1.msra.mxu0 0.0
    %4098 = vmatprep.subr.mxu0 0.0
    %4099 = vmatpush1.msra.mxu0 0.0
    %4100 = vmatprep.subr.mxu0 0.0
    %4101 = vmatpush1.msra.mxu0 0.0
    %4102 = vmatprep.subr.mxu0 0.0
    %4103 = vmatpush1.msra.mxu0 0.0
    %4104 = vmatprep.subr.mxu0 0.0
    %4105 = vmatpush1.msra.mxu0 0.0
    %4106 = vmatprep.subr.mxu0 0.0
    %4107 = vmatpush1.msra.mxu0 0.0
    %4108 = vmatprep.subr.mxu0 0.0
    %4109 = vmatpush1.msra.mxu0 0.0
    %4110 = vmatprep.subr.mxu0 0.0
    %4111 = vmatpush1.msra.mxu0 0.0
    %4112 = vmatprep.subr.mxu0 0.0
    %4113 = vmatpush1.msra.mxu0 0.0
    %4114 = vmatprep.subr.mxu0 0.0
    %4115 = vmatpush1.msra.mxu0 0.0
    %4116 = vmatprep.subr.mxu0 0.0
    %4117 = vmatpush1.msra.mxu0 0.0
    %4118 = vmatprep.subr.mxu0 0.0
    %4119 = vmatpush1.msra.mxu0 0.0
    %4120 = vmatprep.subr.mxu0 0.0
    %4121 = vmatpush1.msra.mxu0 0.0
    %4122 = vmatprep.subr.mxu0 0.0
    %4123 = vmatpush1.msra.mxu0 0.0
    %4124 = vmatprep.subr.mxu0 0.0
    %4125 = vmatpush1.msra.mxu0 0.0
    %4126 = vmatprep.subr.mxu0 0.0
    %4127 = vmatpush1.msra.mxu0 0.0
    %4128 = vmatprep.subr.mxu0 0.0
    %4129 = vmatpush1.msra.mxu0 0.0
    %4130 = vmatprep.subr.mxu0 0.0
    %4131 = vmatpush1.msra.mxu0 0.0
    %4132 = vmatprep.subr.mxu0 0.0
    %4133 = vmatpush1.msra.mxu0 0.0
    %4134 = vmatprep.subr.mxu0 0.0
    %4135 = vmatpush1.msra.mxu0 0.0
    %4136 = vmatprep.subr.mxu0 0.0
    %4137 = vmatpush1.msra.mxu0 0.0
    %4138 = vmatprep.subr.mxu0 0.0
    %4139 = vmatpush1.msra.mxu0 0.0
    %4140 = vmatprep.subr.mxu0 0.0
    %4141 = vmatpush1.msra.mxu0 0.0
    %4142 = vmatprep.subr.mxu0 0.0
    %4143 = vmatpush1.msra.mxu0 0.0
    %4144 = vmatprep.subr.mxu0 0.0
    %4145 = vmatpush1.msra.mxu0 0.0
    %4146 = vmatprep.subr.mxu0 0.0
    %4147 = vmatpush1.msra.mxu0 0.0
    %4148 = vmatprep.subr.mxu0 0.0
    %4149 = vmatpush1.msra.mxu0 0.0
    %4150 = vmatprep.subr.mxu0 0.0
    %4151 = vmatpush1.msra.mxu0 0.0
    %4152 = vmatprep.subr.mxu0 0.0
    %4153 = vmatpush1.msra.mxu0 0.0
    %4154 = vmatprep.mubr.f32.mxu0 0.0
    %4155 = vmatmul.mubr.f32.gmra.mrb[0].mxu0 %v3830
    %v4156 = vpop.f32.mrb[0].mxu0
    %v4157 = vadd.f32 0.0, %v4156
    %v4158 = vpop.f32.mrb[0].mxu0
    %v4159 = vadd.f32 0.0, %v4158
    %4160 = vmatprep.mubr.f32.mxu0 0.0
    %4161 = vmatmul.mubr.f32.gmra.mrb[0].mxu0 %v3833
    %v4162 = vpop.f32.mrb[0].mxu0
    %v4163 = vadd.f32 0.0, %v4162
    %v4164 = vpop.f32.mrb[0].mxu0
    %v4165 = vadd.f32 0.0, %v4164
    %4166 = vdwg.mxu0
    %4167 = vmatprep.subr.mxu0 %v3853
    %4168 = vmatpush1.msra.mxu0 %v3851
    %4169 = vmatprep.subr.mxu0 0.0
    %4170 = vmatpush1.msra.mxu0 0.0
    %4171 = vmatprep.subr.mxu0 0.0
    %4172 = vmatpush1.msra.mxu0 0.0
    %4173 = vmatprep.subr.mxu0 0.0
    %4174 = vmatpush1.msra.mxu0 0.0
    %4175 = vmatprep.subr.mxu0 0.0
    %4176 = vmatpush1.msra.mxu0 0.0
    %4177 = vmatprep.subr.mxu0 0.0
    %4178 = vmatpush1.msra.mxu0 0.0
    %4179 = vmatprep.subr.mxu0 0.0
    %4180 = vmatpush1.msra.mxu0 0.0
    %4181 = vmatprep.subr.mxu0 0.0
    %4182 = vmatpush1.msra.mxu0 0.0
    %4183 = vmatprep.subr.mxu0 0.0
    %4184 = vmatpush1.msra.mxu0 0.0
    %4185 = vmatprep.subr.mxu0 0.0
    %4186 = vmatpush1.msra.mxu0 0.0
    %4187 = vmatprep.subr.mxu0 0.0
    %4188 = vmatpush1.msra.mxu0 0.0
    %4189 = vmatprep.subr.mxu0 0.0
    %4190 = vmatpush1.msra.mxu0 0.0
    %4191 = vmatprep.subr.mxu0 0.0
    %4192 = vmatpush1.msra.mxu0 0.0
    %4193 = vmatprep.subr.mxu0 0.0
    %4194 = vmatpush1.msra.mxu0 0.0
    %4195 = vmatprep.subr.mxu0 0.0
    %4196 = vmatpush1.msra.mxu0 0.0
    %4197 = vmatprep.subr.mxu0 0.0
    %4198 = vmatpush1.msra.mxu0 0.0
    %4199 = vmatprep.subr.mxu0 0.0
    %4200 = vmatpush1.msra.mxu0 0.0
    %4201 = vmatprep.subr.mxu0 0.0
    %4202 = vmatpush1.msra.mxu0 0.0
    %4203 = vmatprep.subr.mxu0 0.0
    %4204 = vmatpush1.msra.mxu0 0.0
    %4205 = vmatprep.subr.mxu0 0.0
    %4206 = vmatpush1.msra.mxu0 0.0
    %4207 = vmatprep.subr.mxu0 0.0
    %4208 = vmatpush1.msra.mxu0 0.0
    %4209 = vmatprep.subr.mxu0 0.0
    %4210 = vmatpush1.msra.mxu0 0.0
    %4211 = vmatprep.subr.mxu0 0.0
    %4212 = vmatpush1.msra.mxu0 0.0
    %4213 = vmatprep.subr.mxu0 0.0
    %4214 = vmatpush1.msra.mxu0 0.0
    %4215 = vmatprep.subr.mxu0 0.0
    %4216 = vmatpush1.msra.mxu0 0.0
    %4217 = vmatprep.subr.mxu0 0.0
    %4218 = vmatpush1.msra.mxu0 0.0
    %4219 = vmatprep.subr.mxu0 0.0
    %4220 = vmatpush1.msra.mxu0 0.0
    %4221 = vmatprep.subr.mxu0 0.0
    %4222 = vmatpush1.msra.mxu0 0.0
    %4223 = vmatprep.subr.mxu0 0.0
    %4224 = vmatpush1.msra.mxu0 0.0
    %4225 = vmatprep.subr.mxu0 0.0
    %4226 = vmatpush1.msra.mxu0 0.0
    %4227 = vmatprep.subr.mxu0 0.0
    %4228 = vmatpush1.msra.mxu0 0.0
    %4229 = vmatprep.subr.mxu0 0.0
    %4230 = vmatpush1.msra.mxu0 0.0
    %4231 = vmatprep.mubr.f32.mxu0 0.0
    %4232 = vmatmul.mubr.f32.gmra.mrb[0].mxu0 %v3830
    %v4233 = vpop.f32.mrb[0].mxu0
    %v4234 = vadd.f32 0.0, %v4233
    %v4235 = vpop.f32.mrb[0].mxu0
    %v4236 = vadd.f32 0.0, %v4235
    %4237 = vmatprep.mubr.f32.mxu0 0.0
    %4238 = vmatmul.mubr.f32.gmra.mrb[0].mxu0 %v3833
    %v4239 = vpop.f32.mrb[0].mxu0
    %v4240 = vadd.f32 0.0, %v4239
    %v4241 = vpop.f32.mrb[0].mxu0
    %v4242 = vadd.f32 0.0, %v4241
    %4243 = vdwg.mxu0
    %4244 = vmatprep.subr.mxu0 %v3857
    %4245 = vmatpush1.msra.mxu0 %v3855
    %4246 = vmatprep.subr.mxu0 0.0
    %4247 = vmatpush1.msra.mxu0 0.0
    %4248 = vmatprep.subr.mxu0 0.0
    %4249 = vmatpush1.msra.mxu0 0.0
    %4250 = vmatprep.subr.mxu0 0.0
    %4251 = vmatpush1.msra.mxu0 0.0
    %4252 = vmatprep.subr.mxu0 0.0
    %4253 = vmatpush1.msra.mxu0 0.0
    %4254 = vmatprep.subr.mxu0 0.0
    %4255 = vmatpush1.msra.mxu0 0.0
    %4256 = vmatprep.subr.mxu0 0.0
    %4257 = vmatpush1.msra.mxu0 0.0
    %4258 = vmatprep.subr.mxu0 0.0
    %4259 = vmatpush1.msra.mxu0 0.0
    %4260 = vmatprep.subr.mxu0 0.0
    %4261 = vmatpush1.msra.mxu0 0.0
    %4262 = vmatprep.subr.mxu0 0.0
    %4263 = vmatpush1.msra.mxu0 0.0
    %4264 = vmatprep.subr.mxu0 0.0
    %4265 = vmatpush1.msra.mxu0 0.0
    %4266 = vmatprep.subr.mxu0 0.0
    %4267 = vmatpush1.msra.mxu0 0.0
    %4268 = vmatprep.subr.mxu0 0.0
    %4269 = vmatpush1.msra.mxu0 0.0
    %4270 = vmatprep.subr.mxu0 0.0
    %4271 = vmatpush1.msra.mxu0 0.0
    %4272 = vmatprep.subr.mxu0 0.0
    %4273 = vmatpush1.msra.mxu0 0.0
    %4274 = vmatprep.subr.mxu0 0.0
    %4275 = vmatpush1.msra.mxu0 0.0
    %4276 = vmatprep.subr.mxu0 0.0
    %4277 = vmatpush1.msra.mxu0 0.0
    %4278 = vmatprep.subr.mxu0 0.0
    %4279 = vmatpush1.msra.mxu0 0.0
    %4280 = vmatprep.subr.mxu0 0.0
    %4281 = vmatpush1.msra.mxu0 0.0
    %4282 = vmatprep.subr.mxu0 0.0
    %4283 = vmatpush1.msra.mxu0 0.0
    %4284 = vmatprep.subr.mxu0 0.0
    %4285 = vmatpush1.msra.mxu0 0.0
    %4286 = vmatprep.subr.mxu0 0.0
    %4287 = vmatpush1.msra.mxu0 0.0
    %4288 = vmatprep.subr.mxu0 0.0
    %4289 = vmatpush1.msra.mxu0 0.0
    %4290 = vmatprep.subr.mxu0 0.0
    %4291 = vmatpush1.msra.mxu0 0.0
    %4292 = vmatprep.subr.mxu0 0.0
    %4293 = vmatpush1.msra.mxu0 0.0
    %4294 = vmatprep.subr.mxu0 0.0
    %4295 = vmatpush1.msra.mxu0 0.0
    %4296 = vmatprep.subr.mxu0 0.0
    %4297 = vmatpush1.msra.mxu0 0.0
    %4298 = vmatprep.subr.mxu0 0.0
    %4299 = vmatpush1.msra.mxu0 0.0
    %4300 = vmatprep.subr.mxu0 0.0
    %4301 = vmatpush1.msra.mxu0 0.0
    %4302 = vmatprep.subr.mxu0 0.0
    %4303 = vmatpush1.msra.mxu0 0.0
    %4304 = vmatprep.subr.mxu0 0.0
    %4305 = vmatpush1.msra.mxu0 0.0
    %4306 = vmatprep.subr.mxu0 0.0
    %4307 = vmatpush1.msra.mxu0 0.0
    %4308 = vmatprep.mubr.f32.mxu0 0.0
    %4309 = vmatmul.mubr.f32.gmra.mrb[0].mxu0 %v3830
    %v4310 = vpop.f32.mrb[0].mxu0
    %v4311 = vadd.f32 0.0, %v4310
    %v4312 = vpop.f32.mrb[0].mxu0
    %v4313 = vadd.f32 0.0, %v4312
    %4314 = vmatprep.mubr.f32.mxu0 0.0
    %4315 = vmatmul.mubr.f32.gmra.mrb[0].mxu0 %v3833
    %v4316 = vpop.f32.mrb[0].mxu0
    %v4317 = vadd.f32 0.0, %v4316
    %v4318 = vpop.f32.mrb[0].mxu0
    %v4319 = vadd.f32 0.0, %v4318
    %4320 = vdwg.mxu0
    %v4321 = vadd.f32 %v3766, %v3926
    %v4322 = vadd.f32 %v3767, %v3928
    %v4323 = vadd.f32 %v3768, %v4003
    %v4324 = vadd.f32 %v3769, %v4005
    %v4325 = vadd.f32 %v3770, %v4080
    %v4326 = vadd.f32 %v3771, %v4082
    %v4327 = vadd.f32 %v3772, %v4157
    %v4328 = vadd.f32 %v3773, %v4159
    %v4329 = vadd.f32 %v3774, %v4234
    %v4330 = vadd.f32 %v3775, %v4236
    %v4331 = vadd.f32 %v3776, %v4311
    %v4332 = vadd.f32 %v3777, %v4313
    %v4333 = vadd.f32 %v3778, %v3932
    %v4334 = vadd.f32 %v3779, %v3934
    %v4335 = vadd.f32 %v3780, %v4009
    %v4336 = vadd.f32 %v3781, %v4011
    %v4337 = vadd.f32 %v3782, %v4086
    %v4338 = vadd.f32 %v3783, %v4088
    %v4339 = vadd.f32 %v3784, %v4163
    %v4340 = vadd.f32 %v3785, %v4165
    %v4341 = vadd.f32 %v3786, %v4240
    %v4342 = vadd.f32 %v3787, %v4242
    %v4343 = vadd.f32 %v3788, %v4317
    %v4344 = vadd.f32 %v3789, %v4319
    %s4345 = scalar_lea.vmem %s3, 96
    %v4346 = vld [vmem:[%s4345] sm:$0xff]
    %v4347 = vld [vmem:[%s4345 + $0x8] sm:$0xff]
    %4348 = vrot.lane.b32.xlu0 %v1076, 16
    %v4349 = vpop.permute.xlu0 %4348
    %4350 = vrot.lane.b32.xlu0 %v1077, 16
    %v4351 = vpop.permute.xlu0 %4350
    %4352 = vrot.lane.b32.xlu0 %v1078, 16
    %v4353 = vpop.permute.xlu0 %4352
    %4354 = vrot.lane.b32.xlu0 %v1079, 16
    %v4355 = vpop.permute.xlu0 %4354
    %4356 = vrot.lane.b32.xlu0 %v1080, 16
    %v4357 = vpop.permute.xlu0 %4356
    %4358 = vrot.lane.b32.xlu0 %v1081, 16
    %v4359 = vpop.permute.xlu0 %4358
    %4360 = vrot.lane.b32.xlu0 %v1082, 16
    %v4361 = vpop.permute.xlu0 %4360
    %4362 = vrot.lane.b32.xlu0 %v1083, 16
    %v4363 = vpop.permute.xlu0 %4362
    %4364 = vrot.lane.b32.xlu0 %v1084, 16
    %v4365 = vpop.permute.xlu0 %4364
    %4366 = vrot.lane.b32.xlu0 %v1085, 16
    %v4367 = vpop.permute.xlu0 %4366
    %4368 = vrot.lane.b32.xlu0 %v1086, 16
    %v4369 = vpop.permute.xlu0 %4368
    %4370 = vrot.lane.b32.xlu0 %v1087, 16
    %v4371 = vpop.permute.xlu0 %4370
    %vm4372 = vcmask 130048
    %v4373 = vsel %vm4372, %v4349, %v4351
    %v4374 = vsel %vm4372, %v4351, %v4353
    %v4375 = vsel %vm4372, %v4353, %v4355
    %v4376 = vsel %vm4372, %v4355, %v4357
    %v4377 = vsel %vm4372, %v4357, %v4359
    %v4378 = vsel %vm4372, %v4359, %v4361
    %v4379 = vsel %vm4372, %v4361, %v4363
    %v4380 = vsel %vm4372, %v4363, %v4365
    %v4381 = vsel %vm4372, %v4365, %v4367
    %v4382 = vsel %vm4372, %v4367, %v4369
    %v4383 = vsel %vm4372, %v4369, %v4371
    %v4385 = vsel %vm1141, %v4346, 0
    %v4388 = vsel %vm1141, %v4347, 0
    %v4390 = vsel %vm1148, %v4373, 0
    %v4392 = vsel %vm1148, %v4374, 0
    %v4394 = vsel %vm1148, %v4375, 0
    %v4396 = vsel %vm1148, %v4376, 0
    %v4398 = vsel %vm1148, %v4377, 0
    %v4400 = vsel %vm1148, %v4378, 0
    %v4402 = vsel %vm1148, %v4379, 0
    %v4404 = vsel %vm1148, %v4380, 0
    %v4406 = vsel %vm1148, %v4381, 0
    %v4408 = vsel %vm1148, %v4382, 0
    %v4410 = vsel %vm1148, %v4383, 0
    %v4412 = vsel %vm1148, %v4371, 0
    %4414 = vmatprep.subr.mxu0 %v4392
    %4415 = vmatpush1.msra.mxu0 %v4390
    %4416 = vmatprep.subr.mxu0 0.0
    %4417 = vmatpush1.msra.mxu0 0.0
    %4418 = vmatprep.subr.mxu0 0.0
    %4419 = vmatpush1.msra.mxu0 0.0
    %4420 = vmatprep.subr.mxu0 0.0
    %4421 = vmatpush1.msra.mxu0 0.0
    %4422 = vmatprep.subr.mxu0 0.0
    %4423 = vmatpush1.msra.mxu0 0.0
    %4424 = vmatprep.subr.mxu0 0.0
    %4425 = vmatpush1.msra.mxu0 0.0
    %4426 = vmatprep.subr.mxu0 0.0
    %4427 = vmatpush1.msra.mxu0 0.0
    %4428 = vmatprep.subr.mxu0 0.0
    %4429 = vmatpush1.msra.mxu0 0.0
    %4430 = vmatprep.subr.mxu0 0.0
    %4431 = vmatpush1.msra.mxu0 0.0
    %4432 = vmatprep.subr.mxu0 0.0
    %4433 = vmatpush1.msra.mxu0 0.0
    %4434 = vmatprep.subr.mxu0 0.0
    %4435 = vmatpush1.msra.mxu0 0.0
    %4436 = vmatprep.subr.mxu0 0.0
    %4437 = vmatpush1.msra.mxu0 0.0
    %4438 = vmatprep.subr.mxu0 0.0
    %4439 = vmatpush1.msra.mxu0 0.0
    %4440 = vmatprep.subr.mxu0 0.0
    %4441 = vmatpush1.msra.mxu0 0.0
    %4442 = vmatprep.subr.mxu0 0.0
    %4443 = vmatpush1.msra.mxu0 0.0
    %4444 = vmatprep.subr.mxu0 0.0
    %4445 = vmatpush1.msra.mxu0 0.0
    %4446 = vmatprep.subr.mxu0 0.0
    %4447 = vmatpush1.msra.mxu0 0.0
    %4448 = vmatprep.subr.mxu0 0.0
    %4449 = vmatpush1.msra.mxu0 0.0
    %4450 = vmatprep.subr.mxu0 0.0
    %4451 = vmatpush1.msra.mxu0 0.0
    %4452 = vmatprep.subr.mxu0 0.0
    %4453 = vmatpush1.msra.mxu0 0.0
    %4454 = vmatprep.subr.mxu0 0.0
    %4455 = vmatpush1.msra.mxu0 0.0
    %4456 = vmatprep.subr.mxu0 0.0
    %4457 = vmatpush1.msra.mxu0 0.0
    %4458 = vmatprep.subr.mxu0 0.0
    %4459 = vmatpush1.msra.mxu0 0.0
    %4460 = vmatprep.subr.mxu0 0.0
    %4461 = vmatpush1.msra.mxu0 0.0
    %4462 = vmatprep.subr.mxu0 0.0
    %4463 = vmatpush1.msra.mxu0 0.0
    %4464 = vmatprep.subr.mxu0 0.0
    %4465 = vmatpush1.msra.mxu0 0.0
    %4466 = vmatprep.subr.mxu0 0.0
    %4467 = vmatpush1.msra.mxu0 0.0
    %4468 = vmatprep.subr.mxu0 0.0
    %4469 = vmatpush1.msra.mxu0 0.0
    %4470 = vmatprep.subr.mxu0 0.0
    %4471 = vmatpush1.msra.mxu0 0.0
    %4472 = vmatprep.subr.mxu0 0.0
    %4473 = vmatpush1.msra.mxu0 0.0
    %4474 = vmatprep.subr.mxu0 0.0
    %4475 = vmatpush1.msra.mxu0 0.0
    %4476 = vmatprep.subr.mxu0 0.0
    %4477 = vmatpush1.msra.mxu0 0.0
    %4478 = vmatprep.mubr.f32.mxu0 0.0
    %4479 = vmatmul.mubr.f32.gmra.mrb[0].mxu0 %v4385
    %v4480 = vpop.f32.mrb[0].mxu0
    %v4481 = vadd.f32 0.0, %v4480
    %v4482 = vpop.f32.mrb[0].mxu0
    %v4483 = vadd.f32 0.0, %v4482
    %4484 = vmatprep.mubr.f32.mxu0 0.0
    %4485 = vmatmul.mubr.f32.gmra.mrb[0].mxu0 %v4388
    %v4486 = vpop.f32.mrb[0].mxu0
    %v4487 = vadd.f32 0.0, %v4486
    %v4488 = vpop.f32.mrb[0].mxu0
    %v4489 = vadd.f32 0.0, %v4488
    %4490 = vdwg.mxu0
    %4491 = vmatprep.subr.mxu0 %v4396
    %4492 = vmatpush1.msra.mxu0 %v4394
    %4493 = vmatprep.subr.mxu0 0.0
    %4494 = vmatpush1.msra.mxu0 0.0
    %4495 = vmatprep.subr.mxu0 0.0
    %4496 = vmatpush1.msra.mxu0 0.0
    %4497 = vmatprep.subr.mxu0 0.0
    %4498 = vmatpush1.msra.mxu0 0.0
    %4499 = vmatprep.subr.mxu0 0.0
    %4500 = vmatpush1.msra.mxu0 0.0
    %4501 = vmatprep.subr.mxu0 0.0
    %4502 = vmatpush1.msra.mxu0 0.0
    %4503 = vmatprep.subr.mxu0 0.0
    %4504 = vmatpush1.msra.mxu0 0.0
    %4505 = vmatprep.subr.mxu0 0.0
    %4506 = vmatpush1.msra.mxu0 0.0
    %4507 = vmatprep.subr.mxu0 0.0
    %4508 = vmatpush1.msra.mxu0 0.0
    %4509 = vmatprep.subr.mxu0 0.0
    %4510 = vmatpush1.msra.mxu0 0.0
    %4511 = vmatprep.subr.mxu0 0.0
    %4512 = vmatpush1.msra.mxu0 0.0
    %4513 = vmatprep.subr.mxu0 0.0
    %4514 = vmatpush1.msra.mxu0 0.0
    %4515 = vmatprep.subr.mxu0 0.0
    %4516 = vmatpush1.msra.mxu0 0.0
    %4517 = vmatprep.subr.mxu0 0.0
    %4518 = vmatpush1.msra.mxu0 0.0
    %4519 = vmatprep.subr.mxu0 0.0
    %4520 = vmatpush1.msra.mxu0 0.0
    %4521 = vmatprep.subr.mxu0 0.0
    %4522 = vmatpush1.msra.mxu0 0.0
    %4523 = vmatprep.subr.mxu0 0.0
    %4524 = vmatpush1.msra.mxu0 0.0
    %4525 = vmatprep.subr.mxu0 0.0
    %4526 = vmatpush1.msra.mxu0 0.0
    %4527 = vmatprep.subr.mxu0 0.0
    %4528 = vmatpush1.msra.mxu0 0.0
    %4529 = vmatprep.subr.mxu0 0.0
    %4530 = vmatpush1.msra.mxu0 0.0
    %4531 = vmatprep.subr.mxu0 0.0
    %4532 = vmatpush1.msra.mxu0 0.0
    %4533 = vmatprep.subr.mxu0 0.0
    %4534 = vmatpush1.msra.mxu0 0.0
    %4535 = vmatprep.subr.mxu0 0.0
    %4536 = vmatpush1.msra.mxu0 0.0
    %4537 = vmatprep.subr.mxu0 0.0
    %4538 = vmatpush1.msra.mxu0 0.0
    %4539 = vmatprep.subr.mxu0 0.0
    %4540 = vmatpush1.msra.mxu0 0.0
    %4541 = vmatprep.subr.mxu0 0.0
    %4542 = vmatpush1.msra.mxu0 0.0
    %4543 = vmatprep.subr.mxu0 0.0
    %4544 = vmatpush1.msra.mxu0 0.0
    %4545 = vmatprep.subr.mxu0 0.0
    %4546 = vmatpush1.msra.mxu0 0.0
    %4547 = vmatprep.subr.mxu0 0.0
    %4548 = vmatpush1.msra.mxu0 0.0
    %4549 = vmatprep.subr.mxu0 0.0
    %4550 = vmatpush1.msra.mxu0 0.0
    %4551 = vmatprep.subr.mxu0 0.0
    %4552 = vmatpush1.msra.mxu0 0.0
    %4553 = vmatprep.subr.mxu0 0.0
    %4554 = vmatpush1.msra.mxu0 0.0
    %4555 = vmatprep.mubr.f32.mxu0 0.0
    %4556 = vmatmul.mubr.f32.gmra.mrb[0].mxu0 %v4385
    %v4557 = vpop.f32.mrb[0].mxu0
    %v4558 = vadd.f32 0.0, %v4557
    %v4559 = vpop.f32.mrb[0].mxu0
    %v4560 = vadd.f32 0.0, %v4559
    %4561 = vmatprep.mubr.f32.mxu0 0.0
    %4562 = vmatmul.mubr.f32.gmra.mrb[0].mxu0 %v4388
    %v4563 = vpop.f32.mrb[0].mxu0
    %v4564 = vadd.f32 0.0, %v4563
    %v4565 = vpop.f32.mrb[0].mxu0
    %v4566 = vadd.f32 0.0, %v4565
    %4567 = vdwg.mxu0
    %4568 = vmatprep.subr.mxu0 %v4400
    %4569 = vmatpush1.msra.mxu0 %v4398
    %4570 = vmatprep.subr.mxu0 0.0
    %4571 = vmatpush1.msra.mxu0 0.0
    %4572 = vmatprep.subr.mxu0 0.0
    %4573 = vmatpush1.msra.mxu0 0.0
    %4574 = vmatprep.subr.mxu0 0.0
    %4575 = vmatpush1.msra.mxu0 0.0
    %4576 = vmatprep.subr.mxu0 0.0
    %4577 = vmatpush1.msra.mxu0 0.0
    %4578 = vmatprep.subr.mxu0 0.0
    %4579 = vmatpush1.msra.mxu0 0.0
    %4580 = vmatprep.subr.mxu0 0.0
    %4581 = vmatpush1.msra.mxu0 0.0
    %4582 = vmatprep.subr.mxu0 0.0
    %4583 = vmatpush1.msra.mxu0 0.0
    %4584 = vmatprep.subr.mxu0 0.0
    %4585 = vmatpush1.msra.mxu0 0.0
    %4586 = vmatprep.subr.mxu0 0.0
    %4587 = vmatpush1.msra.mxu0 0.0
    %4588 = vmatprep.subr.mxu0 0.0
    %4589 = vmatpush1.msra.mxu0 0.0
    %4590 = vmatprep.subr.mxu0 0.0
    %4591 = vmatpush1.msra.mxu0 0.0
    %4592 = vmatprep.subr.mxu0 0.0
    %4593 = vmatpush1.msra.mxu0 0.0
    %4594 = vmatprep.subr.mxu0 0.0
    %4595 = vmatpush1.msra.mxu0 0.0
    %4596 = vmatprep.subr.mxu0 0.0
    %4597 = vmatpush1.msra.mxu0 0.0
    %4598 = vmatprep.subr.mxu0 0.0
    %4599 = vmatpush1.msra.mxu0 0.0
    %4600 = vmatprep.subr.mxu0 0.0
    %4601 = vmatpush1.msra.mxu0 0.0
    %4602 = vmatprep.subr.mxu0 0.0
    %4603 = vmatpush1.msra.mxu0 0.0
    %4604 = vmatprep.subr.mxu0 0.0
    %4605 = vmatpush1.msra.mxu0 0.0
    %4606 = vmatprep.subr.mxu0 0.0
    %4607 = vmatpush1.msra.mxu0 0.0
    %4608 = vmatprep.subr.mxu0 0.0
    %4609 = vmatpush1.msra.mxu0 0.0
    %4610 = vmatprep.subr.mxu0 0.0
    %4611 = vmatpush1.msra.mxu0 0.0
    %4612 = vmatprep.subr.mxu0 0.0
    %4613 = vmatpush1.msra.mxu0 0.0
    %4614 = vmatprep.subr.mxu0 0.0
    %4615 = vmatpush1.msra.mxu0 0.0
    %4616 = vmatprep.subr.mxu0 0.0
    %4617 = vmatpush1.msra.mxu0 0.0
    %4618 = vmatprep.subr.mxu0 0.0
    %4619 = vmatpush1.msra.mxu0 0.0
    %4620 = vmatprep.subr.mxu0 0.0
    %4621 = vmatpush1.msra.mxu0 0.0
    %4622 = vmatprep.subr.mxu0 0.0
    %4623 = vmatpush1.msra.mxu0 0.0
    %4624 = vmatprep.subr.mxu0 0.0
    %4625 = vmatpush1.msra.mxu0 0.0
    %4626 = vmatprep.subr.mxu0 0.0
    %4627 = vmatpush1.msra.mxu0 0.0
    %4628 = vmatprep.subr.mxu0 0.0
    %4629 = vmatpush1.msra.mxu0 0.0
    %4630 = vmatprep.subr.mxu0 0.0
    %4631 = vmatpush1.msra.mxu0 0.0
    %4632 = vmatprep.mubr.f32.mxu0 0.0
    %4633 = vmatmul.mubr.f32.gmra.mrb[0].mxu0 %v4385
    %v4634 = vpop.f32.mrb[0].mxu0
    %v4635 = vadd.f32 0.0, %v4634
    %v4636 = vpop.f32.mrb[0].mxu0
    %v4637 = vadd.f32 0.0, %v4636
    %4638 = vmatprep.mubr.f32.mxu0 0.0
    %4639 = vmatmul.mubr.f32.gmra.mrb[0].mxu0 %v4388
    %v4640 = vpop.f32.mrb[0].mxu0
    %v4641 = vadd.f32 0.0, %v4640
    %v4642 = vpop.f32.mrb[0].mxu0
    %v4643 = vadd.f32 0.0, %v4642
    %4644 = vdwg.mxu0
    %4645 = vmatprep.subr.mxu0 %v4404
    %4646 = vmatpush1.msra.mxu0 %v4402
    %4647 = vmatprep.subr.mxu0 0.0
    %4648 = vmatpush1.msra.mxu0 0.0
    %4649 = vmatprep.subr.mxu0 0.0
    %4650 = vmatpush1.msra.mxu0 0.0
    %4651 = vmatprep.subr.mxu0 0.0
    %4652 = vmatpush1.msra.mxu0 0.0
    %4653 = vmatprep.subr.mxu0 0.0
    %4654 = vmatpush1.msra.mxu0 0.0
    %4655 = vmatprep.subr.mxu0 0.0
    %4656 = vmatpush1.msra.mxu0 0.0
    %4657 = vmatprep.subr.mxu0 0.0
    %4658 = vmatpush1.msra.mxu0 0.0
    %4659 = vmatprep.subr.mxu0 0.0
    %4660 = vmatpush1.msra.mxu0 0.0
    %4661 = vmatprep.subr.mxu0 0.0
    %4662 = vmatpush1.msra.mxu0 0.0
    %4663 = vmatprep.subr.mxu0 0.0
    %4664 = vmatpush1.msra.mxu0 0.0
    %4665 = vmatprep.subr.mxu0 0.0
    %4666 = vmatpush1.msra.mxu0 0.0
    %4667 = vmatprep.subr.mxu0 0.0
    %4668 = vmatpush1.msra.mxu0 0.0
    %4669 = vmatprep.subr.mxu0 0.0
    %4670 = vmatpush1.msra.mxu0 0.0
    %4671 = vmatprep.subr.mxu0 0.0
    %4672 = vmatpush1.msra.mxu0 0.0
    %4673 = vmatprep.subr.mxu0 0.0
    %4674 = vmatpush1.msra.mxu0 0.0
    %4675 = vmatprep.subr.mxu0 0.0
    %4676 = vmatpush1.msra.mxu0 0.0
    %4677 = vmatprep.subr.mxu0 0.0
    %4678 = vmatpush1.msra.mxu0 0.0
    %4679 = vmatprep.subr.mxu0 0.0
    %4680 = vmatpush1.msra.mxu0 0.0
    %4681 = vmatprep.subr.mxu0 0.0
    %4682 = vmatpush1.msra.mxu0 0.0
    %4683 = vmatprep.subr.mxu0 0.0
    %4684 = vmatpush1.msra.mxu0 0.0
    %4685 = vmatprep.subr.mxu0 0.0
    %4686 = vmatpush1.msra.mxu0 0.0
    %4687 = vmatprep.subr.mxu0 0.0
    %4688 = vmatpush1.msra.mxu0 0.0
    %4689 = vmatprep.subr.mxu0 0.0
    %4690 = vmatpush1.msra.mxu0 0.0
    %4691 = vmatprep.subr.mxu0 0.0
    %4692 = vmatpush1.msra.mxu0 0.0
    %4693 = vmatprep.subr.mxu0 0.0
    %4694 = vmatpush1.msra.mxu0 0.0
    %4695 = vmatprep.subr.mxu0 0.0
    %4696 = vmatpush1.msra.mxu0 0.0
    %4697 = vmatprep.subr.mxu0 0.0
    %4698 = vmatpush1.msra.mxu0 0.0
    %4699 = vmatprep.subr.mxu0 0.0
    %4700 = vmatpush1.msra.mxu0 0.0
    %4701 = vmatprep.subr.mxu0 0.0
    %4702 = vmatpush1.msra.mxu0 0.0
    %4703 = vmatprep.subr.mxu0 0.0
    %4704 = vmatpush1.msra.mxu0 0.0
    %4705 = vmatprep.subr.mxu0 0.0
    %4706 = vmatpush1.msra.mxu0 0.0
    %4707 = vmatprep.subr.mxu0 0.0
    %4708 = vmatpush1.msra.mxu0 0.0
    %4709 = vmatprep.mubr.f32.mxu0 0.0
    %4710 = vmatmul.mubr.f32.gmra.mrb[0].mxu0 %v4385
    %v4711 = vpop.f32.mrb[0].mxu0
    %v4712 = vadd.f32 0.0, %v4711
    %v4713 = vpop.f32.mrb[0].mxu0
    %v4714 = vadd.f32 0.0, %v4713
    %4715 = vmatprep.mubr.f32.mxu0 0.0
    %4716 = vmatmul.mubr.f32.gmra.mrb[0].mxu0 %v4388
    %v4717 = vpop.f32.mrb[0].mxu0
    %v4718 = vadd.f32 0.0, %v4717
    %v4719 = vpop.f32.mrb[0].mxu0
    %v4720 = vadd.f32 0.0, %v4719
    %4721 = vdwg.mxu0
    %4722 = vmatprep.subr.mxu0 %v4408
    %4723 = vmatpush1.msra.mxu0 %v4406
    %4724 = vmatprep.subr.mxu0 0.0
    %4725 = vmatpush1.msra.mxu0 0.0
    %4726 = vmatprep.subr.mxu0 0.0
    %4727 = vmatpush1.msra.mxu0 0.0
    %4728 = vmatprep.subr.mxu0 0.0
    %4729 = vmatpush1.msra.mxu0 0.0
    %4730 = vmatprep.subr.mxu0 0.0
    %4731 = vmatpush1.msra.mxu0 0.0
    %4732 = vmatprep.subr.mxu0 0.0
    %4733 = vmatpush1.msra.mxu0 0.0
    %4734 = vmatprep.subr.mxu0 0.0
    %4735 = vmatpush1.msra.mxu0 0.0
    %4736 = vmatprep.subr.mxu0 0.0
    %4737 = vmatpush1.msra.mxu0 0.0
    %4738 = vmatprep.subr.mxu0 0.0
    %4739 = vmatpush1.msra.mxu0 0.0
    %4740 = vmatprep.subr.mxu0 0.0
    %4741 = vmatpush1.msra.mxu0 0.0
    %4742 = vmatprep.subr.mxu0 0.0
    %4743 = vmatpush1.msra.mxu0 0.0
    %4744 = vmatprep.subr.mxu0 0.0
    %4745 = vmatpush1.msra.mxu0 0.0
    %4746 = vmatprep.subr.mxu0 0.0
    %4747 = vmatpush1.msra.mxu0 0.0
    %4748 = vmatprep.subr.mxu0 0.0
    %4749 = vmatpush1.msra.mxu0 0.0
    %4750 = vmatprep.subr.mxu0 0.0
    %4751 = vmatpush1.msra.mxu0 0.0
    %4752 = vmatprep.subr.mxu0 0.0
    %4753 = vmatpush1.msra.mxu0 0.0
    %4754 = vmatprep.subr.mxu0 0.0
    %4755 = vmatpush1.msra.mxu0 0.0
    %4756 = vmatprep.subr.mxu0 0.0
    %4757 = vmatpush1.msra.mxu0 0.0
    %4758 = vmatprep.subr.mxu0 0.0
    %4759 = vmatpush1.msra.mxu0 0.0
    %4760 = vmatprep.subr.mxu0 0.0
    %4761 = vmatpush1.msra.mxu0 0.0
    %4762 = vmatprep.subr.mxu0 0.0
    %4763 = vmatpush1.msra.mxu0 0.0
    %4764 = vmatprep.subr.mxu0 0.0
    %4765 = vmatpush1.msra.mxu0 0.0
    %4766 = vmatprep.subr.mxu0 0.0
    %4767 = vmatpush1.msra.mxu0 0.0
    %4768 = vmatprep.subr.mxu0 0.0
    %4769 = vmatpush1.msra.mxu0 0.0
    %4770 = vmatprep.subr.mxu0 0.0
    %4771 = vmatpush1.msra.mxu0 0.0
    %4772 = vmatprep.subr.mxu0 0.0
    %4773 = vmatpush1.msra.mxu0 0.0
    %4774 = vmatprep.subr.mxu0 0.0
    %4775 = vmatpush1.msra.mxu0 0.0
    %4776 = vmatprep.subr.mxu0 0.0
    %4777 = vmatpush1.msra.mxu0 0.0
    %4778 = vmatprep.subr.mxu0 0.0
    %4779 = vmatpush1.msra.mxu0 0.0
    %4780 = vmatprep.subr.mxu0 0.0
    %4781 = vmatpush1.msra.mxu0 0.0
    %4782 = vmatprep.subr.mxu0 0.0
    %4783 = vmatpush1.msra.mxu0 0.0
    %4784 = vmatprep.subr.mxu0 0.0
    %4785 = vmatpush1.msra.mxu0 0.0
    %4786 = vmatprep.mubr.f32.mxu0 0.0
    %4787 = vmatmul.mubr.f32.gmra.mrb[0].mxu0 %v4385
    %v4788 = vpop.f32.mrb[0].mxu0
    %v4789 = vadd.f32 0.0, %v4788
    %v4790 = vpop.f32.mrb[0].mxu0
    %v4791 = vadd.f32 0.0, %v4790
    %4792 = vmatprep.mubr.f32.mxu0 0.0
    %4793 = vmatmul.mubr.f32.gmra.mrb[0].mxu0 %v4388
    %v4794 = vpop.f32.mrb[0].mxu0
    %v4795 = vadd.f32 0.0, %v4794
    %v4796 = vpop.f32.mrb[0].mxu0
    %v4797 = vadd.f32 0.0, %v4796
    %4798 = vdwg.mxu0
    %4799 = vmatprep.subr.mxu0 %v4412
    %4800 = vmatpush1.msra.mxu0 %v4410
    %4801 = vmatprep.subr.mxu0 0.0
    %4802 = vmatpush1.msra.mxu0 0.0
    %4803 = vmatprep.subr.mxu0 0.0
    %4804 = vmatpush1.msra.mxu0 0.0
    %4805 = vmatprep.subr.mxu0 0.0
    %4806 = vmatpush1.msra.mxu0 0.0
    %4807 = vmatprep.subr.mxu0 0.0
    %4808 = vmatpush1.msra.mxu0 0.0
    %4809 = vmatprep.subr.mxu0 0.0
    %4810 = vmatpush1.msra.mxu0 0.0
    %4811 = vmatprep.subr.mxu0 0.0
    %4812 = vmatpush1.msra.mxu0 0.0
    %4813 = vmatprep.subr.mxu0 0.0
    %4814 = vmatpush1.msra.mxu0 0.0
    %4815 = vmatprep.subr.mxu0 0.0
    %4816 = vmatpush1.msra.mxu0 0.0
    %4817 = vmatprep.subr.mxu0 0.0
    %4818 = vmatpush1.msra.mxu0 0.0
    %4819 = vmatprep.subr.mxu0 0.0
    %4820 = vmatpush1.msra.mxu0 0.0
    %4821 = vmatprep.subr.mxu0 0.0
    %4822 = vmatpush1.msra.mxu0 0.0
    %4823 = vmatprep.subr.mxu0 0.0
    %4824 = vmatpush1.msra.mxu0 0.0
    %4825 = vmatprep.subr.mxu0 0.0
    %4826 = vmatpush1.msra.mxu0 0.0
    %4827 = vmatprep.subr.mxu0 0.0
    %4828 = vmatpush1.msra.mxu0 0.0
    %4829 = vmatprep.subr.mxu0 0.0
    %4830 = vmatpush1.msra.mxu0 0.0
    %4831 = vmatprep.subr.mxu0 0.0
    %4832 = vmatpush1.msra.mxu0 0.0
    %4833 = vmatprep.subr.mxu0 0.0
    %4834 = vmatpush1.msra.mxu0 0.0
    %4835 = vmatprep.subr.mxu0 0.0
    %4836 = vmatpush1.msra.mxu0 0.0
    %4837 = vmatprep.subr.mxu0 0.0
    %4838 = vmatpush1.msra.mxu0 0.0
    %4839 = vmatprep.subr.mxu0 0.0
    %4840 = vmatpush1.msra.mxu0 0.0
    %4841 = vmatprep.subr.mxu0 0.0
    %4842 = vmatpush1.msra.mxu0 0.0
    %4843 = vmatprep.subr.mxu0 0.0
    %4844 = vmatpush1.msra.mxu0 0.0
    %4845 = vmatprep.subr.mxu0 0.0
    %4846 = vmatpush1.msra.mxu0 0.0
    %4847 = vmatprep.subr.mxu0 0.0
    %4848 = vmatpush1.msra.mxu0 0.0
    %4849 = vmatprep.subr.mxu0 0.0
    %4850 = vmatpush1.msra.mxu0 0.0
    %4851 = vmatprep.subr.mxu0 0.0
    %4852 = vmatpush1.msra.mxu0 0.0
    %4853 = vmatprep.subr.mxu0 0.0
    %4854 = vmatpush1.msra.mxu0 0.0
    %4855 = vmatprep.subr.mxu0 0.0
    %4856 = vmatpush1.msra.mxu0 0.0
    %4857 = vmatprep.subr.mxu0 0.0
    %4858 = vmatpush1.msra.mxu0 0.0
    %4859 = vmatprep.subr.mxu0 0.0
    %4860 = vmatpush1.msra.mxu0 0.0
    %4861 = vmatprep.subr.mxu0 0.0
    %4862 = vmatpush1.msra.mxu0 0.0
    %4863 = vmatprep.mubr.f32.mxu0 0.0
    %4864 = vmatmul.mubr.f32.gmra.mrb[0].mxu0 %v4385
    %v4865 = vpop.f32.mrb[0].mxu0
    %v4866 = vadd.f32 0.0, %v4865
    %v4867 = vpop.f32.mrb[0].mxu0
    %v4868 = vadd.f32 0.0, %v4867
    %4869 = vmatprep.mubr.f32.mxu0 0.0
    %4870 = vmatmul.mubr.f32.gmra.mrb[0].mxu0 %v4388
    %v4871 = vpop.f32.mrb[0].mxu0
    %v4872 = vadd.f32 0.0, %v4871
    %v4873 = vpop.f32.mrb[0].mxu0
    %v4874 = vadd.f32 0.0, %v4873
    %4875 = vdwg.mxu0
    %v4876 = vadd.f32 %v4321, %v4481
    %v4877 = vadd.f32 %v4322, %v4483
    %v4878 = vadd.f32 %v4323, %v4558
    %v4879 = vadd.f32 %v4324, %v4560
    %v4880 = vadd.f32 %v4325, %v4635
    %v4881 = vadd.f32 %v4326, %v4637
    %v4882 = vadd.f32 %v4327, %v4712
    %v4883 = vadd.f32 %v4328, %v4714
    %v4884 = vadd.f32 %v4329, %v4789
    %v4885 = vadd.f32 %v4330, %v4791
    %v4886 = vadd.f32 %v4331, %v4866
    %v4887 = vadd.f32 %v4332, %v4868
    %v4888 = vadd.f32 %v4333, %v4487
    %v4889 = vadd.f32 %v4334, %v4489
    %v4890 = vadd.f32 %v4335, %v4564
    %v4891 = vadd.f32 %v4336, %v4566
    %v4892 = vadd.f32 %v4337, %v4641
    %v4893 = vadd.f32 %v4338, %v4643
    %v4894 = vadd.f32 %v4339, %v4718
    %v4895 = vadd.f32 %v4340, %v4720
    %v4896 = vadd.f32 %v4341, %v4795
    %v4897 = vadd.f32 %v4342, %v4797
    %v4898 = vadd.f32 %v4343, %v4872
    %v4899 = vadd.f32 %v4344, %v4874
    %s4900 = scalar_lea.vmem %s3, 112
    %v4901 = vld [vmem:[%s4900] sm:$0xff]
    %v4902 = vld [vmem:[%s4900 + $0x8] sm:$0xff]
    %4904 = vrot.lane.b32.xlu0 %v1076, 14
    %v4905 = vpop.permute.xlu0 %4904
    %4906 = vrot.lane.b32.xlu0 %v1077, 14
    %v4907 = vpop.permute.xlu0 %4906
    %4908 = vrot.lane.b32.xlu0 %v1078, 14
    %v4909 = vpop.permute.xlu0 %4908
    %4910 = vrot.lane.b32.xlu0 %v1079, 14
    %v4911 = vpop.permute.xlu0 %4910
    %4912 = vrot.lane.b32.xlu0 %v1080, 14
    %v4913 = vpop.permute.xlu0 %4912
    %4914 = vrot.lane.b32.xlu0 %v1081, 14
    %v4915 = vpop.permute.xlu0 %4914
    %4916 = vrot.lane.b32.xlu0 %v1082, 14
    %v4917 = vpop.permute.xlu0 %4916
    %4918 = vrot.lane.b32.xlu0 %v1083, 14
    %v4919 = vpop.permute.xlu0 %4918
    %4920 = vrot.lane.b32.xlu0 %v1084, 14
    %v4921 = vpop.permute.xlu0 %4920
    %4922 = vrot.lane.b32.xlu0 %v1085, 14
    %v4923 = vpop.permute.xlu0 %4922
    %4924 = vrot.lane.b32.xlu0 %v1086, 14
    %v4925 = vpop.permute.xlu0 %4924
    %4926 = vrot.lane.b32.xlu0 %v1087, 14
    %v4927 = vpop.permute.xlu0 %4926
    %4928 = vrot.lane.b32.xlu0 %v1088, 14
    %v4929 = vpop.permute.xlu0 %4928
    %vm4930 = vcmask 113664
    %v4931 = vsel %vm4930, %v4905, %v4907
    %v4932 = vsel %vm4930, %v4907, %v4909
    %v4933 = vsel %vm4930, %v4909, %v4911
    %v4934 = vsel %vm4930, %v4911, %v4913
    %v4935 = vsel %vm4930, %v4913, %v4915
    %v4936 = vsel %vm4930, %v4915, %v4917
    %v4937 = vsel %vm4930, %v4917, %v4919
    %v4938 = vsel %vm4930, %v4919, %v4921
    %v4939 = vsel %vm4930, %v4921, %v4923
    %v4940 = vsel %vm4930, %v4923, %v4925
    %v4941 = vsel %vm4930, %v4925, %v4927
    %v4942 = vsel %vm4930, %v4927, %v4929
    %v4944 = vsel %vm1141, %v4901, 0
    %v4947 = vsel %vm1141, %v4902, 0
    %v4949 = vsel %vm1148, %v4931, 0
    %v4951 = vsel %vm1148, %v4932, 0
    %v4953 = vsel %vm1148, %v4933, 0
    %v4955 = vsel %vm1148, %v4934, 0
    %v4957 = vsel %vm1148, %v4935, 0
    %v4959 = vsel %vm1148, %v4936, 0
    %v4961 = vsel %vm1148, %v4937, 0
    %v4963 = vsel %vm1148, %v4938, 0
    %v4965 = vsel %vm1148, %v4939, 0
    %v4967 = vsel %vm1148, %v4940, 0
    %v4969 = vsel %vm1148, %v4941, 0
    %v4971 = vsel %vm1148, %v4942, 0
    %4973 = vmatprep.subr.mxu0 %v4951
    %4974 = vmatpush1.msra.mxu0 %v4949
    %4975 = vmatprep.subr.mxu0 0.0
    %4976 = vmatpush1.msra.mxu0 0.0
    %4977 = vmatprep.subr.mxu0 0.0
    %4978 = vmatpush1.msra.mxu0 0.0
    %4979 = vmatprep.subr.mxu0 0.0
    %4980 = vmatpush1.msra.mxu0 0.0
    %4981 = vmatprep.subr.mxu0 0.0
    %4982 = vmatpush1.msra.mxu0 0.0
    %4983 = vmatprep.subr.mxu0 0.0
    %4984 = vmatpush1.msra.mxu0 0.0
    %4985 = vmatprep.subr.mxu0 0.0
    %4986 = vmatpush1.msra.mxu0 0.0
    %4987 = vmatprep.subr.mxu0 0.0
    %4988 = vmatpush1.msra.mxu0 0.0
    %4989 = vmatprep.subr.mxu0 0.0
    %4990 = vmatpush1.msra.mxu0 0.0
    %4991 = vmatprep.subr.mxu0 0.0
    %4992 = vmatpush1.msra.mxu0 0.0
    %4993 = vmatprep.subr.mxu0 0.0
    %4994 = vmatpush1.msra.mxu0 0.0
    %4995 = vmatprep.subr.mxu0 0.0
    %4996 = vmatpush1.msra.mxu0 0.0
    %4997 = vmatprep.subr.mxu0 0.0
    %4998 = vmatpush1.msra.mxu0 0.0
    %4999 = vmatprep.subr.mxu0 0.0
    %5000 = vmatpush1.msra.mxu0 0.0
    %5001 = vmatprep.subr.mxu0 0.0
    %5002 = vmatpush1.msra.mxu0 0.0
    %5003 = vmatprep.subr.mxu0 0.0
    %5004 = vmatpush1.msra.mxu0 0.0
    %5005 = vmatprep.subr.mxu0 0.0
    %5006 = vmatpush1.msra.mxu0 0.0
    %5007 = vmatprep.subr.mxu0 0.0
    %5008 = vmatpush1.msra.mxu0 0.0
    %5009 = vmatprep.subr.mxu0 0.0
    %5010 = vmatpush1.msra.mxu0 0.0
    %5011 = vmatprep.subr.mxu0 0.0
    %5012 = vmatpush1.msra.mxu0 0.0
    %5013 = vmatprep.subr.mxu0 0.0
    %5014 = vmatpush1.msra.mxu0 0.0
    %5015 = vmatprep.subr.mxu0 0.0
    %5016 = vmatpush1.msra.mxu0 0.0
    %5017 = vmatprep.subr.mxu0 0.0
    %5018 = vmatpush1.msra.mxu0 0.0
    %5019 = vmatprep.subr.mxu0 0.0
    %5020 = vmatpush1.msra.mxu0 0.0
    %5021 = vmatprep.subr.mxu0 0.0
    %5022 = vmatpush1.msra.mxu0 0.0
    %5023 = vmatprep.subr.mxu0 0.0
    %5024 = vmatpush1.msra.mxu0 0.0
    %5025 = vmatprep.subr.mxu0 0.0
    %5026 = vmatpush1.msra.mxu0 0.0
    %5027 = vmatprep.subr.mxu0 0.0
    %5028 = vmatpush1.msra.mxu0 0.0
    %5029 = vmatprep.subr.mxu0 0.0
    %5030 = vmatpush1.msra.mxu0 0.0
    %5031 = vmatprep.subr.mxu0 0.0
    %5032 = vmatpush1.msra.mxu0 0.0
    %5033 = vmatprep.subr.mxu0 0.0
    %5034 = vmatpush1.msra.mxu0 0.0
    %5035 = vmatprep.subr.mxu0 0.0
    %5036 = vmatpush1.msra.mxu0 0.0
    %5037 = vmatprep.mubr.f32.mxu0 0.0
    %5038 = vmatmul.mubr.f32.gmra.mrb[0].mxu0 %v4944
    %v5039 = vpop.f32.mrb[0].mxu0
    %v5040 = vadd.f32 0.0, %v5039
    %v5041 = vpop.f32.mrb[0].mxu0
    %v5042 = vadd.f32 0.0, %v5041
    %5043 = vmatprep.mubr.f32.mxu0 0.0
    %5044 = vmatmul.mubr.f32.gmra.mrb[0].mxu0 %v4947
    %v5045 = vpop.f32.mrb[0].mxu0
    %v5046 = vadd.f32 0.0, %v5045
    %v5047 = vpop.f32.mrb[0].mxu0
    %v5048 = vadd.f32 0.0, %v5047
    %5049 = vdwg.mxu0
    %5050 = vmatprep.subr.mxu0 %v4955
    %5051 = vmatpush1.msra.mxu0 %v4953
    %5052 = vmatprep.subr.mxu0 0.0
    %5053 = vmatpush1.msra.mxu0 0.0
    %5054 = vmatprep.subr.mxu0 0.0
    %5055 = vmatpush1.msra.mxu0 0.0
    %5056 = vmatprep.subr.mxu0 0.0
    %5057 = vmatpush1.msra.mxu0 0.0
    %5058 = vmatprep.subr.mxu0 0.0
    %5059 = vmatpush1.msra.mxu0 0.0
    %5060 = vmatprep.subr.mxu0 0.0
    %5061 = vmatpush1.msra.mxu0 0.0
    %5062 = vmatprep.subr.mxu0 0.0
    %5063 = vmatpush1.msra.mxu0 0.0
    %5064 = vmatprep.subr.mxu0 0.0
    %5065 = vmatpush1.msra.mxu0 0.0
    %5066 = vmatprep.subr.mxu0 0.0
    %5067 = vmatpush1.msra.mxu0 0.0
    %5068 = vmatprep.subr.mxu0 0.0
    %5069 = vmatpush1.msra.mxu0 0.0
    %5070 = vmatprep.subr.mxu0 0.0
    %5071 = vmatpush1.msra.mxu0 0.0
    %5072 = vmatprep.subr.mxu0 0.0
    %5073 = vmatpush1.msra.mxu0 0.0
    %5074 = vmatprep.subr.mxu0 0.0
    %5075 = vmatpush1.msra.mxu0 0.0
    %5076 = vmatprep.subr.mxu0 0.0
    %5077 = vmatpush1.msra.mxu0 0.0
    %5078 = vmatprep.subr.mxu0 0.0
    %5079 = vmatpush1.msra.mxu0 0.0
    %5080 = vmatprep.subr.mxu0 0.0
    %5081 = vmatpush1.msra.mxu0 0.0
    %5082 = vmatprep.subr.mxu0 0.0
    %5083 = vmatpush1.msra.mxu0 0.0
    %5084 = vmatprep.subr.mxu0 0.0
    %5085 = vmatpush1.msra.mxu0 0.0
    %5086 = vmatprep.subr.mxu0 0.0
    %5087 = vmatpush1.msra.mxu0 0.0
    %5088 = vmatprep.subr.mxu0 0.0
    %5089 = vmatpush1.msra.mxu0 0.0
    %5090 = vmatprep.subr.mxu0 0.0
    %5091 = vmatpush1.msra.mxu0 0.0
    %5092 = vmatprep.subr.mxu0 0.0
    %5093 = vmatpush1.msra.mxu0 0.0
    %5094 = vmatprep.subr.mxu0 0.0
    %5095 = vmatpush1.msra.mxu0 0.0
    %5096 = vmatprep.subr.mxu0 0.0
    %5097 = vmatpush1.msra.mxu0 0.0
    %5098 = vmatprep.subr.mxu0 0.0
    %5099 = vmatpush1.msra.mxu0 0.0
    %5100 = vmatprep.subr.mxu0 0.0
    %5101 = vmatpush1.msra.mxu0 0.0
    %5102 = vmatprep.subr.mxu0 0.0
    %5103 = vmatpush1.msra.mxu0 0.0
    %5104 = vmatprep.subr.mxu0 0.0
    %5105 = vmatpush1.msra.mxu0 0.0
    %5106 = vmatprep.subr.mxu0 0.0
    %5107 = vmatpush1.msra.mxu0 0.0
    %5108 = vmatprep.subr.mxu0 0.0
    %5109 = vmatpush1.msra.mxu0 0.0
    %5110 = vmatprep.subr.mxu0 0.0
    %5111 = vmatpush1.msra.mxu0 0.0
    %5112 = vmatprep.subr.mxu0 0.0
    %5113 = vmatpush1.msra.mxu0 0.0
    %5114 = vmatprep.mubr.f32.mxu0 0.0
    %5115 = vmatmul.mubr.f32.gmra.mrb[0].mxu0 %v4944
    %v5116 = vpop.f32.mrb[0].mxu0
    %v5117 = vadd.f32 0.0, %v5116
    %v5118 = vpop.f32.mrb[0].mxu0
    %v5119 = vadd.f32 0.0, %v5118
    %5120 = vmatprep.mubr.f32.mxu0 0.0
    %5121 = vmatmul.mubr.f32.gmra.mrb[0].mxu0 %v4947
    %v5122 = vpop.f32.mrb[0].mxu0
    %v5123 = vadd.f32 0.0, %v5122
    %v5124 = vpop.f32.mrb[0].mxu0
    %v5125 = vadd.f32 0.0, %v5124
    %5126 = vdwg.mxu0
    %5127 = vmatprep.subr.mxu0 %v4959
    %5128 = vmatpush1.msra.mxu0 %v4957
    %5129 = vmatprep.subr.mxu0 0.0
    %5130 = vmatpush1.msra.mxu0 0.0
    %5131 = vmatprep.subr.mxu0 0.0
    %5132 = vmatpush1.msra.mxu0 0.0
    %5133 = vmatprep.subr.mxu0 0.0
    %5134 = vmatpush1.msra.mxu0 0.0
    %5135 = vmatprep.subr.mxu0 0.0
    %5136 = vmatpush1.msra.mxu0 0.0
    %5137 = vmatprep.subr.mxu0 0.0
    %5138 = vmatpush1.msra.mxu0 0.0
    %5139 = vmatprep.subr.mxu0 0.0
    %5140 = vmatpush1.msra.mxu0 0.0
    %5141 = vmatprep.subr.mxu0 0.0
    %5142 = vmatpush1.msra.mxu0 0.0
    %5143 = vmatprep.subr.mxu0 0.0
    %5144 = vmatpush1.msra.mxu0 0.0
    %5145 = vmatprep.subr.mxu0 0.0
    %5146 = vmatpush1.msra.mxu0 0.0
    %5147 = vmatprep.subr.mxu0 0.0
    %5148 = vmatpush1.msra.mxu0 0.0
    %5149 = vmatprep.subr.mxu0 0.0
    %5150 = vmatpush1.msra.mxu0 0.0
    %5151 = vmatprep.subr.mxu0 0.0
    %5152 = vmatpush1.msra.mxu0 0.0
    %5153 = vmatprep.subr.mxu0 0.0
    %5154 = vmatpush1.msra.mxu0 0.0
    %5155 = vmatprep.subr.mxu0 0.0
    %5156 = vmatpush1.msra.mxu0 0.0
    %5157 = vmatprep.subr.mxu0 0.0
    %5158 = vmatpush1.msra.mxu0 0.0
    %5159 = vmatprep.subr.mxu0 0.0
    %5160 = vmatpush1.msra.mxu0 0.0
    %5161 = vmatprep.subr.mxu0 0.0
    %5162 = vmatpush1.msra.mxu0 0.0
    %5163 = vmatprep.subr.mxu0 0.0
    %5164 = vmatpush1.msra.mxu0 0.0
    %5165 = vmatprep.subr.mxu0 0.0
    %5166 = vmatpush1.msra.mxu0 0.0
    %5167 = vmatprep.subr.mxu0 0.0
    %5168 = vmatpush1.msra.mxu0 0.0
    %5169 = vmatprep.subr.mxu0 0.0
    %5170 = vmatpush1.msra.mxu0 0.0
    %5171 = vmatprep.subr.mxu0 0.0
    %5172 = vmatpush1.msra.mxu0 0.0
    %5173 = vmatprep.subr.mxu0 0.0
    %5174 = vmatpush1.msra.mxu0 0.0
    %5175 = vmatprep.subr.mxu0 0.0
    %5176 = vmatpush1.msra.mxu0 0.0
    %5177 = vmatprep.subr.mxu0 0.0
    %5178 = vmatpush1.msra.mxu0 0.0
    %5179 = vmatprep.subr.mxu0 0.0
    %5180 = vmatpush1.msra.mxu0 0.0
    %5181 = vmatprep.subr.mxu0 0.0
    %5182 = vmatpush1.msra.mxu0 0.0
    %5183 = vmatprep.subr.mxu0 0.0
    %5184 = vmatpush1.msra.mxu0 0.0
    %5185 = vmatprep.subr.mxu0 0.0
    %5186 = vmatpush1.msra.mxu0 0.0
    %5187 = vmatprep.subr.mxu0 0.0
    %5188 = vmatpush1.msra.mxu0 0.0
    %5189 = vmatprep.subr.mxu0 0.0
    %5190 = vmatpush1.msra.mxu0 0.0
    %5191 = vmatprep.mubr.f32.mxu0 0.0
    %5192 = vmatmul.mubr.f32.gmra.mrb[0].mxu0 %v4944
    %v5193 = vpop.f32.mrb[0].mxu0
    %v5194 = vadd.f32 0.0, %v5193
    %v5195 = vpop.f32.mrb[0].mxu0
    %v5196 = vadd.f32 0.0, %v5195
    %5197 = vmatprep.mubr.f32.mxu0 0.0
    %5198 = vmatmul.mubr.f32.gmra.mrb[0].mxu0 %v4947
    %v5199 = vpop.f32.mrb[0].mxu0
    %v5200 = vadd.f32 0.0, %v5199
    %v5201 = vpop.f32.mrb[0].mxu0
    %v5202 = vadd.f32 0.0, %v5201
    %5203 = vdwg.mxu0
    %5204 = vmatprep.subr.mxu0 %v4963
    %5205 = vmatpush1.msra.mxu0 %v4961
    %5206 = vmatprep.subr.mxu0 0.0
    %5207 = vmatpush1.msra.mxu0 0.0
    %5208 = vmatprep.subr.mxu0 0.0
    %5209 = vmatpush1.msra.mxu0 0.0
    %5210 = vmatprep.subr.mxu0 0.0
    %5211 = vmatpush1.msra.mxu0 0.0
    %5212 = vmatprep.subr.mxu0 0.0
    %5213 = vmatpush1.msra.mxu0 0.0
    %5214 = vmatprep.subr.mxu0 0.0
    %5215 = vmatpush1.msra.mxu0 0.0
    %5216 = vmatprep.subr.mxu0 0.0
    %5217 = vmatpush1.msra.mxu0 0.0
    %5218 = vmatprep.subr.mxu0 0.0
    %5219 = vmatpush1.msra.mxu0 0.0
    %5220 = vmatprep.subr.mxu0 0.0
    %5221 = vmatpush1.msra.mxu0 0.0
    %5222 = vmatprep.subr.mxu0 0.0
    %5223 = vmatpush1.msra.mxu0 0.0
    %5224 = vmatprep.subr.mxu0 0.0
    %5225 = vmatpush1.msra.mxu0 0.0
    %5226 = vmatprep.subr.mxu0 0.0
    %5227 = vmatpush1.msra.mxu0 0.0
    %5228 = vmatprep.subr.mxu0 0.0
    %5229 = vmatpush1.msra.mxu0 0.0
    %5230 = vmatprep.subr.mxu0 0.0
    %5231 = vmatpush1.msra.mxu0 0.0
    %5232 = vmatprep.subr.mxu0 0.0
    %5233 = vmatpush1.msra.mxu0 0.0
    %5234 = vmatprep.subr.mxu0 0.0
    %5235 = vmatpush1.msra.mxu0 0.0
    %5236 = vmatprep.subr.mxu0 0.0
    %5237 = vmatpush1.msra.mxu0 0.0
    %5238 = vmatprep.subr.mxu0 0.0
    %5239 = vmatpush1.msra.mxu0 0.0
    %5240 = vmatprep.subr.mxu0 0.0
    %5241 = vmatpush1.msra.mxu0 0.0
    %5242 = vmatprep.subr.mxu0 0.0
    %5243 = vmatpush1.msra.mxu0 0.0
    %5244 = vmatprep.subr.mxu0 0.0
    %5245 = vmatpush1.msra.mxu0 0.0
    %5246 = vmatprep.subr.mxu0 0.0
    %5247 = vmatpush1.msra.mxu0 0.0
    %5248 = vmatprep.subr.mxu0 0.0
    %5249 = vmatpush1.msra.mxu0 0.0
    %5250 = vmatprep.subr.mxu0 0.0
    %5251 = vmatpush1.msra.mxu0 0.0
    %5252 = vmatprep.subr.mxu0 0.0
    %5253 = vmatpush1.msra.mxu0 0.0
    %5254 = vmatprep.subr.mxu0 0.0
    %5255 = vmatpush1.msra.mxu0 0.0
    %5256 = vmatprep.subr.mxu0 0.0
    %5257 = vmatpush1.msra.mxu0 0.0
    %5258 = vmatprep.subr.mxu0 0.0
    %5259 = vmatpush1.msra.mxu0 0.0
    %5260 = vmatprep.subr.mxu0 0.0
    %5261 = vmatpush1.msra.mxu0 0.0
    %5262 = vmatprep.subr.mxu0 0.0
    %5263 = vmatpush1.msra.mxu0 0.0
    %5264 = vmatprep.subr.mxu0 0.0
    %5265 = vmatpush1.msra.mxu0 0.0
    %5266 = vmatprep.subr.mxu0 0.0
    %5267 = vmatpush1.msra.mxu0 0.0
    %5268 = vmatprep.mubr.f32.mxu0 0.0
    %5269 = vmatmul.mubr.f32.gmra.mrb[0].mxu0 %v4944
    %v5270 = vpop.f32.mrb[0].mxu0
    %v5271 = vadd.f32 0.0, %v5270
    %v5272 = vpop.f32.mrb[0].mxu0
    %v5273 = vadd.f32 0.0, %v5272
    %5274 = vmatprep.mubr.f32.mxu0 0.0
    %5275 = vmatmul.mubr.f32.gmra.mrb[0].mxu0 %v4947
    %v5276 = vpop.f32.mrb[0].mxu0
    %v5277 = vadd.f32 0.0, %v5276
    %v5278 = vpop.f32.mrb[0].mxu0
    %v5279 = vadd.f32 0.0, %v5278
    %5280 = vdwg.mxu0
    %5281 = vmatprep.subr.mxu0 %v4967
    %5282 = vmatpush1.msra.mxu0 %v4965
    %5283 = vmatprep.subr.mxu0 0.0
    %5284 = vmatpush1.msra.mxu0 0.0
    %5285 = vmatprep.subr.mxu0 0.0
    %5286 = vmatpush1.msra.mxu0 0.0
    %5287 = vmatprep.subr.mxu0 0.0
    %5288 = vmatpush1.msra.mxu0 0.0
    %5289 = vmatprep.subr.mxu0 0.0
    %5290 = vmatpush1.msra.mxu0 0.0
    %5291 = vmatprep.subr.mxu0 0.0
    %5292 = vmatpush1.msra.mxu0 0.0
    %5293 = vmatprep.subr.mxu0 0.0
    %5294 = vmatpush1.msra.mxu0 0.0
    %5295 = vmatprep.subr.mxu0 0.0
    %5296 = vmatpush1.msra.mxu0 0.0
    %5297 = vmatprep.subr.mxu0 0.0
    %5298 = vmatpush1.msra.mxu0 0.0
    %5299 = vmatprep.subr.mxu0 0.0
    %5300 = vmatpush1.msra.mxu0 0.0
    %5301 = vmatprep.subr.mxu0 0.0
    %5302 = vmatpush1.msra.mxu0 0.0
    %5303 = vmatprep.subr.mxu0 0.0
    %5304 = vmatpush1.msra.mxu0 0.0
    %5305 = vmatprep.subr.mxu0 0.0
    %5306 = vmatpush1.msra.mxu0 0.0
    %5307 = vmatprep.subr.mxu0 0.0
    %5308 = vmatpush1.msra.mxu0 0.0
    %5309 = vmatprep.subr.mxu0 0.0
    %5310 = vmatpush1.msra.mxu0 0.0
    %5311 = vmatprep.subr.mxu0 0.0
    %5312 = vmatpush1.msra.mxu0 0.0
    %5313 = vmatprep.subr.mxu0 0.0
    %5314 = vmatpush1.msra.mxu0 0.0
    %5315 = vmatprep.subr.mxu0 0.0
    %5316 = vmatpush1.msra.mxu0 0.0
    %5317 = vmatprep.subr.mxu0 0.0
    %5318 = vmatpush1.msra.mxu0 0.0
    %5319 = vmatprep.subr.mxu0 0.0
    %5320 = vmatpush1.msra.mxu0 0.0
    %5321 = vmatprep.subr.mxu0 0.0
    %5322 = vmatpush1.msra.mxu0 0.0
    %5323 = vmatprep.subr.mxu0 0.0
    %5324 = vmatpush1.msra.mxu0 0.0
    %5325 = vmatprep.subr.mxu0 0.0
    %5326 = vmatpush1.msra.mxu0 0.0
    %5327 = vmatprep.subr.mxu0 0.0
    %5328 = vmatpush1.msra.mxu0 0.0
    %5329 = vmatprep.subr.mxu0 0.0
    %5330 = vmatpush1.msra.mxu0 0.0
    %5331 = vmatprep.subr.mxu0 0.0
    %5332 = vmatpush1.msra.mxu0 0.0
    %5333 = vmatprep.subr.mxu0 0.0
    %5334 = vmatpush1.msra.mxu0 0.0
    %5335 = vmatprep.subr.mxu0 0.0
    %5336 = vmatpush1.msra.mxu0 0.0
    %5337 = vmatprep.subr.mxu0 0.0
    %5338 = vmatpush1.msra.mxu0 0.0
    %5339 = vmatprep.subr.mxu0 0.0
    %5340 = vmatpush1.msra.mxu0 0.0
    %5341 = vmatprep.subr.mxu0 0.0
    %5342 = vmatpush1.msra.mxu0 0.0
    %5343 = vmatprep.subr.mxu0 0.0
    %5344 = vmatpush1.msra.mxu0 0.0
    %5345 = vmatprep.mubr.f32.mxu0 0.0
    %5346 = vmatmul.mubr.f32.gmra.mrb[0].mxu0 %v4944
    %v5347 = vpop.f32.mrb[0].mxu0
    %v5348 = vadd.f32 0.0, %v5347
    %v5349 = vpop.f32.mrb[0].mxu0
    %v5350 = vadd.f32 0.0, %v5349
    %5351 = vmatprep.mubr.f32.mxu0 0.0
    %5352 = vmatmul.mubr.f32.gmra.mrb[0].mxu0 %v4947
    %v5353 = vpop.f32.mrb[0].mxu0
    %v5354 = vadd.f32 0.0, %v5353
    %v5355 = vpop.f32.mrb[0].mxu0
    %v5356 = vadd.f32 0.0, %v5355
    %5357 = vdwg.mxu0
    %5358 = vmatprep.subr.mxu0 %v4971
    %5359 = vmatpush1.msra.mxu0 %v4969
    %5360 = vmatprep.subr.mxu0 0.0
    %5361 = vmatpush1.msra.mxu0 0.0
    %5362 = vmatprep.subr.mxu0 0.0
    %5363 = vmatpush1.msra.mxu0 0.0
    %5364 = vmatprep.subr.mxu0 0.0
    %5365 = vmatpush1.msra.mxu0 0.0
    %5366 = vmatprep.subr.mxu0 0.0
    %5367 = vmatpush1.msra.mxu0 0.0
    %5368 = vmatprep.subr.mxu0 0.0
    %5369 = vmatpush1.msra.mxu0 0.0
    %5370 = vmatprep.subr.mxu0 0.0
    %5371 = vmatpush1.msra.mxu0 0.0
    %5372 = vmatprep.subr.mxu0 0.0
    %5373 = vmatpush1.msra.mxu0 0.0
    %5374 = vmatprep.subr.mxu0 0.0
    %5375 = vmatpush1.msra.mxu0 0.0
    %5376 = vmatprep.subr.mxu0 0.0
    %5377 = vmatpush1.msra.mxu0 0.0
    %5378 = vmatprep.subr.mxu0 0.0
    %5379 = vmatpush1.msra.mxu0 0.0
    %5380 = vmatprep.subr.mxu0 0.0
    %5381 = vmatpush1.msra.mxu0 0.0
    %5382 = vmatprep.subr.mxu0 0.0
    %5383 = vmatpush1.msra.mxu0 0.0
    %5384 = vmatprep.subr.mxu0 0.0
    %5385 = vmatpush1.msra.mxu0 0.0
    %5386 = vmatprep.subr.mxu0 0.0
    %5387 = vmatpush1.msra.mxu0 0.0
    %5388 = vmatprep.subr.mxu0 0.0
    %5389 = vmatpush1.msra.mxu0 0.0
    %5390 = vmatprep.subr.mxu0 0.0
    %5391 = vmatpush1.msra.mxu0 0.0
    %5392 = vmatprep.subr.mxu0 0.0
    %5393 = vmatpush1.msra.mxu0 0.0
    %5394 = vmatprep.subr.mxu0 0.0
    %5395 = vmatpush1.msra.mxu0 0.0
    %5396 = vmatprep.subr.mxu0 0.0
    %5397 = vmatpush1.msra.mxu0 0.0
    %5398 = vmatprep.subr.mxu0 0.0
    %5399 = vmatpush1.msra.mxu0 0.0
    %5400 = vmatprep.subr.mxu0 0.0
    %5401 = vmatpush1.msra.mxu0 0.0
    %5402 = vmatprep.subr.mxu0 0.0
    %5403 = vmatpush1.msra.mxu0 0.0
    %5404 = vmatprep.subr.mxu0 0.0
    %5405 = vmatpush1.msra.mxu0 0.0
    %5406 = vmatprep.subr.mxu0 0.0
    %5407 = vmatpush1.msra.mxu0 0.0
    %5408 = vmatprep.subr.mxu0 0.0
    %5409 = vmatpush1.msra.mxu0 0.0
    %5410 = vmatprep.subr.mxu0 0.0
    %5411 = vmatpush1.msra.mxu0 0.0
    %5412 = vmatprep.subr.mxu0 0.0
    %5413 = vmatpush1.msra.mxu0 0.0
    %5414 = vmatprep.subr.mxu0 0.0
    %5415 = vmatpush1.msra.mxu0 0.0
    %5416 = vmatprep.subr.mxu0 0.0
    %5417 = vmatpush1.msra.mxu0 0.0
    %5418 = vmatprep.subr.mxu0 0.0
    %5419 = vmatpush1.msra.mxu0 0.0
    %5420 = vmatprep.subr.mxu0 0.0
    %5421 = vmatpush1.msra.mxu0 0.0
    %5422 = vmatprep.mubr.f32.mxu0 0.0
    %5423 = vmatmul.mubr.f32.gmra.mrb[0].mxu0 %v4944
    %v5424 = vpop.f32.mrb[0].mxu0
    %v5425 = vadd.f32 0.0, %v5424
    %v5426 = vpop.f32.mrb[0].mxu0
    %v5427 = vadd.f32 0.0, %v5426
    %5428 = vmatprep.mubr.f32.mxu0 0.0
    %5429 = vmatmul.mubr.f32.gmra.mrb[0].mxu0 %v4947
    %v5430 = vpop.f32.mrb[0].mxu0
    %v5431 = vadd.f32 0.0, %v5430
    %v5432 = vpop.f32.mrb[0].mxu0
    %v5433 = vadd.f32 0.0, %v5432
    %5434 = vdwg.mxu0
    %v5435 = vadd.f32 %v4876, %v5040
    %v5436 = vadd.f32 %v4877, %v5042
    %v5437 = vadd.f32 %v4878, %v5117
    %v5438 = vadd.f32 %v4879, %v5119
    %v5439 = vadd.f32 %v4880, %v5194
    %v5440 = vadd.f32 %v4881, %v5196
    %v5441 = vadd.f32 %v4882, %v5271
    %v5442 = vadd.f32 %v4883, %v5273
    %v5443 = vadd.f32 %v4884, %v5348
    %v5444 = vadd.f32 %v4885, %v5350
    %v5445 = vadd.f32 %v4886, %v5425
    %v5446 = vadd.f32 %v4887, %v5427
    %v5447 = vadd.f32 %v4888, %v5046
    %v5448 = vadd.f32 %v4889, %v5048
    %v5449 = vadd.f32 %v4890, %v5123
    %v5450 = vadd.f32 %v4891, %v5125
    %v5451 = vadd.f32 %v4892, %v5200
    %v5452 = vadd.f32 %v4893, %v5202
    %v5453 = vadd.f32 %v4894, %v5277
    %v5454 = vadd.f32 %v4895, %v5279
    %v5455 = vadd.f32 %v4896, %v5354
    %v5456 = vadd.f32 %v4897, %v5356
    %v5457 = vadd.f32 %v4898, %v5431
    %v5458 = vadd.f32 %v4899, %v5433
    %s5459 = scalar_lea.vmem %s3, 128
    %v5460 = vld [vmem:[%s5459] sm:$0xff]
    %v5461 = vld [vmem:[%s5459 + $0x8] sm:$0xff]
    %5462 = vrot.lane.b32.xlu0 %v1076, 12
    %v5463 = vpop.permute.xlu0 %5462
    %5464 = vrot.lane.b32.xlu0 %v1077, 12
    %v5465 = vpop.permute.xlu0 %5464
    %5466 = vrot.lane.b32.xlu0 %v1078, 12
    %v5467 = vpop.permute.xlu0 %5466
    %5468 = vrot.lane.b32.xlu0 %v1079, 12
    %v5469 = vpop.permute.xlu0 %5468
    %5470 = vrot.lane.b32.xlu0 %v1080, 12
    %v5471 = vpop.permute.xlu0 %5470
    %5472 = vrot.lane.b32.xlu0 %v1081, 12
    %v5473 = vpop.permute.xlu0 %5472
    %5474 = vrot.lane.b32.xlu0 %v1082, 12
    %v5475 = vpop.permute.xlu0 %5474
    %5476 = vrot.lane.b32.xlu0 %v1083, 12
    %v5477 = vpop.permute.xlu0 %5476
    %5478 = vrot.lane.b32.xlu0 %v1084, 12
    %v5479 = vpop.permute.xlu0 %5478
    %5480 = vrot.lane.b32.xlu0 %v1085, 12
    %v5481 = vpop.permute.xlu0 %5480
    %5482 = vrot.lane.b32.xlu0 %v1086, 12
    %v5483 = vpop.permute.xlu0 %5482
    %5484 = vrot.lane.b32.xlu0 %v1087, 12
    %v5485 = vpop.permute.xlu0 %5484
    %5486 = vrot.lane.b32.xlu0 %v1088, 12
    %v5487 = vpop.permute.xlu0 %5486
    %vm5488 = vcmask 97280
    %v5489 = vsel %vm5488, %v5463, %v5465
    %v5490 = vsel %vm5488, %v5465, %v5467
    %v5491 = vsel %vm5488, %v5467, %v5469
    %v5492 = vsel %vm5488, %v5469, %v5471
    %v5493 = vsel %vm5488, %v5471, %v5473
    %v5494 = vsel %vm5488, %v5473, %v5475
    %v5495 = vsel %vm5488, %v5475, %v5477
    %v5496 = vsel %vm5488, %v5477, %v5479
    %v5497 = vsel %vm5488, %v5479, %v5481
    %v5498 = vsel %vm5488, %v5481, %v5483
    %v5499 = vsel %vm5488, %v5483, %v5485
    %v5500 = vsel %vm5488, %v5485, %v5487
    %v5502 = vsel %vm1141, %v5460, 0
    %v5505 = vsel %vm1141, %v5461, 0
    %v5507 = vsel %vm1148, %v5489, 0
    %v5509 = vsel %vm1148, %v5490, 0
    %v5511 = vsel %vm1148, %v5491, 0
    %v5513 = vsel %vm1148, %v5492, 0
    %v5515 = vsel %vm1148, %v5493, 0
    %v5517 = vsel %vm1148, %v5494, 0
    %v5519 = vsel %vm1148, %v5495, 0
    %v5521 = vsel %vm1148, %v5496, 0
    %v5523 = vsel %vm1148, %v5497, 0
    %v5525 = vsel %vm1148, %v5498, 0
    %v5527 = vsel %vm1148, %v5499, 0
    %v5529 = vsel %vm1148, %v5500, 0
    %5531 = vmatprep.subr.mxu0 %v5509
    %5532 = vmatpush1.msra.mxu0 %v5507
    %5533 = vmatprep.subr.mxu0 0.0
    %5534 = vmatpush1.msra.mxu0 0.0
    %5535 = vmatprep.subr.mxu0 0.0
    %5536 = vmatpush1.msra.mxu0 0.0
    %5537 = vmatprep.subr.mxu0 0.0
    %5538 = vmatpush1.msra.mxu0 0.0
    %5539 = vmatprep.subr.mxu0 0.0
    %5540 = vmatpush1.msra.mxu0 0.0
    %5541 = vmatprep.subr.mxu0 0.0
    %5542 = vmatpush1.msra.mxu0 0.0
    %5543 = vmatprep.subr.mxu0 0.0
    %5544 = vmatpush1.msra.mxu0 0.0
    %5545 = vmatprep.subr.mxu0 0.0
    %5546 = vmatpush1.msra.mxu0 0.0
    %5547 = vmatprep.subr.mxu0 0.0
    %5548 = vmatpush1.msra.mxu0 0.0
    %5549 = vmatprep.subr.mxu0 0.0
    %5550 = vmatpush1.msra.mxu0 0.0
    %5551 = vmatprep.subr.mxu0 0.0
    %5552 = vmatpush1.msra.mxu0 0.0
    %5553 = vmatprep.subr.mxu0 0.0
    %5554 = vmatpush1.msra.mxu0 0.0
    %5555 = vmatprep.subr.mxu0 0.0
    %5556 = vmatpush1.msra.mxu0 0.0
    %5557 = vmatprep.subr.mxu0 0.0
    %5558 = vmatpush1.msra.mxu0 0.0
    %5559 = vmatprep.subr.mxu0 0.0
    %5560 = vmatpush1.msra.mxu0 0.0
    %5561 = vmatprep.subr.mxu0 0.0
    %5562 = vmatpush1.msra.mxu0 0.0
    %5563 = vmatprep.subr.mxu0 0.0
    %5564 = vmatpush1.msra.mxu0 0.0
    %5565 = vmatprep.subr.mxu0 0.0
    %5566 = vmatpush1.msra.mxu0 0.0
    %5567 = vmatprep.subr.mxu0 0.0
    %5568 = vmatpush1.msra.mxu0 0.0
    %5569 = vmatprep.subr.mxu0 0.0
    %5570 = vmatpush1.msra.mxu0 0.0
    %5571 = vmatprep.subr.mxu0 0.0
    %5572 = vmatpush1.msra.mxu0 0.0
    %5573 = vmatprep.subr.mxu0 0.0
    %5574 = vmatpush1.msra.mxu0 0.0
    %5575 = vmatprep.subr.mxu0 0.0
    %5576 = vmatpush1.msra.mxu0 0.0
    %5577 = vmatprep.subr.mxu0 0.0
    %5578 = vmatpush1.msra.mxu0 0.0
    %5579 = vmatprep.subr.mxu0 0.0
    %5580 = vmatpush1.msra.mxu0 0.0
    %5581 = vmatprep.subr.mxu0 0.0
    %5582 = vmatpush1.msra.mxu0 0.0
    %5583 = vmatprep.subr.mxu0 0.0
    %5584 = vmatpush1.msra.mxu0 0.0
    %5585 = vmatprep.subr.mxu0 0.0
    %5586 = vmatpush1.msra.mxu0 0.0
    %5587 = vmatprep.subr.mxu0 0.0
    %5588 = vmatpush1.msra.mxu0 0.0
    %5589 = vmatprep.subr.mxu0 0.0
    %5590 = vmatpush1.msra.mxu0 0.0
    %5591 = vmatprep.subr.mxu0 0.0
    %5592 = vmatpush1.msra.mxu0 0.0
    %5593 = vmatprep.subr.mxu0 0.0
    %5594 = vmatpush1.msra.mxu0 0.0
    %5595 = vmatprep.mubr.f32.mxu0 0.0
    %5596 = vmatmul.mubr.f32.gmra.mrb[0].mxu0 %v5502
    %v5597 = vpop.f32.mrb[0].mxu0
    %v5598 = vadd.f32 0.0, %v5597
    %v5599 = vpop.f32.mrb[0].mxu0
    %v5600 = vadd.f32 0.0, %v5599
    %5601 = vmatprep.mubr.f32.mxu0 0.0
    %5602 = vmatmul.mubr.f32.gmra.mrb[0].mxu0 %v5505
    %v5603 = vpop.f32.mrb[0].mxu0
    %v5604 = vadd.f32 0.0, %v5603
    %v5605 = vpop.f32.mrb[0].mxu0
    %v5606 = vadd.f32 0.0, %v5605
    %5607 = vdwg.mxu0
    %5608 = vmatprep.subr.mxu0 %v5513
    %5609 = vmatpush1.msra.mxu0 %v5511
    %5610 = vmatprep.subr.mxu0 0.0
    %5611 = vmatpush1.msra.mxu0 0.0
    %5612 = vmatprep.subr.mxu0 0.0
    %5613 = vmatpush1.msra.mxu0 0.0
    %5614 = vmatprep.subr.mxu0 0.0
    %5615 = vmatpush1.msra.mxu0 0.0
    %5616 = vmatprep.subr.mxu0 0.0
    %5617 = vmatpush1.msra.mxu0 0.0
    %5618 = vmatprep.subr.mxu0 0.0
    %5619 = vmatpush1.msra.mxu0 0.0
    %5620 = vmatprep.subr.mxu0 0.0
    %5621 = vmatpush1.msra.mxu0 0.0
    %5622 = vmatprep.subr.mxu0 0.0
    %5623 = vmatpush1.msra.mxu0 0.0
    %5624 = vmatprep.subr.mxu0 0.0
    %5625 = vmatpush1.msra.mxu0 0.0
    %5626 = vmatprep.subr.mxu0 0.0
    %5627 = vmatpush1.msra.mxu0 0.0
    %5628 = vmatprep.subr.mxu0 0.0
    %5629 = vmatpush1.msra.mxu0 0.0
    %5630 = vmatprep.subr.mxu0 0.0
    %5631 = vmatpush1.msra.mxu0 0.0
    %5632 = vmatprep.subr.mxu0 0.0
    %5633 = vmatpush1.msra.mxu0 0.0
    %5634 = vmatprep.subr.mxu0 0.0
    %5635 = vmatpush1.msra.mxu0 0.0
    %5636 = vmatprep.subr.mxu0 0.0
    %5637 = vmatpush1.msra.mxu0 0.0
    %5638 = vmatprep.subr.mxu0 0.0
    %5639 = vmatpush1.msra.mxu0 0.0
    %5640 = vmatprep.subr.mxu0 0.0
    %5641 = vmatpush1.msra.mxu0 0.0
    %5642 = vmatprep.subr.mxu0 0.0
    %5643 = vmatpush1.msra.mxu0 0.0
    %5644 = vmatprep.subr.mxu0 0.0
    %5645 = vmatpush1.msra.mxu0 0.0
    %5646 = vmatprep.subr.mxu0 0.0
    %5647 = vmatpush1.msra.mxu0 0.0
    %5648 = vmatprep.subr.mxu0 0.0
    %5649 = vmatpush1.msra.mxu0 0.0
    %5650 = vmatprep.subr.mxu0 0.0
    %5651 = vmatpush1.msra.mxu0 0.0
    %5652 = vmatprep.subr.mxu0 0.0
    %5653 = vmatpush1.msra.mxu0 0.0
    %5654 = vmatprep.subr.mxu0 0.0
    %5655 = vmatpush1.msra.mxu0 0.0
    %5656 = vmatprep.subr.mxu0 0.0
    %5657 = vmatpush1.msra.mxu0 0.0
    %5658 = vmatprep.subr.mxu0 0.0
    %5659 = vmatpush1.msra.mxu0 0.0
    %5660 = vmatprep.subr.mxu0 0.0
    %5661 = vmatpush1.msra.mxu0 0.0
    %5662 = vmatprep.subr.mxu0 0.0
    %5663 = vmatpush1.msra.mxu0 0.0
    %5664 = vmatprep.subr.mxu0 0.0
    %5665 = vmatpush1.msra.mxu0 0.0
    %5666 = vmatprep.subr.mxu0 0.0
    %5667 = vmatpush1.msra.mxu0 0.0
    %5668 = vmatprep.subr.mxu0 0.0
    %5669 = vmatpush1.msra.mxu0 0.0
    %5670 = vmatprep.subr.mxu0 0.0
    %5671 = vmatpush1.msra.mxu0 0.0
    %5672 = vmatprep.mubr.f32.mxu0 0.0
    %5673 = vmatmul.mubr.f32.gmra.mrb[0].mxu0 %v5502
    %v5674 = vpop.f32.mrb[0].mxu0
    %v5675 = vadd.f32 0.0, %v5674
    %v5676 = vpop.f32.mrb[0].mxu0
    %v5677 = vadd.f32 0.0, %v5676
    %5678 = vmatprep.mubr.f32.mxu0 0.0
    %5679 = vmatmul.mubr.f32.gmra.mrb[0].mxu0 %v5505
    %v5680 = vpop.f32.mrb[0].mxu0
    %v5681 = vadd.f32 0.0, %v5680
    %v5682 = vpop.f32.mrb[0].mxu0
    %v5683 = vadd.f32 0.0, %v5682
    %5684 = vdwg.mxu0
    %5685 = vmatprep.subr.mxu0 %v5517
    %5686 = vmatpush1.msra.mxu0 %v5515
    %5687 = vmatprep.subr.mxu0 0.0
    %5688 = vmatpush1.msra.mxu0 0.0
    %5689 = vmatprep.subr.mxu0 0.0
    %5690 = vmatpush1.msra.mxu0 0.0
    %5691 = vmatprep.subr.mxu0 0.0
    %5692 = vmatpush1.msra.mxu0 0.0
    %5693 = vmatprep.subr.mxu0 0.0
    %5694 = vmatpush1.msra.mxu0 0.0
    %5695 = vmatprep.subr.mxu0 0.0
    %5696 = vmatpush1.msra.mxu0 0.0
    %5697 = vmatprep.subr.mxu0 0.0
    %5698 = vmatpush1.msra.mxu0 0.0
    %5699 = vmatprep.subr.mxu0 0.0
    %5700 = vmatpush1.msra.mxu0 0.0
    %5701 = vmatprep.subr.mxu0 0.0
    %5702 = vmatpush1.msra.mxu0 0.0
    %5703 = vmatprep.subr.mxu0 0.0
    %5704 = vmatpush1.msra.mxu0 0.0
    %5705 = vmatprep.subr.mxu0 0.0
    %5706 = vmatpush1.msra.mxu0 0.0
    %5707 = vmatprep.subr.mxu0 0.0
    %5708 = vmatpush1.msra.mxu0 0.0
    %5709 = vmatprep.subr.mxu0 0.0
    %5710 = vmatpush1.msra.mxu0 0.0
    %5711 = vmatprep.subr.mxu0 0.0
    %5712 = vmatpush1.msra.mxu0 0.0
    %5713 = vmatprep.subr.mxu0 0.0
    %5714 = vmatpush1.msra.mxu0 0.0
    %5715 = vmatprep.subr.mxu0 0.0
    %5716 = vmatpush1.msra.mxu0 0.0
    %5717 = vmatprep.subr.mxu0 0.0
    %5718 = vmatpush1.msra.mxu0 0.0
    %5719 = vmatprep.subr.mxu0 0.0
    %5720 = vmatpush1.msra.mxu0 0.0
    %5721 = vmatprep.subr.mxu0 0.0
    %5722 = vmatpush1.msra.mxu0 0.0
    %5723 = vmatprep.subr.mxu0 0.0
    %5724 = vmatpush1.msra.mxu0 0.0
    %5725 = vmatprep.subr.mxu0 0.0
    %5726 = vmatpush1.msra.mxu0 0.0
    %5727 = vmatprep.subr.mxu0 0.0
    %5728 = vmatpush1.msra.mxu0 0.0
    %5729 = vmatprep.subr.mxu0 0.0
    %5730 = vmatpush1.msra.mxu0 0.0
    %5731 = vmatprep.subr.mxu0 0.0
    %5732 = vmatpush1.msra.mxu0 0.0
    %5733 = vmatprep.subr.mxu0 0.0
    %5734 = vmatpush1.msra.mxu0 0.0
    %5735 = vmatprep.subr.mxu0 0.0
    %5736 = vmatpush1.msra.mxu0 0.0
    %5737 = vmatprep.subr.mxu0 0.0
    %5738 = vmatpush1.msra.mxu0 0.0
    %5739 = vmatprep.subr.mxu0 0.0
    %5740 = vmatpush1.msra.mxu0 0.0
    %5741 = vmatprep.subr.mxu0 0.0
    %5742 = vmatpush1.msra.mxu0 0.0
    %5743 = vmatprep.subr.mxu0 0.0
    %5744 = vmatpush1.msra.mxu0 0.0
    %5745 = vmatprep.subr.mxu0 0.0
    %5746 = vmatpush1.msra.mxu0 0.0
    %5747 = vmatprep.subr.mxu0 0.0
    %5748 = vmatpush1.msra.mxu0 0.0
    %5749 = vmatprep.mubr.f32.mxu0 0.0
    %5750 = vmatmul.mubr.f32.gmra.mrb[0].mxu0 %v5502
    %v5751 = vpop.f32.mrb[0].mxu0
    %v5752 = vadd.f32 0.0, %v5751
    %v5753 = vpop.f32.mrb[0].mxu0
    %v5754 = vadd.f32 0.0, %v5753
    %5755 = vmatprep.mubr.f32.mxu0 0.0
    %5756 = vmatmul.mubr.f32.gmra.mrb[0].mxu0 %v5505
    %v5757 = vpop.f32.mrb[0].mxu0
    %v5758 = vadd.f32 0.0, %v5757
    %v5759 = vpop.f32.mrb[0].mxu0
    %v5760 = vadd.f32 0.0, %v5759
    %5761 = vdwg.mxu0
    %5762 = vmatprep.subr.mxu0 %v5521
    %5763 = vmatpush1.msra.mxu0 %v5519
    %5764 = vmatprep.subr.mxu0 0.0
    %5765 = vmatpush1.msra.mxu0 0.0
    %5766 = vmatprep.subr.mxu0 0.0
    %5767 = vmatpush1.msra.mxu0 0.0
    %5768 = vmatprep.subr.mxu0 0.0
    %5769 = vmatpush1.msra.mxu0 0.0
    %5770 = vmatprep.subr.mxu0 0.0
    %5771 = vmatpush1.msra.mxu0 0.0
    %5772 = vmatprep.subr.mxu0 0.0
    %5773 = vmatpush1.msra.mxu0 0.0
    %5774 = vmatprep.subr.mxu0 0.0
    %5775 = vmatpush1.msra.mxu0 0.0
    %5776 = vmatprep.subr.mxu0 0.0
    %5777 = vmatpush1.msra.mxu0 0.0
    %5778 = vmatprep.subr.mxu0 0.0
    %5779 = vmatpush1.msra.mxu0 0.0
    %5780 = vmatprep.subr.mxu0 0.0
    %5781 = vmatpush1.msra.mxu0 0.0
    %5782 = vmatprep.subr.mxu0 0.0
    %5783 = vmatpush1.msra.mxu0 0.0
    %5784 = vmatprep.subr.mxu0 0.0
    %5785 = vmatpush1.msra.mxu0 0.0
    %5786 = vmatprep.subr.mxu0 0.0
    %5787 = vmatpush1.msra.mxu0 0.0
    %5788 = vmatprep.subr.mxu0 0.0
    %5789 = vmatpush1.msra.mxu0 0.0
    %5790 = vmatprep.subr.mxu0 0.0
    %5791 = vmatpush1.msra.mxu0 0.0
    %5792 = vmatprep.subr.mxu0 0.0
    %5793 = vmatpush1.msra.mxu0 0.0
    %5794 = vmatprep.subr.mxu0 0.0
    %5795 = vmatpush1.msra.mxu0 0.0
    %5796 = vmatprep.subr.mxu0 0.0
    %5797 = vmatpush1.msra.mxu0 0.0
    %5798 = vmatprep.subr.mxu0 0.0
    %5799 = vmatpush1.msra.mxu0 0.0
    %5800 = vmatprep.subr.mxu0 0.0
    %5801 = vmatpush1.msra.mxu0 0.0
    %5802 = vmatprep.subr.mxu0 0.0
    %5803 = vmatpush1.msra.mxu0 0.0
    %5804 = vmatprep.subr.mxu0 0.0
    %5805 = vmatpush1.msra.mxu0 0.0
    %5806 = vmatprep.subr.mxu0 0.0
    %5807 = vmatpush1.msra.mxu0 0.0
    %5808 = vmatprep.subr.mxu0 0.0
    %5809 = vmatpush1.msra.mxu0 0.0
    %5810 = vmatprep.subr.mxu0 0.0
    %5811 = vmatpush1.msra.mxu0 0.0
    %5812 = vmatprep.subr.mxu0 0.0
    %5813 = vmatpush1.msra.mxu0 0.0
    %5814 = vmatprep.subr.mxu0 0.0
    %5815 = vmatpush1.msra.mxu0 0.0
    %5816 = vmatprep.subr.mxu0 0.0
    %5817 = vmatpush1.msra.mxu0 0.0
    %5818 = vmatprep.subr.mxu0 0.0
    %5819 = vmatpush1.msra.mxu0 0.0
    %5820 = vmatprep.subr.mxu0 0.0
    %5821 = vmatpush1.msra.mxu0 0.0
    %5822 = vmatprep.subr.mxu0 0.0
    %5823 = vmatpush1.msra.mxu0 0.0
    %5824 = vmatprep.subr.mxu0 0.0
    %5825 = vmatpush1.msra.mxu0 0.0
    %5826 = vmatprep.mubr.f32.mxu0 0.0
    %5827 = vmatmul.mubr.f32.gmra.mrb[0].mxu0 %v5502
    %v5828 = vpop.f32.mrb[0].mxu0
    %v5829 = vadd.f32 0.0, %v5828
    %v5830 = vpop.f32.mrb[0].mxu0
    %v5831 = vadd.f32 0.0, %v5830
    %5832 = vmatprep.mubr.f32.mxu0 0.0
    %5833 = vmatmul.mubr.f32.gmra.mrb[0].mxu0 %v5505
    %v5834 = vpop.f32.mrb[0].mxu0
    %v5835 = vadd.f32 0.0, %v5834
    %v5836 = vpop.f32.mrb[0].mxu0
    %v5837 = vadd.f32 0.0, %v5836
    %5838 = vdwg.mxu0
    %5839 = vmatprep.subr.mxu0 %v5525
    %5840 = vmatpush1.msra.mxu0 %v5523
    %5841 = vmatprep.subr.mxu0 0.0
    %5842 = vmatpush1.msra.mxu0 0.0
    %5843 = vmatprep.subr.mxu0 0.0
    %5844 = vmatpush1.msra.mxu0 0.0
    %5845 = vmatprep.subr.mxu0 0.0
    %5846 = vmatpush1.msra.mxu0 0.0
    %5847 = vmatprep.subr.mxu0 0.0
    %5848 = vmatpush1.msra.mxu0 0.0
    %5849 = vmatprep.subr.mxu0 0.0
    %5850 = vmatpush1.msra.mxu0 0.0
    %5851 = vmatprep.subr.mxu0 0.0
    %5852 = vmatpush1.msra.mxu0 0.0
    %5853 = vmatprep.subr.mxu0 0.0
    %5854 = vmatpush1.msra.mxu0 0.0
    %5855 = vmatprep.subr.mxu0 0.0
    %5856 = vmatpush1.msra.mxu0 0.0
    %5857 = vmatprep.subr.mxu0 0.0
    %5858 = vmatpush1.msra.mxu0 0.0
    %5859 = vmatprep.subr.mxu0 0.0
    %5860 = vmatpush1.msra.mxu0 0.0
    %5861 = vmatprep.subr.mxu0 0.0
    %5862 = vmatpush1.msra.mxu0 0.0
    %5863 = vmatprep.subr.mxu0 0.0
    %5864 = vmatpush1.msra.mxu0 0.0
    %5865 = vmatprep.subr.mxu0 0.0
    %5866 = vmatpush1.msra.mxu0 0.0
    %5867 = vmatprep.subr.mxu0 0.0
    %5868 = vmatpush1.msra.mxu0 0.0
    %5869 = vmatprep.subr.mxu0 0.0
    %5870 = vmatpush1.msra.mxu0 0.0
    %5871 = vmatprep.subr.mxu0 0.0
    %5872 = vmatpush1.msra.mxu0 0.0
    %5873 = vmatprep.subr.mxu0 0.0
    %5874 = vmatpush1.msra.mxu0 0.0
    %5875 = vmatprep.subr.mxu0 0.0
    %5876 = vmatpush1.msra.mxu0 0.0
    %5877 = vmatprep.subr.mxu0 0.0
    %5878 = vmatpush1.msra.mxu0 0.0
    %5879 = vmatprep.subr.mxu0 0.0
    %5880 = vmatpush1.msra.mxu0 0.0
    %5881 = vmatprep.subr.mxu0 0.0
    %5882 = vmatpush1.msra.mxu0 0.0
    %5883 = vmatprep.subr.mxu0 0.0
    %5884 = vmatpush1.msra.mxu0 0.0
    %5885 = vmatprep.subr.mxu0 0.0
    %5886 = vmatpush1.msra.mxu0 0.0
    %5887 = vmatprep.subr.mxu0 0.0
    %5888 = vmatpush1.msra.mxu0 0.0
    %5889 = vmatprep.subr.mxu0 0.0
    %5890 = vmatpush1.msra.mxu0 0.0
    %5891 = vmatprep.subr.mxu0 0.0
    %5892 = vmatpush1.msra.mxu0 0.0
    %5893 = vmatprep.subr.mxu0 0.0
    %5894 = vmatpush1.msra.mxu0 0.0
    %5895 = vmatprep.subr.mxu0 0.0
    %5896 = vmatpush1.msra.mxu0 0.0
    %5897 = vmatprep.subr.mxu0 0.0
    %5898 = vmatpush1.msra.mxu0 0.0
    %5899 = vmatprep.subr.mxu0 0.0
    %5900 = vmatpush1.msra.mxu0 0.0
    %5901 = vmatprep.subr.mxu0 0.0
    %5902 = vmatpush1.msra.mxu0 0.0
    %5903 = vmatprep.mubr.f32.mxu0 0.0
    %5904 = vmatmul.mubr.f32.gmra.mrb[0].mxu0 %v5502
    %v5905 = vpop.f32.mrb[0].mxu0
    %v5906 = vadd.f32 0.0, %v5905
    %v5907 = vpop.f32.mrb[0].mxu0
    %v5908 = vadd.f32 0.0, %v5907
    %5909 = vmatprep.mubr.f32.mxu0 0.0
    %5910 = vmatmul.mubr.f32.gmra.mrb[0].mxu0 %v5505
    %v5911 = vpop.f32.mrb[0].mxu0
    %v5912 = vadd.f32 0.0, %v5911
    %v5913 = vpop.f32.mrb[0].mxu0
    %v5914 = vadd.f32 0.0, %v5913
    %5915 = vdwg.mxu0
    %5916 = vmatprep.subr.mxu0 %v5529
    %5917 = vmatpush1.msra.mxu0 %v5527
    %5918 = vmatprep.subr.mxu0 0.0
    %5919 = vmatpush1.msra.mxu0 0.0
    %5920 = vmatprep.subr.mxu0 0.0
    %5921 = vmatpush1.msra.mxu0 0.0
    %5922 = vmatprep.subr.mxu0 0.0
    %5923 = vmatpush1.msra.mxu0 0.0
    %5924 = vmatprep.subr.mxu0 0.0
    %5925 = vmatpush1.msra.mxu0 0.0
    %5926 = vmatprep.subr.mxu0 0.0
    %5927 = vmatpush1.msra.mxu0 0.0
    %5928 = vmatprep.subr.mxu0 0.0
    %5929 = vmatpush1.msra.mxu0 0.0
    %5930 = vmatprep.subr.mxu0 0.0
    %5931 = vmatpush1.msra.mxu0 0.0
    %5932 = vmatprep.subr.mxu0 0.0
    %5933 = vmatpush1.msra.mxu0 0.0
    %5934 = vmatprep.subr.mxu0 0.0
    %5935 = vmatpush1.msra.mxu0 0.0
    %5936 = vmatprep.subr.mxu0 0.0
    %5937 = vmatpush1.msra.mxu0 0.0
    %5938 = vmatprep.subr.mxu0 0.0
    %5939 = vmatpush1.msra.mxu0 0.0
    %5940 = vmatprep.subr.mxu0 0.0
    %5941 = vmatpush1.msra.mxu0 0.0
    %5942 = vmatprep.subr.mxu0 0.0
    %5943 = vmatpush1.msra.mxu0 0.0
    %5944 = vmatprep.subr.mxu0 0.0
    %5945 = vmatpush1.msra.mxu0 0.0
    %5946 = vmatprep.subr.mxu0 0.0
    %5947 = vmatpush1.msra.mxu0 0.0
    %5948 = vmatprep.subr.mxu0 0.0
    %5949 = vmatpush1.msra.mxu0 0.0
    %5950 = vmatprep.subr.mxu0 0.0
    %5951 = vmatpush1.msra.mxu0 0.0
    %5952 = vmatprep.subr.mxu0 0.0
    %5953 = vmatpush1.msra.mxu0 0.0
    %5954 = vmatprep.subr.mxu0 0.0
    %5955 = vmatpush1.msra.mxu0 0.0
    %5956 = vmatprep.subr.mxu0 0.0
    %5957 = vmatpush1.msra.mxu0 0.0
    %5958 = vmatprep.subr.mxu0 0.0
    %5959 = vmatpush1.msra.mxu0 0.0
    %5960 = vmatprep.subr.mxu0 0.0
    %5961 = vmatpush1.msra.mxu0 0.0
    %5962 = vmatprep.subr.mxu0 0.0
    %5963 = vmatpush1.msra.mxu0 0.0
    %5964 = vmatprep.subr.mxu0 0.0
    %5965 = vmatpush1.msra.mxu0 0.0
    %5966 = vmatprep.subr.mxu0 0.0
    %5967 = vmatpush1.msra.mxu0 0.0
    %5968 = vmatprep.subr.mxu0 0.0
    %5969 = vmatpush1.msra.mxu0 0.0
    %5970 = vmatprep.subr.mxu0 0.0
    %5971 = vmatpush1.msra.mxu0 0.0
    %5972 = vmatprep.subr.mxu0 0.0
    %5973 = vmatpush1.msra.mxu0 0.0
    %5974 = vmatprep.subr.mxu0 0.0
    %5975 = vmatpush1.msra.mxu0 0.0
    %5976 = vmatprep.subr.mxu0 0.0
    %5977 = vmatpush1.msra.mxu0 0.0
    %5978 = vmatprep.subr.mxu0 0.0
    %5979 = vmatpush1.msra.mxu0 0.0
    %5980 = vmatprep.mubr.f32.mxu0 0.0
    %5981 = vmatmul.mubr.f32.gmra.mrb[0].mxu0 %v5502
    %v5982 = vpop.f32.mrb[0].mxu0
    %v5983 = vadd.f32 0.0, %v5982
    %v5984 = vpop.f32.mrb[0].mxu0
    %v5985 = vadd.f32 0.0, %v5984
    %5986 = vmatprep.mubr.f32.mxu0 0.0
    %5987 = vmatmul.mubr.f32.gmra.mrb[0].mxu0 %v5505
    %v5988 = vpop.f32.mrb[0].mxu0
    %v5989 = vadd.f32 0.0, %v5988
    %v5990 = vpop.f32.mrb[0].mxu0
    %v5991 = vadd.f32 0.0, %v5990
    %5992 = vdwg.mxu0
    %v5993 = vadd.f32 %v5435, %v5598
    %v5994 = vadd.f32 %v5436, %v5600
    %v5995 = vadd.f32 %v5437, %v5675
    %v5996 = vadd.f32 %v5438, %v5677
    %v5997 = vadd.f32 %v5439, %v5752
    %v5998 = vadd.f32 %v5440, %v5754
    %v5999 = vadd.f32 %v5441, %v5829
    %v6000 = vadd.f32 %v5442, %v5831
    %v6001 = vadd.f32 %v5443, %v5906
    %v6002 = vadd.f32 %v5444, %v5908
    %v6003 = vadd.f32 %v5445, %v5983
    %v6004 = vadd.f32 %v5446, %v5985
    %v6005 = vadd.f32 %v5447, %v5604
    %v6006 = vadd.f32 %v5448, %v5606
    %v6007 = vadd.f32 %v5449, %v5681
    %v6008 = vadd.f32 %v5450, %v5683
    %v6009 = vadd.f32 %v5451, %v5758
    %v6010 = vadd.f32 %v5452, %v5760
    %v6011 = vadd.f32 %v5453, %v5835
    %v6012 = vadd.f32 %v5454, %v5837
    %v6013 = vadd.f32 %v5455, %v5912
    %v6014 = vadd.f32 %v5456, %v5914
    %v6015 = vadd.f32 %v5457, %v5989
    %v6016 = vadd.f32 %v5458, %v5991
    %v6017 = vld [vmem:[%s4] sm:$0xff]
    %v6018 = vld [vmem:[%s4 + $0x8] sm:$0xff]
    %6020 = vset.pattern.permute.xlu0 0
    %6021 = vperm.xlu0 %6020, %v6017
    %v6022 = vpop.permute.xlu0 %6021
    %6025 = vset.pattern.permute.xlu0 0
    %6026 = vperm.xlu0 %6025, %v6018
    %v6027 = vpop.permute.xlu0 %6026
    %v6029 = vadd.f32 %v5993, %v6022
    %v6030 = vadd.f32 %v5994, %v6022
    %v6031 = vadd.f32 %v5995, %v6022
    %v6032 = vadd.f32 %v5996, %v6022
    %v6033 = vadd.f32 %v5997, %v6022
    %v6034 = vadd.f32 %v5998, %v6022
    %v6035 = vadd.f32 %v5999, %v6022
    %v6036 = vadd.f32 %v6000, %v6022
    %v6037 = vadd.f32 %v6001, %v6022
    %v6038 = vadd.f32 %v6002, %v6022
    %v6039 = vadd.f32 %v6003, %v6022
    %v6040 = vadd.f32 %v6004, %v6022
    %v6041 = vadd.f32 %v6005, %v6027
    %v6042 = vadd.f32 %v6006, %v6027
    %v6043 = vadd.f32 %v6007, %v6027
    %v6044 = vadd.f32 %v6008, %v6027
    %v6045 = vadd.f32 %v6009, %v6027
    %v6046 = vadd.f32 %v6010, %v6027
    %v6047 = vadd.f32 %v6011, %v6027
    %v6048 = vadd.f32 %v6012, %v6027
    %v6049 = vadd.f32 %v6013, %v6027
    %v6050 = vadd.f32 %v6014, %v6027
    %v6051 = vadd.f32 %v6015, %v6027
    %v6052 = vadd.f32 %v6016, %v6027
    %v6053 = vmax.f32 %v6029, 0.0
    %v6054 = vmax.f32 %v6030, 0.0
    %v6055 = vmax.f32 %v6031, 0.0
    %v6056 = vmax.f32 %v6032, 0.0
    %v6057 = vmax.f32 %v6033, 0.0
    %v6058 = vmax.f32 %v6034, 0.0
    %v6059 = vmax.f32 %v6035, 0.0
    %v6060 = vmax.f32 %v6036, 0.0
    %v6061 = vmax.f32 %v6037, 0.0
    %v6062 = vmax.f32 %v6038, 0.0
    %v6063 = vmax.f32 %v6039, 0.0
    %v6064 = vmax.f32 %v6040, 0.0
    %v6065 = vmax.f32 %v6041, 0.0
    %v6066 = vmax.f32 %v6042, 0.0
    %v6067 = vmax.f32 %v6043, 0.0
    %v6068 = vmax.f32 %v6044, 0.0
    %v6069 = vmax.f32 %v6045, 0.0
    %v6070 = vmax.f32 %v6046, 0.0
    %v6071 = vmax.f32 %v6047, 0.0
    %v6072 = vmax.f32 %v6048, 0.0
    %v6073 = vmax.f32 %v6049, 0.0
    %v6074 = vmax.f32 %v6050, 0.0
    %v6075 = vmax.f32 %v6051, 0.0
    %v6076 = vmax.f32 %v6052, 0.0
    %6099 = vrot.lane.b32.xlu0 %v6053, 126
    %v6100 = vpop.permute.xlu0 %6099
    %6101 = vrot.lane.b32.xlu0 %v6054, 126
    %v6102 = vpop.permute.xlu0 %6101
    %6103 = vrot.lane.b32.xlu0 %v6055, 126
    %v6104 = vpop.permute.xlu0 %6103
    %6105 = vrot.lane.b32.xlu0 %v6056, 126
    %v6106 = vpop.permute.xlu0 %6105
    %6107 = vrot.lane.b32.xlu0 %v6057, 126
    %v6108 = vpop.permute.xlu0 %6107
    %6109 = vrot.lane.b32.xlu0 %v6058, 126
    %v6110 = vpop.permute.xlu0 %6109
    %6111 = vrot.lane.b32.xlu0 %v6059, 126
    %v6112 = vpop.permute.xlu0 %6111
    %6113 = vrot.lane.b32.xlu0 %v6060, 126
    %v6114 = vpop.permute.xlu0 %6113
    %6115 = vrot.lane.b32.xlu0 %v6061, 126
    %v6116 = vpop.permute.xlu0 %6115
    %6117 = vrot.lane.b32.xlu0 %v6062, 126
    %v6118 = vpop.permute.xlu0 %6117
    %6119 = vrot.lane.b32.xlu0 %v6063, 126
    %v6120 = vpop.permute.xlu0 %6119
    %6121 = vrot.lane.b32.xlu0 %v6065, 126
    %v6122 = vpop.permute.xlu0 %6121
    %6123 = vrot.lane.b32.xlu0 %v6066, 126
    %v6124 = vpop.permute.xlu0 %6123
    %6125 = vrot.lane.b32.xlu0 %v6067, 126
    %v6126 = vpop.permute.xlu0 %6125
    %6127 = vrot.lane.b32.xlu0 %v6068, 126
    %v6128 = vpop.permute.xlu0 %6127
    %6129 = vrot.lane.b32.xlu0 %v6069, 126
    %v6130 = vpop.permute.xlu0 %6129
    %6131 = vrot.lane.b32.xlu0 %v6070, 126
    %v6132 = vpop.permute.xlu0 %6131
    %6133 = vrot.lane.b32.xlu0 %v6071, 126
    %v6134 = vpop.permute.xlu0 %6133
    %6135 = vrot.lane.b32.xlu0 %v6072, 126
    %v6136 = vpop.permute.xlu0 %6135
    %6137 = vrot.lane.b32.xlu0 %v6073, 126
    %v6138 = vpop.permute.xlu0 %6137
    %6139 = vrot.lane.b32.xlu0 %v6074, 126
    %v6140 = vpop.permute.xlu0 %6139
    %6141 = vrot.lane.b32.xlu0 %v6075, 126
    %v6142 = vpop.permute.xlu0 %6141
    %v6143 = vsel %vm294, %v6100, %v6102
    %v6144 = vsel %vm294, %v6102, %v6104
    %v6145 = vsel %vm294, %v6104, %v6106
    %v6146 = vsel %vm294, %v6106, %v6108
    %v6147 = vsel %vm294, %v6108, %v6110
    %v6148 = vsel %vm294, %v6110, %v6112
    %v6149 = vsel %vm294, %v6112, %v6114
    %v6150 = vsel %vm294, %v6114, %v6116
    %v6151 = vsel %vm294, %v6116, %v6118
    %v6152 = vsel %vm294, %v6118, %v6120
    %v6153 = vsel %vm294, %v6122, %v6124
    %v6154 = vsel %vm294, %v6124, %v6126
    %v6155 = vsel %vm294, %v6126, %v6128
    %v6156 = vsel %vm294, %v6128, %v6130
    %v6157 = vsel %vm294, %v6130, %v6132
    %v6158 = vsel %vm294, %v6132, %v6134
    %v6159 = vsel %vm294, %v6134, %v6136
    %v6160 = vsel %vm294, %v6136, %v6138
    %v6161 = vsel %vm294, %v6138, %v6140
    %v6162 = vsel %vm294, %v6140, %v6142
    %v6185 = vmax.f32 %v6053, %v6143
    %v6186 = vmax.f32 %v6054, %v6144
    %v6187 = vmax.f32 %v6055, %v6145
    %v6188 = vmax.f32 %v6056, %v6146
    %v6189 = vmax.f32 %v6057, %v6147
    %v6190 = vmax.f32 %v6058, %v6148
    %v6191 = vmax.f32 %v6059, %v6149
    %v6192 = vmax.f32 %v6060, %v6150
    %v6193 = vmax.f32 %v6061, %v6151
    %v6194 = vmax.f32 %v6062, %v6152
    %v6195 = vmax.f32 %v6063, %v6120
    %v6196 = vmax.f32 %v6065, %v6153
    %v6197 = vmax.f32 %v6066, %v6154
    %v6198 = vmax.f32 %v6067, %v6155
    %v6199 = vmax.f32 %v6068, %v6156
    %v6200 = vmax.f32 %v6069, %v6157
    %v6201 = vmax.f32 %v6070, %v6158
    %v6202 = vmax.f32 %v6071, %v6159
    %v6203 = vmax.f32 %v6072, %v6160
    %v6204 = vmax.f32 %v6073, %v6161
    %v6205 = vmax.f32 %v6074, %v6162
    %v6206 = vmax.f32 %v6075, %v6142
    %6209 = vrot.lane.b32.xlu0 %v6064, 126
    %v6210 = vpop.permute.xlu0 %6209
    %6211 = vrot.lane.b32.xlu0 %v6076, 126
    %v6212 = vpop.permute.xlu0 %6211
    %v6213 = vsel %vm294, %v6120, %v6210
    %v6214 = vsel %vm294, %v6142, %v6212
    %v6219 = vmax.f32 %v6063, %v6213
    %v6220 = vmax.f32 %v6064, %v6210
    %v6221 = vmax.f32 %v6075, %v6214
    %v6222 = vmax.f32 %v6076, %v6212
    %6247 = vrot.lane.b32.xlu0 %v6185, 72
    %v6248 = vpop.permute.xlu0 %6247
    %6249 = vrot.lane.b32.xlu0 %v6186, 72
    %v6250 = vpop.permute.xlu0 %6249
    %6251 = vrot.lane.b32.xlu0 %v6187, 72
    %v6252 = vpop.permute.xlu0 %6251
    %6253 = vrot.lane.b32.xlu0 %v6188, 72
    %v6254 = vpop.permute.xlu0 %6253
    %6255 = vrot.lane.b32.xlu0 %v6189, 72
    %v6256 = vpop.permute.xlu0 %6255
    %6257 = vrot.lane.b32.xlu0 %v6190, 72
    %v6258 = vpop.permute.xlu0 %6257
    %6259 = vrot.lane.b32.xlu0 %v6191, 72
    %v6260 = vpop.permute.xlu0 %6259
    %6261 = vrot.lane.b32.xlu0 %v6192, 72
    %v6262 = vpop.permute.xlu0 %6261
    %6263 = vrot.lane.b32.xlu0 %v6193, 72
    %v6264 = vpop.permute.xlu0 %6263
    %6265 = vrot.lane.b32.xlu0 %v6194, 72
    %v6266 = vpop.permute.xlu0 %6265
    %6267 = vrot.lane.b32.xlu0 %v6219, 72
    %v6268 = vpop.permute.xlu0 %6267
    %6269 = vrot.lane.b32.xlu0 %v6220, 72
    %v6270 = vpop.permute.xlu0 %6269
    %6271 = vrot.lane.b32.xlu0 %v6196, 72
    %v6272 = vpop.permute.xlu0 %6271
    %6273 = vrot.lane.b32.xlu0 %v6197, 72
    %v6274 = vpop.permute.xlu0 %6273
    %6275 = vrot.lane.b32.xlu0 %v6198, 72
    %v6276 = vpop.permute.xlu0 %6275
    %6277 = vrot.lane.b32.xlu0 %v6199, 72
    %v6278 = vpop.permute.xlu0 %6277
    %6279 = vrot.lane.b32.xlu0 %v6200, 72
    %v6280 = vpop.permute.xlu0 %6279
    %6281 = vrot.lane.b32.xlu0 %v6201, 72
    %v6282 = vpop.permute.xlu0 %6281
    %6283 = vrot.lane.b32.xlu0 %v6202, 72
    %v6284 = vpop.permute.xlu0 %6283
    %6285 = vrot.lane.b32.xlu0 %v6203, 72
    %v6286 = vpop.permute.xlu0 %6285
    %6287 = vrot.lane.b32.xlu0 %v6204, 72
    %v6288 = vpop.permute.xlu0 %6287
    %6289 = vrot.lane.b32.xlu0 %v6205, 72
    %v6290 = vpop.permute.xlu0 %6289
    %6291 = vrot.lane.b32.xlu0 %v6221, 72
    %v6292 = vpop.permute.xlu0 %6291
    %6293 = vrot.lane.b32.xlu0 %v6222, 72
    %v6294 = vpop.permute.xlu0 %6293
    %v6295 = vsel %vm674, %v6248, %v6250
    %v6296 = vsel %vm674, %v6250, %v6252
    %v6297 = vsel %vm674, %v6252, %v6254
    %v6298 = vsel %vm674, %v6254, %v6256
    %v6299 = vsel %vm674, %v6256, %v6258
    %v6300 = vsel %vm674, %v6258, %v6260
    %v6301 = vsel %vm674, %v6260, %v6262
    %v6302 = vsel %vm674, %v6262, %v6264
    %v6303 = vsel %vm674, %v6264, %v6266
    %v6304 = vsel %vm674, %v6266, %v6268
    %v6305 = vsel %vm674, %v6268, %v6270
    %v6306 = vsel %vm674, %v6272, %v6274
    %v6307 = vsel %vm674, %v6274, %v6276
    %v6308 = vsel %vm674, %v6276, %v6278
    %v6309 = vsel %vm674, %v6278, %v6280
    %v6310 = vsel %vm674, %v6280, %v6282
    %v6311 = vsel %vm674, %v6282, %v6284
    %v6312 = vsel %vm674, %v6284, %v6286
    %v6313 = vsel %vm674, %v6286, %v6288
    %v6314 = vsel %vm674, %v6288, %v6290
    %v6315 = vsel %vm674, %v6290, %v6292
    %v6316 = vsel %vm674, %v6292, %v6294
    %v6339 = vmax.f32 %v6185, %v6295
    %v6340 = vmax.f32 %v6186, %v6296
    %v6341 = vmax.f32 %v6187, %v6297
    %v6342 = vmax.f32 %v6188, %v6298
    %v6343 = vmax.f32 %v6189, %v6299
    %v6344 = vmax.f32 %v6190, %v6300
    %v6345 = vmax.f32 %v6191, %v6301
    %v6346 = vmax.f32 %v6192, %v6302
    %v6347 = vmax.f32 %v6193, %v6303
    %v6348 = vmax.f32 %v6194, %v6304
    %v6349 = vmax.f32 %v6195, %v6305
    %v6350 = vmax.f32 %v6196, %v6306
    %v6351 = vmax.f32 %v6197, %v6307
    %v6352 = vmax.f32 %v6198, %v6308
    %v6353 = vmax.f32 %v6199, %v6309
    %v6354 = vmax.f32 %v6200, %v6310
    %v6355 = vmax.f32 %v6201, %v6311
    %v6356 = vmax.f32 %v6202, %v6312
    %v6357 = vmax.f32 %v6203, %v6313
    %v6358 = vmax.f32 %v6204, %v6314
    %v6359 = vmax.f32 %v6205, %v6315
    %v6360 = vmax.f32 %v6206, %v6316
    %v6361 = vlaneseq
    %v6362 = vshrl.u32 %v6361, 7
    %v6363 = vadd.s32 %v6362, 8
    %v6364 = vadd.s32 %v6362, 16
    %v6365 = vadd.s32 %v6362, 24
    %v6366 = vadd.s32 %v6362, 32
    %v6367 = vadd.s32 %v6362, 40
    %v6368 = vadd.s32 %v6362, 48
    %v6369 = vadd.s32 %v6362, 56
    %v6370 = vadd.s32 %v6362, 64
    %v6371 = vadd.s32 %v6362, 72
    %v6372 = vadd.s32 %v6362, 80
    %v6373 = vadd.s32 %v6362, 88
    %v6374 = vadd.s32 %v6362, 96
    %v6375 = vadd.s32 %v6362, 104
    %v6376 = vadd.s32 %v6362, 112
    %v6377 = vadd.s32 %v6362, 120
    %v6378 = vadd.s32 %v6362, 128
    %v6379 = vadd.s32 %v6362, 136
    %v6380 = vadd.s32 %v6362, 144
    %v6381 = vadd.s32 %v6362, 152
    %v6382 = vadd.s32 %v6362, 160
    %v6383 = vadd.s32 %v6362, 168
    %v6384 = vadd.s32 %v6362, 176
    %v6385 = vadd.s32 %v6362, 184
    %v6386 = vadd.s32 %v6362, 192
    %v6387 = vadd.s32 %v6362, 200
    %v6388 = vadd.s32 %v6362, 208
    %v6389 = vadd.s32 %v6362, 216
    %v6390 = vadd.s32 %v6362, 224
    %v6391 = vadd.s32 %v6362, 232
    %v6392 = vadd.s32 %v6362, 240
    %v6393 = vadd.s32 %v6362, 248
    %v6394 = vadd.s32 %v6362, 256
    %v6395 = vadd.s32 %v6362, 264
    %v6396 = vadd.s32 %v6362, 272
    %v6397 = vadd.s32 %v6362, 280
    %v6398 = vadd.s32 %v6362, 288
    %v6399 = vadd.s32 %v6362, 296
    %v6400 = vadd.s32 %v6362, 304
    %v6401 = vadd.s32 %v6362, 312
    %v6402 = vadd.s32 %v6362, 320
    %v6403 = vadd.s32 %v6362, 328
    %v6404 = vadd.s32 %v6362, 336
    %v6405 = vadd.s32 %v6362, 344
    %v6406 = vadd.s32 %v6362, 352
    %v6407 = vadd.s32 %v6362, 360
    %v6408 = vadd.s32 %v6362, 368
    %v6409 = vadd.s32 %v6362, 376
    %v6410 = vadd.s32 %v6362, 384
    %v6411 = vadd.s32 %v6362, 392
    %v6412 = vadd.s32 %v6362, 400
    %v6413 = vadd.s32 %v6362, 408
    %v6414 = vadd.s32 %v6362, 416
    %v6415 = vadd.s32 %v6362, 424
    %v6416 = vadd.s32 %v6362, 432
    %v6417 = vadd.s32 %v6362, 440
    %v6418 = vadd.s32 %v6362, 448
    %v6419 = vadd.s32 %v6362, 456
    %v6420 = vadd.s32 %v6362, 464
    %v6421 = vadd.s32 %v6362, 472
    %v6422 = vadd.s32 %v6362, 480
    %v6423 = vadd.s32 %v6362, 488
    %v6424 = vadd.s32 %v6362, 496
    %v6425 = vadd.s32 %v6362, 504
    %v6426 = vadd.s32 %v6362, 512
    %v6427 = vadd.s32 %v6362, 520
    %v6428 = vadd.s32 %v6362, 528
    %v6429 = vadd.s32 %v6362, 536
    %v6430 = vadd.s32 %v6362, 544
    %v6431 = vadd.s32 %v6362, 552
    %v6432 = vadd.s32 %v6362, 560
    %v6433 = vadd.s32 %v6362, 568
    %v6434 = vadd.s32 %v6362, 576
    %v6435 = vadd.s32 %v6362, 584
    %v6436 = vadd.s32 %v6362, 592
    %v6437 = vadd.s32 %v6362, 600
    %v6438 = vadd.s32 %v6362, 608
    %v6439 = vadd.s32 %v6362, 616
    %v6440 = vadd.s32 %v6362, 624
    %v6441 = vadd.s32 %v6362, 632
    %v6442 = vadd.s32 %v6362, 640
    %v6443 = vadd.s32 %v6362, 648
    %v6444 = vadd.s32 %v6362, 656
    %v6445 = vadd.s32 %v6362, 664
    %v6446 = vadd.s32 %v6362, 672
    %v6447 = vadd.s32 %v6362, 680
    %v6448 = vadd.s32 %v6362, 688
    %v6449 = vadd.s32 %v6362, 696
    %v6450 = vadd.s32 %v6362, 704
    %v6451 = vadd.s32 %v6362, 712
    %v6452 = vadd.s32 %v6362, 720
    %v6453 = vadd.s32 %v6362, 728
    %v6454 = vadd.s32 %v6362, 736
    %v6455 = vadd.s32 %v6362, 744
    %v6456 = vadd.s32 %v6362, 752
    %v6457 = vadd.s32 %v6362, 760
    %v6458 = vadd.s32 %v6362, 768
    %v6459 = vadd.s32 %v6362, 776
    %v6460 = vadd.s32 %v6362, 784
    %v6461 = vadd.s32 %v6362, 792
    %v6462 = vadd.s32 %v6362, 800
    %v6463 = vadd.s32 %v6362, 808
    %v6464 = vadd.s32 %v6362, 816
    %v6465 = vadd.s32 %v6362, 824
    %v6466 = vadd.s32 %v6362, 832
    %v6467 = vadd.s32 %v6362, 840
    %v6468 = vadd.s32 %v6362, 848
    %v6469 = vadd.s32 %v6362, 856
    %v6470 = vadd.s32 %v6362, 864
    %v6471 = vadd.s32 %v6362, 872
    %v6472 = vadd.s32 %v6362, 880
    %v6473 = vadd.s32 %v6362, 888
    %v6474 = vadd.s32 %v6362, 896
    %v6475 = vadd.s32 %v6362, 904
    %v6476 = vadd.s32 %v6362, 912
    %v6477 = vadd.s32 %v6362, 920
    %v6478 = vadd.s32 %v6362, 928
    %v6479 = vadd.s32 %v6362, 936
    %v6480 = vadd.s32 %v6362, 944
    %v6481 = vadd.s32 %v6362, 952
    %v6482 = vadd.s32 %v6362, 960
    %v6483 = vadd.s32 %v6362, 968
    %v6484 = vadd.s32 %v6362, 976
    %v6485 = vadd.s32 %v6362, 984
    %v6486 = vadd.s32 %v6362, 992
    %v6487 = vadd.s32 %v6362, 1000
    %v6488 = vadd.s32 %v6362, 1008
    %v6489 = vadd.s32 %v6362, 1016
    %v6490 = vadd.s32 %v6362, 1024
    %v6491 = vadd.s32 %v6362, 1032
    %v6492 = vadd.s32 %v6362, 1040
    %v6493 = vadd.s32 %v6362, 1048
    %v6494 = vadd.s32 %v6362, 1056
    %v6495 = vadd.s32 %v6362, 1064
    %v6496 = vadd.s32 %v6362, 1072
    %v6497 = vadd.s32 %v6362, 1080
    %v6498 = vadd.s32 %v6362, 1088
    %v6499 = vadd.s32 %v6362, 1096
    %v6500 = vadd.s32 %v6362, 1104
    %v6501 = vadd.s32 %v6362, 1112
    %v6502 = vadd.s32 %v6362, 1120
    %v6503 = vadd.s32 %v6362, 1128
    %v6504 = vadd.s32 %v6362, 1136
    %v6505 = vadd.s32 %v6362, 1144
    %v6506 = vadd.s32 %v6362, 1152
    %v6507 = vadd.s32 %v6362, 1160
    %v6508 = vadd.s32 %v6362, 1168
    %v6509 = vadd.s32 %v6362, 1176
    %v6510 = vadd.s32 %v6362, 1184
    %v6511 = vadd.s32 %v6362, 1192
    %v6512 = vadd.s32 %v6362, 1200
    %v6513 = vadd.s32 %v6362, 1208
    %v6514 = vadd.s32 %v6362, 1216
    %v6515 = vadd.s32 %v6362, 1224
    %v6516 = vadd.s32 %v6362, 1232
    %v6517 = vadd.s32 %v6362, 1240
    %v6518 = vadd.s32 %v6362, 1248
    %v6519 = vadd.s32 %v6362, 1256
    %v6520 = vadd.s32 %v6362, 1264
    %v6521 = vadd.s32 %v6362, 1272
    %v6522 = vadd.s32 %v6362, 1280
    %v6523 = vadd.s32 %v6362, 1288
    %v6524 = vadd.s32 %v6362, 1296
    %v6525 = vadd.s32 %v6362, 1304
    %v6526 = vadd.s32 %v6362, 1312
    %v6527 = vadd.s32 %v6362, 1320
    %v6528 = vadd.s32 %v6362, 1328
    %v6529 = vadd.s32 %v6362, 1336
    %v6530 = vadd.s32 %v6362, 1344
    %v6531 = vadd.s32 %v6362, 1352
    %v6532 = vadd.s32 %v6362, 1360
    %v6533 = vld [vmem:[%s5] sm:$0x1]
    %v6534 = vlaneseq
    %v6535 = vshrl.u32 %v6534, 7
    %v6536 = vsub.s32 0, %v6535
    %v6537 = vrot.slane %v6533, %v6536
    %vm6538 = vcmp.eq.s32.totalorder %v6362, %v6537
    %vm6539 = vcmp.eq.s32.totalorder %v6363, %v6537
    %vm6540 = vcmp.eq.s32.totalorder %v6364, %v6537
    %vm6541 = vcmp.eq.s32.totalorder %v6365, %v6537
    %vm6542 = vcmp.eq.s32.totalorder %v6366, %v6537
    %vm6543 = vcmp.eq.s32.totalorder %v6367, %v6537
    %vm6544 = vcmp.eq.s32.totalorder %v6368, %v6537
    %vm6545 = vcmp.eq.s32.totalorder %v6369, %v6537
    %vm6546 = vcmp.eq.s32.totalorder %v6370, %v6537
    %vm6547 = vcmp.eq.s32.totalorder %v6371, %v6537
    %vm6548 = vcmp.eq.s32.totalorder %v6372, %v6537
    %vm6549 = vcmp.eq.s32.totalorder %v6373, %v6537
    %vm6550 = vcmp.eq.s32.totalorder %v6374, %v6537
    %vm6551 = vcmp.eq.s32.totalorder %v6375, %v6537
    %vm6552 = vcmp.eq.s32.totalorder %v6376, %v6537
    %vm6553 = vcmp.eq.s32.totalorder %v6377, %v6537
    %vm6554 = vcmp.eq.s32.totalorder %v6378, %v6537
    %vm6555 = vcmp.eq.s32.totalorder %v6379, %v6537
    %vm6556 = vcmp.eq.s32.totalorder %v6380, %v6537
    %vm6557 = vcmp.eq.s32.totalorder %v6381, %v6537
    %vm6558 = vcmp.eq.s32.totalorder %v6382, %v6537
    %vm6559 = vcmp.eq.s32.totalorder %v6383, %v6537
    %vm6560 = vcmp.eq.s32.totalorder %v6384, %v6537
    %vm6561 = vcmp.eq.s32.totalorder %v6385, %v6537
    %vm6562 = vcmp.eq.s32.totalorder %v6386, %v6537
    %vm6563 = vcmp.eq.s32.totalorder %v6387, %v6537
    %vm6564 = vcmp.eq.s32.totalorder %v6388, %v6537
    %vm6565 = vcmp.eq.s32.totalorder %v6389, %v6537
    %vm6566 = vcmp.eq.s32.totalorder %v6390, %v6537
    %vm6567 = vcmp.eq.s32.totalorder %v6391, %v6537
    %vm6568 = vcmp.eq.s32.totalorder %v6392, %v6537
    %vm6569 = vcmp.eq.s32.totalorder %v6393, %v6537
    %vm6570 = vcmp.eq.s32.totalorder %v6394, %v6537
    %vm6571 = vcmp.eq.s32.totalorder %v6395, %v6537
    %vm6572 = vcmp.eq.s32.totalorder %v6396, %v6537
    %vm6573 = vcmp.eq.s32.totalorder %v6397, %v6537
    %vm6574 = vcmp.eq.s32.totalorder %v6398, %v6537
    %vm6575 = vcmp.eq.s32.totalorder %v6399, %v6537
    %vm6576 = vcmp.eq.s32.totalorder %v6400, %v6537
    %vm6577 = vcmp.eq.s32.totalorder %v6401, %v6537
    %vm6578 = vcmp.eq.s32.totalorder %v6402, %v6537
    %vm6579 = vcmp.eq.s32.totalorder %v6403, %v6537
    %vm6580 = vcmp.eq.s32.totalorder %v6404, %v6537
    %vm6581 = vcmp.eq.s32.totalorder %v6405, %v6537
    %vm6582 = vcmp.eq.s32.totalorder %v6406, %v6537
    %vm6583 = vcmp.eq.s32.totalorder %v6407, %v6537
    %vm6584 = vcmp.eq.s32.totalorder %v6408, %v6537
    %vm6585 = vcmp.eq.s32.totalorder %v6409, %v6537
    %vm6586 = vcmp.eq.s32.totalorder %v6410, %v6537
    %vm6587 = vcmp.eq.s32.totalorder %v6411, %v6537
    %vm6588 = vcmp.eq.s32.totalorder %v6412, %v6537
    %vm6589 = vcmp.eq.s32.totalorder %v6413, %v6537
    %vm6590 = vcmp.eq.s32.totalorder %v6414, %v6537
    %vm6591 = vcmp.eq.s32.totalorder %v6415, %v6537
    %vm6592 = vcmp.eq.s32.totalorder %v6416, %v6537
    %vm6593 = vcmp.eq.s32.totalorder %v6417, %v6537
    %vm6594 = vcmp.eq.s32.totalorder %v6418, %v6537
    %vm6595 = vcmp.eq.s32.totalorder %v6419, %v6537
    %vm6596 = vcmp.eq.s32.totalorder %v6420, %v6537
    %vm6597 = vcmp.eq.s32.totalorder %v6421, %v6537
    %vm6598 = vcmp.eq.s32.totalorder %v6422, %v6537
    %vm6599 = vcmp.eq.s32.totalorder %v6423, %v6537
    %vm6600 = vcmp.eq.s32.totalorder %v6424, %v6537
    %vm6601 = vcmp.eq.s32.totalorder %v6425, %v6537
    %vm6602 = vcmp.eq.s32.totalorder %v6426, %v6537
    %vm6603 = vcmp.eq.s32.totalorder %v6427, %v6537
    %vm6604 = vcmp.eq.s32.totalorder %v6428, %v6537
    %vm6605 = vcmp.eq.s32.totalorder %v6429, %v6537
    %vm6606 = vcmp.eq.s32.totalorder %v6430, %v6537
    %vm6607 = vcmp.eq.s32.totalorder %v6431, %v6537
    %vm6608 = vcmp.eq.s32.totalorder %v6432, %v6537
    %vm6609 = vcmp.eq.s32.totalorder %v6433, %v6537
    %vm6610 = vcmp.eq.s32.totalorder %v6434, %v6537
    %vm6611 = vcmp.eq.s32.totalorder %v6435, %v6537
    %vm6612 = vcmp.eq.s32.totalorder %v6436, %v6537
    %vm6613 = vcmp.eq.s32.totalorder %v6437, %v6537
    %vm6614 = vcmp.eq.s32.totalorder %v6438, %v6537
    %vm6615 = vcmp.eq.s32.totalorder %v6439, %v6537
    %vm6616 = vcmp.eq.s32.totalorder %v6440, %v6537
    %vm6617 = vcmp.eq.s32.totalorder %v6441, %v6537
    %vm6618 = vcmp.eq.s32.totalorder %v6442, %v6537
    %vm6619 = vcmp.eq.s32.totalorder %v6443, %v6537
    %vm6620 = vcmp.eq.s32.totalorder %v6444, %v6537
    %vm6621 = vcmp.eq.s32.totalorder %v6445, %v6537
    %vm6622 = vcmp.eq.s32.totalorder %v6446, %v6537
    %vm6623 = vcmp.eq.s32.totalorder %v6447, %v6537
    %vm6624 = vcmp.eq.s32.totalorder %v6448, %v6537
    %vm6625 = vcmp.eq.s32.totalorder %v6449, %v6537
    %vm6626 = vcmp.eq.s32.totalorder %v6450, %v6537
    %vm6627 = vcmp.eq.s32.totalorder %v6451, %v6537
    %vm6628 = vcmp.eq.s32.totalorder %v6452, %v6537
    %vm6629 = vcmp.eq.s32.totalorder %v6453, %v6537
    %vm6630 = vcmp.eq.s32.totalorder %v6454, %v6537
    %vm6631 = vcmp.eq.s32.totalorder %v6455, %v6537
    %vm6632 = vcmp.eq.s32.totalorder %v6456, %v6537
    %vm6633 = vcmp.eq.s32.totalorder %v6457, %v6537
    %vm6634 = vcmp.eq.s32.totalorder %v6458, %v6537
    %vm6635 = vcmp.eq.s32.totalorder %v6459, %v6537
    %vm6636 = vcmp.eq.s32.totalorder %v6460, %v6537
    %vm6637 = vcmp.eq.s32.totalorder %v6461, %v6537
    %vm6638 = vcmp.eq.s32.totalorder %v6462, %v6537
    %vm6639 = vcmp.eq.s32.totalorder %v6463, %v6537
    %vm6640 = vcmp.eq.s32.totalorder %v6464, %v6537
    %vm6641 = vcmp.eq.s32.totalorder %v6465, %v6537
    %vm6642 = vcmp.eq.s32.totalorder %v6466, %v6537
    %vm6643 = vcmp.eq.s32.totalorder %v6467, %v6537
    %vm6644 = vcmp.eq.s32.totalorder %v6468, %v6537
    %vm6645 = vcmp.eq.s32.totalorder %v6469, %v6537
    %vm6646 = vcmp.eq.s32.totalorder %v6470, %v6537
    %vm6647 = vcmp.eq.s32.totalorder %v6471, %v6537
    %vm6648 = vcmp.eq.s32.totalorder %v6472, %v6537
    %vm6649 = vcmp.eq.s32.totalorder %v6473, %v6537
    %vm6650 = vcmp.eq.s32.totalorder %v6474, %v6537
    %vm6651 = vcmp.eq.s32.totalorder %v6475, %v6537
    %vm6652 = vcmp.eq.s32.totalorder %v6476, %v6537
    %vm6653 = vcmp.eq.s32.totalorder %v6477, %v6537
    %vm6654 = vcmp.eq.s32.totalorder %v6478, %v6537
    %vm6655 = vcmp.eq.s32.totalorder %v6479, %v6537
    %vm6656 = vcmp.eq.s32.totalorder %v6480, %v6537
    %vm6657 = vcmp.eq.s32.totalorder %v6481, %v6537
    %vm6658 = vcmp.eq.s32.totalorder %v6482, %v6537
    %vm6659 = vcmp.eq.s32.totalorder %v6483, %v6537
    %vm6660 = vcmp.eq.s32.totalorder %v6484, %v6537
    %vm6661 = vcmp.eq.s32.totalorder %v6485, %v6537
    %vm6662 = vcmp.eq.s32.totalorder %v6486, %v6537
    %vm6663 = vcmp.eq.s32.totalorder %v6487, %v6537
    %vm6664 = vcmp.eq.s32.totalorder %v6488, %v6537
    %vm6665 = vcmp.eq.s32.totalorder %v6489, %v6537
    %vm6666 = vcmp.eq.s32.totalorder %v6490, %v6537
    %vm6667 = vcmp.eq.s32.totalorder %v6491, %v6537
    %vm6668 = vcmp.eq.s32.totalorder %v6492, %v6537
    %vm6669 = vcmp.eq.s32.totalorder %v6493, %v6537
    %vm6670 = vcmp.eq.s32.totalorder %v6494, %v6537
    %vm6671 = vcmp.eq.s32.totalorder %v6495, %v6537
    %vm6672 = vcmp.eq.s32.totalorder %v6496, %v6537
    %vm6673 = vcmp.eq.s32.totalorder %v6497, %v6537
    %vm6674 = vcmp.eq.s32.totalorder %v6498, %v6537
    %vm6675 = vcmp.eq.s32.totalorder %v6499, %v6537
    %vm6676 = vcmp.eq.s32.totalorder %v6500, %v6537
    %vm6677 = vcmp.eq.s32.totalorder %v6501, %v6537
    %vm6678 = vcmp.eq.s32.totalorder %v6502, %v6537
    %vm6679 = vcmp.eq.s32.totalorder %v6503, %v6537
    %vm6680 = vcmp.eq.s32.totalorder %v6504, %v6537
    %vm6681 = vcmp.eq.s32.totalorder %v6505, %v6537
    %vm6682 = vcmp.eq.s32.totalorder %v6506, %v6537
    %vm6683 = vcmp.eq.s32.totalorder %v6507, %v6537
    %vm6684 = vcmp.eq.s32.totalorder %v6508, %v6537
    %vm6685 = vcmp.eq.s32.totalorder %v6509, %v6537
    %vm6686 = vcmp.eq.s32.totalorder %v6510, %v6537
    %vm6687 = vcmp.eq.s32.totalorder %v6511, %v6537
    %vm6688 = vcmp.eq.s32.totalorder %v6512, %v6537
    %vm6689 = vcmp.eq.s32.totalorder %v6513, %v6537
    %vm6690 = vcmp.eq.s32.totalorder %v6514, %v6537
    %vm6691 = vcmp.eq.s32.totalorder %v6515, %v6537
    %vm6692 = vcmp.eq.s32.totalorder %v6516, %v6537
    %vm6693 = vcmp.eq.s32.totalorder %v6517, %v6537
    %vm6694 = vcmp.eq.s32.totalorder %v6518, %v6537
    %vm6695 = vcmp.eq.s32.totalorder %v6519, %v6537
    %vm6696 = vcmp.eq.s32.totalorder %v6520, %v6537
    %vm6697 = vcmp.eq.s32.totalorder %v6521, %v6537
    %vm6698 = vcmp.eq.s32.totalorder %v6522, %v6537
    %vm6699 = vcmp.eq.s32.totalorder %v6523, %v6537
    %vm6700 = vcmp.eq.s32.totalorder %v6524, %v6537
    %vm6701 = vcmp.eq.s32.totalorder %v6525, %v6537
    %vm6702 = vcmp.eq.s32.totalorder %v6526, %v6537
    %vm6703 = vcmp.eq.s32.totalorder %v6527, %v6537
    %vm6704 = vcmp.eq.s32.totalorder %v6528, %v6537
    %vm6705 = vcmp.eq.s32.totalorder %v6529, %v6537
    %vm6706 = vcmp.eq.s32.totalorder %v6530, %v6537
    %vm6707 = vcmp.eq.s32.totalorder %v6531, %v6537
    %vm6708 = vcmp.eq.s32.totalorder %v6532, %v6537
    %v6709 = vsel %vm6538, 1.0, 0.0
    %v6710 = vsel %vm6539, 1.0, 0.0
    %v6711 = vsel %vm6540, 1.0, 0.0
    %v6712 = vsel %vm6541, 1.0, 0.0
    %v6713 = vsel %vm6542, 1.0, 0.0
    %v6714 = vsel %vm6543, 1.0, 0.0
    %v6715 = vsel %vm6544, 1.0, 0.0
    %v6716 = vsel %vm6545, 1.0, 0.0
    %v6717 = vsel %vm6546, 1.0, 0.0
    %v6718 = vsel %vm6547, 1.0, 0.0
    %v6719 = vsel %vm6548, 1.0, 0.0
    %v6720 = vsel %vm6549, 1.0, 0.0
    %v6721 = vsel %vm6550, 1.0, 0.0
    %v6722 = vsel %vm6551, 1.0, 0.0
    %v6723 = vsel %vm6552, 1.0, 0.0
    %v6724 = vsel %vm6553, 1.0, 0.0
    %v6725 = vsel %vm6554, 1.0, 0.0
    %v6726 = vsel %vm6555, 1.0, 0.0
    %v6727 = vsel %vm6556, 1.0, 0.0
    %v6728 = vsel %vm6557, 1.0, 0.0
    %v6729 = vsel %vm6558, 1.0, 0.0
    %v6730 = vsel %vm6559, 1.0, 0.0
    %v6731 = vsel %vm6560, 1.0, 0.0
    %v6732 = vsel %vm6561, 1.0, 0.0
    %v6733 = vsel %vm6562, 1.0, 0.0
    %v6734 = vsel %vm6563, 1.0, 0.0
    %v6735 = vsel %vm6564, 1.0, 0.0
    %v6736 = vsel %vm6565, 1.0, 0.0
    %v6737 = vsel %vm6566, 1.0, 0.0
    %v6738 = vsel %vm6567, 1.0, 0.0
    %v6739 = vsel %vm6568, 1.0, 0.0
    %v6740 = vsel %vm6569, 1.0, 0.0
    %v6741 = vsel %vm6570, 1.0, 0.0
    %v6742 = vsel %vm6571, 1.0, 0.0
    %v6743 = vsel %vm6572, 1.0, 0.0
    %v6744 = vsel %vm6573, 1.0, 0.0
    %v6745 = vsel %vm6574, 1.0, 0.0
    %v6746 = vsel %vm6575, 1.0, 0.0
    %v6747 = vsel %vm6576, 1.0, 0.0
    %v6748 = vsel %vm6577, 1.0, 0.0
    %v6749 = vsel %vm6578, 1.0, 0.0
    %v6750 = vsel %vm6579, 1.0, 0.0
    %v6751 = vsel %vm6580, 1.0, 0.0
    %v6752 = vsel %vm6581, 1.0, 0.0
    %v6753 = vsel %vm6582, 1.0, 0.0
    %v6754 = vsel %vm6583, 1.0, 0.0
    %v6755 = vsel %vm6584, 1.0, 0.0
    %v6756 = vsel %vm6585, 1.0, 0.0
    %v6757 = vsel %vm6586, 1.0, 0.0
    %v6758 = vsel %vm6587, 1.0, 0.0
    %v6759 = vsel %vm6588, 1.0, 0.0
    %v6760 = vsel %vm6589, 1.0, 0.0
    %v6761 = vsel %vm6590, 1.0, 0.0
    %v6762 = vsel %vm6591, 1.0, 0.0
    %v6763 = vsel %vm6592, 1.0, 0.0
    %v6764 = vsel %vm6593, 1.0, 0.0
    %v6765 = vsel %vm6594, 1.0, 0.0
    %v6766 = vsel %vm6595, 1.0, 0.0
    %v6767 = vsel %vm6596, 1.0, 0.0
    %v6768 = vsel %vm6597, 1.0, 0.0
    %v6769 = vsel %vm6598, 1.0, 0.0
    %v6770 = vsel %vm6599, 1.0, 0.0
    %v6771 = vsel %vm6600, 1.0, 0.0
    %v6772 = vsel %vm6601, 1.0, 0.0
    %v6773 = vsel %vm6602, 1.0, 0.0
    %v6774 = vsel %vm6603, 1.0, 0.0
    %v6775 = vsel %vm6604, 1.0, 0.0
    %v6776 = vsel %vm6605, 1.0, 0.0
    %v6777 = vsel %vm6606, 1.0, 0.0
    %v6778 = vsel %vm6607, 1.0, 0.0
    %v6779 = vsel %vm6608, 1.0, 0.0
    %v6780 = vsel %vm6609, 1.0, 0.0
    %v6781 = vsel %vm6610, 1.0, 0.0
    %v6782 = vsel %vm6611, 1.0, 0.0
    %v6783 = vsel %vm6612, 1.0, 0.0
    %v6784 = vsel %vm6613, 1.0, 0.0
    %v6785 = vsel %vm6614, 1.0, 0.0
    %v6786 = vsel %vm6615, 1.0, 0.0
    %v6787 = vsel %vm6616, 1.0, 0.0
    %v6788 = vsel %vm6617, 1.0, 0.0
    %v6789 = vsel %vm6618, 1.0, 0.0
    %v6790 = vsel %vm6619, 1.0, 0.0
    %v6791 = vsel %vm6620, 1.0, 0.0
    %v6792 = vsel %vm6621, 1.0, 0.0
    %v6793 = vsel %vm6622, 1.0, 0.0
    %v6794 = vsel %vm6623, 1.0, 0.0
    %v6795 = vsel %vm6624, 1.0, 0.0
    %v6796 = vsel %vm6625, 1.0, 0.0
    %v6797 = vsel %vm6626, 1.0, 0.0
    %v6798 = vsel %vm6627, 1.0, 0.0
    %v6799 = vsel %vm6628, 1.0, 0.0
    %v6800 = vsel %vm6629, 1.0, 0.0
    %v6801 = vsel %vm6630, 1.0, 0.0
    %v6802 = vsel %vm6631, 1.0, 0.0
    %v6803 = vsel %vm6632, 1.0, 0.0
    %v6804 = vsel %vm6633, 1.0, 0.0
    %v6805 = vsel %vm6634, 1.0, 0.0
    %v6806 = vsel %vm6635, 1.0, 0.0
    %v6807 = vsel %vm6636, 1.0, 0.0
    %v6808 = vsel %vm6637, 1.0, 0.0
    %v6809 = vsel %vm6638, 1.0, 0.0
    %v6810 = vsel %vm6639, 1.0, 0.0
    %v6811 = vsel %vm6640, 1.0, 0.0
    %v6812 = vsel %vm6641, 1.0, 0.0
    %v6813 = vsel %vm6642, 1.0, 0.0
    %v6814 = vsel %vm6643, 1.0, 0.0
    %v6815 = vsel %vm6644, 1.0, 0.0
    %v6816 = vsel %vm6645, 1.0, 0.0
    %v6817 = vsel %vm6646, 1.0, 0.0
    %v6818 = vsel %vm6647, 1.0, 0.0
    %v6819 = vsel %vm6648, 1.0, 0.0
    %v6820 = vsel %vm6649, 1.0, 0.0
    %v6821 = vsel %vm6650, 1.0, 0.0
    %v6822 = vsel %vm6651, 1.0, 0.0
    %v6823 = vsel %vm6652, 1.0, 0.0
    %v6824 = vsel %vm6653, 1.0, 0.0
    %v6825 = vsel %vm6654, 1.0, 0.0
    %v6826 = vsel %vm6655, 1.0, 0.0
    %v6827 = vsel %vm6656, 1.0, 0.0
    %v6828 = vsel %vm6657, 1.0, 0.0
    %v6829 = vsel %vm6658, 1.0, 0.0
    %v6830 = vsel %vm6659, 1.0, 0.0
    %v6831 = vsel %vm6660, 1.0, 0.0
    %v6832 = vsel %vm6661, 1.0, 0.0
    %v6833 = vsel %vm6662, 1.0, 0.0
    %v6834 = vsel %vm6663, 1.0, 0.0
    %v6835 = vsel %vm6664, 1.0, 0.0
    %v6836 = vsel %vm6665, 1.0, 0.0
    %v6837 = vsel %vm6666, 1.0, 0.0
    %v6838 = vsel %vm6667, 1.0, 0.0
    %v6839 = vsel %vm6668, 1.0, 0.0
    %v6840 = vsel %vm6669, 1.0, 0.0
    %v6841 = vsel %vm6670, 1.0, 0.0
    %v6842 = vsel %vm6671, 1.0, 0.0
    %v6843 = vsel %vm6672, 1.0, 0.0
    %v6844 = vsel %vm6673, 1.0, 0.0
    %v6845 = vsel %vm6674, 1.0, 0.0
    %v6846 = vsel %vm6675, 1.0, 0.0
    %v6847 = vsel %vm6676, 1.0, 0.0
    %v6848 = vsel %vm6677, 1.0, 0.0
    %v6849 = vsel %vm6678, 1.0, 0.0
    %v6850 = vsel %vm6679, 1.0, 0.0
    %v6851 = vsel %vm6680, 1.0, 0.0
    %v6852 = vsel %vm6681, 1.0, 0.0
    %v6853 = vsel %vm6682, 1.0, 0.0
    %v6854 = vsel %vm6683, 1.0, 0.0
    %v6855 = vsel %vm6684, 1.0, 0.0
    %v6856 = vsel %vm6685, 1.0, 0.0
    %v6857 = vsel %vm6686, 1.0, 0.0
    %v6858 = vsel %vm6687, 1.0, 0.0
    %v6859 = vsel %vm6688, 1.0, 0.0
    %v6860 = vsel %vm6689, 1.0, 0.0
    %v6861 = vsel %vm6690, 1.0, 0.0
    %v6862 = vsel %vm6691, 1.0, 0.0
    %v6863 = vsel %vm6692, 1.0, 0.0
    %v6864 = vsel %vm6693, 1.0, 0.0
    %v6865 = vsel %vm6694, 1.0, 0.0
    %v6866 = vsel %vm6695, 1.0, 0.0
    %v6867 = vsel %vm6696, 1.0, 0.0
    %v6868 = vsel %vm6697, 1.0, 0.0
    %v6869 = vsel %vm6698, 1.0, 0.0
    %v6870 = vsel %vm6699, 1.0, 0.0
    %v6871 = vsel %vm6700, 1.0, 0.0
    %v6872 = vsel %vm6701, 1.0, 0.0
    %v6873 = vsel %vm6702, 1.0, 0.0
    %v6874 = vsel %vm6703, 1.0, 0.0
    %v6875 = vsel %vm6704, 1.0, 0.0
    %v6876 = vsel %vm6705, 1.0, 0.0
    %v6877 = vsel %vm6706, 1.0, 0.0
    %v6878 = vsel %vm6707, 1.0, 0.0
    %v6879 = vsel %vm6708, 1.0, 0.0
    %vm6880 = vcmask 695296
    %v6882 = vsel %vm6880, %v6349, 0
    %v6885 = vsel %vm6880, %v6360, 0
    %vm6887 = vcmask 1044480
    %v6889 = vsel %vm6887, %v6879, 0
    %6891 = vmatprep.subr.mxu0 0.0
    %6892 = vmatpush1.msra.mxu0 %v6709
    %6893 = vmatprep.subr.mxu0 0.0
    %6894 = vmatpush1.msra.mxu0 %v6710
    %6895 = vmatprep.subr.mxu0 0.0
    %6896 = vmatpush1.msra.mxu0 %v6711
    %6897 = vmatprep.subr.mxu0 0.0
    %6898 = vmatpush1.msra.mxu0 %v6712
    %6899 = vmatprep.subr.mxu0 0.0
    %6900 = vmatpush1.msra.mxu0 %v6713
    %6901 = vmatprep.subr.mxu0 0.0
    %6902 = vmatpush1.msra.mxu0 %v6714
    %6903 = vmatprep.subr.mxu0 0.0
    %6904 = vmatpush1.msra.mxu0 %v6715
    %6905 = vmatprep.subr.mxu0 0.0
    %6906 = vmatpush1.msra.mxu0 %v6716
    %6907 = vmatprep.subr.mxu0 0.0
    %6908 = vmatpush1.msra.mxu0 %v6717
    %6909 = vmatprep.subr.mxu0 0.0
    %6910 = vmatpush1.msra.mxu0 %v6718
    %6911 = vmatprep.subr.mxu0 0.0
    %6912 = vmatpush1.msra.mxu0 %v6719
    %6913 = vmatprep.subr.mxu0 0.0
    %6914 = vmatpush1.msra.mxu0 %v6720
    %6915 = vmatprep.subr.mxu0 0.0
    %6916 = vmatpush1.msra.mxu0 %v6721
    %6917 = vmatprep.subr.mxu0 0.0
    %6918 = vmatpush1.msra.mxu0 %v6722
    %6919 = vmatprep.subr.mxu0 0.0
    %6920 = vmatpush1.msra.mxu0 %v6723
    %6921 = vmatprep.subr.mxu0 0.0
    %6922 = vmatpush1.msra.mxu0 %v6724
    %6923 = vmatprep.subr.mxu0 0.0
    %6924 = vmatpush1.msra.mxu0 %v6725
    %6925 = vmatprep.subr.mxu0 0.0
    %6926 = vmatpush1.msra.mxu0 %v6726
    %6927 = vmatprep.subr.mxu0 0.0
    %6928 = vmatpush1.msra.mxu0 %v6727
    %6929 = vmatprep.subr.mxu0 0.0
    %6930 = vmatpush1.msra.mxu0 %v6728
    %6931 = vmatprep.subr.mxu0 0.0
    %6932 = vmatpush1.msra.mxu0 %v6729
    %6933 = vmatprep.subr.mxu0 0.0
    %6934 = vmatpush1.msra.mxu0 %v6730
    %6935 = vmatprep.subr.mxu0 0.0
    %6936 = vmatpush1.msra.mxu0 %v6731
    %6937 = vmatprep.subr.mxu0 0.0
    %6938 = vmatpush1.msra.mxu0 %v6732
    %6939 = vmatprep.subr.mxu0 0.0
    %6940 = vmatpush1.msra.mxu0 %v6733
    %6941 = vmatprep.subr.mxu0 0.0
    %6942 = vmatpush1.msra.mxu0 %v6734
    %6943 = vmatprep.subr.mxu0 0.0
    %6944 = vmatpush1.msra.mxu0 %v6735
    %6945 = vmatprep.subr.mxu0 0.0
    %6946 = vmatpush1.msra.mxu0 %v6736
    %6947 = vmatprep.subr.mxu0 0.0
    %6948 = vmatpush1.msra.mxu0 %v6737
    %6949 = vmatprep.subr.mxu0 0.0
    %6950 = vmatpush1.msra.mxu0 %v6738
    %6951 = vmatprep.subr.mxu0 0.0
    %6952 = vmatpush1.msra.mxu0 %v6739
    %6953 = vmatprep.subr.mxu0 0.0
    %6954 = vmatpush1.msra.mxu0 %v6740
    %6955 = vmatprep.mubr.f32.mxu0 %v6340
    %6956 = vmatmul.mubr.f32.gmra.mrb[0].mxu0 %v6339
    %v6957 = vpop.f32.mrb[0].mxu0
    %v6958 = vadd.f32 0.0, %v6957
    %v6959 = vpop.f32.mrb[0].mxu0
    %6960 = vmatprep.mubr.f32.mxu0 %v6351
    %6961 = vmatmul.mubr.f32.gmra.mrb[0].mxu0 %v6350
    %v6962 = vpop.f32.mrb[0].mxu0
    %v6963 = vadd.f32 0.0, %v6962
    %v6964 = vpop.f32.mrb[0].mxu0
    %6965 = vdwg.mxu0
    %6966 = vmatprep.subr.mxu0 0.0
    %6967 = vmatpush1.msra.mxu0 %v6741
    %6968 = vmatprep.subr.mxu0 0.0
    %6969 = vmatpush1.msra.mxu0 %v6742
    %6970 = vmatprep.subr.mxu0 0.0
    %6971 = vmatpush1.msra.mxu0 %v6743
    %6972 = vmatprep.subr.mxu0 0.0
    %6973 = vmatpush1.msra.mxu0 %v6744
    %6974 = vmatprep.subr.mxu0 0.0
    %6975 = vmatpush1.msra.mxu0 %v6745
    %6976 = vmatprep.subr.mxu0 0.0
    %6977 = vmatpush1.msra.mxu0 %v6746
    %6978 = vmatprep.subr.mxu0 0.0
    %6979 = vmatpush1.msra.mxu0 %v6747
    %6980 = vmatprep.subr.mxu0 0.0
    %6981 = vmatpush1.msra.mxu0 %v6748
    %6982 = vmatprep.subr.mxu0 0.0
    %6983 = vmatpush1.msra.mxu0 %v6749
    %6984 = vmatprep.subr.mxu0 0.0
    %6985 = vmatpush1.msra.mxu0 %v6750
    %6986 = vmatprep.subr.mxu0 0.0
    %6987 = vmatpush1.msra.mxu0 %v6751
    %6988 = vmatprep.subr.mxu0 0.0
    %6989 = vmatpush1.msra.mxu0 %v6752
    %6990 = vmatprep.subr.mxu0 0.0
    %6991 = vmatpush1.msra.mxu0 %v6753
    %6992 = vmatprep.subr.mxu0 0.0
    %6993 = vmatpush1.msra.mxu0 %v6754
    %6994 = vmatprep.subr.mxu0 0.0
    %6995 = vmatpush1.msra.mxu0 %v6755
    %6996 = vmatprep.subr.mxu0 0.0
    %6997 = vmatpush1.msra.mxu0 %v6756
    %6998 = vmatprep.subr.mxu0 0.0
    %6999 = vmatpush1.msra.mxu0 %v6757
    %7000 = vmatprep.subr.mxu0 0.0
    %7001 = vmatpush1.msra.mxu0 %v6758
    %7002 = vmatprep.subr.mxu0 0.0
    %7003 = vmatpush1.msra.mxu0 %v6759
    %7004 = vmatprep.subr.mxu0 0.0
    %7005 = vmatpush1.msra.mxu0 %v6760
    %7006 = vmatprep.subr.mxu0 0.0
    %7007 = vmatpush1.msra.mxu0 %v6761
    %7008 = vmatprep.subr.mxu0 0.0
    %7009 = vmatpush1.msra.mxu0 %v6762
    %7010 = vmatprep.subr.mxu0 0.0
    %7011 = vmatpush1.msra.mxu0 %v6763
    %7012 = vmatprep.subr.mxu0 0.0
    %7013 = vmatpush1.msra.mxu0 %v6764
    %7014 = vmatprep.subr.mxu0 0.0
    %7015 = vmatpush1.msra.mxu0 %v6765
    %7016 = vmatprep.subr.mxu0 0.0
    %7017 = vmatpush1.msra.mxu0 %v6766
    %7018 = vmatprep.subr.mxu0 0.0
    %7019 = vmatpush1.msra.mxu0 %v6767
    %7020 = vmatprep.subr.mxu0 0.0
    %7021 = vmatpush1.msra.mxu0 %v6768
    %7022 = vmatprep.subr.mxu0 0.0
    %7023 = vmatpush1.msra.mxu0 %v6769
    %7024 = vmatprep.subr.mxu0 0.0
    %7025 = vmatpush1.msra.mxu0 %v6770
    %7026 = vmatprep.subr.mxu0 0.0
    %7027 = vmatpush1.msra.mxu0 %v6771
    %7028 = vmatprep.subr.mxu0 0.0
    %7029 = vmatpush1.msra.mxu0 %v6772
    %7030 = vmatprep.mubr.f32.mxu0 %v6342
    %7031 = vmatmul.mubr.f32.gmra.mrb[0].mxu0 %v6341
    %v7032 = vpop.f32.mrb[0].mxu0
    %v7033 = vadd.f32 %v6958, %v7032
    %v7034 = vpop.f32.mrb[0].mxu0
    %7035 = vmatprep.mubr.f32.mxu0 %v6353
    %7036 = vmatmul.mubr.f32.gmra.mrb[0].mxu0 %v6352
    %v7037 = vpop.f32.mrb[0].mxu0
    %v7038 = vadd.f32 %v6963, %v7037
    %v7039 = vpop.f32.mrb[0].mxu0
    %7040 = vdwg.mxu0
    %7041 = vmatprep.subr.mxu0 0.0
    %7042 = vmatpush1.msra.mxu0 %v6773
    %7043 = vmatprep.subr.mxu0 0.0
    %7044 = vmatpush1.msra.mxu0 %v6774
    %7045 = vmatprep.subr.mxu0 0.0
    %7046 = vmatpush1.msra.mxu0 %v6775
    %7047 = vmatprep.subr.mxu0 0.0
    %7048 = vmatpush1.msra.mxu0 %v6776
    %7049 = vmatprep.subr.mxu0 0.0
    %7050 = vmatpush1.msra.mxu0 %v6777
    %7051 = vmatprep.subr.mxu0 0.0
    %7052 = vmatpush1.msra.mxu0 %v6778
    %7053 = vmatprep.subr.mxu0 0.0
    %7054 = vmatpush1.msra.mxu0 %v6779
    %7055 = vmatprep.subr.mxu0 0.0
    %7056 = vmatpush1.msra.mxu0 %v6780
    %7057 = vmatprep.subr.mxu0 0.0
    %7058 = vmatpush1.msra.mxu0 %v6781
    %7059 = vmatprep.subr.mxu0 0.0
    %7060 = vmatpush1.msra.mxu0 %v6782
    %7061 = vmatprep.subr.mxu0 0.0
    %7062 = vmatpush1.msra.mxu0 %v6783
    %7063 = vmatprep.subr.mxu0 0.0
    %7064 = vmatpush1.msra.mxu0 %v6784
    %7065 = vmatprep.subr.mxu0 0.0
    %7066 = vmatpush1.msra.mxu0 %v6785
    %7067 = vmatprep.subr.mxu0 0.0
    %7068 = vmatpush1.msra.mxu0 %v6786
    %7069 = vmatprep.subr.mxu0 0.0
    %7070 = vmatpush1.msra.mxu0 %v6787
    %7071 = vmatprep.subr.mxu0 0.0
    %7072 = vmatpush1.msra.mxu0 %v6788
    %7073 = vmatprep.subr.mxu0 0.0
    %7074 = vmatpush1.msra.mxu0 %v6789
    %7075 = vmatprep.subr.mxu0 0.0
    %7076 = vmatpush1.msra.mxu0 %v6790
    %7077 = vmatprep.subr.mxu0 0.0
    %7078 = vmatpush1.msra.mxu0 %v6791
    %7079 = vmatprep.subr.mxu0 0.0
    %7080 = vmatpush1.msra.mxu0 %v6792
    %7081 = vmatprep.subr.mxu0 0.0
    %7082 = vmatpush1.msra.mxu0 %v6793
    %7083 = vmatprep.subr.mxu0 0.0
    %7084 = vmatpush1.msra.mxu0 %v6794
    %7085 = vmatprep.subr.mxu0 0.0
    %7086 = vmatpush1.msra.mxu0 %v6795
    %7087 = vmatprep.subr.mxu0 0.0
    %7088 = vmatpush1.msra.mxu0 %v6796
    %7089 = vmatprep.subr.mxu0 0.0
    %7090 = vmatpush1.msra.mxu0 %v6797
    %7091 = vmatprep.subr.mxu0 0.0
    %7092 = vmatpush1.msra.mxu0 %v6798
    %7093 = vmatprep.subr.mxu0 0.0
    %7094 = vmatpush1.msra.mxu0 %v6799
    %7095 = vmatprep.subr.mxu0 0.0
    %7096 = vmatpush1.msra.mxu0 %v6800
    %7097 = vmatprep.subr.mxu0 0.0
    %7098 = vmatpush1.msra.mxu0 %v6801
    %7099 = vmatprep.subr.mxu0 0.0
    %7100 = vmatpush1.msra.mxu0 %v6802
    %7101 = vmatprep.subr.mxu0 0.0
    %7102 = vmatpush1.msra.mxu0 %v6803
    %7103 = vmatprep.subr.mxu0 0.0
    %7104 = vmatpush1.msra.mxu0 %v6804
    %7105 = vmatprep.mubr.f32.mxu0 %v6344
    %7106 = vmatmul.mubr.f32.gmra.mrb[0].mxu0 %v6343
    %v7107 = vpop.f32.mrb[0].mxu0
    %v7108 = vadd.f32 %v7033, %v7107
    %v7109 = vpop.f32.mrb[0].mxu0
    %7110 = vmatprep.mubr.f32.mxu0 %v6355
    %7111 = vmatmul.mubr.f32.gmra.mrb[0].mxu0 %v6354
    %v7112 = vpop.f32.mrb[0].mxu0
    %v7113 = vadd.f32 %v7038, %v7112
    %v7114 = vpop.f32.mrb[0].mxu0
    %7115 = vdwg.mxu0
    %7116 = vmatprep.subr.mxu0 0.0
    %7117 = vmatpush1.msra.mxu0 %v6805
    %7118 = vmatprep.subr.mxu0 0.0
    %7119 = vmatpush1.msra.mxu0 %v6806
    %7120 = vmatprep.subr.mxu0 0.0
    %7121 = vmatpush1.msra.mxu0 %v6807
    %7122 = vmatprep.subr.mxu0 0.0
    %7123 = vmatpush1.msra.mxu0 %v6808
    %7124 = vmatprep.subr.mxu0 0.0
    %7125 = vmatpush1.msra.mxu0 %v6809
    %7126 = vmatprep.subr.mxu0 0.0
    %7127 = vmatpush1.msra.mxu0 %v6810
    %7128 = vmatprep.subr.mxu0 0.0
    %7129 = vmatpush1.msra.mxu0 %v6811
    %7130 = vmatprep.subr.mxu0 0.0
    %7131 = vmatpush1.msra.mxu0 %v6812
    %7132 = vmatprep.subr.mxu0 0.0
    %7133 = vmatpush1.msra.mxu0 %v6813
    %7134 = vmatprep.subr.mxu0 0.0
    %7135 = vmatpush1.msra.mxu0 %v6814
    %7136 = vmatprep.subr.mxu0 0.0
    %7137 = vmatpush1.msra.mxu0 %v6815
    %7138 = vmatprep.subr.mxu0 0.0
    %7139 = vmatpush1.msra.mxu0 %v6816
    %7140 = vmatprep.subr.mxu0 0.0
    %7141 = vmatpush1.msra.mxu0 %v6817
    %7142 = vmatprep.subr.mxu0 0.0
    %7143 = vmatpush1.msra.mxu0 %v6818
    %7144 = vmatprep.subr.mxu0 0.0
    %7145 = vmatpush1.msra.mxu0 %v6819
    %7146 = vmatprep.subr.mxu0 0.0
    %7147 = vmatpush1.msra.mxu0 %v6820
    %7148 = vmatprep.subr.mxu0 0.0
    %7149 = vmatpush1.msra.mxu0 %v6821
    %7150 = vmatprep.subr.mxu0 0.0
    %7151 = vmatpush1.msra.mxu0 %v6822
    %7152 = vmatprep.subr.mxu0 0.0
    %7153 = vmatpush1.msra.mxu0 %v6823
    %7154 = vmatprep.subr.mxu0 0.0
    %7155 = vmatpush1.msra.mxu0 %v6824
    %7156 = vmatprep.subr.mxu0 0.0
    %7157 = vmatpush1.msra.mxu0 %v6825
    %7158 = vmatprep.subr.mxu0 0.0
    %7159 = vmatpush1.msra.mxu0 %v6826
    %7160 = vmatprep.subr.mxu0 0.0
    %7161 = vmatpush1.msra.mxu0 %v6827
    %7162 = vmatprep.subr.mxu0 0.0
    %7163 = vmatpush1.msra.mxu0 %v6828
    %7164 = vmatprep.subr.mxu0 0.0
    %7165 = vmatpush1.msra.mxu0 %v6829
    %7166 = vmatprep.subr.mxu0 0.0
    %7167 = vmatpush1.msra.mxu0 %v6830
    %7168 = vmatprep.subr.mxu0 0.0
    %7169 = vmatpush1.msra.mxu0 %v6831
    %7170 = vmatprep.subr.mxu0 0.0
    %7171 = vmatpush1.msra.mxu0 %v6832
    %7172 = vmatprep.subr.mxu0 0.0
    %7173 = vmatpush1.msra.mxu0 %v6833
    %7174 = vmatprep.subr.mxu0 0.0
    %7175 = vmatpush1.msra.mxu0 %v6834
    %7176 = vmatprep.subr.mxu0 0.0
    %7177 = vmatpush1.msra.mxu0 %v6835
    %7178 = vmatprep.subr.mxu0 0.0
    %7179 = vmatpush1.msra.mxu0 %v6836
    %7180 = vmatprep.mubr.f32.mxu0 %v6346
    %7181 = vmatmul.mubr.f32.gmra.mrb[0].mxu0 %v6345
    %v7182 = vpop.f32.mrb[0].mxu0
    %v7183 = vadd.f32 %v7108, %v7182
    %v7184 = vpop.f32.mrb[0].mxu0
    %7185 = vmatprep.mubr.f32.mxu0 %v6357
    %7186 = vmatmul.mubr.f32.gmra.mrb[0].mxu0 %v6356
    %v7187 = vpop.f32.mrb[0].mxu0
    %v7188 = vadd.f32 %v7113, %v7187
    %v7189 = vpop.f32.mrb[0].mxu0
    %7190 = vdwg.mxu0
    %7191 = vmatprep.subr.mxu0 0.0
    %7192 = vmatpush1.msra.mxu0 %v6837
    %7193 = vmatprep.subr.mxu0 0.0
    %7194 = vmatpush1.msra.mxu0 %v6838
    %7195 = vmatprep.subr.mxu0 0.0
    %7196 = vmatpush1.msra.mxu0 %v6839
    %7197 = vmatprep.subr.mxu0 0.0
    %7198 = vmatpush1.msra.mxu0 %v6840
    %7199 = vmatprep.subr.mxu0 0.0
    %7200 = vmatpush1.msra.mxu0 %v6841
    %7201 = vmatprep.subr.mxu0 0.0
    %7202 = vmatpush1.msra.mxu0 %v6842
    %7203 = vmatprep.subr.mxu0 0.0
    %7204 = vmatpush1.msra.mxu0 %v6843
    %7205 = vmatprep.subr.mxu0 0.0
    %7206 = vmatpush1.msra.mxu0 %v6844
    %7207 = vmatprep.subr.mxu0 0.0
    %7208 = vmatpush1.msra.mxu0 %v6845
    %7209 = vmatprep.subr.mxu0 0.0
    %7210 = vmatpush1.msra.mxu0 %v6846
    %7211 = vmatprep.subr.mxu0 0.0
    %7212 = vmatpush1.msra.mxu0 %v6847
    %7213 = vmatprep.subr.mxu0 0.0
    %7214 = vmatpush1.msra.mxu0 %v6848
    %7215 = vmatprep.subr.mxu0 0.0
    %7216 = vmatpush1.msra.mxu0 %v6849
    %7217 = vmatprep.subr.mxu0 0.0
    %7218 = vmatpush1.msra.mxu0 %v6850
    %7219 = vmatprep.subr.mxu0 0.0
    %7220 = vmatpush1.msra.mxu0 %v6851
    %7221 = vmatprep.subr.mxu0 0.0
    %7222 = vmatpush1.msra.mxu0 %v6852
    %7223 = vmatprep.subr.mxu0 0.0
    %7224 = vmatpush1.msra.mxu0 %v6853
    %7225 = vmatprep.subr.mxu0 0.0
    %7226 = vmatpush1.msra.mxu0 %v6854
    %7227 = vmatprep.subr.mxu0 0.0
    %7228 = vmatpush1.msra.mxu0 %v6855
    %7229 = vmatprep.subr.mxu0 0.0
    %7230 = vmatpush1.msra.mxu0 %v6856
    %7231 = vmatprep.subr.mxu0 0.0
    %7232 = vmatpush1.msra.mxu0 %v6857
    %7233 = vmatprep.subr.mxu0 0.0
    %7234 = vmatpush1.msra.mxu0 %v6858
    %7235 = vmatprep.subr.mxu0 0.0
    %7236 = vmatpush1.msra.mxu0 %v6859
    %7237 = vmatprep.subr.mxu0 0.0
    %7238 = vmatpush1.msra.mxu0 %v6860
    %7239 = vmatprep.subr.mxu0 0.0
    %7240 = vmatpush1.msra.mxu0 %v6861
    %7241 = vmatprep.subr.mxu0 0.0
    %7242 = vmatpush1.msra.mxu0 %v6862
    %7243 = vmatprep.subr.mxu0 0.0
    %7244 = vmatpush1.msra.mxu0 %v6863
    %7245 = vmatprep.subr.mxu0 0.0
    %7246 = vmatpush1.msra.mxu0 %v6864
    %7247 = vmatprep.subr.mxu0 0.0
    %7248 = vmatpush1.msra.mxu0 %v6865
    %7249 = vmatprep.subr.mxu0 0.0
    %7250 = vmatpush1.msra.mxu0 %v6866
    %7251 = vmatprep.subr.mxu0 0.0
    %7252 = vmatpush1.msra.mxu0 %v6867
    %7253 = vmatprep.subr.mxu0 0.0
    %7254 = vmatpush1.msra.mxu0 %v6868
    %7255 = vmatprep.mubr.f32.mxu0 %v6348
    %7256 = vmatmul.mubr.f32.gmra.mrb[0].mxu0 %v6347
    %v7257 = vpop.f32.mrb[0].mxu0
    %v7258 = vadd.f32 %v7183, %v7257
    %v7259 = vpop.f32.mrb[0].mxu0
    %7260 = vmatprep.mubr.f32.mxu0 %v6359
    %7261 = vmatmul.mubr.f32.gmra.mrb[0].mxu0 %v6358
    %v7262 = vpop.f32.mrb[0].mxu0
    %v7263 = vadd.f32 %v7188, %v7262
    %v7264 = vpop.f32.mrb[0].mxu0
    %7265 = vdwg.mxu0
    %7266 = vmatprep.subr.mxu0 0.0
    %7267 = vmatpush1.msra.mxu0 %v6869
    %7268 = vmatprep.subr.mxu0 0.0
    %7269 = vmatpush1.msra.mxu0 %v6870
    %7270 = vmatprep.subr.mxu0 0.0
    %7271 = vmatpush1.msra.mxu0 %v6871
    %7272 = vmatprep.subr.mxu0 0.0
    %7273 = vmatpush1.msra.mxu0 %v6872
    %7274 = vmatprep.subr.mxu0 0.0
    %7275 = vmatpush1.msra.mxu0 %v6873
    %7276 = vmatprep.subr.mxu0 0.0
    %7277 = vmatpush1.msra.mxu0 %v6874
    %7278 = vmatprep.subr.mxu0 0.0
    %7279 = vmatpush1.msra.mxu0 %v6875
    %7280 = vmatprep.subr.mxu0 0.0
    %7281 = vmatpush1.msra.mxu0 %v6876
    %7282 = vmatprep.subr.mxu0 0.0
    %7283 = vmatpush1.msra.mxu0 %v6877
    %7284 = vmatprep.subr.mxu0 0.0
    %7285 = vmatpush1.msra.mxu0 %v6878
    %7286 = vmatprep.subr.mxu0 0.0
    %7287 = vmatpush1.msra.mxu0 %v6889
    %7288 = vmatprep.subr.mxu0 0.0
    %7289 = vmatpush1.msra.mxu0 0.0
    %7290 = vmatprep.subr.mxu0 0.0
    %7291 = vmatpush1.msra.mxu0 0.0
    %7292 = vmatprep.subr.mxu0 0.0
    %7293 = vmatpush1.msra.mxu0 0.0
    %7294 = vmatprep.subr.mxu0 0.0
    %7295 = vmatpush1.msra.mxu0 0.0
    %7296 = vmatprep.subr.mxu0 0.0
    %7297 = vmatpush1.msra.mxu0 0.0
    %7298 = vmatprep.subr.mxu0 0.0
    %7299 = vmatpush1.msra.mxu0 0.0
    %7300 = vmatprep.subr.mxu0 0.0
    %7301 = vmatpush1.msra.mxu0 0.0
    %7302 = vmatprep.subr.mxu0 0.0
    %7303 = vmatpush1.msra.mxu0 0.0
    %7304 = vmatprep.subr.mxu0 0.0
    %7305 = vmatpush1.msra.mxu0 0.0
    %7306 = vmatprep.subr.mxu0 0.0
    %7307 = vmatpush1.msra.mxu0 0.0
    %7308 = vmatprep.subr.mxu0 0.0
    %7309 = vmatpush1.msra.mxu0 0.0
    %7310 = vmatprep.subr.mxu0 0.0
    %7311 = vmatpush1.msra.mxu0 0.0
    %7312 = vmatprep.subr.mxu0 0.0
    %7313 = vmatpush1.msra.mxu0 0.0
    %7314 = vmatprep.subr.mxu0 0.0
    %7315 = vmatpush1.msra.mxu0 0.0
    %7316 = vmatprep.subr.mxu0 0.0
    %7317 = vmatpush1.msra.mxu0 0.0
    %7318 = vmatprep.subr.mxu0 0.0
    %7319 = vmatpush1.msra.mxu0 0.0
    %7320 = vmatprep.subr.mxu0 0.0
    %7321 = vmatpush1.msra.mxu0 0.0
    %7322 = vmatprep.subr.mxu0 0.0
    %7323 = vmatpush1.msra.mxu0 0.0
    %7324 = vmatprep.subr.mxu0 0.0
    %7325 = vmatpush1.msra.mxu0 0.0
    %7326 = vmatprep.subr.mxu0 0.0
    %7327 = vmatpush1.msra.mxu0 0.0
    %7328 = vmatprep.subr.mxu0 0.0
    %7329 = vmatpush1.msra.mxu0 0.0
    %7330 = vmatprep.mubr.f32.mxu0 0.0
    %7331 = vmatmul.mubr.f32.gmra.mrb[0].mxu0 %v6882
    %v7332 = vpop.f32.mrb[0].mxu0
    %v7333 = vadd.f32 %v7258, %v7332
    %v7334 = vpop.f32.mrb[0].mxu0
    %7335 = vmatprep.mubr.f32.mxu0 0.0
    %7336 = vmatmul.mubr.f32.gmra.mrb[0].mxu0 %v6885
    %v7337 = vpop.f32.mrb[0].mxu0
    %v7338 = vadd.f32 %v7263, %v7337
    %v7339 = vpop.f32.mrb[0].mxu0
    %7340 = vdwg.mxu0
    %vm7341 = vcmask 523264
    %7342 = vst.msk [vmem:[#allocation2] sm:$0xff] %vm7341, %v7333
    %7343 = vst.msk [vmem:[#allocation2 + $0x8] sm:$0xff] %vm7341, %v7338
    %v7344 = vld [vmem:[#allocation2] sm:$0x1]
    %vm7345 = vcmask 196608
    %7346 = vst.msk [vmem:[#allocation3] sm:$0x1] %vm7345, %v7344
    %v7347 = vld [vmem:[#allocation2] sm:$0x1]
    %v7350 = vunpack.c.l.s4 1983009808
    %v7351 = vunpack.c.0.s8 %v7350
    %v7352 = vlaneseq
    %v7353 = vshrl.u32 %v7352, 7
    %v7354 = vsub.s32 %v7351, %v7353
    %v7355 = vrot.slane %v7347, %v7354
    %7356 = vrot.lane.b32.xlu0 %v7355, 103
    %v7357 = vpop.permute.xlu0 %7356
    %7359 = vst.msk [vmem:[#allocation3 + $0x1] sm:$0x1] %vm7345, %v7357
    %v7360 = vld [vmem:[#allocation2 + $0x1] sm:$0x1]
    %v7363 = vunpack.c.l.s4 1983009808
    %v7364 = vunpack.c.0.s8 %v7363
    %v7365 = vlaneseq
    %v7366 = vshrl.u32 %v7365, 7
    %v7367 = vsub.s32 %v7364, %v7366
    %v7368 = vrot.slane %v7360, %v7367
    %7369 = vrot.lane.b32.xlu0 %v7368, 25
    %v7370 = vpop.permute.xlu0 %7369
    %vm7372 = vcmask 401608
    %7373 = vst.msk [vmem:[#allocation3] sm:$0x1] %vm7372, %v7370
    %v7374 = vld [vmem:[#allocation2 + $0x1] sm:$0x1]
    %7375 = vst.msk [vmem:[#allocation3 + $0x1] sm:$0x1] %vm7372, %v7374
    %v7376 = vld [vmem:[#allocation2 + $0x2] sm:$0x1]
    %v7379 = vunpack.c.l.s4 1983009808
    %v7380 = vunpack.c.0.s8 %v7379
    %v7381 = vlaneseq
    %v7382 = vshrl.u32 %v7381, 7
    %v7383 = vsub.s32 %v7380, %v7382
    %v7384 = vrot.slane %v7376, %v7383
    %7385 = vrot.lane.b32.xlu0 %v7384, 50
    %v7386 = vpop.permute.xlu0 %7385
    %vm7388 = vcmask 606608
    %7389 = vst.msk [vmem:[#allocation3] sm:$0x1] %vm7388, %v7386
    %v7390 = vld [vmem:[#allocation2 + $0x2] sm:$0x1]
    %v7393 = vunpack.c.l.s4 1983009808
    %v7394 = vunpack.c.0.s8 %v7393
    %v7395 = vlaneseq
    %v7396 = vshrl.u32 %v7395, 7
    %v7397 = vsub.s32 %v7394, %v7396
    %v7398 = vrot.slane %v7390, %v7397
    %7399 = vrot.lane.b32.xlu0 %v7398, 25
    %v7400 = vpop.permute.xlu0 %7399
    %7402 = vst.msk [vmem:[#allocation3 + $0x1] sm:$0x1] %vm7388, %v7400
    %v7403 = vld [vmem:[#allocation2 + $0x3] sm:$0x1]
    %v7406 = vunpack.c.l.s4 1983009808
    %v7407 = vunpack.c.0.s8 %v7406
    %v7408 = vlaneseq
    %v7409 = vshrl.u32 %v7408, 7
    %v7410 = vsub.s32 %v7407, %v7409
    %v7411 = vrot.slane %v7403, %v7410
    %7412 = vrot.lane.b32.xlu0 %v7411, 75
    %v7413 = vpop.permute.xlu0 %7412
    %vm7415 = vcmask 811608
    %7416 = vst.msk [vmem:[#allocation3] sm:$0x1] %vm7415, %v7413
    %v7417 = vld [vmem:[#allocation2 + $0x3] sm:$0x1]
    %v7420 = vunpack.c.l.s4 1983009808
    %v7421 = vunpack.c.0.s8 %v7420
    %v7422 = vlaneseq
    %v7423 = vshrl.u32 %v7422, 7
    %v7424 = vsub.s32 %v7421, %v7423
    %v7425 = vrot.slane %v7417, %v7424
    %7426 = vrot.lane.b32.xlu0 %v7425, 50
    %v7427 = vpop.permute.xlu0 %7426
    %7429 = vst.msk [vmem:[#allocation3 + $0x1] sm:$0x1] %vm7415, %v7427
    %v7430 = vld [vmem:[#allocation2 + $0x4] sm:$0x1]
    %v7433 = vunpack.c.l.s4 1983009808
    %v7434 = vunpack.c.0.s8 %v7433
    %v7435 = vlaneseq
    %v7436 = vshrl.u32 %v7435, 7
    %v7437 = vsub.s32 %v7434, %v7436
    %v7438 = vrot.slane %v7430, %v7437
    %7439 = vrot.lane.b32.xlu0 %v7438, 100
    %v7440 = vpop.permute.xlu0 %7439
    %vm7442 = vcmask 1016608
    %7443 = vst.msk [vmem:[#allocation3] sm:$0x1] %vm7442, %v7440
    %v7444 = vld [vmem:[#allocation2 + $0x4] sm:$0x1]
    %v7447 = vunpack.c.l.s4 1983009808
    %v7448 = vunpack.c.0.s8 %v7447
    %v7449 = vlaneseq
    %v7450 = vshrl.u32 %v7449, 7
    %v7451 = vsub.s32 %v7448, %v7450
    %v7452 = vrot.slane %v7444, %v7451
    %7453 = vrot.lane.b32.xlu0 %v7452, 75
    %v7454 = vpop.permute.xlu0 %7453
    %7456 = vst.msk [vmem:[#allocation3 + $0x1] sm:$0x1] %vm7442, %v7454
    %v7457 = vld [vmem:[#allocation2 + $0x5] sm:$0x1]
    %v7460 = vunpack.c.l.s4 1983009808
    %v7461 = vunpack.c.0.s8 %v7460
    %v7462 = vlaneseq
    %v7463 = vshrl.u32 %v7462, 7
    %v7464 = vsub.s32 %v7461, %v7463
    %v7465 = vrot.slane %v7457, %v7464
    %7466 = vrot.lane.b32.xlu0 %v7465, 125
    %v7467 = vpop.permute.xlu0 %7466
    %v7468 = vrot.slane %v7467, 6
    %vm7469 = vcmask 1022976
    %v7470 = vsel %vm7469, %v7468, %v7467
    %vm7472 = vcmask 1041384
    %vm7473 = vcmask 174082
    %vm7474 = vmor %vm7473, %vm7472
    %7475 = vst.msk [vmem:[#allocation3] sm:$0x5] %vm7474, %v7470
    %v7476 = vld [vmem:[#allocation2 + $0x5] sm:$0x1]
    %v7479 = vunpack.c.l.s4 1983009808
    %v7480 = vunpack.c.0.s8 %v7479
    %v7481 = vlaneseq
    %v7482 = vshrl.u32 %v7481, 7
    %v7483 = vsub.s32 %v7480, %v7482
    %v7484 = vrot.slane %v7476, %v7483
    %7485 = vrot.lane.b32.xlu0 %v7484, 100
    %v7486 = vpop.permute.xlu0 %7485
    %v7487 = vrot.slane %v7486, 6
    %v7488 = vsel %vm389, %v7487, %v7486
    %7490 = vst.msk [vmem:[#allocation3 + $0x1] sm:$0x5] %vm7474, %v7488
    %v7491 = vld [vmem:[#allocation2 + $0x6] sm:$0x1]
    %v7494 = vunpack.c.l.s4 1983009808
    %v7495 = vunpack.c.0.s8 %v7494
    %v7496 = vlaneseq
    %v7497 = vshrl.u32 %v7496, 7
    %v7498 = vsub.s32 %v7495, %v7497
    %v7499 = vrot.slane %v7491, %v7498
    %7500 = vrot.lane.b32.xlu0 %v7499, 22
    %v7501 = vpop.permute.xlu0 %7500
    %vm7503 = vcmask 377008
    %7504 = vst.msk [vmem:[#allocation3 + $0x2] sm:$0x1] %vm7503, %v7501
    %v7505 = vld [vmem:[#allocation2 + $0x6] sm:$0x1]
    %v7508 = vunpack.c.l.s4 1983009808
    %v7509 = vunpack.c.0.s8 %v7508
    %v7510 = vlaneseq
    %v7511 = vshrl.u32 %v7510, 7
    %v7512 = vsub.s32 %v7509, %v7511
    %v7513 = vrot.slane %v7505, %v7512
    %7514 = vrot.lane.b32.xlu0 %v7513, 125
    %v7515 = vpop.permute.xlu0 %7514
    %7517 = vst.msk [vmem:[#allocation3 + $0x3] sm:$0x1] %vm7503, %v7515
    %v7518 = vld [vmem:[#allocation2 + $0x7] sm:$0x1]
    %v7521 = vunpack.c.l.s4 1983009808
    %v7522 = vunpack.c.0.s8 %v7521
    %v7523 = vlaneseq
    %v7524 = vshrl.u32 %v7523, 7
    %v7525 = vsub.s32 %v7522, %v7524
    %v7526 = vrot.slane %v7518, %v7525
    %7527 = vrot.lane.b32.xlu0 %v7526, 47
    %v7528 = vpop.permute.xlu0 %7527
    %vm7530 = vcmask 582008
    %7531 = vst.msk [vmem:[#allocation3 + $0x2] sm:$0x1] %vm7530, %v7528
    %v7532 = vld [vmem:[#allocation2 + $0x7] sm:$0x1]
    %v7535 = vunpack.c.l.s4 1983009808
    %v7536 = vunpack.c.0.s8 %v7535
    %v7537 = vlaneseq
    %v7538 = vshrl.u32 %v7537, 7
    %v7539 = vsub.s32 %v7536, %v7538
    %v7540 = vrot.slane %v7532, %v7539
    %7541 = vrot.lane.b32.xlu0 %v7540, 22
    %v7542 = vpop.permute.xlu0 %7541
    %7544 = vst.msk [vmem:[#allocation3 + $0x3] sm:$0x1] %vm7530, %v7542
    %v7545 = vld [vmem:[#allocation2 + $0x8] sm:$0x1]
    %v7548 = vunpack.c.l.s4 1983009808
    %v7549 = vunpack.c.0.s8 %v7548
    %v7550 = vlaneseq
    %v7551 = vshrl.u32 %v7550, 7
    %v7552 = vsub.s32 %v7549, %v7551
    %v7553 = vrot.slane %v7545, %v7552
    %7554 = vrot.lane.b32.xlu0 %v7553, 72
    %v7555 = vpop.permute.xlu0 %7554
    %vm7557 = vcmask 787008
    %7558 = vst.msk [vmem:[#allocation3 + $0x2] sm:$0x1] %vm7557, %v7555
    %v7559 = vld [vmem:[#allocation2 + $0x8] sm:$0x1]
    %v7562 = vunpack.c.l.s4 1983009808
    %v7563 = vunpack.c.0.s8 %v7562
    %v7564 = vlaneseq
    %v7565 = vshrl.u32 %v7564, 7
    %v7566 = vsub.s32 %v7563, %v7565
    %v7567 = vrot.slane %v7559, %v7566
    %7568 = vrot.lane.b32.xlu0 %v7567, 47
    %v7569 = vpop.permute.xlu0 %7568
    %7571 = vst.msk [vmem:[#allocation3 + $0x3] sm:$0x1] %vm7557, %v7569
    %v7572 = vld [vmem:[#allocation2 + $0x9] sm:$0x1]
    %v7575 = vunpack.c.l.s4 1983009808
    %v7576 = vunpack.c.0.s8 %v7575
    %v7577 = vlaneseq
    %v7578 = vshrl.u32 %v7577, 7
    %v7579 = vsub.s32 %v7576, %v7578
    %v7580 = vrot.slane %v7572, %v7579
    %7581 = vrot.lane.b32.xlu0 %v7580, 97
    %v7582 = vpop.permute.xlu0 %7581
    %vm7584 = vcmask 992008
    %7585 = vst.msk [vmem:[#allocation3 + $0x2] sm:$0x1] %vm7584, %v7582
    %v7586 = vld [vmem:[#allocation2 + $0x9] sm:$0x1]
    %v7589 = vunpack.c.l.s4 1983009808
    %v7590 = vunpack.c.0.s8 %v7589
    %v7591 = vlaneseq
    %v7592 = vshrl.u32 %v7591, 7
    %v7593 = vsub.s32 %v7590, %v7592
    %v7594 = vrot.slane %v7586, %v7593
    %7595 = vrot.lane.b32.xlu0 %v7594, 72
    %v7596 = vpop.permute.xlu0 %7595
    %7598 = vst.msk [vmem:[#allocation3 + $0x3] sm:$0x1] %vm7584, %v7596
    %v7599 = vld [vmem:[#allocation2 + $0xa] sm:$0x1]
    %v7602 = vunpack.c.l.s4 1983009808
    %v7603 = vunpack.c.0.s8 %v7602
    %v7604 = vlaneseq
    %v7605 = vshrl.u32 %v7604, 7
    %v7606 = vsub.s32 %v7603, %v7605
    %v7607 = vrot.slane %v7599, %v7606
    %7608 = vrot.lane.b32.xlu0 %v7607, 122
    %v7609 = vpop.permute.xlu0 %7608
    %v7610 = vrot.slane %v7609, 6
    %vm7611 = vcmask 998400
    %v7612 = vsel %vm7611, %v7610, %v7609
    %vm7614 = vcmask 1041360
    %vm7615 = vcmask 149506
    %vm7616 = vmor %vm7615, %vm7614
    %7617 = vst.msk [vmem:[#allocation3 + $0x2] sm:$0x5] %vm7616, %v7612
    %v7618 = vld [vmem:[#allocation2 + $0xa] sm:$0x1]
    %v7621 = vunpack.c.l.s4 1983009808
    %v7622 = vunpack.c.0.s8 %v7621
    %v7623 = vlaneseq
    %v7624 = vshrl.u32 %v7623, 7
    %v7625 = vsub.s32 %v7622, %v7624
    %v7626 = vrot.slane %v7618, %v7625
    %7627 = vrot.lane.b32.xlu0 %v7626, 97
    %v7628 = vpop.permute.xlu0 %7627
    %v7629 = vrot.slane %v7628, 6
    %vm7630 = vcmask 793600
    %v7631 = vsel %vm7630, %v7629, %v7628
    %7633 = vst.msk [vmem:[#allocation3 + $0x3] sm:$0x5] %vm7616, %v7631
    %v7634 = vld [vmem:[#allocation2 + $0xb] sm:$0x1]
    %v7637 = vunpack.c.l.s4 1983009808
    %v7638 = vunpack.c.0.s8 %v7637
    %v7639 = vlaneseq
    %v7640 = vshrl.u32 %v7639, 7
    %v7641 = vsub.s32 %v7638, %v7640
    %v7642 = vrot.slane %v7634, %v7641
    %7643 = vrot.lane.b32.xlu0 %v7642, 19
    %v7644 = vpop.permute.xlu0 %7643
    %vm7646 = vcmask 352408
    %7647 = vst.msk [vmem:[#allocation3 + $0x4] sm:$0x1] %vm7646, %v7644
    %v7648 = vld [vmem:[#allocation2 + $0xb] sm:$0x1]
    %v7651 = vunpack.c.l.s4 1983009808
    %v7652 = vunpack.c.0.s8 %v7651
    %v7653 = vlaneseq
    %v7654 = vshrl.u32 %v7653, 7
    %v7655 = vsub.s32 %v7652, %v7654
    %v7656 = vrot.slane %v7648, %v7655
    %7657 = vrot.lane.b32.xlu0 %v7656, 122
    %v7658 = vpop.permute.xlu0 %7657
    %7660 = vst.msk [vmem:[#allocation3 + $0x5] sm:$0x1] %vm7646, %v7658
    %v7661 = vld [vmem:[#allocation2 + $0xc] sm:$0x1]
    %v7664 = vunpack.c.l.s4 1983009808
    %v7665 = vunpack.c.0.s8 %v7664
    %v7666 = vlaneseq
    %v7667 = vshrl.u32 %v7666, 7
    %v7668 = vsub.s32 %v7665, %v7667
    %v7669 = vrot.slane %v7661, %v7668
    %7670 = vrot.lane.b32.xlu0 %v7669, 44
    %v7671 = vpop.permute.xlu0 %7670
    %vm7673 = vcmask 557408
    %7674 = vst.msk [vmem:[#allocation3 + $0x4] sm:$0x1] %vm7673, %v7671
    %v7675 = vld [vmem:[#allocation2 + $0xc] sm:$0x1]
    %v7678 = vunpack.c.l.s4 1983009808
    %v7679 = vunpack.c.0.s8 %v7678
    %v7680 = vlaneseq
    %v7681 = vshrl.u32 %v7680, 7
    %v7682 = vsub.s32 %v7679, %v7681
    %v7683 = vrot.slane %v7675, %v7682
    %7684 = vrot.lane.b32.xlu0 %v7683, 19
    %v7685 = vpop.permute.xlu0 %7684
    %7687 = vst.msk [vmem:[#allocation3 + $0x5] sm:$0x1] %vm7673, %v7685
    %v7688 = vld [vmem:[#allocation2 + $0xd] sm:$0x1]
    %v7691 = vunpack.c.l.s4 1983009808
    %v7692 = vunpack.c.0.s8 %v7691
    %v7693 = vlaneseq
    %v7694 = vshrl.u32 %v7693, 7
    %v7695 = vsub.s32 %v7692, %v7694
    %v7696 = vrot.slane %v7688, %v7695
    %7697 = vrot.lane.b32.xlu0 %v7696, 69
    %v7698 = vpop.permute.xlu0 %7697
    %vm7700 = vcmask 762408
    %7701 = vst.msk [vmem:[#allocation3 + $0x4] sm:$0x1] %vm7700, %v7698
    %v7702 = vld [vmem:[#allocation2 + $0xd] sm:$0x1]
    %v7705 = vunpack.c.l.s4 1983009808
    %v7706 = vunpack.c.0.s8 %v7705
    %v7707 = vlaneseq
    %v7708 = vshrl.u32 %v7707, 7
    %v7709 = vsub.s32 %v7706, %v7708
    %v7710 = vrot.slane %v7702, %v7709
    %7711 = vrot.lane.b32.xlu0 %v7710, 44
    %v7712 = vpop.permute.xlu0 %7711
    %7714 = vst.msk [vmem:[#allocation3 + $0x5] sm:$0x1] %vm7700, %v7712
    %v7715 = vld [vmem:[#allocation2 + $0xe] sm:$0x1]
    %v7718 = vunpack.c.l.s4 1983009808
    %v7719 = vunpack.c.0.s8 %v7718
    %v7720 = vlaneseq
    %v7721 = vshrl.u32 %v7720, 7
    %v7722 = vsub.s32 %v7719, %v7721
    %v7723 = vrot.slane %v7715, %v7722
    %7724 = vrot.lane.b32.xlu0 %v7723, 94
    %v7725 = vpop.permute.xlu0 %7724
    %vm7727 = vcmask 967408
    %7728 = vst.msk [vmem:[#allocation3 + $0x4] sm:$0x1] %vm7727, %v7725
    %v7729 = vld [vmem:[#allocation2 + $0xe] sm:$0x1]
    %v7732 = vunpack.c.l.s4 1983009808
    %v7733 = vunpack.c.0.s8 %v7732
    %v7734 = vlaneseq
    %v7735 = vshrl.u32 %v7734, 7
    %v7736 = vsub.s32 %v7733, %v7735
    %v7737 = vrot.slane %v7729, %v7736
    %7738 = vrot.lane.b32.xlu0 %v7737, 69
    %v7739 = vpop.permute.xlu0 %7738
    %7741 = vst.msk [vmem:[#allocation3 + $0x5] sm:$0x1] %vm7727, %v7739
    %v7742 = vld [vmem:[#allocation2 + $0xf] sm:$0x1]
    %v7745 = vunpack.c.l.s4 1983009808
    %v7746 = vunpack.c.0.s8 %v7745
    %v7747 = vlaneseq
    %v7748 = vshrl.u32 %v7747, 7
    %v7749 = vsub.s32 %v7746, %v7748
    %v7750 = vrot.slane %v7742, %v7749
    %7751 = vrot.lane.b32.xlu0 %v7750, 119
    %v7752 = vpop.permute.xlu0 %7751
    %v7753 = vrot.slane %v7752, 6
    %vm7754 = vcmask 973824
    %v7755 = vsel %vm7754, %v7753, %v7752
    %vm7757 = vcmask 1041336
    %vm7758 = vcmask 124930
    %vm7759 = vmor %vm7758, %vm7757
    %7760 = vst.msk [vmem:[#allocation3 + $0x4] sm:$0x5] %vm7759, %v7755
    %v7761 = vld [vmem:[#allocation2 + $0xf] sm:$0x1]
    %v7764 = vunpack.c.l.s4 1983009808
    %v7765 = vunpack.c.0.s8 %v7764
    %v7766 = vlaneseq
    %v7767 = vshrl.u32 %v7766, 7
    %v7768 = vsub.s32 %v7765, %v7767
    %v7769 = vrot.slane %v7761, %v7768
    %7770 = vrot.lane.b32.xlu0 %v7769, 94
    %v7771 = vpop.permute.xlu0 %7770
    %v7772 = vrot.slane %v7771, 6
    %vm7773 = vcmask 769024
    %v7774 = vsel %vm7773, %v7772, %v7771
    %7776 = vst.msk [vmem:[#allocation3 + $0x5] sm:$0x5] %vm7759, %v7774
    %v7777 = vld [vmem:[#allocation3] sm:$0xff]
    %v7778 = vld [vmem:[%s6] sm:$0xff]
    %v7779 = vld [vmem:[%s6 + $0x8] sm:$0xff]
    %v7780 = vld [vmem:[%s6 + $0x10] sm:$0xff]
    %v7781 = vld [vmem:[%s6 + $0x18] sm:$0xff]
    %v7782 = vld [vmem:[%s6 + $0x20] sm:$0xff]
    %v7783 = vld [vmem:[%s6 + $0x28] sm:$0xff]
    %v7784 = vld [vmem:[%s6 + $0x30] sm:$0xff]
    %v7785 = vld [vmem:[%s6 + $0x38] sm:$0xff]
    %v7786 = vld [vmem:[%s6 + $0x40] sm:$0xff]
    %v7787 = vld [vmem:[%s6 + $0x48] sm:$0xff]
    %v7788 = vld [vmem:[%s6 + $0x50] sm:$0xff]
    %v7789 = vld [vmem:[%s6 + $0x58] sm:$0xff]
    %v7790 = vld [vmem:[%s6 + $0x60] sm:$0xff]
    %v7791 = vld [vmem:[%s6 + $0x68] sm:$0xff]
    %v7792 = vld [vmem:[%s6 + $0x70] sm:$0xff]
    %v7793 = vld [vmem:[%s6 + $0x78] sm:$0xff]
    %v7794 = vld [vmem:[%s6 + $0x80] sm:$0xff]
    %v7795 = vld [vmem:[%s6 + $0x88] sm:$0xff]
    %v7796 = vld [vmem:[%s6 + $0x90] sm:$0xff]
    %v7797 = vld [vmem:[%s6 + $0x98] sm:$0xff]
    %v7798 = vld [vmem:[%s6 + $0xa0] sm:$0xff]
    %v7799 = vld [vmem:[%s6 + $0xa8] sm:$0xff]
    %v7800 = vld [vmem:[%s6 + $0xb0] sm:$0xff]
    %v7801 = vld [vmem:[%s6 + $0xb8] sm:$0xff]
    %v7802 = vld [vmem:[%s6 + $0xc0] sm:$0xff]
    %v7803 = vld [vmem:[%s6 + $0xc8] sm:$0xff]
    %v7804 = vld [vmem:[%s6 + $0xd0] sm:$0xff]
    %v7805 = vld [vmem:[%s6 + $0xd8] sm:$0xff]
    %v7806 = vld [vmem:[%s6 + $0xe0] sm:$0xff]
    %v7807 = vld [vmem:[%s6 + $0xe8] sm:$0xff]
    %v7808 = vld [vmem:[%s6 + $0xf0] sm:$0xff]
    %v7809 = vld [vmem:[%s6 + $0xf8] sm:$0xff]
    %v7810 = vld [vmem:[%s6 + $0x100] sm:$0xff]
    %v7811 = vld [vmem:[%s6 + $0x108] sm:$0xff]
    %v7812 = vld [vmem:[%s6 + $0x110] sm:$0xff]
    %v7813 = vld [vmem:[%s6 + $0x118] sm:$0xff]
    %v7814 = vld [vmem:[%s6 + $0x120] sm:$0xff]
    %v7815 = vld [vmem:[%s6 + $0x128] sm:$0xff]
    %v7816 = vld [vmem:[%s6 + $0x130] sm:$0xff]
    %v7817 = vld [vmem:[%s6 + $0x138] sm:$0xff]
    %v7818 = vld [vmem:[%s6 + $0x140] sm:$0xff]
    %v7819 = vld [vmem:[%s6 + $0x148] sm:$0xff]
    %v7820 = vld [vmem:[%s6 + $0x150] sm:$0xff]
    %v7821 = vld [vmem:[%s6 + $0x158] sm:$0xff]
    %v7822 = vld [vmem:[%s6 + $0x160] sm:$0xff]
    %v7823 = vld [vmem:[%s6 + $0x168] sm:$0xff]
    %v7824 = vld [vmem:[%s6 + $0x170] sm:$0xff]
    %v7825 = vld [vmem:[%s6 + $0x178] sm:$0xff]
    %v7826 = vld [vmem:[%s6 + $0x180] sm:$0xff]
    %v7827 = vld [vmem:[%s6 + $0x188] sm:$0xff]
    %v7828 = vld [vmem:[%s7] sm:$0x1]
    %v7830 = vlaneseq
    %v7831 = vshrl.u32 %v7830, 7
    %v7832 = vsub.s32 0, %v7831
    %v7833 = vrot.slane %v7828, %v7832
    %v7836 = vcombine.high %v7777, %v7777
    %v7838 = vunpack.c.l.s4 1983009808
    %v7839 = vunpack.c.0.s8 %v7838
    %v7840 = vlaneseq
    %v7841 = vshrl.u32 %v7840, 7
    %v7842 = vsub.s32 %v7839, %v7841
    %v7843 = vrot.slane %v7777, %v7842
    %v7845 = vunpack.c.l.s4 1983009808
    %v7846 = vunpack.c.0.s8 %v7845
    %v7847 = vlaneseq
    %v7848 = vshrl.u32 %v7847, 7
    %v7849 = vsub.s32 %v7846, %v7848
    %v7850 = vrot.slane %v7836, %v7849
    %v7851 = vcombine.high %v7843, %v7843
    %v7852 = vcombine.high %v7850, %v7850
    %v7856 = vsel %vm4372, %v7852, 0
    %7858 = vmatprep.subr.mxu0 0.0
    %7859 = vmatpush1.msra.mxu0 %v7778
    %7860 = vmatprep.subr.mxu0 0.0
    %7861 = vmatpush1.msra.mxu0 %v7779
    %7862 = vmatprep.subr.mxu0 0.0
    %7863 = vmatpush1.msra.mxu0 %v7780
    %7864 = vmatprep.subr.mxu0 0.0
    %7865 = vmatpush1.msra.mxu0 %v7781
    %7866 = vmatprep.subr.mxu0 0.0
    %7867 = vmatpush1.msra.mxu0 %v7782
    %7868 = vmatprep.subr.mxu0 0.0
    %7869 = vmatpush1.msra.mxu0 %v7783
    %7870 = vmatprep.subr.mxu0 0.0
    %7871 = vmatpush1.msra.mxu0 %v7784
    %7872 = vmatprep.subr.mxu0 0.0
    %7873 = vmatpush1.msra.mxu0 %v7785
    %7874 = vmatprep.subr.mxu0 0.0
    %7875 = vmatpush1.msra.mxu0 %v7786
    %7876 = vmatprep.subr.mxu0 0.0
    %7877 = vmatpush1.msra.mxu0 %v7787
    %7878 = vmatprep.subr.mxu0 0.0
    %7879 = vmatpush1.msra.mxu0 %v7788
    %7880 = vmatprep.subr.mxu0 0.0
    %7881 = vmatpush1.msra.mxu0 %v7789
    %7882 = vmatprep.subr.mxu0 0.0
    %7883 = vmatpush1.msra.mxu0 %v7790
    %7884 = vmatprep.subr.mxu0 0.0
    %7885 = vmatpush1.msra.mxu0 %v7791
    %7886 = vmatprep.subr.mxu0 0.0
    %7887 = vmatpush1.msra.mxu0 %v7792
    %7888 = vmatprep.subr.mxu0 0.0
    %7889 = vmatpush1.msra.mxu0 %v7793
    %7890 = vmatprep.subr.mxu0 0.0
    %7891 = vmatpush1.msra.mxu0 %v7794
    %7892 = vmatprep.subr.mxu0 0.0
    %7893 = vmatpush1.msra.mxu0 %v7795
    %7894 = vmatprep.subr.mxu0 0.0
    %7895 = vmatpush1.msra.mxu0 %v7796
    %7896 = vmatprep.subr.mxu0 0.0
    %7897 = vmatpush1.msra.mxu0 %v7797
    %7898 = vmatprep.subr.mxu0 0.0
    %7899 = vmatpush1.msra.mxu0 %v7798
    %7900 = vmatprep.subr.mxu0 0.0
    %7901 = vmatpush1.msra.mxu0 %v7799
    %7902 = vmatprep.subr.mxu0 0.0
    %7903 = vmatpush1.msra.mxu0 %v7800
    %7904 = vmatprep.subr.mxu0 0.0
    %7905 = vmatpush1.msra.mxu0 %v7801
    %7906 = vmatprep.subr.mxu0 0.0
    %7907 = vmatpush1.msra.mxu0 %v7802
    %7908 = vmatprep.subr.mxu0 0.0
    %7909 = vmatpush1.msra.mxu0 %v7803
    %7910 = vmatprep.subr.mxu0 0.0
    %7911 = vmatpush1.msra.mxu0 %v7804
    %7912 = vmatprep.subr.mxu0 0.0
    %7913 = vmatpush1.msra.mxu0 %v7805
    %7914 = vmatprep.subr.mxu0 0.0
    %7915 = vmatpush1.msra.mxu0 %v7806
    %7916 = vmatprep.subr.mxu0 0.0
    %7917 = vmatpush1.msra.mxu0 %v7807
    %7918 = vmatprep.subr.mxu0 0.0
    %7919 = vmatpush1.msra.mxu0 %v7808
    %7920 = vmatprep.subr.mxu0 0.0
    %7921 = vmatpush1.msra.mxu0 %v7809
    %7922 = vmatprep.mubr.f32.mxu0 %v7851
    %7923 = vmatmul.mubr.f32.gmra.mrb[0].mxu0 %v7843
    %v7924 = vpop.f32.mrb[0].mxu0
    %v7925 = vadd.f32 %v7833, %v7924
    %v7926 = vpop.f32.mrb[0].mxu0
    %7927 = vdwg.mxu0
    %7928 = vmatprep.subr.mxu0 0.0
    %7929 = vmatpush1.msra.mxu0 %v7810
    %7930 = vmatprep.subr.mxu0 0.0
    %7931 = vmatpush1.msra.mxu0 %v7811
    %7932 = vmatprep.subr.mxu0 0.0
    %7933 = vmatpush1.msra.mxu0 %v7812
    %7934 = vmatprep.subr.mxu0 0.0
    %7935 = vmatpush1.msra.mxu0 %v7813
    %7936 = vmatprep.subr.mxu0 0.0
    %7937 = vmatpush1.msra.mxu0 %v7814
    %7938 = vmatprep.subr.mxu0 0.0
    %7939 = vmatpush1.msra.mxu0 %v7815
    %7940 = vmatprep.subr.mxu0 0.0
    %7941 = vmatpush1.msra.mxu0 %v7816
    %7942 = vmatprep.subr.mxu0 0.0
    %7943 = vmatpush1.msra.mxu0 %v7817
    %7944 = vmatprep.subr.mxu0 0.0
    %7945 = vmatpush1.msra.mxu0 %v7818
    %7946 = vmatprep.subr.mxu0 0.0
    %7947 = vmatpush1.msra.mxu0 %v7819
    %7948 = vmatprep.subr.mxu0 0.0
    %7949 = vmatpush1.msra.mxu0 %v7820
    %7950 = vmatprep.subr.mxu0 0.0
    %7951 = vmatpush1.msra.mxu0 %v7821
    %7952 = vmatprep.subr.mxu0 0.0
    %7953 = vmatpush1.msra.mxu0 %v7822
    %7954 = vmatprep.subr.mxu0 0.0
    %7955 = vmatpush1.msra.mxu0 %v7823
    %7956 = vmatprep.subr.mxu0 0.0
    %7957 = vmatpush1.msra.mxu0 %v7824
    %7958 = vmatprep.subr.mxu0 0.0
    %7959 = vmatpush1.msra.mxu0 %v7825
    %7960 = vmatprep.subr.mxu0 0.0
    %7961 = vmatpush1.msra.mxu0 %v7826
    %7962 = vmatprep.subr.mxu0 0.0
    %7963 = vmatpush1.msra.mxu0 %v7827
    %7964 = vmatprep.subr.mxu0 0.0
    %7965 = vmatpush1.msra.mxu0 0.0
    %7966 = vmatprep.subr.mxu0 0.0
    %7967 = vmatpush1.msra.mxu0 0.0
    %7968 = vmatprep.subr.mxu0 0.0
    %7969 = vmatpush1.msra.mxu0 0.0
    %7970 = vmatprep.subr.mxu0 0.0
    %7971 = vmatpush1.msra.mxu0 0.0
    %7972 = vmatprep.subr.mxu0 0.0
    %7973 = vmatpush1.msra.mxu0 0.0
    %7974 = vmatprep.subr.mxu0 0.0
    %7975 = vmatpush1.msra.mxu0 0.0
    %7976 = vmatprep.subr.mxu0 0.0
    %7977 = vmatpush1.msra.mxu0 0.0
    %7978 = vmatprep.subr.mxu0 0.0
    %7979 = vmatpush1.msra.mxu0 0.0
    %7980 = vmatprep.subr.mxu0 0.0
    %7981 = vmatpush1.msra.mxu0 0.0
    %7982 = vmatprep.subr.mxu0 0.0
    %7983 = vmatpush1.msra.mxu0 0.0
    %7984 = vmatprep.subr.mxu0 0.0
    %7985 = vmatpush1.msra.mxu0 0.0
    %7986 = vmatprep.subr.mxu0 0.0
    %7987 = vmatpush1.msra.mxu0 0.0
    %7988 = vmatprep.subr.mxu0 0.0
    %7989 = vmatpush1.msra.mxu0 0.0
    %7990 = vmatprep.subr.mxu0 0.0
    %7991 = vmatpush1.msra.mxu0 0.0
    %7992 = vmatprep.mubr.f32.mxu0 %v7856
    %7993 = vmatmul.mubr.f32.gmra.mrb[0].mxu0 %v7850
    %v7994 = vpop.f32.mrb[0].mxu0
    %v7995 = vadd.f32 %v7925, %v7994
    %v7996 = vpop.f32.mrb[0].mxu0
    %7997 = vdwg.mxu0
    %v7998 = vmax.f32 %v7995, 0.0
    %v7999 = vld [vmem:[%s8] sm:$0xff]
    %v8000 = vld [vmem:[%s8 + $0x8] sm:$0xff]
    %v8001 = vld [vmem:[%s8 + $0x10] sm:$0xff]
    %v8002 = vld [vmem:[%s8 + $0x18] sm:$0xff]
    %v8003 = vld [vmem:[%s8 + $0x20] sm:$0xff]
    %v8004 = vld [vmem:[%s8 + $0x28] sm:$0xff]
    %v8005 = vld [vmem:[%s8 + $0x30] sm:$0xff]
    %v8006 = vld [vmem:[%s8 + $0x38] sm:$0xff]
    %v8007 = vld [vmem:[%s8 + $0x40] sm:$0xff]
    %v8008 = vld [vmem:[%s8 + $0x48] sm:$0xff]
    %v8009 = vld [vmem:[%s8 + $0x50] sm:$0xff]
    %v8010 = vld [vmem:[%s8 + $0x58] sm:$0xff]
    %v8011 = vld [vmem:[%s8 + $0x60] sm:$0xff]
    %v8012 = vld [vmem:[%s8 + $0x68] sm:$0xff]
    %v8013 = vld [vmem:[%s8 + $0x70] sm:$0xff]
    %v8014 = vld [vmem:[%s9] sm:$0x1]
    %v8016 = vlaneseq
    %v8017 = vshrl.u32 %v8016, 7
    %v8018 = vsub.s32 0, %v8017
    %v8019 = vrot.slane %v8014, %v8018
    %vm8021 = vcmask 982016
    %v8023 = vsel %vm8021, %v7998, 0
    %8025 = vmatprep.subr.mxu0 0.0
    %8026 = vmatpush1.msra.mxu0 %v7999
    %8027 = vmatprep.subr.mxu0 0.0
    %8028 = vmatpush1.msra.mxu0 %v8000
    %8029 = vmatprep.subr.mxu0 0.0
    %8030 = vmatpush1.msra.mxu0 %v8001
    %8031 = vmatprep.subr.mxu0 0.0
    %8032 = vmatpush1.msra.mxu0 %v8002
    %8033 = vmatprep.subr.mxu0 0.0
    %8034 = vmatpush1.msra.mxu0 %v8003
    %8035 = vmatprep.subr.mxu0 0.0
    %8036 = vmatpush1.msra.mxu0 %v8004
    %8037 = vmatprep.subr.mxu0 0.0
    %8038 = vmatpush1.msra.mxu0 %v8005
    %8039 = vmatprep.subr.mxu0 0.0
    %8040 = vmatpush1.msra.mxu0 %v8006
    %8041 = vmatprep.subr.mxu0 0.0
    %8042 = vmatpush1.msra.mxu0 %v8007
    %8043 = vmatprep.subr.mxu0 0.0
    %8044 = vmatpush1.msra.mxu0 %v8008
    %8045 = vmatprep.subr.mxu0 0.0
    %8046 = vmatpush1.msra.mxu0 %v8009
    %8047 = vmatprep.subr.mxu0 0.0
    %8048 = vmatpush1.msra.mxu0 %v8010
    %8049 = vmatprep.subr.mxu0 0.0
    %8050 = vmatpush1.msra.mxu0 %v8011
    %8051 = vmatprep.subr.mxu0 0.0
    %8052 = vmatpush1.msra.mxu0 %v8012
    %8053 = vmatprep.subr.mxu0 0.0
    %8054 = vmatpush1.msra.mxu0 %v8013
    %8055 = vmatprep.subr.mxu0 0.0
    %8056 = vmatpush1.msra.mxu0 0.0
    %8057 = vmatprep.subr.mxu0 0.0
    %8058 = vmatpush1.msra.mxu0 0.0
    %8059 = vmatprep.subr.mxu0 0.0
    %8060 = vmatpush1.msra.mxu0 0.0
    %8061 = vmatprep.subr.mxu0 0.0
    %8062 = vmatpush1.msra.mxu0 0.0
    %8063 = vmatprep.subr.mxu0 0.0
    %8064 = vmatpush1.msra.mxu0 0.0
    %8065 = vmatprep.subr.mxu0 0.0
    %8066 = vmatpush1.msra.mxu0 0.0
    %8067 = vmatprep.subr.mxu0 0.0
    %8068 = vmatpush1.msra.mxu0 0.0
    %8069 = vmatprep.subr.mxu0 0.0
    %8070 = vmatpush1.msra.mxu0 0.0
    %8071 = vmatprep.subr.mxu0 0.0
    %8072 = vmatpush1.msra.mxu0 0.0
    %8073 = vmatprep.subr.mxu0 0.0
    %8074 = vmatpush1.msra.mxu0 0.0
    %8075 = vmatprep.subr.mxu0 0.0
    %8076 = vmatpush1.msra.mxu0 0.0
    %8077 = vmatprep.subr.mxu0 0.0
    %8078 = vmatpush1.msra.mxu0 0.0
    %8079 = vmatprep.subr.mxu0 0.0
    %8080 = vmatpush1.msra.mxu0 0.0
    %8081 = vmatprep.subr.mxu0 0.0
    %8082 = vmatpush1.msra.mxu0 0.0
    %8083 = vmatprep.subr.mxu0 0.0
    %8084 = vmatpush1.msra.mxu0 0.0
    %8085 = vmatprep.subr.mxu0 0.0
    %8086 = vmatpush1.msra.mxu0 0.0
    %8087 = vmatprep.subr.mxu0 0.0
    %8088 = vmatpush1.msra.mxu0 0.0
    %8089 = vmatprep.mubr.f32.mxu0 0.0
    %8090 = vmatmul.mubr.f32.gmra.mrb[0].mxu0 %v8023
    %v8091 = vpop.f32.mrb[0].mxu0
    %v8092 = vadd.f32 %v8019, %v8091
    %v8093 = vpop.f32.mrb[0].mxu0
    %8094 = vdwg.mxu0
    %v8095 = vmax.f32 %v8092, 0.0
    %v8096 = vld [vmem:[%s10] sm:$0xff]
    %v8097 = vld [vmem:[%s10 + $0x8] sm:$0xff]
    %v8098 = vld [vmem:[%s10 + $0x10] sm:$0xff]
    %v8099 = vld [vmem:[%s10 + $0x18] sm:$0xff]
    %v8100 = vld [vmem:[%s10 + $0x20] sm:$0xff]
    %v8101 = vld [vmem:[%s10 + $0x28] sm:$0xff]
    %v8102 = vld [vmem:[%s10 + $0x30] sm:$0xff]
    %v8103 = vld [vmem:[%s10 + $0x38] sm:$0xff]
    %v8104 = vld [vmem:[%s10 + $0x40] sm:$0xff]
    %v8105 = vld [vmem:[%s10 + $0x48] sm:$0xff]
    %v8106 = vld [vmem:[%s10 + $0x50] sm:$0xf]
    %v8107 = vld [vmem:[%s11] sm:$0x1]
    %v8109 = vlaneseq
    %v8110 = vshrl.u32 %v8109, 7
    %v8111 = vsub.s32 0, %v8110
    %v8112 = vrot.slane %v8107, %v8111
    %vm8114 = vcmask 687104
    %v8116 = vsel %vm8114, %v8095, 0
    %vm8118 = vcmask 1043456
    %v8120 = vsel %vm8118, %v8106, 0
    %8122 = vmatprep.subr.mxu0 0.0
    %8123 = vmatpush1.msra.mxu0 %v8096
    %8124 = vmatprep.subr.mxu0 0.0
    %8125 = vmatpush1.msra.mxu0 %v8097
    %8126 = vmatprep.subr.mxu0 0.0
    %8127 = vmatpush1.msra.mxu0 %v8098
    %8128 = vmatprep.subr.mxu0 0.0
    %8129 = vmatpush1.msra.mxu0 %v8099
    %8130 = vmatprep.subr.mxu0 0.0
    %8131 = vmatpush1.msra.mxu0 %v8100
    %8132 = vmatprep.subr.mxu0 0.0
    %8133 = vmatpush1.msra.mxu0 %v8101
    %8134 = vmatprep.subr.mxu0 0.0
    %8135 = vmatpush1.msra.mxu0 %v8102
    %8136 = vmatprep.subr.mxu0 0.0
    %8137 = vmatpush1.msra.mxu0 %v8103
    %8138 = vmatprep.subr.mxu0 0.0
    %8139 = vmatpush1.msra.mxu0 %v8104
    %8140 = vmatprep.subr.mxu0 0.0
    %8141 = vmatpush1.msra.mxu0 %v8105
    %8142 = vmatprep.subr.mxu0 0.0
    %8143 = vmatpush1.msra.mxu0 %v8120
    %8144 = vmatprep.subr.mxu0 0.0
    %8145 = vmatpush1.msra.mxu0 0.0
    %8146 = vmatprep.subr.mxu0 0.0
    %8147 = vmatpush1.msra.mxu0 0.0
    %8148 = vmatprep.subr.mxu0 0.0
    %8149 = vmatpush1.msra.mxu0 0.0
    %8150 = vmatprep.subr.mxu0 0.0
    %8151 = vmatpush1.msra.mxu0 0.0
    %8152 = vmatprep.subr.mxu0 0.0
    %8153 = vmatpush1.msra.mxu0 0.0
    %8154 = vmatprep.subr.mxu0 0.0
    %8155 = vmatpush1.msra.mxu0 0.0
    %8156 = vmatprep.subr.mxu0 0.0
    %8157 = vmatpush1.msra.mxu0 0.0
    %8158 = vmatprep.subr.mxu0 0.0
    %8159 = vmatpush1.msra.mxu0 0.0
    %8160 = vmatprep.subr.mxu0 0.0
    %8161 = vmatpush1.msra.mxu0 0.0
    %8162 = vmatprep.subr.mxu0 0.0
    %8163 = vmatpush1.msra.mxu0 0.0
    %8164 = vmatprep.subr.mxu0 0.0
    %8165 = vmatpush1.msra.mxu0 0.0
    %8166 = vmatprep.subr.mxu0 0.0
    %8167 = vmatpush1.msra.mxu0 0.0
    %8168 = vmatprep.subr.mxu0 0.0
    %8169 = vmatpush1.msra.mxu0 0.0
    %8170 = vmatprep.subr.mxu0 0.0
    %8171 = vmatpush1.msra.mxu0 0.0
    %8172 = vmatprep.subr.mxu0 0.0
    %8173 = vmatpush1.msra.mxu0 0.0
    %8174 = vmatprep.subr.mxu0 0.0
    %8175 = vmatpush1.msra.mxu0 0.0
    %8176 = vmatprep.subr.mxu0 0.0
    %8177 = vmatpush1.msra.mxu0 0.0
    %8178 = vmatprep.subr.mxu0 0.0
    %8179 = vmatpush1.msra.mxu0 0.0
    %8180 = vmatprep.subr.mxu0 0.0
    %8181 = vmatpush1.msra.mxu0 0.0
    %8182 = vmatprep.subr.mxu0 0.0
    %8183 = vmatpush1.msra.mxu0 0.0
    %8184 = vmatprep.subr.mxu0 0.0
    %8185 = vmatpush1.msra.mxu0 0.0
    %8186 = vmatprep.mubr.f32.mxu0 0.0
    %8187 = vmatmul.mubr.f32.gmra.mrb[0].mxu0 %v8116
    %v8188 = vpop.f32.mrb[0].mxu0
    %v8189 = vadd.f32 %v8112, %v8188
    %v8190 = vpop.f32.mrb[0].mxu0
    %8191 = vdwg.mxu0
    %vm8192 = vcmask 74752
    %8193 = vst.msk [vmem:[#allocation4] sm:$0x3] %vm8192, %v8189
    // Predicated region
    $region50: #{lenet_forward.1} parent=1 // pred_check
      _
    $region51: #{lenet_forward.1} parent=1 // pred_check_branch
      %8195 = sbr.rel (0) target = $region53
    $region52: #{lenet_forward.1} parent=1 // pred_region
      %s8197 = ssub.s32 32, 32
      %8198 = vsyncadd [#allocation5], %s8197
      %s8200 = sshll.u32 [#allocation4], 4
      %s8201 = int_to_ptr.vmem [resolvable:$true] %s8200
      %8203 = dma.vmem_to_hbm [thread:$0]  %s8201, 32, %s12, [#allocation5]
    $region53: #{lenet_forward.1} parent=1 // pred_fallthru
      _
    // Predicated region
    $region54: #{lenet_forward.1} parent=1 // pred_check
      _
    $region55: #{lenet_forward.1} parent=1 // pred_check_branch
      %8205 = sbr.rel (0) target = $region57
    $region56: #{lenet_forward.1} parent=1 // pred_region
      %8206 = dma.done [#allocation5], 32
    $region57: #{lenet_forward.1} parent=1 // pred_fallthru
      _
    %8207 = vsyncpa [#allocation5], 1

</llo_original>
